<compile_context>
chip_gen: v6e
topology: v6e:2x2x1
jax: 0.10.0
libtpu: 0.0.40
codegen_flags: <defaults>
</compile_context>

<pallas_src>
import numpy as np
import jax
import jax.numpy as jnp
from jax import lax
from jax.experimental import pallas as pl
from jax.experimental.pallas import tpu as pltpu

BN_EPS = 1e-3

_TAP_ORDER = [(dy, dx) for dy in range(3) for dx in range(3)]


# ---------------------------------------------------------------------------
# Fused conv3x3 + BN (+ residual) + ReLU Pallas kernel
# ---------------------------------------------------------------------------
def _make_fused_kernel(plan, n_phase, TH, Wo, res_mode):
    """plan: static list of (phase_ref_idx, row_offset, col_offset), one entry per tap,
    ordered exactly like the rows of the flattened weight."""
    M = TH * Wo

    def kernel(*refs):
        x_refs = refs[:n_phase]
        i = n_phase
        w_ref, scale_ref, bias_ref = refs[i], refs[i + 1], refs[i + 2]
        i += 3
        if res_mode == "add":
            id_ref = refs[i]; i += 1
        elif res_mode == "down":
            xid_ref, wd_ref, sd_ref, bd_ref = refs[i:i + 4]; i += 4
        out_ref = refs[i]

        row0 = pl.program_id(1) * TH

        # im2col: build one (M, T*Cin) bf16 slab -> a single MXU matmul over K = T*Cin.
        pieces = []
        for (pi, drow, dcol) in plan:
            blk = x_refs[pi][0, pl.ds(row0 + drow, TH), dcol:dcol + Wo, :]   # (TH, Wo, Cin)
            pieces.append(blk.reshape(M, blk.shape[-1]))
        slab = jnp.concatenate(pieces, axis=-1)

        y = jnp.dot(slab, w_ref[...], preferred_element_type=jnp.float32)   # (M, Cout) f32
        y = y * scale_ref[...] + bias_ref[...]                               # folded BN

        if res_mode == "add":            # identity residual
            y = y + id_ref[0].astype(jnp.float32)
        elif res_mode == "down":         # fused 1x1-conv + BN downsample residual
            idn = jnp.dot(xid_ref[0], wd_ref[...], preferred_element_type=jnp.float32)
            y = y + (idn * sd_ref[...] + bd_ref[...])

        y = jnp.maximum(y, 0.0)
        out_ref[0] = y.astype(out_ref.dtype)

    return kernel


def _fused_conv(phase_inputs, plan, w_flat, scale, bias, *, Ho, Wo, Cout,
                res_mode=None, res_args=(), out_dtype=jnp.bfloat16):
    N = phase_inputs[0].shape[0]
    Cin = phase_inputs[0].shape[-1]
    T = len(plan)
    TH = 8 if Ho % 8 == 0 else Ho        # row-strip height (M = TH*Wo rows per matmul)
    assert Ho % TH == 0
    R = Ho // TH
    M = TH * Wo

    kernel = _make_fused_kernel(plan, len(phase_inputs), TH, Wo, res_mode)

    in_specs, args = [], []
    for xph in phase_inputs:             # per-image phase arrays stay resident across r
        _, Hp, Wp, _ = xph.shape
        in_specs.append(pl.BlockSpec((1, Hp, Wp, Cin), lambda n, r: (n, 0, 0, 0)))
        args.append(xph)
    in_specs.append(pl.BlockSpec((T * Cin, Cout), lambda n, r: (0, 0)))
    args.append(w_flat)
    for vec in (scale, bias):
        in_specs.append(pl.BlockSpec((1, Cout), lambda n, r: (0, 0)))
        args.append(vec.reshape(1, Cout).astype(jnp.float32))

    if res_mode == "add":
        (ident,) = res_args                                    # (N, Ho*Wo, Cout) bf16
        in_specs.append(pl.BlockSpec((1, M, Cout), lambda n, r: (n, r, 0)))
        args.append(ident)
    elif res_mode == "down":
        xid, wd, sd, bd = res_args                             # (N, Ho*Wo, Cin), (Cin, Cout)
        Cid = xid.shape[-1]
        in_specs.append(pl.BlockSpec((1, M, Cid), lambda n, r: (n, r, 0)))
        args.append(xid)
        in_specs.append(pl.BlockSpec((Cid, Cout), lambda n, r: (0, 0)))
        args.append(wd)
        for vec in (sd, bd):
            in_specs.append(pl.BlockSpec((1, Cout), lambda n, r: (0, 0)))
            args.append(vec.reshape(1, Cout).astype(jnp.float32))

    out = pl.pallas_call(
        kernel,
        out_shape=jax.ShapeDtypeStruct((N, Ho * Wo, Cout), out_dtype),
        grid=(N, R),
        in_specs=in_specs,
        out_specs=pl.BlockSpec((1, M, Cout), lambda n, r: (n, r, 0)),   # lane-dense slab
        compiler_params=pltpu.CompilerParams(
            dimension_semantics=("parallel", "arbitrary"),
            vmem_limit_bytes=32 * 1024 * 1024,
        ),
    )(*args)
    return out.reshape(N, Ho, Wo, Cout)


# ---------------------------------------------------------------------------
# Glue: weight flattening, tap plans, space-to-depth phases, BN folding
# ---------------------------------------------------------------------------
def _flatten_conv_weight(w_oihw):
    # torch (Cout, Cin, 3, 3) -> (9*Cin, Cout); row order matches _TAP_ORDER / the plan.
    blocks = [jnp.transpose(w_oihw[:, :, dy, dx], (1, 0)) for dy, dx in _TAP_ORDER]
    return jnp.concatenate(blocks, axis=0)


def _build_plan(stride):
    plan = []
    for dy, dx in _TAP_ORDER:
        if stride == 1:
            plan.append((0, dy, dx))
        else:  # stride 2: tap (dy,dx) lives in space-to-depth phase (dy%2, dx%2)
            plan.append(((dy % 2) * 2 + (dx % 2), dy // 2, dx // 2))
    return plan


def _build_phase_inputs(x_nhwc, stride):
    xp = jnp.pad(x_nhwc, ((0, 0), (1, 1), (1, 1), (0, 0)))
    if stride == 1:
        return [xp]
    assert stride == 2, "BasicBlock only uses stride 1 or 2"
    return [xp[:, p::2, q::2, :] for p in range(2) for q in range(2)]


def fold_bn(gamma, beta, mean, var):
    scale = gamma / jnp.sqrt(var + BN_EPS)
    bias = beta - mean * scale
    return scale, bias


# ---------------------------------------------------------------------------
# BasicBlock forward (two fused pallas_calls)
# ---------------------------------------------------------------------------
def basic_block_forward(x_nhwc, p):
    """x_nhwc: (N, H, W, Cin) float32 -> (N, H/s, W/s, planes) float32."""
    stride = p['stride']
    N, H, W, Cin = x_nhwc.shape
    planes = p['conv1_w'].shape[0]
    Ho, Wo = H // stride, W // stride

    x_bf = x_nhwc.astype(jnp.bfloat16)

    # conv1 (stride s) + bn1 + relu
    h = _fused_conv(
        _build_phase_inputs(x_bf, stride), _build_plan(stride),
        _flatten_conv_weight(p['conv1_w']).astype(jnp.bfloat16),
        *fold_bn(*p['bn1']),
        Ho=Ho, Wo=Wo, Cout=planes, out_dtype=jnp.bfloat16)

    # conv2 (stride 1) + bn2 + residual + relu   (residual fused into this kernel)
    w2 = _flatten_conv_weight(p['conv2_w']).astype(jnp.bfloat16)
    s2, b2 = fold_bn(*p['bn2'])
    if 'down_w' in p:   # identity = BN(1x1 stride-s conv(x)), computed in-kernel
        x_sub = x_bf[:, ::stride, ::stride, :].reshape(N, Ho * Wo, Cin)   # exact for 1x1
        wd = jnp.transpose(p['down_w'][:, :, 0, 0], (1, 0)).astype(jnp.bfloat16)
        sd, bd = fold_bn(*p['down_bn'])
        res_mode, res_args = "down", (x_sub, wd, sd, bd)
    else:               # identity = x
        res_mode, res_args = "add", (x_bf.reshape(N, H * W, Cin),)

    out = _fused_conv(
        _build_phase_inputs(h, 1), _build_plan(1), w2, s2, b2,
        Ho=Ho, Wo=Wo, Cout=planes,
        res_mode=res_mode, res_args=res_args, out_dtype=jnp.float32)
    return out


# ---------------------------------------------------------------------------
# Pure-JAX reference (f32 lax conv) for correctness check
# ---------------------------------------------------------------------------
def _ref_conv(x, w_oihw, stride, padding):
    w = jnp.transpose(w_oihw, (2, 3, 1, 0))
    return lax.conv_general_dilated(
        x, w, (stride, stride), ((padding, padding), (padding, padding)),
        dimension_numbers=('NHWC', 'HWIO', 'NHWC'),
        precision=lax.Precision.HIGHEST)


def _ref_bn(y, bn):
    g, b, m, v = bn
    return (y - m) / jnp.sqrt(v + BN_EPS) * g + b


def ref_basic_block(x, p):
    s = p['stride']
    out = jax.nn.relu(_ref_bn(_ref_conv(x, p['conv1_w'], s, 1), p['bn1']))
    out = _ref_bn(_ref_conv(out, p['conv2_w'], 1, 1), p['bn2'])
    ident = x
    if 'down_w' in p:
        ident = _ref_bn(_ref_conv(x, p['down_w'], s, 0), p['down_bn'])
    return jax.nn.relu(out + ident)


# ---------------------------------------------------------------------------
# Deterministic parameter init (shapes from the PyTorch __init__)
# ---------------------------------------------------------------------------
def init_block_params(key, inplanes, planes, stride):
    ks = jax.random.split(key, 6)

    def conv_w(k, cout, cin, ksz):
        std = (2.0 / (cout * ksz * ksz)) ** 0.5          # kaiming_normal, fan_out
        return jax.random.normal(k, (cout, cin, ksz, ksz), jnp.float32) * std

    def bn_params(k, c):                                 # (gamma, beta, mean, var), eval-mode
        k1, k2, k3, k4 = jax.random.split(k, 4)
        return (jax.random.uniform(k1, (c,), jnp.float32, 0.5, 1.5),
                jax.random.normal(k2, (c,), jnp.float32) * 0.1,
                jax.random.normal(k3, (c,), jnp.float32) * 0.1,
                jax.random.uniform(k4, (c,), jnp.float32, 0.5, 1.5))

    p = {'stride': stride,
         'conv1_w': conv_w(ks[0], planes, inplanes, 3), 'bn1': bn_params(ks[1], planes),
         'conv2_w': conv_w(ks[2], planes, planes, 3),   'bn2': bn_params(ks[3], planes)}
    if stride != 1 or inplanes != planes:
        p['down_w'] = conv_w(ks[4], planes, inplanes, 1)
        p['down_bn'] = bn_params(ks[5], planes)
    return p


# ---------------------------------------------------------------------------
if __name__ == "__main__":
    key = jax.random.PRNGKey(0)
    kx, ka, kb = jax.random.split(key, 3)

    # PyTorch-style NCHW input; pcdet's BasicBlock runs at 64 input channels.
    N, C, H, W = 2, 64, 32, 32
    x_nchw = jax.random.normal(kx, (N, C, H, W), jnp.float32)
    x_nhwc = jnp.transpose(x_nchw, (0, 2, 3, 1))

    params_a = init_block_params(ka, inplanes=64, planes=64, stride=1)    # plain residual
    params_b = init_block_params(kb, inplanes=64, planes=128, stride=2)   # strided + downsample

    run = jax.jit(lambda xx: (basic_block_forward(xx, params_a),
                              basic_block_forward(xx, params_b)))
    out_a, out_b = jax.block_until_ready(run(x_nhwc))

    assert out_a.shape == (N, H, W, 64), out_a.shape
    assert out_b.shape == (N, H // 2, W // 2, 128), out_b.shape

    ref_a = ref_basic_block(x_nhwc, params_a)
    ref_b = ref_basic_block(x_nhwc, params_b)
    np.testing.assert_allclose(np.asarray(out_a), np.asarray(ref_a), rtol=5e-2, atol=5e-2)
    np.testing.assert_allclose(np.asarray(out_b), np.asarray(ref_b), rtol=5e-2, atol=5e-2)

    print("KERNEL_OK")
</pallas_src>

<mosaic_0001>
module attributes {stable_mosaic.version = 11 : i64} {
  func.func @kernel(%arg0: i32, %arg1: i32, %arg2: memref<1x17x17x64xbf16, #tpu.memory_space<vmem>>, %arg3: memref<1x17x17x64xbf16, #tpu.memory_space<vmem>>, %arg4: memref<1x17x17x64xbf16, #tpu.memory_space<vmem>>, %arg5: memref<1x17x17x64xbf16, #tpu.memory_space<vmem>>, %arg6: memref<576x128xbf16, #tpu.memory_space<vmem>>, %arg7: memref<1x128xf32, #tpu.memory_space<vmem>>, %arg8: memref<1x128xf32, #tpu.memory_space<vmem>>, %arg9: memref<1x128x128xbf16, #tpu.memory_space<vmem>>) attributes {dimension_semantics = [#tpu.dimension_semantics<parallel>, #tpu.dimension_semantics<arbitrary>], iteration_bounds = array<i64: 2, 2>, scalar_prefetch = 0 : i64, scratch_operands = 0 : i64, tpu.core_type = #tpu.core_type<tc>, window_params = [{transform_indices = @transform_0, window_bounds = array<i64: 1, 17, 17, 64>}, {transform_indices = @transform_1, window_bounds = array<i64: 1, 17, 17, 64>}, {transform_indices = @transform_2, window_bounds = array<i64: 1, 17, 17, 64>}, {transform_indices = @transform_3, window_bounds = array<i64: 1, 17, 17, 64>}, {pipeline_mode = #tpu.pipeline_mode<synchronous>, transform_indices = @transform_4, window_bounds = array<i64: 576, 128>}, {pipeline_mode = #tpu.pipeline_mode<synchronous>, transform_indices = @transform_5, window_bounds = array<i64: 1, 128>}, {pipeline_mode = #tpu.pipeline_mode<synchronous>, transform_indices = @transform_6, window_bounds = array<i64: 1, 128>}, {transform_indices = @transform_7, window_bounds = array<i64: 1, 128, 128>}]} {
    %c8_i32 = arith.constant 8 : i32
    %0 = arith.muli %arg1, %c8_i32 : i32
    %c0_i32 = arith.constant 0 : i32
    %1 = arith.addi %0, %c0_i32 : i32
    %c0 = arith.constant 0 : index
    %2 = arith.index_cast %1 : i32 to index
    %c0_0 = arith.constant 0 : index
    %c0_1 = arith.constant 0 : index
    %3 = vector.load %arg2[%c0, %2, %c0_0, %c0_1] : memref<1x17x17x64xbf16, #tpu.memory_space<vmem>>, vector<1x8x16x64xbf16>
    %4 = vector.shape_cast %3 : vector<1x8x16x64xbf16> to vector<8x16x64xbf16>
    %5 = vector.shape_cast %4 : vector<8x16x64xbf16> to vector<128x64xbf16>
    %c0_i32_2 = arith.constant 0 : i32
    %6 = arith.addi %0, %c0_i32_2 : i32
    %c0_3 = arith.constant 0 : index
    %7 = arith.index_cast %6 : i32 to index
    %c0_4 = arith.constant 0 : index
    %c0_5 = arith.constant 0 : index
    %8 = vector.load %arg3[%c0_3, %7, %c0_4, %c0_5] : memref<1x17x17x64xbf16, #tpu.memory_space<vmem>>, vector<1x8x16x64xbf16>
    %9 = vector.shape_cast %8 : vector<1x8x16x64xbf16> to vector<8x16x64xbf16>
    %10 = vector.shape_cast %9 : vector<8x16x64xbf16> to vector<128x64xbf16>
    %c0_i32_6 = arith.constant 0 : i32
    %11 = arith.addi %0, %c0_i32_6 : i32
    %c0_7 = arith.constant 0 : index
    %12 = arith.index_cast %11 : i32 to index
    %c1 = arith.constant 1 : index
    %c0_8 = arith.constant 0 : index
    %13 = vector.load %arg2[%c0_7, %12, %c1, %c0_8] : memref<1x17x17x64xbf16, #tpu.memory_space<vmem>>, vector<1x8x16x64xbf16>
    %14 = vector.shape_cast %13 : vector<1x8x16x64xbf16> to vector<8x16x64xbf16>
    %15 = vector.shape_cast %14 : vector<8x16x64xbf16> to vector<128x64xbf16>
    %c0_i32_9 = arith.constant 0 : i32
    %16 = arith.addi %0, %c0_i32_9 : i32
    %c0_10 = arith.constant 0 : index
    %17 = arith.index_cast %16 : i32 to index
    %c0_11 = arith.constant 0 : index
    %c0_12 = arith.constant 0 : index
    %18 = vector.load %arg4[%c0_10, %17, %c0_11, %c0_12] : memref<1x17x17x64xbf16, #tpu.memory_space<vmem>>, vector<1x8x16x64xbf16>
    %19 = vector.shape_cast %18 : vector<1x8x16x64xbf16> to vector<8x16x64xbf16>
    %20 = vector.shape_cast %19 : vector<8x16x64xbf16> to vector<128x64xbf16>
    %c0_i32_13 = arith.constant 0 : i32
    %21 = arith.addi %0, %c0_i32_13 : i32
    %c0_14 = arith.constant 0 : index
    %22 = arith.index_cast %21 : i32 to index
    %c0_15 = arith.constant 0 : index
    %c0_16 = arith.constant 0 : index
    %23 = vector.load %arg5[%c0_14, %22, %c0_15, %c0_16] : memref<1x17x17x64xbf16, #tpu.memory_space<vmem>>, vector<1x8x16x64xbf16>
    %24 = vector.shape_cast %23 : vector<1x8x16x64xbf16> to vector<8x16x64xbf16>
    %25 = vector.shape_cast %24 : vector<8x16x64xbf16> to vector<128x64xbf16>
    %c0_i32_17 = arith.constant 0 : i32
    %26 = arith.addi %0, %c0_i32_17 : i32
    %c0_18 = arith.constant 0 : index
    %27 = arith.index_cast %26 : i32 to index
    %c1_19 = arith.constant 1 : index
    %c0_20 = arith.constant 0 : index
    %28 = vector.load %arg4[%c0_18, %27, %c1_19, %c0_20] : memref<1x17x17x64xbf16, #tpu.memory_space<vmem>>, vector<1x8x16x64xbf16>
    %29 = vector.shape_cast %28 : vector<1x8x16x64xbf16> to vector<8x16x64xbf16>
    %30 = vector.shape_cast %29 : vector<8x16x64xbf16> to vector<128x64xbf16>
    %c1_i32 = arith.constant 1 : i32
    %31 = arith.addi %0, %c1_i32 : i32
    %c0_21 = arith.constant 0 : index
    %32 = arith.index_cast %31 : i32 to index
    %c0_22 = arith.constant 0 : index
    %c0_23 = arith.constant 0 : index
    %33 = vector.load %arg2[%c0_21, %32, %c0_22, %c0_23] : memref<1x17x17x64xbf16, #tpu.memory_space<vmem>>, vector<1x8x16x64xbf16>
    %34 = vector.shape_cast %33 : vector<1x8x16x64xbf16> to vector<8x16x64xbf16>
    %35 = vector.shape_cast %34 : vector<8x16x64xbf16> to vector<128x64xbf16>
    %c1_i32_24 = arith.constant 1 : i32
    %36 = arith.addi %0, %c1_i32_24 : i32
    %c0_25 = arith.constant 0 : index
    %37 = arith.index_cast %36 : i32 to index
    %c0_26 = arith.constant 0 : index
    %c0_27 = arith.constant 0 : index
    %38 = vector.load %arg3[%c0_25, %37, %c0_26, %c0_27] : memref<1x17x17x64xbf16, #tpu.memory_space<vmem>>, vector<1x8x16x64xbf16>
    %39 = vector.shape_cast %38 : vector<1x8x16x64xbf16> to vector<8x16x64xbf16>
    %40 = vector.shape_cast %39 : vector<8x16x64xbf16> to vector<128x64xbf16>
    %c1_i32_28 = arith.constant 1 : i32
    %41 = arith.addi %0, %c1_i32_28 : i32
    %c0_29 = arith.constant 0 : index
    %42 = arith.index_cast %41 : i32 to index
    %c1_30 = arith.constant 1 : index
    %c0_31 = arith.constant 0 : index
    %43 = vector.load %arg2[%c0_29, %42, %c1_30, %c0_31] : memref<1x17x17x64xbf16, #tpu.memory_space<vmem>>, vector<1x8x16x64xbf16>
    %44 = vector.shape_cast %43 : vector<1x8x16x64xbf16> to vector<8x16x64xbf16>
    %45 = vector.shape_cast %44 : vector<8x16x64xbf16> to vector<128x64xbf16>
    %46 = tpu.concatenate %5, %10, %15, %20, %25, %30, %35, %40, %45 in 1 : vector<128x64xbf16>, vector<128x64xbf16>, vector<128x64xbf16>, vector<128x64xbf16>, vector<128x64xbf16>, vector<128x64xbf16>, vector<128x64xbf16>, vector<128x64xbf16>, vector<128x64xbf16> -> vector<128x576xbf16>
    %c0_32 = arith.constant 0 : index
    %c0_33 = arith.constant 0 : index
    %47 = vector.load %arg6[%c0_32, %c0_33] : memref<576x128xbf16, #tpu.memory_space<vmem>>, vector<576x128xbf16>
    %cst = arith.constant dense<0.000000e+00> : vector<128x128xf32>
    %48 = tpu.matmul %46, %47, %cst {dimension_numbers = #tpu.dot_dimension_numbers<[1], [0], [0], [1], [0, 0, 1, 1], [], []>} : vector<128x576xbf16>, vector<576x128xbf16>, vector<128x128xf32> -> vector<128x128xf32>
    %c0_34 = arith.constant 0 : index
    %c0_35 = arith.constant 0 : index
    %49 = vector.load %arg7[%c0_34, %c0_35] : memref<1x128xf32, #tpu.memory_space<vmem>>, vector<1x128xf32>
    %50 = vector.broadcast %49 : vector<1x128xf32> to vector<128x128xf32>
    %51 = arith.mulf %48, %50 : vector<128x128xf32>
    %c0_36 = arith.constant 0 : index
    %c0_37 = arith.constant 0 : index
    %52 = vector.load %arg8[%c0_36, %c0_37] : memref<1x128xf32, #tpu.memory_space<vmem>>, vector<1x128xf32>
    %53 = vector.broadcast %52 : vector<1x128xf32> to vector<128x128xf32>
    %54 = arith.addf %51, %53 : vector<128x128xf32>
    %cst_38 = arith.constant 0.000000e+00 : f32
    %55 = vector.broadcast %cst_38 : f32 to vector<128x128xf32>
    %56 = arith.maximumf %54, %55 : vector<128x128xf32>
    %57 = arith.truncf %56 : vector<128x128xf32> to vector<128x128xbf16>
    %c0_39 = arith.constant 0 : index
    %c0_40 = arith.constant 0 : index
    %c0_41 = arith.constant 0 : index
    %58 = vector.load %arg9[%c0_39, %c0_40, %c0_41] : memref<1x128x128xbf16, #tpu.memory_space<vmem>>, vector<1x128x128xbf16>
    %59 = vector.shape_cast %58 : vector<1x128x128xbf16> to vector<128x128xbf16>
    %60 = vector.shape_cast %57 : vector<128x128xbf16> to vector<1x128x128xbf16>
    tpu.vector_store %arg9[%c0_39, %c0_40, %c0_41], %60 {strides = array<i32>} : memref<1x128x128xbf16, #tpu.memory_space<vmem>>, vector<1x128x128xbf16>,
    return
  }
  func.func @transform_0(%arg0: i32, %arg1: i32) -> (i32, i32, i32, i32) {
    %c0_i32 = arith.constant 0 : i32
    %c0_i32_0 = arith.constant 0 : i32
    %c0_i32_1 = arith.constant 0 : i32
    %c0_i32_2 = arith.constant 0 : i32
    return %arg0, %c0_i32, %c0_i32_0, %c0_i32_1 : i32, i32, i32, i32
  }
  func.func @transform_1(%arg0: i32, %arg1: i32) -> (i32, i32, i32, i32) {
    %c0_i32 = arith.constant 0 : i32
    %c0_i32_0 = arith.constant 0 : i32
    %c0_i32_1 = arith.constant 0 : i32
    %c0_i32_2 = arith.constant 0 : i32
    return %arg0, %c0_i32, %c0_i32_0, %c0_i32_1 : i32, i32, i32, i32
  }
  func.func @transform_2(%arg0: i32, %arg1: i32) -> (i32, i32, i32, i32) {
    %c0_i32 = arith.constant 0 : i32
    %c0_i32_0 = arith.constant 0 : i32
    %c0_i32_1 = arith.constant 0 : i32
    %c0_i32_2 = arith.constant 0 : i32
    return %arg0, %c0_i32, %c0_i32_0, %c0_i32_1 : i32, i32, i32, i32
  }
  func.func @transform_3(%arg0: i32, %arg1: i32) -> (i32, i32, i32, i32) {
    %c0_i32 = arith.constant 0 : i32
    %c0_i32_0 = arith.constant 0 : i32
    %c0_i32_1 = arith.constant 0 : i32
    %c0_i32_2 = arith.constant 0 : i32
    return %arg0, %c0_i32, %c0_i32_0, %c0_i32_1 : i32, i32, i32, i32
  }
  func.func @transform_4(%arg0: i32, %arg1: i32) -> (i32, i32) {
    %c0_i32 = arith.constant 0 : i32
    %c0_i32_0 = arith.constant 0 : i32
    %c0_i32_1 = arith.constant 0 : i32
    return %c0_i32, %c0_i32_0 : i32, i32
  }
  func.func @transform_5(%arg0: i32, %arg1: i32) -> (i32, i32) {
    %c0_i32 = arith.constant 0 : i32
    %c0_i32_0 = arith.constant 0 : i32
    %c0_i32_1 = arith.constant 0 : i32
    return %c0_i32, %c0_i32_0 : i32, i32
  }
  func.func @transform_6(%arg0: i32, %arg1: i32) -> (i32, i32) {
    %c0_i32 = arith.constant 0 : i32
    %c0_i32_0 = arith.constant 0 : i32
    %c0_i32_1 = arith.constant 0 : i32
    return %c0_i32, %c0_i32_0 : i32, i32
  }
  func.func @transform_7(%arg0: i32, %arg1: i32) -> (i32, i32, i32) {
    %c0_i32 = arith.constant 0 : i32
    %c0_i32_0 = arith.constant 0 : i32
    return %arg0, %arg1, %c0_i32 : i32, i32, i32
  }
}

module attributes {stable_mosaic.version = 11 : i64} {
  func.func @kernel(%arg0: i32, %arg1: i32, %arg2: memref<1x34x34x64xbf16, #tpu.memory_space<vmem>>, %arg3: memref<576x64xbf16, #tpu.memory_space<vmem>>, %arg4: memref<1x64xf32, #tpu.memory_space<vmem>>, %arg5: memref<1x64xf32, #tpu.memory_space<vmem>>, %arg6: memref<1x256x64xbf16, #tpu.memory_space<vmem>>) attributes {dimension_semantics = [#tpu.dimension_semantics<parallel>, #tpu.dimension_semantics<arbitrary>], iteration_bounds = array<i64: 2, 4>, scalar_prefetch = 0 : i64, scratch_operands = 0 : i64, tpu.core_type = #tpu.core_type<tc>, window_params = [{transform_indices = @transform_0, window_bounds = array<i64: 1, 34, 34, 64>}, {pipeline_mode = #tpu.pipeline_mode<synchronous>, transform_indices = @transform_1, window_bounds = array<i64: 576, 64>}, {pipeline_mode = #tpu.pipeline_mode<synchronous>, transform_indices = @transform_2, window_bounds = array<i64: 1, 64>}, {pipeline_mode = #tpu.pipeline_mode<synchronous>, transform_indices = @transform_3, window_bounds = array<i64: 1, 64>}, {transform_indices = @transform_4, window_bounds = array<i64: 1, 256, 64>}]} {
    %c8_i32 = arith.constant 8 : i32
    %0 = arith.muli %arg1, %c8_i32 : i32
    %c0_i32 = arith.constant 0 : i32
    %1 = arith.addi %0, %c0_i32 : i32
    %c0 = arith.constant 0 : index
    %2 = arith.index_cast %1 : i32 to index
    %c0_0 = arith.constant 0 : index
    %c0_1 = arith.constant 0 : index
    %3 = vector.load %arg2[%c0, %2, %c0_0, %c0_1] : memref<1x34x34x64xbf16, #tpu.memory_space<vmem>>, vector<1x8x32x64xbf16>
    %4 = vector.shape_cast %3 : vector<1x8x32x64xbf16> to vector<8x32x64xbf16>
    %5 = vector.shape_cast %4 : vector<8x32x64xbf16> to vector<256x64xbf16>
    %c0_i32_2 = arith.constant 0 : i32
    %6 = arith.addi %0, %c0_i32_2 : i32
    %c0_3 = arith.constant 0 : index
    %7 = arith.index_cast %6 : i32 to index
    %c1 = arith.constant 1 : index
    %c0_4 = arith.constant 0 : index
    %8 = vector.load %arg2[%c0_3, %7, %c1, %c0_4] : memref<1x34x34x64xbf16, #tpu.memory_space<vmem>>, vector<1x8x32x64xbf16>
    %9 = vector.shape_cast %8 : vector<1x8x32x64xbf16> to vector<8x32x64xbf16>
    %10 = vector.shape_cast %9 : vector<8x32x64xbf16> to vector<256x64xbf16>
    %c0_i32_5 = arith.constant 0 : i32
    %11 = arith.addi %0, %c0_i32_5 : i32
    %c0_6 = arith.constant 0 : index
    %12 = arith.index_cast %11 : i32 to index
    %c2 = arith.constant 2 : index
    %c0_7 = arith.constant 0 : index
    %13 = vector.load %arg2[%c0_6, %12, %c2, %c0_7] : memref<1x34x34x64xbf16, #tpu.memory_space<vmem>>, vector<1x8x32x64xbf16>
    %14 = vector.shape_cast %13 : vector<1x8x32x64xbf16> to vector<8x32x64xbf16>
    %15 = vector.shape_cast %14 : vector<8x32x64xbf16> to vector<256x64xbf16>
    %c1_i32 = arith.constant 1 : i32
    %16 = arith.addi %0, %c1_i32 : i32
    %c0_8 = arith.constant 0 : index
    %17 = arith.index_cast %16 : i32 to index
    %c0_9 = arith.constant 0 : index
    %c0_10 = arith.constant 0 : index
    %18 = vector.load %arg2[%c0_8, %17, %c0_9, %c0_10] : memref<1x34x34x64xbf16, #tpu.memory_space<vmem>>, vector<1x8x32x64xbf16>
    %19 = vector.shape_cast %18 : vector<1x8x32x64xbf16> to vector<8x32x64xbf16>
    %20 = vector.shape_cast %19 : vector<8x32x64xbf16> to vector<256x64xbf16>
    %c1_i32_11 = arith.constant 1 : i32
    %21 = arith.addi %0, %c1_i32_11 : i32
    %c0_12 = arith.constant 0 : index
    %22 = arith.index_cast %21 : i32 to index
    %c1_13 = arith.constant 1 : index
    %c0_14 = arith.constant 0 : index
    %23 = vector.load %arg2[%c0_12, %22, %c1_13, %c0_14] : memref<1x34x34x64xbf16, #tpu.memory_space<vmem>>, vector<1x8x32x64xbf16>
    %24 = vector.shape_cast %23 : vector<1x8x32x64xbf16> to vector<8x32x64xbf16>
    %25 = vector.shape_cast %24 : vector<8x32x64xbf16> to vector<256x64xbf16>
    %c1_i32_15 = arith.constant 1 : i32
    %26 = arith.addi %0, %c1_i32_15 : i32
    %c0_16 = arith.constant 0 : index
    %27 = arith.index_cast %26 : i32 to index
    %c2_17 = arith.constant 2 : index
    %c0_18 = arith.constant 0 : index
    %28 = vector.load %arg2[%c0_16, %27, %c2_17, %c0_18] : memref<1x34x34x64xbf16, #tpu.memory_space<vmem>>, vector<1x8x32x64xbf16>
    %29 = vector.shape_cast %28 : vector<1x8x32x64xbf16> to vector<8x32x64xbf16>
    %30 = vector.shape_cast %29 : vector<8x32x64xbf16> to vector<256x64xbf16>
    %c2_i32 = arith.constant 2 : i32
    %31 = arith.addi %0, %c2_i32 : i32
    %c0_19 = arith.constant 0 : index
    %32 = arith.index_cast %31 : i32 to index
    %c0_20 = arith.constant 0 : index
    %c0_21 = arith.constant 0 : index
    %33 = vector.load %arg2[%c0_19, %32, %c0_20, %c0_21] : memref<1x34x34x64xbf16, #tpu.memory_space<vmem>>, vector<1x8x32x64xbf16>
    %34 = vector.shape_cast %33 : vector<1x8x32x64xbf16> to vector<8x32x64xbf16>
    %35 = vector.shape_cast %34 : vector<8x32x64xbf16> to vector<256x64xbf16>
    %c2_i32_22 = arith.constant 2 : i32
    %36 = arith.addi %0, %c2_i32_22 : i32
    %c0_23 = arith.constant 0 : index
    %37 = arith.index_cast %36 : i32 to index
    %c1_24 = arith.constant 1 : index
    %c0_25 = arith.constant 0 : index
    %38 = vector.load %arg2[%c0_23, %37, %c1_24, %c0_25] : memref<1x34x34x64xbf16, #tpu.memory_space<vmem>>, vector<1x8x32x64xbf16>
    %39 = vector.shape_cast %38 : vector<1x8x32x64xbf16> to vector<8x32x64xbf16>
    %40 = vector.shape_cast %39 : vector<8x32x64xbf16> to vector<256x64xbf16>
    %c2_i32_26 = arith.constant 2 : i32
    %41 = arith.addi %0, %c2_i32_26 : i32
    %c0_27 = arith.constant 0 : index
    %42 = arith.index_cast %41 : i32 to index
    %c2_28 = arith.constant 2 : index
    %c0_29 = arith.constant 0 : index
    %43 = vector.load %arg2[%c0_27, %42, %c2_28, %c0_29] : memref<1x34x34x64xbf16, #tpu.memory_space<vmem>>, vector<1x8x32x64xbf16>
    %44 = vector.shape_cast %43 : vector<1x8x32x64xbf16> to vector<8x32x64xbf16>
    %45 = vector.shape_cast %44 : vector<8x32x64xbf16> to vector<256x64xbf16>
    %46 = tpu.concatenate %5, %10, %15, %20, %25, %30, %35, %40, %45 in 1 : vector<256x64xbf16>, vector<256x64xbf16>, vector<256x64xbf16>, vector<256x64xbf16>, vector<256x64xbf16>, vector<256x64xbf16>, vector<256x64xbf16>, vector<256x64xbf16>, vector<256x64xbf16> -> vector<256x576xbf16>
    %c0_30 = arith.constant 0 : index
    %c0_31 = arith.constant 0 : index
    %47 = vector.load %arg3[%c0_30, %c0_31] : memref<576x64xbf16, #tpu.memory_space<vmem>>, vector<576x64xbf16>
    %cst = arith.constant dense<0.000000e+00> : vector<256x64xf32>
    %48 = tpu.matmul %46, %47, %cst {dimension_numbers = #tpu.dot_dimension_numbers<[1], [0], [0], [1], [0, 0, 1, 1], [], []>} : vector<256x576xbf16>, vector<576x64xbf16>, vector<256x64xf32> -> vector<256x64xf32>
    %c0_32 = arith.constant 0 : index
    %c0_33 = arith.constant 0 : index
    %49 = vector.load %arg4[%c0_32, %c0_33] : memref<1x64xf32, #tpu.memory_space<vmem>>, vector<1x64xf32>
    %50 = vector.broadcast %49 : vector<1x64xf32> to vector<256x64xf32>
    %51 = arith.mulf %48, %50 : vector<256x64xf32>
    %c0_34 = arith.constant 0 : index
    %c0_35 = arith.constant 0 : index
    %52 = vector.load %arg5[%c0_34, %c0_35] : memref<1x64xf32, #tpu.memory_space<vmem>>, vector<1x64xf32>
    %53 = vector.broadcast %52 : vector<1x64xf32> to vector<256x64xf32>
    %54 = arith.addf %51, %53 : vector<256x64xf32>
    %cst_36 = arith.constant 0.000000e+00 : f32
    %55 = vector.broadcast %cst_36 : f32 to vector<256x64xf32>
    %56 = arith.maximumf %54, %55 : vector<256x64xf32>
    %57 = arith.truncf %56 : vector<256x64xf32> to vector<256x64xbf16>
    %c0_37 = arith.constant 0 : index
    %c0_38 = arith.constant 0 : index
    %c0_39 = arith.constant 0 : index
    %58 = vector.load %arg6[%c0_37, %c0_38, %c0_39] : memref<1x256x64xbf16, #tpu.memory_space<vmem>>, vector<1x256x64xbf16>
    %59 = vector.shape_cast %58 : vector<1x256x64xbf16> to vector<256x64xbf16>
    %60 = vector.shape_cast %57 : vector<256x64xbf16> to vector<1x256x64xbf16>
    tpu.vector_store %arg6[%c0_37, %c0_38, %c0_39], %60 {strides = array<i32>} : memref<1x256x64xbf16, #tpu.memory_space<vmem>>, vector<1x256x64xbf16>,
    return
  }
  func.func @transform_0(%arg0: i32, %arg1: i32) -> (i32, i32, i32, i32) {
    %c0_i32 = arith.constant 0 : i32
    %c0_i32_0 = arith.constant 0 : i32
    %c0_i32_1 = arith.constant 0 : i32
    %c0_i32_2 = arith.constant 0 : i32
    return %arg0, %c0_i32, %c0_i32_0, %c0_i32_1 : i32, i32, i32, i32
  }
  func.func @transform_1(%arg0: i32, %arg1: i32) -> (i32, i32) {
    %c0_i32 = arith.constant 0 : i32
    %c0_i32_0 = arith.constant 0 : i32
    %c0_i32_1 = arith.constant 0 : i32
    return %c0_i32, %c0_i32_0 : i32, i32
  }
  func.func @transform_2(%arg0: i32, %arg1: i32) -> (i32, i32) {
    %c0_i32 = arith.constant 0 : i32
    %c0_i32_0 = arith.constant 0 : i32
    %c0_i32_1 = arith.constant 0 : i32
    return %c0_i32, %c0_i32_0 : i32, i32
  }
  func.func @transform_3(%arg0: i32, %arg1: i32) -> (i32, i32) {
    %c0_i32 = arith.constant 0 : i32
    %c0_i32_0 = arith.constant 0 : i32
    %c0_i32_1 = arith.constant 0 : i32
    return %c0_i32, %c0_i32_0 : i32, i32
  }
  func.func @transform_4(%arg0: i32, %arg1: i32) -> (i32, i32, i32) {
    %c0_i32 = arith.constant 0 : i32
    %c0_i32_0 = arith.constant 0 : i32
    return %arg0, %arg1, %c0_i32 : i32, i32, i32
  }
}

module attributes {stable_mosaic.version = 11 : i64} {
  func.func @kernel(%arg0: i32, %arg1: i32, %arg2: memref<1x18x18x128xbf16, #tpu.memory_space<vmem>>, %arg3: memref<1152x128xbf16, #tpu.memory_space<vmem>>, %arg4: memref<1x128xf32, #tpu.memory_space<vmem>>, %arg5: memref<1x128xf32, #tpu.memory_space<vmem>>, %arg6: memref<1x128x64xbf16, #tpu.memory_space<vmem>>, %arg7: memref<64x128xbf16, #tpu.memory_space<vmem>>, %arg8: memref<1x128xf32, #tpu.memory_space<vmem>>, %arg9: memref<1x128xf32, #tpu.memory_space<vmem>>, %arg10: memref<1x128x128xf32, #tpu.memory_space<vmem>>) attributes {dimension_semantics = [#tpu.dimension_semantics<parallel>, #tpu.dimension_semantics<arbitrary>], iteration_bounds = array<i64: 2, 2>, scalar_prefetch = 0 : i64, scratch_operands = 0 : i64, tpu.core_type = #tpu.core_type<tc>, window_params = [{transform_indices = @transform_0, window_bounds = array<i64: 1, 18, 18, 128>}, {pipeline_mode = #tpu.pipeline_mode<synchronous>, transform_indices = @transform_1, window_bounds = array<i64: 1152, 128>}, {pipeline_mode = #tpu.pipeline_mode<synchronous>, transform_indices = @transform_2, window_bounds = array<i64: 1, 128>}, {pipeline_mode = #tpu.pipeline_mode<synchronous>, transform_indices = @transform_3, window_bounds = array<i64: 1, 128>}, {transform_indices = @transform_4, window_bounds = array<i64: 1, 128, 64>}, {pipeline_mode = #tpu.pipeline_mode<synchronous>, transform_indices = @transform_5, window_bounds = array<i64: 64, 128>}, {pipeline_mode = #tpu.pipeline_mode<synchronous>, transform_indices = @transform_6, window_bounds = array<i64: 1, 128>}, {pipeline_mode = #tpu.pipeline_mode<synchronous>, transform_indices = @transform_7, window_bounds = array<i64: 1, 128>}, {transform_indices = @transform_8, window_bounds = array<i64: 1, 128, 128>}]} {
    %c8_i32 = arith.constant 8 : i32
    %0 = arith.muli %arg1, %c8_i32 : i32
    %c0_i32 = arith.constant 0 : i32
    %1 = arith.addi %0, %c0_i32 : i32
    %c0 = arith.constant 0 : index
    %2 = arith.index_cast %1 : i32 to index
    %c0_0 = arith.constant 0 : index
    %c0_1 = arith.constant 0 : index
    %3 = vector.load %arg2[%c0, %2, %c0_0, %c0_1] : memref<1x18x18x128xbf16, #tpu.memory_space<vmem>>, vector<1x8x16x128xbf16>
    %4 = vector.shape_cast %3 : vector<1x8x16x128xbf16> to vector<8x16x128xbf16>
    %5 = vector.shape_cast %4 : vector<8x16x128xbf16> to vector<128x128xbf16>
    %c0_i32_2 = arith.constant 0 : i32
    %6 = arith.addi %0, %c0_i32_2 : i32
    %c0_3 = arith.constant 0 : index
    %7 = arith.index_cast %6 : i32 to index
    %c1 = arith.constant 1 : index
    %c0_4 = arith.constant 0 : index
    %8 = vector.load %arg2[%c0_3, %7, %c1, %c0_4] : memref<1x18x18x128xbf16, #tpu.memory_space<vmem>>, vector<1x8x16x128xbf16>
    %9 = vector.shape_cast %8 : vector<1x8x16x128xbf16> to vector<8x16x128xbf16>
    %10 = vector.shape_cast %9 : vector<8x16x128xbf16> to vector<128x128xbf16>
    %c0_i32_5 = arith.constant 0 : i32
    %11 = arith.addi %0, %c0_i32_5 : i32
    %c0_6 = arith.constant 0 : index
    %12 = arith.index_cast %11 : i32 to index
    %c2 = arith.constant 2 : index
    %c0_7 = arith.constant 0 : index
    %13 = vector.load %arg2[%c0_6, %12, %c2, %c0_7] : memref<1x18x18x128xbf16, #tpu.memory_space<vmem>>, vector<1x8x16x128xbf16>
    %14 = vector.shape_cast %13 : vector<1x8x16x128xbf16> to vector<8x16x128xbf16>
    %15 = vector.shape_cast %14 : vector<8x16x128xbf16> to vector<128x128xbf16>
    %c1_i32 = arith.constant 1 : i32
    %16 = arith.addi %0, %c1_i32 : i32
    %c0_8 = arith.constant 0 : index
    %17 = arith.index_cast %16 : i32 to index
    %c0_9 = arith.constant 0 : index
    %c0_10 = arith.constant 0 : index
    %18 = vector.load %arg2[%c0_8, %17, %c0_9, %c0_10] : memref<1x18x18x128xbf16, #tpu.memory_space<vmem>>, vector<1x8x16x128xbf16>
    %19 = vector.shape_cast %18 : vector<1x8x16x128xbf16> to vector<8x16x128xbf16>
    %20 = vector.shape_cast %19 : vector<8x16x128xbf16> to vector<128x128xbf16>
    %c1_i32_11 = arith.constant 1 : i32
    %21 = arith.addi %0, %c1_i32_11 : i32
    %c0_12 = arith.constant 0 : index
    %22 = arith.index_cast %21 : i32 to index
    %c1_13 = arith.constant 1 : index
    %c0_14 = arith.constant 0 : index
    %23 = vector.load %arg2[%c0_12, %22, %c1_13, %c0_14] : memref<1x18x18x128xbf16, #tpu.memory_space<vmem>>, vector<1x8x16x128xbf16>
    %24 = vector.shape_cast %23 : vector<1x8x16x128xbf16> to vector<8x16x128xbf16>
    %25 = vector.shape_cast %24 : vector<8x16x128xbf16> to vector<128x128xbf16>
    %c1_i32_15 = arith.constant 1 : i32
    %26 = arith.addi %0, %c1_i32_15 : i32
    %c0_16 = arith.constant 0 : index
    %27 = arith.index_cast %26 : i32 to index
    %c2_17 = arith.constant 2 : index
    %c0_18 = arith.constant 0 : index
    %28 = vector.load %arg2[%c0_16, %27, %c2_17, %c0_18] : memref<1x18x18x128xbf16, #tpu.memory_space<vmem>>, vector<1x8x16x128xbf16>
    %29 = vector.shape_cast %28 : vector<1x8x16x128xbf16> to vector<8x16x128xbf16>
    %30 = vector.shape_cast %29 : vector<8x16x128xbf16> to vector<128x128xbf16>
    %c2_i32 = arith.constant 2 : i32
    %31 = arith.addi %0, %c2_i32 : i32
    %c0_19 = arith.constant 0 : index
    %32 = arith.index_cast %31 : i32 to index
    %c0_20 = arith.constant 0 : index
    %c0_21 = arith.constant 0 : index
    %33 = vector.load %arg2[%c0_19, %32, %c0_20, %c0_21] : memref<1x18x18x128xbf16, #tpu.memory_space<vmem>>, vector<1x8x16x128xbf16>
    %34 = vector.shape_cast %33 : vector<1x8x16x128xbf16> to vector<8x16x128xbf16>
    %35 = vector.shape_cast %34 : vector<8x16x128xbf16> to vector<128x128xbf16>
    %c2_i32_22 = arith.constant 2 : i32
    %36 = arith.addi %0, %c2_i32_22 : i32
    %c0_23 = arith.constant 0 : index
    %37 = arith.index_cast %36 : i32 to index
    %c1_24 = arith.constant 1 : index
    %c0_25 = arith.constant 0 : index
    %38 = vector.load %arg2[%c0_23, %37, %c1_24, %c0_25] : memref<1x18x18x128xbf16, #tpu.memory_space<vmem>>, vector<1x8x16x128xbf16>
    %39 = vector.shape_cast %38 : vector<1x8x16x128xbf16> to vector<8x16x128xbf16>
    %40 = vector.shape_cast %39 : vector<8x16x128xbf16> to vector<128x128xbf16>
    %c2_i32_26 = arith.constant 2 : i32
    %41 = arith.addi %0, %c2_i32_26 : i32
    %c0_27 = arith.constant 0 : index
    %42 = arith.index_cast %41 : i32 to index
    %c2_28 = arith.constant 2 : index
    %c0_29 = arith.constant 0 : index
    %43 = vector.load %arg2[%c0_27, %42, %c2_28, %c0_29] : memref<1x18x18x128xbf16, #tpu.memory_space<vmem>>, vector<1x8x16x128xbf16>
    %44 = vector.shape_cast %43 : vector<1x8x16x128xbf16> to vector<8x16x128xbf16>
    %45 = vector.shape_cast %44 : vector<8x16x128xbf16> to vector<128x128xbf16>
    %46 = tpu.concatenate %5, %10, %15, %20, %25, %30, %35, %40, %45 in 1 : vector<128x128xbf16>, vector<128x128xbf16>, vector<128x128xbf16>, vector<128x128xbf16>, vector<128x128xbf16>, vector<128x128xbf16>, vector<128x128xbf16>, vector<128x128xbf16>, vector<128x128xbf16> -> vector<128x1152xbf16>
    %c0_30 = arith.constant 0 : index
    %c0_31 = arith.constant 0 : index
    %47 = vector.load %arg3[%c0_30, %c0_31] : memref<1152x128xbf16, #tpu.memory_space<vmem>>, vector<1152x128xbf16>
    %cst = arith.constant dense<0.000000e+00> : vector<128x128xf32>
    %48 = tpu.matmul %46, %47, %cst {dimension_numbers = #tpu.dot_dimension_numbers<[1], [0], [0], [1], [0, 0, 1, 1], [], []>} : vector<128x1152xbf16>, vector<1152x128xbf16>, vector<128x128xf32> -> vector<128x128xf32>
    %c0_32 = arith.constant 0 : index
    %c0_33 = arith.constant 0 : index
    %49 = vector.load %arg4[%c0_32, %c0_33] : memref<1x128xf32, #tpu.memory_space<vmem>>, vector<1x128xf32>
    %50 = vector.broadcast %49 : vector<1x128xf32> to vector<128x128xf32>
    %51 = arith.mulf %48, %50 : vector<128x128xf32>
    %c0_34 = arith.constant 0 : index
    %c0_35 = arith.constant 0 : index
    %52 = vector.load %arg5[%c0_34, %c0_35] : memref<1x128xf32, #tpu.memory_space<vmem>>, vector<1x128xf32>
    %53 = vector.broadcast %52 : vector<1x128xf32> to vector<128x128xf32>
    %54 = arith.addf %51, %53 : vector<128x128xf32>
    %c0_36 = arith.constant 0 : index
    %c0_37 = arith.constant 0 : index
    %c0_38 = arith.constant 0 : index
    %55 = vector.load %arg6[%c0_36, %c0_37, %c0_38] : memref<1x128x64xbf16, #tpu.memory_space<vmem>>, vector<1x128x64xbf16>
    %56 = vector.shape_cast %55 : vector<1x128x64xbf16> to vector<128x64xbf16>
    %c0_39 = arith.constant 0 : index
    %c0_40 = arith.constant 0 : index
    %57 = vector.load %arg7[%c0_39, %c0_40] : memref<64x128xbf16, #tpu.memory_space<vmem>>, vector<64x128xbf16>
    %cst_41 = arith.constant dense<0.000000e+00> : vector<128x128xf32>
    %58 = tpu.matmul %56, %57, %cst_41 {dimension_numbers = #tpu.dot_dimension_numbers<[1], [0], [0], [1], [0, 0, 1, 1], [], []>} : vector<128x64xbf16>, vector<64x128xbf16>, vector<128x128xf32> -> vector<128x128xf32>
    %c0_42 = arith.constant 0 : index
    %c0_43 = arith.constant 0 : index
    %59 = vector.load %arg8[%c0_42, %c0_43] : memref<1x128xf32, #tpu.memory_space<vmem>>, vector<1x128xf32>
    %60 = vector.broadcast %59 : vector<1x128xf32> to vector<128x128xf32>
    %61 = arith.mulf %58, %60 : vector<128x128xf32>
    %c0_44 = arith.constant 0 : index
    %c0_45 = arith.constant 0 : index
    %62 = vector.load %arg9[%c0_44, %c0_45] : memref<1x128xf32, #tpu.memory_space<vmem>>, vector<1x128xf32>
    %63 = vector.broadcast %62 : vector<1x128xf32> to vector<128x128xf32>
    %64 = arith.addf %61, %63 : vector<128x128xf32>
    %65 = arith.addf %54, %64 : vector<128x128xf32>
    %cst_46 = arith.constant 0.000000e+00 : f32
    %66 = vector.broadcast %cst_46 : f32 to vector<128x128xf32>
    %67 = arith.maximumf %65, %66 : vector<128x128xf32>
    %c0_47 = arith.constant 0 : index
    %c0_48 = arith.constant 0 : index
    %c0_49 = arith.constant 0 : index
    %68 = vector.load %arg10[%c0_47, %c0_48, %c0_49] : memref<1x128x128xf32, #tpu.memory_space<vmem>>, vector<1x128x128xf32>
    %69 = vector.shape_cast %68 : vector<1x128x128xf32> to vector<128x128xf32>
    %70 = vector.shape_cast %67 : vector<128x128xf32> to vector<1x128x128xf32>
    tpu.vector_store %arg10[%c0_47, %c0_48, %c0_49], %70 {strides = array<i32>} : memref<1x128x128xf32, #tpu.memory_space<vmem>>, vector<1x128x128xf32>,
    return
  }
  func.func @transform_0(%arg0: i32, %arg1: i32) -> (i32, i32, i32, i32) {
    %c0_i32 = arith.constant 0 : i32
    %c0_i32_0 = arith.constant 0 : i32
    %c0_i32_1 = arith.constant 0 : i32
    %c0_i32_2 = arith.constant 0 : i32
    return %arg0, %c0_i32, %c0_i32_0, %c0_i32_1 : i32, i32, i32, i32
  }
  func.func @transform_1(%arg0: i32, %arg1: i32) -> (i32, i32) {
    %c0_i32 = arith.constant 0 : i32
    %c0_i32_0 = arith.constant 0 : i32
    %c0_i32_1 = arith.constant 0 : i32
    return %c0_i32, %c0_i32_0 : i32, i32
  }
  func.func @transform_2(%arg0: i32, %arg1: i32) -> (i32, i32) {
    %c0_i32 = arith.constant 0 : i32
    %c0_i32_0 = arith.constant 0 : i32
    %c0_i32_1 = arith.constant 0 : i32
    return %c0_i32, %c0_i32_0 : i32, i32
  }
  func.func @transform_3(%arg0: i32, %arg1: i32) -> (i32, i32) {
    %c0_i32 = arith.constant 0 : i32
    %c0_i32_0 = arith.constant 0 : i32
    %c0_i32_1 = arith.constant 0 : i32
    return %c0_i32, %c0_i32_0 : i32, i32
  }
  func.func @transform_4(%arg0: i32, %arg1: i32) -> (i32, i32, i32) {
    %c0_i32 = arith.constant 0 : i32
    %c0_i32_0 = arith.constant 0 : i32
    return %arg0, %arg1, %c0_i32 : i32, i32, i32
  }
  func.func @transform_5(%arg0: i32, %arg1: i32) -> (i32, i32) {
    %c0_i32 = arith.constant 0 : i32
    %c0_i32_0 = arith.constant 0 : i32
    %c0_i32_1 = arith.constant 0 : i32
    return %c0_i32, %c0_i32_0 : i32, i32
  }
  func.func @transform_6(%arg0: i32, %arg1: i32) -> (i32, i32) {
    %c0_i32 = arith.constant 0 : i32
    %c0_i32_0 = arith.constant 0 : i32
    %c0_i32_1 = arith.constant 0 : i32
    return %c0_i32, %c0_i32_0 : i32, i32
  }
  func.func @transform_7(%arg0: i32, %arg1: i32) -> (i32, i32) {
    %c0_i32 = arith.constant 0 : i32
    %c0_i32_0 = arith.constant 0 : i32
    %c0_i32_1 = arith.constant 0 : i32
    return %c0_i32, %c0_i32_0 : i32, i32
  }
  func.func @transform_8(%arg0: i32, %arg1: i32) -> (i32, i32, i32) {
    %c0_i32 = arith.constant 0 : i32
    %c0_i32_0 = arith.constant 0 : i32
    return %arg0, %arg1, %c0_i32 : i32, i32, i32
  }
}

module attributes {stable_mosaic.version = 11 : i64} {
  func.func @kernel(%arg0: i32, %arg1: i32, %arg2: memref<1x34x34x64xbf16, #tpu.memory_space<vmem>>, %arg3: memref<576x64xbf16, #tpu.memory_space<vmem>>, %arg4: memref<1x64xf32, #tpu.memory_space<vmem>>, %arg5: memref<1x64xf32, #tpu.memory_space<vmem>>, %arg6: memref<1x256x64xbf16, #tpu.memory_space<vmem>>, %arg7: memref<1x256x64xf32, #tpu.memory_space<vmem>>) attributes {dimension_semantics = [#tpu.dimension_semantics<parallel>, #tpu.dimension_semantics<arbitrary>], iteration_bounds = array<i64: 2, 4>, scalar_prefetch = 0 : i64, scratch_operands = 0 : i64, tpu.core_type = #tpu.core_type<tc>, window_params = [{transform_indices = @transform_0, window_bounds = array<i64: 1, 34, 34, 64>}, {pipeline_mode = #tpu.pipeline_mode<synchronous>, transform_indices = @transform_1, window_bounds = array<i64: 576, 64>}, {pipeline_mode = #tpu.pipeline_mode<synchronous>, transform_indices = @transform_2, window_bounds = array<i64: 1, 64>}, {pipeline_mode = #tpu.pipeline_mode<synchronous>, transform_indices = @transform_3, window_bounds = array<i64: 1, 64>}, {transform_indices = @transform_4, window_bounds = array<i64: 1, 256, 64>}, {transform_indices = @transform_5, window_bounds = array<i64: 1, 256, 64>}]} {
    %c8_i32 = arith.constant 8 : i32
    %0 = arith.muli %arg1, %c8_i32 : i32
    %c0_i32 = arith.constant 0 : i32
    %1 = arith.addi %0, %c0_i32 : i32
    %c0 = arith.constant 0 : index
    %2 = arith.index_cast %1 : i32 to index
    %c0_0 = arith.constant 0 : index
    %c0_1 = arith.constant 0 : index
    %3 = vector.load %arg2[%c0, %2, %c0_0, %c0_1] : memref<1x34x34x64xbf16, #tpu.memory_space<vmem>>, vector<1x8x32x64xbf16>
    %4 = vector.shape_cast %3 : vector<1x8x32x64xbf16> to vector<8x32x64xbf16>
    %5 = vector.shape_cast %4 : vector<8x32x64xbf16> to vector<256x64xbf16>
    %c0_i32_2 = arith.constant 0 : i32
    %6 = arith.addi %0, %c0_i32_2 : i32
    %c0_3 = arith.constant 0 : index
    %7 = arith.index_cast %6 : i32 to index
    %c1 = arith.constant 1 : index
    %c0_4 = arith.constant 0 : index
    %8 = vector.load %arg2[%c0_3, %7, %c1, %c0_4] : memref<1x34x34x64xbf16, #tpu.memory_space<vmem>>, vector<1x8x32x64xbf16>
    %9 = vector.shape_cast %8 : vector<1x8x32x64xbf16> to vector<8x32x64xbf16>
    %10 = vector.shape_cast %9 : vector<8x32x64xbf16> to vector<256x64xbf16>
    %c0_i32_5 = arith.constant 0 : i32
    %11 = arith.addi %0, %c0_i32_5 : i32
    %c0_6 = arith.constant 0 : index
    %12 = arith.index_cast %11 : i32 to index
    %c2 = arith.constant 2 : index
    %c0_7 = arith.constant 0 : index
    %13 = vector.load %arg2[%c0_6, %12, %c2, %c0_7] : memref<1x34x34x64xbf16, #tpu.memory_space<vmem>>, vector<1x8x32x64xbf16>
    %14 = vector.shape_cast %13 : vector<1x8x32x64xbf16> to vector<8x32x64xbf16>
    %15 = vector.shape_cast %14 : vector<8x32x64xbf16> to vector<256x64xbf16>
    %c1_i32 = arith.constant 1 : i32
    %16 = arith.addi %0, %c1_i32 : i32
    %c0_8 = arith.constant 0 : index
    %17 = arith.index_cast %16 : i32 to index
    %c0_9 = arith.constant 0 : index
    %c0_10 = arith.constant 0 : index
    %18 = vector.load %arg2[%c0_8, %17, %c0_9, %c0_10] : memref<1x34x34x64xbf16, #tpu.memory_space<vmem>>, vector<1x8x32x64xbf16>
    %19 = vector.shape_cast %18 : vector<1x8x32x64xbf16> to vector<8x32x64xbf16>
    %20 = vector.shape_cast %19 : vector<8x32x64xbf16> to vector<256x64xbf16>
    %c1_i32_11 = arith.constant 1 : i32
    %21 = arith.addi %0, %c1_i32_11 : i32
    %c0_12 = arith.constant 0 : index
    %22 = arith.index_cast %21 : i32 to index
    %c1_13 = arith.constant 1 : index
    %c0_14 = arith.constant 0 : index
    %23 = vector.load %arg2[%c0_12, %22, %c1_13, %c0_14] : memref<1x34x34x64xbf16, #tpu.memory_space<vmem>>, vector<1x8x32x64xbf16>
    %24 = vector.shape_cast %23 : vector<1x8x32x64xbf16> to vector<8x32x64xbf16>
    %25 = vector.shape_cast %24 : vector<8x32x64xbf16> to vector<256x64xbf16>
    %c1_i32_15 = arith.constant 1 : i32
    %26 = arith.addi %0, %c1_i32_15 : i32
    %c0_16 = arith.constant 0 : index
    %27 = arith.index_cast %26 : i32 to index
    %c2_17 = arith.constant 2 : index
    %c0_18 = arith.constant 0 : index
    %28 = vector.load %arg2[%c0_16, %27, %c2_17, %c0_18] : memref<1x34x34x64xbf16, #tpu.memory_space<vmem>>, vector<1x8x32x64xbf16>
    %29 = vector.shape_cast %28 : vector<1x8x32x64xbf16> to vector<8x32x64xbf16>
    %30 = vector.shape_cast %29 : vector<8x32x64xbf16> to vector<256x64xbf16>
    %c2_i32 = arith.constant 2 : i32
    %31 = arith.addi %0, %c2_i32 : i32
    %c0_19 = arith.constant 0 : index
    %32 = arith.index_cast %31 : i32 to index
    %c0_20 = arith.constant 0 : index
    %c0_21 = arith.constant 0 : index
    %33 = vector.load %arg2[%c0_19, %32, %c0_20, %c0_21] : memref<1x34x34x64xbf16, #tpu.memory_space<vmem>>, vector<1x8x32x64xbf16>
    %34 = vector.shape_cast %33 : vector<1x8x32x64xbf16> to vector<8x32x64xbf16>
    %35 = vector.shape_cast %34 : vector<8x32x64xbf16> to vector<256x64xbf16>
    %c2_i32_22 = arith.constant 2 : i32
    %36 = arith.addi %0, %c2_i32_22 : i32
    %c0_23 = arith.constant 0 : index
    %37 = arith.index_cast %36 : i32 to index
    %c1_24 = arith.constant 1 : index
    %c0_25 = arith.constant 0 : index
    %38 = vector.load %arg2[%c0_23, %37, %c1_24, %c0_25] : memref<1x34x34x64xbf16, #tpu.memory_space<vmem>>, vector<1x8x32x64xbf16>
    %39 = vector.shape_cast %38 : vector<1x8x32x64xbf16> to vector<8x32x64xbf16>
    %40 = vector.shape_cast %39 : vector<8x32x64xbf16> to vector<256x64xbf16>
    %c2_i32_26 = arith.constant 2 : i32
    %41 = arith.addi %0, %c2_i32_26 : i32
    %c0_27 = arith.constant 0 : index
    %42 = arith.index_cast %41 : i32 to index
    %c2_28 = arith.constant 2 : index
    %c0_29 = arith.constant 0 : index
    %43 = vector.load %arg2[%c0_27, %42, %c2_28, %c0_29] : memref<1x34x34x64xbf16, #tpu.memory_space<vmem>>, vector<1x8x32x64xbf16>
    %44 = vector.shape_cast %43 : vector<1x8x32x64xbf16> to vector<8x32x64xbf16>
    %45 = vector.shape_cast %44 : vector<8x32x64xbf16> to vector<256x64xbf16>
    %46 = tpu.concatenate %5, %10, %15, %20, %25, %30, %35, %40, %45 in 1 : vector<256x64xbf16>, vector<256x64xbf16>, vector<256x64xbf16>, vector<256x64xbf16>, vector<256x64xbf16>, vector<256x64xbf16>, vector<256x64xbf16>, vector<256x64xbf16>, vector<256x64xbf16> -> vector<256x576xbf16>
    %c0_30 = arith.constant 0 : index
    %c0_31 = arith.constant 0 : index
    %47 = vector.load %arg3[%c0_30, %c0_31] : memref<576x64xbf16, #tpu.memory_space<vmem>>, vector<576x64xbf16>
    %cst = arith.constant dense<0.000000e+00> : vector<256x64xf32>
    %48 = tpu.matmul %46, %47, %cst {dimension_numbers = #tpu.dot_dimension_numbers<[1], [0], [0], [1], [0, 0, 1, 1], [], []>} : vector<256x576xbf16>, vector<576x64xbf16>, vector<256x64xf32> -> vector<256x64xf32>
    %c0_32 = arith.constant 0 : index
    %c0_33 = arith.constant 0 : index
    %49 = vector.load %arg4[%c0_32, %c0_33] : memref<1x64xf32, #tpu.memory_space<vmem>>, vector<1x64xf32>
    %50 = vector.broadcast %49 : vector<1x64xf32> to vector<256x64xf32>
    %51 = arith.mulf %48, %50 : vector<256x64xf32>
    %c0_34 = arith.constant 0 : index
    %c0_35 = arith.constant 0 : index
    %52 = vector.load %arg5[%c0_34, %c0_35] : memref<1x64xf32, #tpu.memory_space<vmem>>, vector<1x64xf32>
    %53 = vector.broadcast %52 : vector<1x64xf32> to vector<256x64xf32>
    %54 = arith.addf %51, %53 : vector<256x64xf32>
    %c0_36 = arith.constant 0 : index
    %c0_37 = arith.constant 0 : index
    %c0_38 = arith.constant 0 : index
    %55 = vector.load %arg6[%c0_36, %c0_37, %c0_38] : memref<1x256x64xbf16, #tpu.memory_space<vmem>>, vector<1x256x64xbf16>
    %56 = vector.shape_cast %55 : vector<1x256x64xbf16> to vector<256x64xbf16>
    %57 = arith.extf %56 : vector<256x64xbf16> to vector<256x64xf32>
    %58 = arith.addf %54, %57 : vector<256x64xf32>
    %cst_39 = arith.constant 0.000000e+00 : f32
    %59 = vector.broadcast %cst_39 : f32 to vector<256x64xf32>
    %60 = arith.maximumf %58, %59 : vector<256x64xf32>
    %c0_40 = arith.constant 0 : index
    %c0_41 = arith.constant 0 : index
    %c0_42 = arith.constant 0 : index
    %61 = vector.load %arg7[%c0_40, %c0_41, %c0_42] : memref<1x256x64xf32, #tpu.memory_space<vmem>>, vector<1x256x64xf32>
    %62 = vector.shape_cast %61 : vector<1x256x64xf32> to vector<256x64xf32>
    %63 = vector.shape_cast %60 : vector<256x64xf32> to vector<1x256x64xf32>
    tpu.vector_store %arg7[%c0_40, %c0_41, %c0_42], %63 {strides = array<i32>} : memref<1x256x64xf32, #tpu.memory_space<vmem>>, vector<1x256x64xf32>,
    return
  }
  func.func @transform_0(%arg0: i32, %arg1: i32) -> (i32, i32, i32, i32) {
    %c0_i32 = arith.constant 0 : i32
    %c0_i32_0 = arith.constant 0 : i32
    %c0_i32_1 = arith.constant 0 : i32
    %c0_i32_2 = arith.constant 0 : i32
    return %arg0, %c0_i32, %c0_i32_0, %c0_i32_1 : i32, i32, i32, i32
  }
  func.func @transform_1(%arg0: i32, %arg1: i32) -> (i32, i32) {
    %c0_i32 = arith.constant 0 : i32
    %c0_i32_0 = arith.constant 0 : i32
    %c0_i32_1 = arith.constant 0 : i32
    return %c0_i32, %c0_i32_0 : i32, i32
  }
  func.func @transform_2(%arg0: i32, %arg1: i32) -> (i32, i32) {
    %c0_i32 = arith.constant 0 : i32
    %c0_i32_0 = arith.constant 0 : i32
    %c0_i32_1 = arith.constant 0 : i32
    return %c0_i32, %c0_i32_0 : i32, i32
  }
  func.func @transform_3(%arg0: i32, %arg1: i32) -> (i32, i32) {
    %c0_i32 = arith.constant 0 : i32
    %c0_i32_0 = arith.constant 0 : i32
    %c0_i32_1 = arith.constant 0 : i32
    return %c0_i32, %c0_i32_0 : i32, i32
  }
  func.func @transform_4(%arg0: i32, %arg1: i32) -> (i32, i32, i32) {
    %c0_i32 = arith.constant 0 : i32
    %c0_i32_0 = arith.constant 0 : i32
    return %arg0, %arg1, %c0_i32 : i32, i32, i32
  }
  func.func @transform_5(%arg0: i32, %arg1: i32) -> (i32, i32, i32) {
    %c0_i32 = arith.constant 0 : i32
    %c0_i32_0 = arith.constant 0 : i32
    return %arg0, %arg1, %c0_i32 : i32, i32, i32
  }
}

</mosaic_0001>

<llo_original>
// kernel: _lambda_.6
$region0: #{_lambda_.6}
  #allocation0 [shape = 'u32[]', space=smem, size = 0x4, offset = 0x4, fixed_abs, tag = 'smem constant byte address 0x4 - core index']
  #allocation1 [shape = 'u32[144,128]{1,0:T(1,128)}', space=vmem, size = 0x12000, scoped, tag = 'internal scratch']
  %s0 = inlined_call_operand.vmem [shape: bf16[2,17,17,64], index: 0, kind: input, shape index: {}]
  %s1 = inlined_call_operand.vmem [shape: bf16[2,17,17,64], index: 1, kind: input, shape index: {}]
  %s2 = inlined_call_operand.vmem [shape: bf16[2,17,17,64], index: 2, kind: input, shape index: {}]
  %s3 = inlined_call_operand.vmem [shape: bf16[2,17,17,64], index: 3, kind: input, shape index: {}]
  %s4 = inlined_call_operand.vmem [shape: bf16[576,128], index: 4, kind: input, shape index: {}]
  %s5 = inlined_call_operand.vmem [shape: f32[1,128], index: 5, kind: input, shape index: {}]
  %s6 = inlined_call_operand.vmem [shape: f32[1,128], index: 6, kind: input, shape index: {}]
  %s7 = inlined_call_operand.vmem [shape: bf16[2,256,128], index: 7, kind: output, shape index: {}]
  %s8 = sld [smem:[#allocation0]]
  $region61: #{_lambda_.6} parent=0
    _
  %s10 = ssub.s32 1, %s8
  %s11 = scalar_select 0, %s10, %s8
  loop: start=0, step=1, limit=6
  $region2: #{_lambda_.6} parent=0 // loop_pre_header
    _
  $region3: #{_lambda_.6} parent=0 // loop_header
    %s13 = sphi 0, %s17
    %p14 = scmp.ge.s32.totalorder %s13, 6
    %s20 = sphi 0, %s32
    %s21 = sphi 0, %s28
    %s22 = sphi 0, %s20
    %s23 = sphi 0, %s21
    %s24 = sphi 0, %s22
    %s25 = sphi 0, %s23
    %s35 = sphi 0, %s37
    %s38 = sphi 0, %s35
    %s39 = sphi 0, %s38
    %s55 = sphi 0, %s39
    %s61 = sphi 0, %s63
    %s64 = sphi 0, %s61
    %s65 = sphi 0, %s64
    %s81 = sphi 0, %s65
    %s87 = sphi 0, %s89
    %s90 = sphi 0, %s87
    %s91 = sphi 0, %s90
    %s107 = sphi 0, %s91
    %s113 = sphi 0, %s115
    %s116 = sphi 0, %s113
    %s117 = sphi 0, %s116
    %s133 = sphi 0, %s117
    %s137 = sphi 0, %s137
    %s139 = sphi 0, %s137
    %s140 = sphi 0, %s139
    %s154 = sphi 0, %s140
    %s158 = sphi 0, %s158
    %s160 = sphi 0, %s158
    %s161 = sphi 0, %s160
    %s175 = sphi 0, %s161
    %s179 = sphi 0, %s179
    %s181 = sphi 0, %s179
    %s182 = sphi 0, %s181
    %s196 = sphi 0, %s182
    %s204 = sphi 0, %s206
    %s207 = sphi 0, %s204
    %s208 = sphi 0, %s207
    %s224 = sphi 0, %s208
  $region4: #{_lambda_.6} parent=0 // loop_header_branch
    %16 = sbr.rel (%p14) target = $region8
  $region5: #{_lambda_.6} parent=0 // loop_body
    %s18 = ssub.s32 %s13, 1
    %s19 = ssub.s32 %s13, 2
    %s26 = sadd.s32 1, %s21
    %p27 = scmp.ge.s32.totalorder %s26, 2
    %s28 = scalar_select %p27, 0, %s26
    %s29 = sadd.s32 1, %s20
    %s30 = scalar_select %p27, %s29, %s20
    %p31 = scmp.ge.s32.totalorder %s30, 2
    %s32 = scalar_select %p31, 0, %s30
    %s33 = ssub.s32 %s20, %s32
    %p34 = scmp.eq.s32.totalorder %s33, 0
    %s36 = sadd.s32 %s35, 1
    %s37 = scalar_select %p34, %s35, %s36
    %p40 = pneg %p34
    %p41 = scmp.eq.s32.totalorder %s13, 3
    %p42 = por %p40, %p41
    %p43 = scmp.ne.s32.totalorder %s35, %s38
    %p44 = scmp.eq.s32.totalorder %s13, 0
    %p45 = por %p43, %p44
    %p46 = scmp.ne.s32.totalorder %s35, %s38
    %p47 = scmp.eq.s32.totalorder %s18, 3
    %p48 = por %p46, %p47
    %p49 = scmp.ne.s32.totalorder %s38, %s39
    %p50 = scmp.eq.s32.totalorder %s18, 0
    %p51 = por %p49, %p50
    %p52 = scmp.ne.s32.totalorder %s38, %s39
    %p53 = scmp.eq.s32.totalorder %s19, 3
    %p54 = por %p52, %p53
    %p56 = scmp.ne.s32.totalorder %s39, %s55
    %p57 = scmp.eq.s32.totalorder %s19, 0
    %p58 = por %p56, %p57
    %s59 = ssub.s32 %s20, %s32
    %p60 = scmp.eq.s32.totalorder %s59, 0
    %s62 = sadd.s32 %s61, 1
    %s63 = scalar_select %p60, %s61, %s62
    %p66 = pneg %p60
    %p67 = scmp.eq.s32.totalorder %s13, 3
    %p68 = por %p66, %p67
    %p69 = scmp.ne.s32.totalorder %s61, %s64
    %p70 = scmp.eq.s32.totalorder %s13, 0
    %p71 = por %p69, %p70
    %p72 = scmp.ne.s32.totalorder %s61, %s64
    %p73 = scmp.eq.s32.totalorder %s18, 3
    %p74 = por %p72, %p73
    %p75 = scmp.ne.s32.totalorder %s64, %s65
    %p76 = scmp.eq.s32.totalorder %s18, 0
    %p77 = por %p75, %p76
    %p78 = scmp.ne.s32.totalorder %s64, %s65
    %p79 = scmp.eq.s32.totalorder %s19, 3
    %p80 = por %p78, %p79
    %p82 = scmp.ne.s32.totalorder %s65, %s81
    %p83 = scmp.eq.s32.totalorder %s19, 0
    %p84 = por %p82, %p83
    %s85 = ssub.s32 %s20, %s32
    %p86 = scmp.eq.s32.totalorder %s85, 0
    %s88 = sadd.s32 %s87, 1
    %s89 = scalar_select %p86, %s87, %s88
    %p92 = pneg %p86
    %p93 = scmp.eq.s32.totalorder %s13, 3
    %p94 = por %p92, %p93
    %p95 = scmp.ne.s32.totalorder %s87, %s90
    %p96 = scmp.eq.s32.totalorder %s13, 0
    %p97 = por %p95, %p96
    %p98 = scmp.ne.s32.totalorder %s87, %s90
    %p99 = scmp.eq.s32.totalorder %s18, 3
    %p100 = por %p98, %p99
    %p101 = scmp.ne.s32.totalorder %s90, %s91
    %p102 = scmp.eq.s32.totalorder %s18, 0
    %p103 = por %p101, %p102
    %p104 = scmp.ne.s32.totalorder %s90, %s91
    %p105 = scmp.eq.s32.totalorder %s19, 3
    %p106 = por %p104, %p105
    %p108 = scmp.ne.s32.totalorder %s91, %s107
    %p109 = scmp.eq.s32.totalorder %s19, 0
    %p110 = por %p108, %p109
    %s111 = ssub.s32 %s20, %s32
    %p112 = scmp.eq.s32.totalorder %s111, 0
    %s114 = sadd.s32 %s113, 1
    %s115 = scalar_select %p112, %s113, %s114
    %p118 = pneg %p112
    %p119 = scmp.eq.s32.totalorder %s13, 3
    %p120 = por %p118, %p119
    %p121 = scmp.ne.s32.totalorder %s113, %s116
    %p122 = scmp.eq.s32.totalorder %s13, 0
    %p123 = por %p121, %p122
    %p124 = scmp.ne.s32.totalorder %s113, %s116
    %p125 = scmp.eq.s32.totalorder %s18, 3
    %p126 = por %p124, %p125
    %p127 = scmp.ne.s32.totalorder %s116, %s117
    %p128 = scmp.eq.s32.totalorder %s18, 0
    %p129 = por %p127, %p128
    %p130 = scmp.ne.s32.totalorder %s116, %s117
    %p131 = scmp.eq.s32.totalorder %s19, 3
    %p132 = por %p130, %p131
    %p134 = scmp.ne.s32.totalorder %s117, %s133
    %p135 = scmp.eq.s32.totalorder %s19, 0
    %p136 = por %p134, %p135
    %s138 = sadd.s32 %s137, 1
    %p141 = scmp.eq.s32.totalorder %s13, 3
    %p142 = scmp.ne.s32.totalorder %s137, %s139
    %p143 = scmp.eq.s32.totalorder %s13, 0
    %p144 = por %p142, %p143
    %p145 = scmp.ne.s32.totalorder %s137, %s139
    %p146 = scmp.eq.s32.totalorder %s18, 3
    %p147 = por %p145, %p146
    %p148 = scmp.ne.s32.totalorder %s139, %s140
    %p149 = scmp.eq.s32.totalorder %s18, 0
    %p150 = por %p148, %p149
    %p151 = scmp.ne.s32.totalorder %s139, %s140
    %p152 = scmp.eq.s32.totalorder %s19, 3
    %p153 = por %p151, %p152
    %p155 = scmp.ne.s32.totalorder %s140, %s154
    %p156 = scmp.eq.s32.totalorder %s19, 0
    %p157 = por %p155, %p156
    %s159 = sadd.s32 %s158, 1
    %p162 = scmp.eq.s32.totalorder %s13, 3
    %p163 = scmp.ne.s32.totalorder %s158, %s160
    %p164 = scmp.eq.s32.totalorder %s13, 0
    %p165 = por %p163, %p164
    %p166 = scmp.ne.s32.totalorder %s158, %s160
    %p167 = scmp.eq.s32.totalorder %s18, 3
    %p168 = por %p166, %p167
    %p169 = scmp.ne.s32.totalorder %s160, %s161
    %p170 = scmp.eq.s32.totalorder %s18, 0
    %p171 = por %p169, %p170
    %p172 = scmp.ne.s32.totalorder %s160, %s161
    %p173 = scmp.eq.s32.totalorder %s19, 3
    %p174 = por %p172, %p173
    %p176 = scmp.ne.s32.totalorder %s161, %s175
    %p177 = scmp.eq.s32.totalorder %s19, 0
    %p178 = por %p176, %p177
    %s180 = sadd.s32 %s179, 1
    %p183 = scmp.eq.s32.totalorder %s13, 3
    %p184 = scmp.ne.s32.totalorder %s179, %s181
    %p185 = scmp.eq.s32.totalorder %s13, 0
    %p186 = por %p184, %p185
    %p187 = scmp.ne.s32.totalorder %s179, %s181
    %p188 = scmp.eq.s32.totalorder %s18, 3
    %p189 = por %p187, %p188
    %p190 = scmp.ne.s32.totalorder %s181, %s182
    %p191 = scmp.eq.s32.totalorder %s18, 0
    %p192 = por %p190, %p191
    %p193 = scmp.ne.s32.totalorder %s181, %s182
    %p194 = scmp.eq.s32.totalorder %s19, 3
    %p195 = por %p193, %p194
    %p197 = scmp.ne.s32.totalorder %s182, %s196
    %p198 = scmp.eq.s32.totalorder %s19, 0
    %p199 = por %p197, %p198
    %s200 = ssub.s32 %s20, %s32
    %s201 = ssub.s32 %s21, %s28
    %s202 = sor.u32 %s200, %s201
    %p203 = scmp.eq.s32.totalorder %s202, 0
    %s205 = sadd.s32 %s204, 1
    %s206 = scalar_select %p203, %s204, %s205
    %p209 = pneg %p203
    %p210 = scmp.eq.s32.totalorder %s13, 3
    %p211 = por %p209, %p210
    %p212 = scmp.ne.s32.totalorder %s204, %s207
    %p213 = scmp.eq.s32.totalorder %s13, 0
    %p214 = por %p212, %p213
    %p215 = scmp.ne.s32.totalorder %s204, %s207
    %p216 = scmp.eq.s32.totalorder %s18, 3
    %p217 = por %p215, %p216
    %p218 = scmp.ne.s32.totalorder %s207, %s208
    %p219 = scmp.eq.s32.totalorder %s18, 0
    %p220 = por %p218, %p219
    %p221 = scmp.ne.s32.totalorder %s207, %s208
    %p222 = scmp.eq.s32.totalorder %s19, 3
    %p223 = por %p221, %p222
    %p225 = scmp.ne.s32.totalorder %s208, %s224
    %p226 = scmp.eq.s32.totalorder %s19, 0
    %p227 = por %p225, %p226
    %p228 = scmp.le.s32.totalorder 1, %s13
    %p229 = scmp.lt.s32.totalorder %s13, 5
    %p230 = pnand %p228, %p229
    %p231 = pneg %p230
    // Predicated region
    $region9: #{_lambda_.6} parent=5 // pred_check
      _
    $region10: #{_lambda_.6} parent=5 // pred_check_branch
      %233 = sbr.rel (%p230) target = $region12
    $region11: #{_lambda_.6} parent=5 // pred_region
      %s234 = ssub.s32 %s13, 1
      // Predicated region
      $region13: #{_lambda_.6} parent=11 // pred_check
        %p235 = pneg %p150
      $region14: #{_lambda_.6} parent=11 // pred_check_branch
        %237 = sbr.rel (%p235) target = $region16
      $region15: #{_lambda_.6} parent=11 // pred_region
        _
      $region16: #{_lambda_.6} parent=11 // pred_fallthru
        _
      // Predicated region
      $region17: #{_lambda_.6} parent=11 // pred_check
        %p238 = pneg %p171
      $region18: #{_lambda_.6} parent=11 // pred_check_branch
        %240 = sbr.rel (%p238) target = $region20
      $region19: #{_lambda_.6} parent=11 // pred_region
        _
      $region20: #{_lambda_.6} parent=11 // pred_fallthru
        _
      // Predicated region
      $region21: #{_lambda_.6} parent=11 // pred_check
        %p241 = pneg %p192
      $region22: #{_lambda_.6} parent=11 // pred_check_branch
        %243 = sbr.rel (%p241) target = $region24
      $region23: #{_lambda_.6} parent=11 // pred_region
        _
      $region24: #{_lambda_.6} parent=11 // pred_fallthru
        _
    $region12: #{_lambda_.6} parent=5 // pred_fallthru
      _
    %p244 = scmp.lt.s32.totalorder %s13, 4
    // Predicated region
    $region25: #{_lambda_.6} parent=5 // pred_check
      %p245 = pneg %p244
    $region26: #{_lambda_.6} parent=5 // pred_check_branch
      %247 = sbr.rel (%p245) target = $region28
    $region27: #{_lambda_.6} parent=5 // pred_region
      // Predicated region
      $region29: #{_lambda_.6} parent=27 // pred_check
        %p248 = pneg %p45
      $region30: #{_lambda_.6} parent=27 // pred_check_branch
        %250 = sbr.rel (%p248) target = $region32
      $region31: #{_lambda_.6} parent=27 // pred_region
        %p251 = scmp.lt.s32.totalorder %s20, 1
        %s252 = scalar_select %p251, %s20, 1
        %s253 = smul.addr %s252, 51
        %s254 = smul.addr %s253, 4
        %s255 = scalar_lea.vmem %s0, %s254
      $region32: #{_lambda_.6} parent=27 // pred_fallthru
        _
      // Predicated region
      $region33: #{_lambda_.6} parent=27 // pred_check
        %p256 = pneg %p71
      $region34: #{_lambda_.6} parent=27 // pred_check_branch
        %258 = sbr.rel (%p256) target = $region36
      $region35: #{_lambda_.6} parent=27 // pred_region
        %p259 = scmp.lt.s32.totalorder %s20, 1
        %s260 = scalar_select %p259, %s20, 1
        %s261 = smul.addr %s260, 51
        %s262 = smul.addr %s261, 4
        %s263 = scalar_lea.vmem %s1, %s262
      $region36: #{_lambda_.6} parent=27 // pred_fallthru
        _
      // Predicated region
      $region37: #{_lambda_.6} parent=27 // pred_check
        %p264 = pneg %p97
      $region38: #{_lambda_.6} parent=27 // pred_check_branch
        %266 = sbr.rel (%p264) target = $region40
      $region39: #{_lambda_.6} parent=27 // pred_region
        %p267 = scmp.lt.s32.totalorder %s20, 1
        %s268 = scalar_select %p267, %s20, 1
        %s269 = smul.addr %s268, 51
        %s270 = smul.addr %s269, 4
        %s271 = scalar_lea.vmem %s2, %s270
      $region40: #{_lambda_.6} parent=27 // pred_fallthru
        _
      // Predicated region
      $region41: #{_lambda_.6} parent=27 // pred_check
        %p272 = pneg %p123
      $region42: #{_lambda_.6} parent=27 // pred_check_branch
        %274 = sbr.rel (%p272) target = $region44
      $region43: #{_lambda_.6} parent=27 // pred_region
        %p275 = scmp.lt.s32.totalorder %s20, 1
        %s276 = scalar_select %p275, %s20, 1
        %s277 = smul.addr %s276, 51
        %s278 = smul.addr %s277, 4
        %s279 = scalar_lea.vmem %s3, %s278
      $region44: #{_lambda_.6} parent=27 // pred_fallthru
        _
    $region28: #{_lambda_.6} parent=5 // pred_fallthru
      _
    %p280 = scmp.le.s32.totalorder 1, %s13
    %p281 = scmp.lt.s32.totalorder %s13, 5
    %p282 = pnand %p280, %p281
    %p283 = pneg %p282
    // Predicated region
    $region45: #{_lambda_.6} parent=5 // pred_check
      _
    $region46: #{_lambda_.6} parent=5 // pred_check_branch
      %285 = sbr.rel (%p282) target = $region48
    $region47: #{_lambda_.6} parent=5 // pred_region
      %s286 = ssub.s32 %s13, 1
      %p287 = scmp.lt.s32.totalorder %s22, 1
      %s288 = scalar_select %p287, %s22, 1
      %s289 = smul.addr %s288, 51
      %s290 = smul.addr %s289, 4
      %s291 = scalar_lea.vmem %s0, %s290
      %p292 = pneg %p51
      %p293 = pneg %p48
      %p294 = scmp.lt.s32.totalorder %s22, 1
      %s295 = scalar_select %p294, %s22, 1
      %s296 = smul.addr %s295, 51
      %s297 = smul.addr %s296, 4
      %s298 = scalar_lea.vmem %s1, %s297
      %p299 = pneg %p77
      %p300 = pneg %p74
      %p301 = scmp.lt.s32.totalorder %s22, 1
      %s302 = scalar_select %p301, %s22, 1
      %s303 = smul.addr %s302, 51
      %s304 = smul.addr %s303, 4
      %s305 = scalar_lea.vmem %s2, %s304
      %p306 = pneg %p103
      %p307 = pneg %p100
      %p308 = scmp.lt.s32.totalorder %s22, 1
      %s309 = scalar_select %p308, %s22, 1
      %s310 = smul.addr %s309, 51
      %s311 = smul.addr %s310, 4
      %s312 = scalar_lea.vmem %s3, %s311
      %p313 = pneg %p129
      %p314 = pneg %p126
      %p315 = pneg %p150
      %p316 = pneg %p147
      %p317 = pneg %p171
      %p318 = pneg %p168
      %p319 = pneg %p192
      %p320 = pneg %p189
      %p321 = pneg %p220
      %p322 = pneg %p217
      %s323 = smul.u32 16, %s23
      %p324 = scmp.lt.s32.totalorder %s22, 1
      %s325 = scalar_select %p324, %s22, 1
      %p326 = scmp.lt.s32.totalorder %s323, 31
      %s327 = scalar_select %p326, %s323, 31
      %s328 = smul.addr %s325, 32
      %s329 = sadd.s32 %s327, %s328
      %s330 = smul.addr %s329, 4
      %s331 = scalar_lea.vmem %s7, %s330
      %p332 = scmp.lt.s32.totalorder %s22, 1
      %s333 = scalar_select %p332, %s22, 1
      %s334 = smul.addr %s333, 51
      %s335 = smul.addr %s334, 4
      %s336 = scalar_lea.vmem %s0, %s335
      %p337 = scmp.lt.s32.totalorder %s22, 1
      %s338 = scalar_select %p337, %s22, 1
      %s339 = smul.addr %s338, 51
      %s340 = smul.addr %s339, 4
      %s341 = scalar_lea.vmem %s1, %s340
      %p342 = scmp.lt.s32.totalorder %s22, 1
      %s343 = scalar_select %p342, %s22, 1
      %s344 = smul.addr %s343, 51
      %s345 = smul.addr %s344, 4
      %s346 = scalar_lea.vmem %s2, %s345
      %p347 = scmp.lt.s32.totalorder %s22, 1
      %s348 = scalar_select %p347, %s22, 1
      %s349 = smul.addr %s348, 51
      %s350 = smul.addr %s349, 4
      %s351 = scalar_lea.vmem %s3, %s350
      %s352 = smul.u32 16, %s23
      %p353 = scmp.lt.s32.totalorder %s22, 1
      %s354 = scalar_select %p353, %s22, 1
      %p355 = scmp.lt.s32.totalorder %s352, 31
      %s356 = scalar_select %p355, %s352, 31
      %s357 = smul.addr %s354, 32
      %s358 = sadd.s32 %s356, %s357
      %s359 = smul.addr %s358, 4
      %s360 = scalar_lea.vmem %s7, %s359
      %s361 = smul.u32 16, %s23
      %s363 = smul.u32 %s23, 8
      %s364 = smul.u32 %s363, 3
      %s365 = smul.addr %s364, 4
      %s366 = scalar_lea.vmem %s336, %s365
      %v367 = vld [vmem:[%s366] sm:$0xf]
      %v368 = vld [vmem:[%s366 + $0x4] sm:$0xf]
      %v369 = vld [vmem:[%s366 + $0xc] sm:$0xf]
      %v370 = vld [vmem:[%s366 + $0x10] sm:$0xf]
      %v371 = vld [vmem:[%s366 + $0x18] sm:$0xf]
      %v372 = vld [vmem:[%s366 + $0x1c] sm:$0xf]
      %v373 = vld [vmem:[%s366 + $0x24] sm:$0xf]
      %v374 = vld [vmem:[%s366 + $0x28] sm:$0xf]
      %v375 = vld [vmem:[%s366 + $0x30] sm:$0xf]
      %v376 = vld [vmem:[%s366 + $0x34] sm:$0xf]
      %v377 = vld [vmem:[%s366 + $0x3c] sm:$0xf]
      %v378 = vld [vmem:[%s366 + $0x40] sm:$0xf]
      %v379 = vld [vmem:[%s366 + $0x48] sm:$0xf]
      %v380 = vld [vmem:[%s366 + $0x4c] sm:$0xf]
      %v381 = vld [vmem:[%s366 + $0x54] sm:$0xf]
      %v382 = vld [vmem:[%s366 + $0x58] sm:$0xf]
      %s383 = smul.addr %s364, 4
      %s384 = scalar_lea.vmem %s341, %s383
      %v385 = vld [vmem:[%s384] sm:$0xf]
      %v386 = vld [vmem:[%s384 + $0x4] sm:$0xf]
      %v387 = vld [vmem:[%s384 + $0xc] sm:$0xf]
      %v388 = vld [vmem:[%s384 + $0x10] sm:$0xf]
      %v389 = vld [vmem:[%s384 + $0x18] sm:$0xf]
      %v390 = vld [vmem:[%s384 + $0x1c] sm:$0xf]
      %v391 = vld [vmem:[%s384 + $0x24] sm:$0xf]
      %v392 = vld [vmem:[%s384 + $0x28] sm:$0xf]
      %v393 = vld [vmem:[%s384 + $0x30] sm:$0xf]
      %v394 = vld [vmem:[%s384 + $0x34] sm:$0xf]
      %v395 = vld [vmem:[%s384 + $0x3c] sm:$0xf]
      %v396 = vld [vmem:[%s384 + $0x40] sm:$0xf]
      %v397 = vld [vmem:[%s384 + $0x48] sm:$0xf]
      %v398 = vld [vmem:[%s384 + $0x4c] sm:$0xf]
      %v399 = vld [vmem:[%s384 + $0x54] sm:$0xf]
      %v400 = vld [vmem:[%s384 + $0x58] sm:$0xf]
      %v401 = vld [vmem:[%s366 + $0x8] sm:$0x1]
      %v402 = vld [vmem:[%s366 + $0x14] sm:$0x1]
      %v403 = vld [vmem:[%s366 + $0x20] sm:$0x1]
      %v404 = vld [vmem:[%s366 + $0x2c] sm:$0x1]
      %v405 = vld [vmem:[%s366 + $0x38] sm:$0x1]
      %v406 = vld [vmem:[%s366 + $0x44] sm:$0x1]
      %v407 = vld [vmem:[%s366 + $0x50] sm:$0x1]
      %v408 = vld [vmem:[%s366 + $0x5c] sm:$0x1]
      %vm409 = vsmask.f32 3328
      %vm410 = vsmask.f32 7440
      %vm411 = vmor %vm409, %vm410
      %v413 = vshrl.u32 %v367, 16
      %v415 = vrot.slane %v413, 4
      %v416 = vshll.u32 %v367, 16
      %v418 = vrot.slane %v416, 5
      %v419 = vor.u32 %v415, %v418
      %v420 = vrot.slane %v419, 4
      %v422 = vshll.u32 %v368, 16
      %v424 = vrot.slane %v422, 5
      %v425 = vsel %vm411, %v420, %v424
      %v426 = vshrl.u32 %v368, 16
      %v428 = vrot.slane %v426, 4
      %v429 = vor.u32 %v428, %v424
      %v430 = vrot.slane %v429, 4
      %v432 = vshll.u32 %v401, 16
      %v434 = vrot.slane %v432, 5
      %v435 = vsel %vm411, %v430, %v434
      %v437 = vshrl.u32 %v369, 16
      %v439 = vrot.slane %v437, 4
      %v440 = vshll.u32 %v369, 16
      %v442 = vrot.slane %v440, 5
      %v443 = vor.u32 %v439, %v442
      %v444 = vrot.slane %v443, 4
      %v446 = vshll.u32 %v370, 16
      %v448 = vrot.slane %v446, 5
      %v449 = vsel %vm411, %v444, %v448
      %v450 = vshrl.u32 %v370, 16
      %v452 = vrot.slane %v450, 4
      %v453 = vor.u32 %v452, %v448
      %v454 = vrot.slane %v453, 4
      %v456 = vshll.u32 %v402, 16
      %v458 = vrot.slane %v456, 5
      %v459 = vsel %vm411, %v454, %v458
      %v461 = vshrl.u32 %v371, 16
      %v463 = vrot.slane %v461, 4
      %v464 = vshll.u32 %v371, 16
      %v466 = vrot.slane %v464, 5
      %v467 = vor.u32 %v463, %v466
      %v468 = vrot.slane %v467, 4
      %v470 = vshll.u32 %v372, 16
      %v472 = vrot.slane %v470, 5
      %v473 = vsel %vm411, %v468, %v472
      %v474 = vshrl.u32 %v372, 16
      %v476 = vrot.slane %v474, 4
      %v477 = vor.u32 %v476, %v472
      %v478 = vrot.slane %v477, 4
      %v480 = vshll.u32 %v403, 16
      %v482 = vrot.slane %v480, 5
      %v483 = vsel %vm411, %v478, %v482
      %v485 = vshrl.u32 %v373, 16
      %v487 = vrot.slane %v485, 4
      %v488 = vshll.u32 %v373, 16
      %v490 = vrot.slane %v488, 5
      %v491 = vor.u32 %v487, %v490
      %v492 = vrot.slane %v491, 4
      %v494 = vshll.u32 %v374, 16
      %v496 = vrot.slane %v494, 5
      %v497 = vsel %vm411, %v492, %v496
      %v498 = vshrl.u32 %v374, 16
      %v500 = vrot.slane %v498, 4
      %v501 = vor.u32 %v500, %v496
      %v502 = vrot.slane %v501, 4
      %v504 = vshll.u32 %v404, 16
      %v506 = vrot.slane %v504, 5
      %v507 = vsel %vm411, %v502, %v506
      %v509 = vshrl.u32 %v375, 16
      %v511 = vrot.slane %v509, 4
      %v512 = vshll.u32 %v375, 16
      %v514 = vrot.slane %v512, 5
      %v515 = vor.u32 %v511, %v514
      %v516 = vrot.slane %v515, 4
      %v518 = vshll.u32 %v376, 16
      %v520 = vrot.slane %v518, 5
      %v521 = vsel %vm411, %v516, %v520
      %v522 = vshrl.u32 %v376, 16
      %v524 = vrot.slane %v522, 4
      %v525 = vor.u32 %v524, %v520
      %v526 = vrot.slane %v525, 4
      %v528 = vshll.u32 %v405, 16
      %v530 = vrot.slane %v528, 5
      %v531 = vsel %vm411, %v526, %v530
      %v533 = vshrl.u32 %v377, 16
      %v535 = vrot.slane %v533, 4
      %v536 = vshll.u32 %v377, 16
      %v538 = vrot.slane %v536, 5
      %v539 = vor.u32 %v535, %v538
      %v540 = vrot.slane %v539, 4
      %v542 = vshll.u32 %v378, 16
      %v544 = vrot.slane %v542, 5
      %v545 = vsel %vm411, %v540, %v544
      %v546 = vshrl.u32 %v378, 16
      %v548 = vrot.slane %v546, 4
      %v549 = vor.u32 %v548, %v544
      %v550 = vrot.slane %v549, 4
      %v552 = vshll.u32 %v406, 16
      %v554 = vrot.slane %v552, 5
      %v555 = vsel %vm411, %v550, %v554
      %v557 = vshrl.u32 %v379, 16
      %v559 = vrot.slane %v557, 4
      %v560 = vshll.u32 %v379, 16
      %v562 = vrot.slane %v560, 5
      %v563 = vor.u32 %v559, %v562
      %v564 = vrot.slane %v563, 4
      %v566 = vshll.u32 %v380, 16
      %v568 = vrot.slane %v566, 5
      %v569 = vsel %vm411, %v564, %v568
      %v570 = vshrl.u32 %v380, 16
      %v572 = vrot.slane %v570, 4
      %v573 = vor.u32 %v572, %v568
      %v574 = vrot.slane %v573, 4
      %v576 = vshll.u32 %v407, 16
      %v578 = vrot.slane %v576, 5
      %v579 = vsel %vm411, %v574, %v578
      %v581 = vshrl.u32 %v381, 16
      %v583 = vrot.slane %v581, 4
      %v584 = vshll.u32 %v381, 16
      %v586 = vrot.slane %v584, 5
      %v587 = vor.u32 %v583, %v586
      %v588 = vrot.slane %v587, 4
      %v590 = vshll.u32 %v382, 16
      %v592 = vrot.slane %v590, 5
      %v593 = vsel %vm411, %v588, %v592
      %v594 = vshrl.u32 %v382, 16
      %v596 = vrot.slane %v594, 4
      %v597 = vor.u32 %v596, %v592
      %v598 = vrot.slane %v597, 4
      %v600 = vshll.u32 %v408, 16
      %v602 = vrot.slane %v600, 5
      %v603 = vsel %vm411, %v598, %v602
      %s604 = smul.addr %s364, 4
      %s605 = scalar_lea.vmem %s346, %s604
      %v606 = vld [vmem:[%s605] sm:$0xf]
      %v607 = vld [vmem:[%s605 + $0x4] sm:$0xf]
      %v608 = vld [vmem:[%s605 + $0xc] sm:$0xf]
      %v609 = vld [vmem:[%s605 + $0x10] sm:$0xf]
      %v610 = vld [vmem:[%s605 + $0x18] sm:$0xf]
      %v611 = vld [vmem:[%s605 + $0x1c] sm:$0xf]
      %v612 = vld [vmem:[%s605 + $0x24] sm:$0xf]
      %v613 = vld [vmem:[%s605 + $0x28] sm:$0xf]
      %v614 = vld [vmem:[%s605 + $0x30] sm:$0xf]
      %v615 = vld [vmem:[%s605 + $0x34] sm:$0xf]
      %v616 = vld [vmem:[%s605 + $0x3c] sm:$0xf]
      %v617 = vld [vmem:[%s605 + $0x40] sm:$0xf]
      %v618 = vld [vmem:[%s605 + $0x48] sm:$0xf]
      %v619 = vld [vmem:[%s605 + $0x4c] sm:$0xf]
      %v620 = vld [vmem:[%s605 + $0x54] sm:$0xf]
      %v621 = vld [vmem:[%s605 + $0x58] sm:$0xf]
      %s622 = smul.addr %s364, 4
      %s623 = scalar_lea.vmem %s351, %s622
      %v624 = vld [vmem:[%s623] sm:$0xf]
      %v625 = vld [vmem:[%s623 + $0x4] sm:$0xf]
      %v626 = vld [vmem:[%s623 + $0xc] sm:$0xf]
      %v627 = vld [vmem:[%s623 + $0x10] sm:$0xf]
      %v628 = vld [vmem:[%s623 + $0x18] sm:$0xf]
      %v629 = vld [vmem:[%s623 + $0x1c] sm:$0xf]
      %v630 = vld [vmem:[%s623 + $0x24] sm:$0xf]
      %v631 = vld [vmem:[%s623 + $0x28] sm:$0xf]
      %v632 = vld [vmem:[%s623 + $0x30] sm:$0xf]
      %v633 = vld [vmem:[%s623 + $0x34] sm:$0xf]
      %v634 = vld [vmem:[%s623 + $0x3c] sm:$0xf]
      %v635 = vld [vmem:[%s623 + $0x40] sm:$0xf]
      %v636 = vld [vmem:[%s623 + $0x48] sm:$0xf]
      %v637 = vld [vmem:[%s623 + $0x4c] sm:$0xf]
      %v638 = vld [vmem:[%s623 + $0x54] sm:$0xf]
      %v639 = vld [vmem:[%s623 + $0x58] sm:$0xf]
      %v640 = vld [vmem:[%s605 + $0x8] sm:$0x1]
      %v641 = vld [vmem:[%s605 + $0x14] sm:$0x1]
      %v642 = vld [vmem:[%s605 + $0x20] sm:$0x1]
      %v643 = vld [vmem:[%s605 + $0x2c] sm:$0x1]
      %v644 = vld [vmem:[%s605 + $0x38] sm:$0x1]
      %v645 = vld [vmem:[%s605 + $0x44] sm:$0x1]
      %v646 = vld [vmem:[%s605 + $0x50] sm:$0x1]
      %v647 = vld [vmem:[%s605 + $0x5c] sm:$0x1]
      %v649 = vshrl.u32 %v606, 16
      %v651 = vrot.slane %v649, 4
      %v652 = vshll.u32 %v606, 16
      %v654 = vrot.slane %v652, 5
      %v655 = vor.u32 %v651, %v654
      %v656 = vrot.slane %v655, 4
      %v658 = vshll.u32 %v607, 16
      %v660 = vrot.slane %v658, 5
      %v661 = vsel %vm411, %v656, %v660
      %v662 = vshrl.u32 %v607, 16
      %v664 = vrot.slane %v662, 4
      %v665 = vor.u32 %v664, %v660
      %v666 = vrot.slane %v665, 4
      %v668 = vshll.u32 %v640, 16
      %v670 = vrot.slane %v668, 5
      %v671 = vsel %vm411, %v666, %v670
      %v673 = vshrl.u32 %v608, 16
      %v675 = vrot.slane %v673, 4
      %v676 = vshll.u32 %v608, 16
      %v678 = vrot.slane %v676, 5
      %v679 = vor.u32 %v675, %v678
      %v680 = vrot.slane %v679, 4
      %v682 = vshll.u32 %v609, 16
      %v684 = vrot.slane %v682, 5
      %v685 = vsel %vm411, %v680, %v684
      %v686 = vshrl.u32 %v609, 16
      %v688 = vrot.slane %v686, 4
      %v689 = vor.u32 %v688, %v684
      %v690 = vrot.slane %v689, 4
      %v692 = vshll.u32 %v641, 16
      %v694 = vrot.slane %v692, 5
      %v695 = vsel %vm411, %v690, %v694
      %v697 = vshrl.u32 %v610, 16
      %v699 = vrot.slane %v697, 4
      %v700 = vshll.u32 %v610, 16
      %v702 = vrot.slane %v700, 5
      %v703 = vor.u32 %v699, %v702
      %v704 = vrot.slane %v703, 4
      %v706 = vshll.u32 %v611, 16
      %v708 = vrot.slane %v706, 5
      %v709 = vsel %vm411, %v704, %v708
      %v710 = vshrl.u32 %v611, 16
      %v712 = vrot.slane %v710, 4
      %v713 = vor.u32 %v712, %v708
      %v714 = vrot.slane %v713, 4
      %v716 = vshll.u32 %v642, 16
      %v718 = vrot.slane %v716, 5
      %v719 = vsel %vm411, %v714, %v718
      %v721 = vshrl.u32 %v612, 16
      %v723 = vrot.slane %v721, 4
      %v724 = vshll.u32 %v612, 16
      %v726 = vrot.slane %v724, 5
      %v727 = vor.u32 %v723, %v726
      %v728 = vrot.slane %v727, 4
      %v730 = vshll.u32 %v613, 16
      %v732 = vrot.slane %v730, 5
      %v733 = vsel %vm411, %v728, %v732
      %v734 = vshrl.u32 %v613, 16
      %v736 = vrot.slane %v734, 4
      %v737 = vor.u32 %v736, %v732
      %v738 = vrot.slane %v737, 4
      %v740 = vshll.u32 %v643, 16
      %v742 = vrot.slane %v740, 5
      %v743 = vsel %vm411, %v738, %v742
      %v745 = vshrl.u32 %v614, 16
      %v747 = vrot.slane %v745, 4
      %v748 = vshll.u32 %v614, 16
      %v750 = vrot.slane %v748, 5
      %v751 = vor.u32 %v747, %v750
      %v752 = vrot.slane %v751, 4
      %v754 = vshll.u32 %v615, 16
      %v756 = vrot.slane %v754, 5
      %v757 = vsel %vm411, %v752, %v756
      %v758 = vshrl.u32 %v615, 16
      %v760 = vrot.slane %v758, 4
      %v761 = vor.u32 %v760, %v756
      %v762 = vrot.slane %v761, 4
      %v764 = vshll.u32 %v644, 16
      %v766 = vrot.slane %v764, 5
      %v767 = vsel %vm411, %v762, %v766
      %v769 = vshrl.u32 %v616, 16
      %v771 = vrot.slane %v769, 4
      %v772 = vshll.u32 %v616, 16
      %v774 = vrot.slane %v772, 5
      %v775 = vor.u32 %v771, %v774
      %v776 = vrot.slane %v775, 4
      %v778 = vshll.u32 %v617, 16
      %v780 = vrot.slane %v778, 5
      %v781 = vsel %vm411, %v776, %v780
      %v782 = vshrl.u32 %v617, 16
      %v784 = vrot.slane %v782, 4
      %v785 = vor.u32 %v784, %v780
      %v786 = vrot.slane %v785, 4
      %v788 = vshll.u32 %v645, 16
      %v790 = vrot.slane %v788, 5
      %v791 = vsel %vm411, %v786, %v790
      %v793 = vshrl.u32 %v618, 16
      %v795 = vrot.slane %v793, 4
      %v796 = vshll.u32 %v618, 16
      %v798 = vrot.slane %v796, 5
      %v799 = vor.u32 %v795, %v798
      %v800 = vrot.slane %v799, 4
      %v802 = vshll.u32 %v619, 16
      %v804 = vrot.slane %v802, 5
      %v805 = vsel %vm411, %v800, %v804
      %v806 = vshrl.u32 %v619, 16
      %v808 = vrot.slane %v806, 4
      %v809 = vor.u32 %v808, %v804
      %v810 = vrot.slane %v809, 4
      %v812 = vshll.u32 %v646, 16
      %v814 = vrot.slane %v812, 5
      %v815 = vsel %vm411, %v810, %v814
      %v817 = vshrl.u32 %v620, 16
      %v819 = vrot.slane %v817, 4
      %v820 = vshll.u32 %v620, 16
      %v822 = vrot.slane %v820, 5
      %v823 = vor.u32 %v819, %v822
      %v824 = vrot.slane %v823, 4
      %v826 = vshll.u32 %v621, 16
      %v828 = vrot.slane %v826, 5
      %v829 = vsel %vm411, %v824, %v828
      %v830 = vshrl.u32 %v621, 16
      %v832 = vrot.slane %v830, 4
      %v833 = vor.u32 %v832, %v828
      %v834 = vrot.slane %v833, 4
      %v836 = vshll.u32 %v647, 16
      %v838 = vrot.slane %v836, 5
      %v839 = vsel %vm411, %v834, %v838
      %s840 = sadd.s32 %s363, 1
      %s841 = smul.u32 %s840, 3
      %s842 = smul.addr %s841, 4
      %s843 = scalar_lea.vmem %s336, %s842
      %v844 = vld [vmem:[%s843] sm:$0xf]
      %v845 = vld [vmem:[%s843 + $0x4] sm:$0xf]
      %v846 = vld [vmem:[%s843 + $0xc] sm:$0xf]
      %v847 = vld [vmem:[%s843 + $0x10] sm:$0xf]
      %v848 = vld [vmem:[%s843 + $0x18] sm:$0xf]
      %v849 = vld [vmem:[%s843 + $0x1c] sm:$0xf]
      %v850 = vld [vmem:[%s843 + $0x24] sm:$0xf]
      %v851 = vld [vmem:[%s843 + $0x28] sm:$0xf]
      %v852 = vld [vmem:[%s843 + $0x30] sm:$0xf]
      %v853 = vld [vmem:[%s843 + $0x34] sm:$0xf]
      %v854 = vld [vmem:[%s843 + $0x3c] sm:$0xf]
      %v855 = vld [vmem:[%s843 + $0x40] sm:$0xf]
      %v856 = vld [vmem:[%s843 + $0x48] sm:$0xf]
      %v857 = vld [vmem:[%s843 + $0x4c] sm:$0xf]
      %v858 = vld [vmem:[%s843 + $0x54] sm:$0xf]
      %v859 = vld [vmem:[%s843 + $0x58] sm:$0xf]
      %s860 = smul.addr %s841, 4
      %s861 = scalar_lea.vmem %s341, %s860
      %v862 = vld [vmem:[%s861] sm:$0xf]
      %v863 = vld [vmem:[%s861 + $0x4] sm:$0xf]
      %v864 = vld [vmem:[%s861 + $0xc] sm:$0xf]
      %v865 = vld [vmem:[%s861 + $0x10] sm:$0xf]
      %v866 = vld [vmem:[%s861 + $0x18] sm:$0xf]
      %v867 = vld [vmem:[%s861 + $0x1c] sm:$0xf]
      %v868 = vld [vmem:[%s861 + $0x24] sm:$0xf]
      %v869 = vld [vmem:[%s861 + $0x28] sm:$0xf]
      %v870 = vld [vmem:[%s861 + $0x30] sm:$0xf]
      %v871 = vld [vmem:[%s861 + $0x34] sm:$0xf]
      %v872 = vld [vmem:[%s861 + $0x3c] sm:$0xf]
      %v873 = vld [vmem:[%s861 + $0x40] sm:$0xf]
      %v874 = vld [vmem:[%s861 + $0x48] sm:$0xf]
      %v875 = vld [vmem:[%s861 + $0x4c] sm:$0xf]
      %v876 = vld [vmem:[%s861 + $0x54] sm:$0xf]
      %v877 = vld [vmem:[%s861 + $0x58] sm:$0xf]
      %v878 = vld [vmem:[%s843 + $0x8] sm:$0x1]
      %v879 = vld [vmem:[%s843 + $0x14] sm:$0x1]
      %v880 = vld [vmem:[%s843 + $0x20] sm:$0x1]
      %v881 = vld [vmem:[%s843 + $0x2c] sm:$0x1]
      %v882 = vld [vmem:[%s843 + $0x38] sm:$0x1]
      %v883 = vld [vmem:[%s843 + $0x44] sm:$0x1]
      %v884 = vld [vmem:[%s843 + $0x50] sm:$0x1]
      %v885 = vld [vmem:[%s843 + $0x5c] sm:$0x1]
      %v887 = vshrl.u32 %v844, 16
      %v889 = vrot.slane %v887, 4
      %v890 = vshll.u32 %v844, 16
      %v892 = vrot.slane %v890, 5
      %v893 = vor.u32 %v889, %v892
      %v894 = vrot.slane %v893, 4
      %v896 = vshll.u32 %v845, 16
      %v898 = vrot.slane %v896, 5
      %v899 = vsel %vm411, %v894, %v898
      %v900 = vshrl.u32 %v845, 16
      %v902 = vrot.slane %v900, 4
      %v903 = vor.u32 %v902, %v898
      %v904 = vrot.slane %v903, 4
      %v906 = vshll.u32 %v878, 16
      %v908 = vrot.slane %v906, 5
      %v909 = vsel %vm411, %v904, %v908
      %v911 = vshrl.u32 %v846, 16
      %v913 = vrot.slane %v911, 4
      %v914 = vshll.u32 %v846, 16
      %v916 = vrot.slane %v914, 5
      %v917 = vor.u32 %v913, %v916
      %v918 = vrot.slane %v917, 4
      %v920 = vshll.u32 %v847, 16
      %v922 = vrot.slane %v920, 5
      %v923 = vsel %vm411, %v918, %v922
      %v924 = vshrl.u32 %v847, 16
      %v926 = vrot.slane %v924, 4
      %v927 = vor.u32 %v926, %v922
      %v928 = vrot.slane %v927, 4
      %v930 = vshll.u32 %v879, 16
      %v932 = vrot.slane %v930, 5
      %v933 = vsel %vm411, %v928, %v932
      %v935 = vshrl.u32 %v848, 16
      %v937 = vrot.slane %v935, 4
      %v938 = vshll.u32 %v848, 16
      %v940 = vrot.slane %v938, 5
      %v941 = vor.u32 %v937, %v940
      %v942 = vrot.slane %v941, 4
      %v944 = vshll.u32 %v849, 16
      %v946 = vrot.slane %v944, 5
      %v947 = vsel %vm411, %v942, %v946
      %v948 = vshrl.u32 %v849, 16
      %v950 = vrot.slane %v948, 4
      %v951 = vor.u32 %v950, %v946
      %v952 = vrot.slane %v951, 4
      %v954 = vshll.u32 %v880, 16
      %v956 = vrot.slane %v954, 5
      %v957 = vsel %vm411, %v952, %v956
      %v959 = vshrl.u32 %v850, 16
      %v961 = vrot.slane %v959, 4
      %v962 = vshll.u32 %v850, 16
      %v964 = vrot.slane %v962, 5
      %v965 = vor.u32 %v961, %v964
      %v966 = vrot.slane %v965, 4
      %v968 = vshll.u32 %v851, 16
      %v970 = vrot.slane %v968, 5
      %v971 = vsel %vm411, %v966, %v970
      %v972 = vshrl.u32 %v851, 16
      %v974 = vrot.slane %v972, 4
      %v975 = vor.u32 %v974, %v970
      %v976 = vrot.slane %v975, 4
      %v978 = vshll.u32 %v881, 16
      %v980 = vrot.slane %v978, 5
      %v981 = vsel %vm411, %v976, %v980
      %v983 = vshrl.u32 %v852, 16
      %v985 = vrot.slane %v983, 4
      %v986 = vshll.u32 %v852, 16
      %v988 = vrot.slane %v986, 5
      %v989 = vor.u32 %v985, %v988
      %v990 = vrot.slane %v989, 4
      %v992 = vshll.u32 %v853, 16
      %v994 = vrot.slane %v992, 5
      %v995 = vsel %vm411, %v990, %v994
      %v996 = vshrl.u32 %v853, 16
      %v998 = vrot.slane %v996, 4
      %v999 = vor.u32 %v998, %v994
      %v1000 = vrot.slane %v999, 4
      %v1002 = vshll.u32 %v882, 16
      %v1004 = vrot.slane %v1002, 5
      %v1005 = vsel %vm411, %v1000, %v1004
      %v1007 = vshrl.u32 %v854, 16
      %v1009 = vrot.slane %v1007, 4
      %v1010 = vshll.u32 %v854, 16
      %v1012 = vrot.slane %v1010, 5
      %v1013 = vor.u32 %v1009, %v1012
      %v1014 = vrot.slane %v1013, 4
      %v1016 = vshll.u32 %v855, 16
      %v1018 = vrot.slane %v1016, 5
      %v1019 = vsel %vm411, %v1014, %v1018
      %v1020 = vshrl.u32 %v855, 16
      %v1022 = vrot.slane %v1020, 4
      %v1023 = vor.u32 %v1022, %v1018
      %v1024 = vrot.slane %v1023, 4
      %v1026 = vshll.u32 %v883, 16
      %v1028 = vrot.slane %v1026, 5
      %v1029 = vsel %vm411, %v1024, %v1028
      %v1031 = vshrl.u32 %v856, 16
      %v1033 = vrot.slane %v1031, 4
      %v1034 = vshll.u32 %v856, 16
      %v1036 = vrot.slane %v1034, 5
      %v1037 = vor.u32 %v1033, %v1036
      %v1038 = vrot.slane %v1037, 4
      %v1040 = vshll.u32 %v857, 16
      %v1042 = vrot.slane %v1040, 5
      %v1043 = vsel %vm411, %v1038, %v1042
      %v1044 = vshrl.u32 %v857, 16
      %v1046 = vrot.slane %v1044, 4
      %v1047 = vor.u32 %v1046, %v1042
      %v1048 = vrot.slane %v1047, 4
      %v1050 = vshll.u32 %v884, 16
      %v1052 = vrot.slane %v1050, 5
      %v1053 = vsel %vm411, %v1048, %v1052
      %v1055 = vshrl.u32 %v858, 16
      %v1057 = vrot.slane %v1055, 4
      %v1058 = vshll.u32 %v858, 16
      %v1060 = vrot.slane %v1058, 5
      %v1061 = vor.u32 %v1057, %v1060
      %v1062 = vrot.slane %v1061, 4
      %v1064 = vshll.u32 %v859, 16
      %v1066 = vrot.slane %v1064, 5
      %v1067 = vsel %vm411, %v1062, %v1066
      %v1068 = vshrl.u32 %v859, 16
      %v1070 = vrot.slane %v1068, 4
      %v1071 = vor.u32 %v1070, %v1066
      %v1072 = vrot.slane %v1071, 4
      %v1074 = vshll.u32 %v885, 16
      %v1076 = vrot.slane %v1074, 5
      %v1077 = vsel %vm411, %v1072, %v1076
      %v1094 = vunpack.c.l.b16 %v367
      %v1095 = vunpack.c.l.b16 %v368
      %v1096 = vunpack.c.l.b16 %v369
      %v1097 = vunpack.c.l.b16 %v370
      %v1098 = vunpack.c.l.b16 %v371
      %v1099 = vunpack.c.l.b16 %v372
      %v1100 = vunpack.c.l.b16 %v373
      %v1101 = vunpack.c.l.b16 %v374
      %v1102 = vunpack.c.l.b16 %v375
      %v1103 = vunpack.c.l.b16 %v376
      %v1104 = vunpack.c.l.b16 %v377
      %v1105 = vunpack.c.l.b16 %v378
      %v1106 = vunpack.c.l.b16 %v379
      %v1107 = vunpack.c.l.b16 %v380
      %v1108 = vunpack.c.l.b16 %v381
      %v1109 = vunpack.c.l.b16 %v382
      %v1110 = vpack.c.b16 %v1095, %v1094
      %v1111 = vpack.c.b16 %v1097, %v1096
      %v1112 = vpack.c.b16 %v1099, %v1098
      %v1113 = vpack.c.b16 %v1101, %v1100
      %v1114 = vpack.c.b16 %v1103, %v1102
      %v1115 = vpack.c.b16 %v1105, %v1104
      %v1116 = vpack.c.b16 %v1107, %v1106
      %v1117 = vpack.c.b16 %v1109, %v1108
      %v1134 = vunpack.c.l.b16 %v385
      %v1135 = vunpack.c.l.b16 %v386
      %v1136 = vunpack.c.l.b16 %v387
      %v1137 = vunpack.c.l.b16 %v388
      %v1138 = vunpack.c.l.b16 %v389
      %v1139 = vunpack.c.l.b16 %v390
      %v1140 = vunpack.c.l.b16 %v391
      %v1141 = vunpack.c.l.b16 %v392
      %v1142 = vunpack.c.l.b16 %v393
      %v1143 = vunpack.c.l.b16 %v394
      %v1144 = vunpack.c.l.b16 %v395
      %v1145 = vunpack.c.l.b16 %v396
      %v1146 = vunpack.c.l.b16 %v397
      %v1147 = vunpack.c.l.b16 %v398
      %v1148 = vunpack.c.l.b16 %v399
      %v1149 = vunpack.c.l.b16 %v400
      %v1150 = vpack.c.b16 %v1135, %v1134
      %v1151 = vpack.c.b16 %v1137, %v1136
      %v1152 = vpack.c.b16 %v1139, %v1138
      %v1153 = vpack.c.b16 %v1141, %v1140
      %v1154 = vpack.c.b16 %v1143, %v1142
      %v1155 = vpack.c.b16 %v1145, %v1144
      %v1156 = vpack.c.b16 %v1147, %v1146
      %v1157 = vpack.c.b16 %v1149, %v1148
      %1158 = vrot.lane.b32.xlu0 %v1150, 64
      %v1159 = vpop.permute.xlu0 %1158
      %1160 = vrot.lane.b32.xlu0 %v1151, 64
      %v1161 = vpop.permute.xlu0 %1160
      %1162 = vrot.lane.b32.xlu0 %v1152, 64
      %v1163 = vpop.permute.xlu0 %1162
      %1164 = vrot.lane.b32.xlu0 %v1153, 64
      %v1165 = vpop.permute.xlu0 %1164
      %1166 = vrot.lane.b32.xlu0 %v1154, 64
      %v1167 = vpop.permute.xlu0 %1166
      %1168 = vrot.lane.b32.xlu0 %v1155, 64
      %v1169 = vpop.permute.xlu0 %1168
      %1170 = vrot.lane.b32.xlu0 %v1156, 64
      %v1171 = vpop.permute.xlu0 %1170
      %1172 = vrot.lane.b32.xlu0 %v1157, 64
      %v1173 = vpop.permute.xlu0 %1172
      %v1174 = vunpack.c.l.b16 %v425
      %v1175 = vunpack.c.l.b16 %v435
      %v1176 = vunpack.c.l.b16 %v449
      %v1177 = vunpack.c.l.b16 %v459
      %v1178 = vunpack.c.l.b16 %v473
      %v1179 = vunpack.c.l.b16 %v483
      %v1180 = vunpack.c.l.b16 %v497
      %v1181 = vunpack.c.l.b16 %v507
      %v1182 = vunpack.c.l.b16 %v521
      %v1183 = vunpack.c.l.b16 %v531
      %v1184 = vunpack.c.l.b16 %v545
      %v1185 = vunpack.c.l.b16 %v555
      %v1186 = vunpack.c.l.b16 %v569
      %v1187 = vunpack.c.l.b16 %v579
      %v1188 = vunpack.c.l.b16 %v593
      %v1189 = vunpack.c.l.b16 %v603
      %v1190 = vpack.c.b16 %v1175, %v1174
      %v1191 = vpack.c.b16 %v1177, %v1176
      %v1192 = vpack.c.b16 %v1179, %v1178
      %v1193 = vpack.c.b16 %v1181, %v1180
      %v1194 = vpack.c.b16 %v1183, %v1182
      %v1195 = vpack.c.b16 %v1185, %v1184
      %v1196 = vpack.c.b16 %v1187, %v1186
      %v1197 = vpack.c.b16 %v1189, %v1188
      %v1214 = vunpack.c.l.b16 %v606
      %v1215 = vunpack.c.l.b16 %v607
      %v1216 = vunpack.c.l.b16 %v608
      %v1217 = vunpack.c.l.b16 %v609
      %v1218 = vunpack.c.l.b16 %v610
      %v1219 = vunpack.c.l.b16 %v611
      %v1220 = vunpack.c.l.b16 %v612
      %v1221 = vunpack.c.l.b16 %v613
      %v1222 = vunpack.c.l.b16 %v614
      %v1223 = vunpack.c.l.b16 %v615
      %v1224 = vunpack.c.l.b16 %v616
      %v1225 = vunpack.c.l.b16 %v617
      %v1226 = vunpack.c.l.b16 %v618
      %v1227 = vunpack.c.l.b16 %v619
      %v1228 = vunpack.c.l.b16 %v620
      %v1229 = vunpack.c.l.b16 %v621
      %v1230 = vpack.c.b16 %v1215, %v1214
      %v1231 = vpack.c.b16 %v1217, %v1216
      %v1232 = vpack.c.b16 %v1219, %v1218
      %v1233 = vpack.c.b16 %v1221, %v1220
      %v1234 = vpack.c.b16 %v1223, %v1222
      %v1235 = vpack.c.b16 %v1225, %v1224
      %v1236 = vpack.c.b16 %v1227, %v1226
      %v1237 = vpack.c.b16 %v1229, %v1228
      %1238 = vrot.lane.b32.xlu0 %v1230, 64
      %v1239 = vpop.permute.xlu0 %1238
      %1240 = vrot.lane.b32.xlu0 %v1231, 64
      %v1241 = vpop.permute.xlu0 %1240
      %1242 = vrot.lane.b32.xlu0 %v1232, 64
      %v1243 = vpop.permute.xlu0 %1242
      %1244 = vrot.lane.b32.xlu0 %v1233, 64
      %v1245 = vpop.permute.xlu0 %1244
      %1246 = vrot.lane.b32.xlu0 %v1234, 64
      %v1247 = vpop.permute.xlu0 %1246
      %1248 = vrot.lane.b32.xlu0 %v1235, 64
      %v1249 = vpop.permute.xlu0 %1248
      %1250 = vrot.lane.b32.xlu0 %v1236, 64
      %v1251 = vpop.permute.xlu0 %1250
      %1252 = vrot.lane.b32.xlu0 %v1237, 64
      %v1253 = vpop.permute.xlu0 %1252
      %v1270 = vunpack.c.l.b16 %v624
      %v1271 = vunpack.c.l.b16 %v625
      %v1272 = vunpack.c.l.b16 %v626
      %v1273 = vunpack.c.l.b16 %v627
      %v1274 = vunpack.c.l.b16 %v628
      %v1275 = vunpack.c.l.b16 %v629
      %v1276 = vunpack.c.l.b16 %v630
      %v1277 = vunpack.c.l.b16 %v631
      %v1278 = vunpack.c.l.b16 %v632
      %v1279 = vunpack.c.l.b16 %v633
      %v1280 = vunpack.c.l.b16 %v634
      %v1281 = vunpack.c.l.b16 %v635
      %v1282 = vunpack.c.l.b16 %v636
      %v1283 = vunpack.c.l.b16 %v637
      %v1284 = vunpack.c.l.b16 %v638
      %v1285 = vunpack.c.l.b16 %v639
      %v1286 = vpack.c.b16 %v1271, %v1270
      %v1287 = vpack.c.b16 %v1273, %v1272
      %v1288 = vpack.c.b16 %v1275, %v1274
      %v1289 = vpack.c.b16 %v1277, %v1276
      %v1290 = vpack.c.b16 %v1279, %v1278
      %v1291 = vpack.c.b16 %v1281, %v1280
      %v1292 = vpack.c.b16 %v1283, %v1282
      %v1293 = vpack.c.b16 %v1285, %v1284
      %v1294 = vunpack.c.l.b16 %v661
      %v1295 = vunpack.c.l.b16 %v671
      %v1296 = vunpack.c.l.b16 %v685
      %v1297 = vunpack.c.l.b16 %v695
      %v1298 = vunpack.c.l.b16 %v709
      %v1299 = vunpack.c.l.b16 %v719
      %v1300 = vunpack.c.l.b16 %v733
      %v1301 = vunpack.c.l.b16 %v743
      %v1302 = vunpack.c.l.b16 %v757
      %v1303 = vunpack.c.l.b16 %v767
      %v1304 = vunpack.c.l.b16 %v781
      %v1305 = vunpack.c.l.b16 %v791
      %v1306 = vunpack.c.l.b16 %v805
      %v1307 = vunpack.c.l.b16 %v815
      %v1308 = vunpack.c.l.b16 %v829
      %v1309 = vunpack.c.l.b16 %v839
      %v1310 = vpack.c.b16 %v1295, %v1294
      %v1311 = vpack.c.b16 %v1297, %v1296
      %v1312 = vpack.c.b16 %v1299, %v1298
      %v1313 = vpack.c.b16 %v1301, %v1300
      %v1314 = vpack.c.b16 %v1303, %v1302
      %v1315 = vpack.c.b16 %v1305, %v1304
      %v1316 = vpack.c.b16 %v1307, %v1306
      %v1317 = vpack.c.b16 %v1309, %v1308
      %1318 = vrot.lane.b32.xlu0 %v1310, 64
      %v1319 = vpop.permute.xlu0 %1318
      %1320 = vrot.lane.b32.xlu0 %v1311, 64
      %v1321 = vpop.permute.xlu0 %1320
      %1322 = vrot.lane.b32.xlu0 %v1312, 64
      %v1323 = vpop.permute.xlu0 %1322
      %1324 = vrot.lane.b32.xlu0 %v1313, 64
      %v1325 = vpop.permute.xlu0 %1324
      %1326 = vrot.lane.b32.xlu0 %v1314, 64
      %v1327 = vpop.permute.xlu0 %1326
      %1328 = vrot.lane.b32.xlu0 %v1315, 64
      %v1329 = vpop.permute.xlu0 %1328
      %1330 = vrot.lane.b32.xlu0 %v1316, 64
      %v1331 = vpop.permute.xlu0 %1330
      %1332 = vrot.lane.b32.xlu0 %v1317, 64
      %v1333 = vpop.permute.xlu0 %1332
      %v1350 = vunpack.c.l.b16 %v844
      %v1351 = vunpack.c.l.b16 %v845
      %v1352 = vunpack.c.l.b16 %v846
      %v1353 = vunpack.c.l.b16 %v847
      %v1354 = vunpack.c.l.b16 %v848
      %v1355 = vunpack.c.l.b16 %v849
      %v1356 = vunpack.c.l.b16 %v850
      %v1357 = vunpack.c.l.b16 %v851
      %v1358 = vunpack.c.l.b16 %v852
      %v1359 = vunpack.c.l.b16 %v853
      %v1360 = vunpack.c.l.b16 %v854
      %v1361 = vunpack.c.l.b16 %v855
      %v1362 = vunpack.c.l.b16 %v856
      %v1363 = vunpack.c.l.b16 %v857
      %v1364 = vunpack.c.l.b16 %v858
      %v1365 = vunpack.c.l.b16 %v859
      %v1366 = vpack.c.b16 %v1351, %v1350
      %v1367 = vpack.c.b16 %v1353, %v1352
      %v1368 = vpack.c.b16 %v1355, %v1354
      %v1369 = vpack.c.b16 %v1357, %v1356
      %v1370 = vpack.c.b16 %v1359, %v1358
      %v1371 = vpack.c.b16 %v1361, %v1360
      %v1372 = vpack.c.b16 %v1363, %v1362
      %v1373 = vpack.c.b16 %v1365, %v1364
      %v1390 = vunpack.c.l.b16 %v862
      %v1391 = vunpack.c.l.b16 %v863
      %v1392 = vunpack.c.l.b16 %v864
      %v1393 = vunpack.c.l.b16 %v865
      %v1394 = vunpack.c.l.b16 %v866
      %v1395 = vunpack.c.l.b16 %v867
      %v1396 = vunpack.c.l.b16 %v868
      %v1397 = vunpack.c.l.b16 %v869
      %v1398 = vunpack.c.l.b16 %v870
      %v1399 = vunpack.c.l.b16 %v871
      %v1400 = vunpack.c.l.b16 %v872
      %v1401 = vunpack.c.l.b16 %v873
      %v1402 = vunpack.c.l.b16 %v874
      %v1403 = vunpack.c.l.b16 %v875
      %v1404 = vunpack.c.l.b16 %v876
      %v1405 = vunpack.c.l.b16 %v877
      %v1406 = vpack.c.b16 %v1391, %v1390
      %v1407 = vpack.c.b16 %v1393, %v1392
      %v1408 = vpack.c.b16 %v1395, %v1394
      %v1409 = vpack.c.b16 %v1397, %v1396
      %v1410 = vpack.c.b16 %v1399, %v1398
      %v1411 = vpack.c.b16 %v1401, %v1400
      %v1412 = vpack.c.b16 %v1403, %v1402
      %v1413 = vpack.c.b16 %v1405, %v1404
      %1414 = vrot.lane.b32.xlu0 %v1406, 64
      %v1415 = vpop.permute.xlu0 %1414
      %1416 = vrot.lane.b32.xlu0 %v1407, 64
      %v1417 = vpop.permute.xlu0 %1416
      %1418 = vrot.lane.b32.xlu0 %v1408, 64
      %v1419 = vpop.permute.xlu0 %1418
      %1420 = vrot.lane.b32.xlu0 %v1409, 64
      %v1421 = vpop.permute.xlu0 %1420
      %1422 = vrot.lane.b32.xlu0 %v1410, 64
      %v1423 = vpop.permute.xlu0 %1422
      %1424 = vrot.lane.b32.xlu0 %v1411, 64
      %v1425 = vpop.permute.xlu0 %1424
      %1426 = vrot.lane.b32.xlu0 %v1412, 64
      %v1427 = vpop.permute.xlu0 %1426
      %1428 = vrot.lane.b32.xlu0 %v1413, 64
      %v1429 = vpop.permute.xlu0 %1428
      %v1430 = vunpack.c.l.b16 %v899
      %v1431 = vunpack.c.l.b16 %v909
      %v1432 = vunpack.c.l.b16 %v923
      %v1433 = vunpack.c.l.b16 %v933
      %v1434 = vunpack.c.l.b16 %v947
      %v1435 = vunpack.c.l.b16 %v957
      %v1436 = vunpack.c.l.b16 %v971
      %v1437 = vunpack.c.l.b16 %v981
      %v1438 = vunpack.c.l.b16 %v995
      %v1439 = vunpack.c.l.b16 %v1005
      %v1440 = vunpack.c.l.b16 %v1019
      %v1441 = vunpack.c.l.b16 %v1029
      %v1442 = vunpack.c.l.b16 %v1043
      %v1443 = vunpack.c.l.b16 %v1053
      %v1444 = vunpack.c.l.b16 %v1067
      %v1445 = vunpack.c.l.b16 %v1077
      %v1446 = vpack.c.b16 %v1431, %v1430
      %v1447 = vpack.c.b16 %v1433, %v1432
      %v1448 = vpack.c.b16 %v1435, %v1434
      %v1449 = vpack.c.b16 %v1437, %v1436
      %v1450 = vpack.c.b16 %v1439, %v1438
      %v1451 = vpack.c.b16 %v1441, %v1440
      %v1452 = vpack.c.b16 %v1443, %v1442
      %v1453 = vpack.c.b16 %v1445, %v1444
      %vm1454 = vcmask 523264
      %v1457 = vsel %vm1454, %v1110, %v1159
      %v1461 = vsel %vm1454, %v1111, %v1161
      %v1465 = vsel %vm1454, %v1112, %v1163
      %v1469 = vsel %vm1454, %v1113, %v1165
      %v1473 = vsel %vm1454, %v1114, %v1167
      %v1477 = vsel %vm1454, %v1115, %v1169
      %v1481 = vsel %vm1454, %v1116, %v1171
      %v1485 = vsel %vm1454, %v1117, %v1173
      %v1489 = vsel %vm1454, %v1190, %v1239
      %v1493 = vsel %vm1454, %v1191, %v1241
      %v1497 = vsel %vm1454, %v1192, %v1243
      %v1501 = vsel %vm1454, %v1193, %v1245
      %v1505 = vsel %vm1454, %v1194, %v1247
      %v1509 = vsel %vm1454, %v1195, %v1249
      %v1513 = vsel %vm1454, %v1196, %v1251
      %v1517 = vsel %vm1454, %v1197, %v1253
      %v1521 = vsel %vm1454, %v1286, %v1319
      %v1525 = vsel %vm1454, %v1287, %v1321
      %v1529 = vsel %vm1454, %v1288, %v1323
      %v1533 = vsel %vm1454, %v1289, %v1325
      %v1537 = vsel %vm1454, %v1290, %v1327
      %v1541 = vsel %vm1454, %v1291, %v1329
      %v1545 = vsel %vm1454, %v1292, %v1331
      %v1549 = vsel %vm1454, %v1293, %v1333
      %v1553 = vsel %vm1454, %v1366, %v1415
      %v1557 = vsel %vm1454, %v1367, %v1417
      %v1561 = vsel %vm1454, %v1368, %v1419
      %v1565 = vsel %vm1454, %v1369, %v1421
      %v1569 = vsel %vm1454, %v1370, %v1423
      %v1573 = vsel %vm1454, %v1371, %v1425
      %v1577 = vsel %vm1454, %v1372, %v1427
      %v1581 = vsel %vm1454, %v1373, %v1429
      %v1583 = vld [vmem:[%s4] sm:$0xf]
      %v1584 = vld [vmem:[%s4 + $0x4] sm:$0xf]
      %v1585 = vld [vmem:[%s4 + $0x8] sm:$0xf]
      %v1586 = vld [vmem:[%s4 + $0xc] sm:$0xf]
      %v1587 = vld [vmem:[%s4 + $0x10] sm:$0xf]
      %v1588 = vld [vmem:[%s4 + $0x14] sm:$0xf]
      %v1589 = vld [vmem:[%s4 + $0x18] sm:$0xf]
      %v1590 = vld [vmem:[%s4 + $0x1c] sm:$0xf]
      %v1591 = vld [vmem:[%s4 + $0x20] sm:$0xf]
      %v1592 = vld [vmem:[%s4 + $0x24] sm:$0xf]
      %v1593 = vld [vmem:[%s4 + $0x28] sm:$0xf]
      %v1594 = vld [vmem:[%s4 + $0x2c] sm:$0xf]
      %v1595 = vld [vmem:[%s4 + $0x30] sm:$0xf]
      %v1596 = vld [vmem:[%s4 + $0x34] sm:$0xf]
      %v1597 = vld [vmem:[%s4 + $0x38] sm:$0xf]
      %v1598 = vld [vmem:[%s4 + $0x3c] sm:$0xf]
      %v1599 = vld [vmem:[%s4 + $0x40] sm:$0xf]
      %v1600 = vld [vmem:[%s4 + $0x44] sm:$0xf]
      %v1601 = vld [vmem:[%s4 + $0x48] sm:$0xf]
      %v1602 = vld [vmem:[%s4 + $0x4c] sm:$0xf]
      %v1603 = vld [vmem:[%s4 + $0x50] sm:$0xf]
      %v1604 = vld [vmem:[%s4 + $0x54] sm:$0xf]
      %v1605 = vld [vmem:[%s4 + $0x58] sm:$0xf]
      %v1606 = vld [vmem:[%s4 + $0x5c] sm:$0xf]
      %v1607 = vld [vmem:[%s4 + $0x60] sm:$0xf]
      %v1608 = vld [vmem:[%s4 + $0x64] sm:$0xf]
      %v1609 = vld [vmem:[%s4 + $0x68] sm:$0xf]
      %v1610 = vld [vmem:[%s4 + $0x6c] sm:$0xf]
      %v1611 = vld [vmem:[%s4 + $0x70] sm:$0xf]
      %v1612 = vld [vmem:[%s4 + $0x74] sm:$0xf]
      %v1613 = vld [vmem:[%s4 + $0x78] sm:$0xf]
      %v1614 = vld [vmem:[%s4 + $0x7c] sm:$0xf]
      %v1615 = vld [vmem:[%s4 + $0x80] sm:$0xf]
      %v1616 = vld [vmem:[%s4 + $0x84] sm:$0xf]
      %v1617 = vld [vmem:[%s4 + $0x88] sm:$0xf]
      %v1618 = vld [vmem:[%s4 + $0x8c] sm:$0xf]
      %v1619 = vld [vmem:[%s4 + $0x90] sm:$0xf]
      %v1620 = vld [vmem:[%s4 + $0x94] sm:$0xf]
      %v1621 = vld [vmem:[%s4 + $0x98] sm:$0xf]
      %v1622 = vld [vmem:[%s4 + $0x9c] sm:$0xf]
      %v1623 = vld [vmem:[%s4 + $0xa0] sm:$0xf]
      %v1624 = vld [vmem:[%s4 + $0xa4] sm:$0xf]
      %v1625 = vld [vmem:[%s4 + $0xa8] sm:$0xf]
      %v1626 = vld [vmem:[%s4 + $0xac] sm:$0xf]
      %v1627 = vld [vmem:[%s4 + $0xb0] sm:$0xf]
      %v1628 = vld [vmem:[%s4 + $0xb4] sm:$0xf]
      %v1629 = vld [vmem:[%s4 + $0xb8] sm:$0xf]
      %v1630 = vld [vmem:[%s4 + $0xbc] sm:$0xf]
      %v1631 = vld [vmem:[%s4 + $0xc0] sm:$0xf]
      %v1632 = vld [vmem:[%s4 + $0xc4] sm:$0xf]
      %v1633 = vld [vmem:[%s4 + $0xc8] sm:$0xf]
      %v1634 = vld [vmem:[%s4 + $0xcc] sm:$0xf]
      %v1635 = vld [vmem:[%s4 + $0xd0] sm:$0xf]
      %v1636 = vld [vmem:[%s4 + $0xd4] sm:$0xf]
      %v1637 = vld [vmem:[%s4 + $0xd8] sm:$0xf]
      %v1638 = vld [vmem:[%s4 + $0xdc] sm:$0xf]
      %v1639 = vld [vmem:[%s4 + $0xe0] sm:$0xf]
      %v1640 = vld [vmem:[%s4 + $0xe4] sm:$0xf]
      %v1641 = vld [vmem:[%s4 + $0xe8] sm:$0xf]
      %v1642 = vld [vmem:[%s4 + $0xec] sm:$0xf]
      %v1643 = vld [vmem:[%s4 + $0xf0] sm:$0xf]
      %v1644 = vld [vmem:[%s4 + $0xf4] sm:$0xf]
      %v1645 = vld [vmem:[%s4 + $0xf8] sm:$0xf]
      %v1646 = vld [vmem:[%s4 + $0xfc] sm:$0xf]
      %v1647 = vld [vmem:[%s4 + $0x100] sm:$0xf]
      %v1648 = vld [vmem:[%s4 + $0x104] sm:$0xf]
      %v1649 = vld [vmem:[%s4 + $0x108] sm:$0xf]
      %v1650 = vld [vmem:[%s4 + $0x10c] sm:$0xf]
      %v1651 = vld [vmem:[%s4 + $0x110] sm:$0xf]
      %v1652 = vld [vmem:[%s4 + $0x114] sm:$0xf]
      %v1653 = vld [vmem:[%s4 + $0x118] sm:$0xf]
      %v1654 = vld [vmem:[%s4 + $0x11c] sm:$0xf]
      %v1727 = vunpack.c.l.b16 %v1583
      %v1728 = vunpack.c.l.b16 %v1584
      %v1729 = vunpack.c.l.b16 %v1585
      %v1730 = vunpack.c.l.b16 %v1586
      %v1731 = vunpack.c.l.b16 %v1587
      %v1732 = vunpack.c.l.b16 %v1588
      %v1733 = vunpack.c.l.b16 %v1589
      %v1734 = vunpack.c.l.b16 %v1590
      %v1735 = vunpack.c.l.b16 %v1591
      %v1736 = vunpack.c.l.b16 %v1592
      %v1737 = vunpack.c.l.b16 %v1593
      %v1738 = vunpack.c.l.b16 %v1594
      %v1739 = vunpack.c.l.b16 %v1595
      %v1740 = vunpack.c.l.b16 %v1596
      %v1741 = vunpack.c.l.b16 %v1597
      %v1742 = vunpack.c.l.b16 %v1598
      %v1743 = vunpack.c.l.b16 %v1599
      %v1744 = vunpack.c.l.b16 %v1600
      %v1745 = vunpack.c.l.b16 %v1601
      %v1746 = vunpack.c.l.b16 %v1602
      %v1747 = vunpack.c.l.b16 %v1603
      %v1748 = vunpack.c.l.b16 %v1604
      %v1749 = vunpack.c.l.b16 %v1605
      %v1750 = vunpack.c.l.b16 %v1606
      %v1751 = vunpack.c.l.b16 %v1607
      %v1752 = vunpack.c.l.b16 %v1608
      %v1753 = vunpack.c.l.b16 %v1609
      %v1754 = vunpack.c.l.b16 %v1610
      %v1755 = vunpack.c.l.b16 %v1611
      %v1756 = vunpack.c.l.b16 %v1612
      %v1757 = vunpack.c.l.b16 %v1613
      %v1758 = vunpack.c.l.b16 %v1614
      %v1759 = vunpack.c.l.b16 %v1615
      %v1760 = vunpack.c.l.b16 %v1616
      %v1761 = vunpack.c.l.b16 %v1617
      %v1762 = vunpack.c.l.b16 %v1618
      %v1763 = vunpack.c.l.b16 %v1619
      %v1764 = vunpack.c.l.b16 %v1620
      %v1765 = vunpack.c.l.b16 %v1621
      %v1766 = vunpack.c.l.b16 %v1622
      %v1767 = vunpack.c.l.b16 %v1623
      %v1768 = vunpack.c.l.b16 %v1624
      %v1769 = vunpack.c.l.b16 %v1625
      %v1770 = vunpack.c.l.b16 %v1626
      %v1771 = vunpack.c.l.b16 %v1627
      %v1772 = vunpack.c.l.b16 %v1628
      %v1773 = vunpack.c.l.b16 %v1629
      %v1774 = vunpack.c.l.b16 %v1630
      %v1775 = vunpack.c.l.b16 %v1631
      %v1776 = vunpack.c.l.b16 %v1632
      %v1777 = vunpack.c.l.b16 %v1633
      %v1778 = vunpack.c.l.b16 %v1634
      %v1779 = vunpack.c.l.b16 %v1635
      %v1780 = vunpack.c.l.b16 %v1636
      %v1781 = vunpack.c.l.b16 %v1637
      %v1782 = vunpack.c.l.b16 %v1638
      %v1783 = vunpack.c.l.b16 %v1639
      %v1784 = vunpack.c.l.b16 %v1640
      %v1785 = vunpack.c.l.b16 %v1641
      %v1786 = vunpack.c.l.b16 %v1642
      %v1787 = vunpack.c.l.b16 %v1643
      %v1788 = vunpack.c.l.b16 %v1644
      %v1789 = vunpack.c.l.b16 %v1645
      %v1790 = vunpack.c.l.b16 %v1646
      %v1791 = vunpack.c.l.b16 %v1647
      %v1792 = vunpack.c.l.b16 %v1648
      %v1793 = vunpack.c.l.b16 %v1649
      %v1794 = vunpack.c.l.b16 %v1650
      %v1795 = vunpack.c.l.b16 %v1651
      %v1796 = vunpack.c.l.b16 %v1652
      %v1797 = vunpack.c.l.b16 %v1653
      %v1798 = vunpack.c.l.b16 %v1654
      %v1799 = vpack.c.b16 %v1728, %v1727
      %v1800 = vpack.c.b16 %v1730, %v1729
      %v1801 = vpack.c.b16 %v1732, %v1731
      %v1802 = vpack.c.b16 %v1734, %v1733
      %v1803 = vpack.c.b16 %v1736, %v1735
      %v1804 = vpack.c.b16 %v1738, %v1737
      %v1805 = vpack.c.b16 %v1740, %v1739
      %v1806 = vpack.c.b16 %v1742, %v1741
      %v1807 = vpack.c.b16 %v1744, %v1743
      %v1808 = vpack.c.b16 %v1746, %v1745
      %v1809 = vpack.c.b16 %v1748, %v1747
      %v1810 = vpack.c.b16 %v1750, %v1749
      %v1811 = vpack.c.b16 %v1752, %v1751
      %v1812 = vpack.c.b16 %v1754, %v1753
      %v1813 = vpack.c.b16 %v1756, %v1755
      %v1814 = vpack.c.b16 %v1758, %v1757
      %v1815 = vpack.c.b16 %v1760, %v1759
      %v1816 = vpack.c.b16 %v1762, %v1761
      %v1817 = vpack.c.b16 %v1764, %v1763
      %v1818 = vpack.c.b16 %v1766, %v1765
      %v1819 = vpack.c.b16 %v1768, %v1767
      %v1820 = vpack.c.b16 %v1770, %v1769
      %v1821 = vpack.c.b16 %v1772, %v1771
      %v1822 = vpack.c.b16 %v1774, %v1773
      %v1823 = vpack.c.b16 %v1776, %v1775
      %v1824 = vpack.c.b16 %v1778, %v1777
      %v1825 = vpack.c.b16 %v1780, %v1779
      %v1826 = vpack.c.b16 %v1782, %v1781
      %v1827 = vpack.c.b16 %v1784, %v1783
      %v1828 = vpack.c.b16 %v1786, %v1785
      %v1829 = vpack.c.b16 %v1788, %v1787
      %v1830 = vpack.c.b16 %v1790, %v1789
      %v1831 = vpack.c.b16 %v1792, %v1791
      %v1832 = vpack.c.b16 %v1794, %v1793
      %v1833 = vpack.c.b16 %v1796, %v1795
      %v1834 = vpack.c.b16 %v1798, %v1797
      %v1872 = vsel %vm1454, %v1446, 0
      %v1875 = vsel %vm1454, %v1447, 0
      %v1878 = vsel %vm1454, %v1448, 0
      %v1881 = vsel %vm1454, %v1449, 0
      %v1884 = vsel %vm1454, %v1450, 0
      %v1887 = vsel %vm1454, %v1451, 0
      %v1890 = vsel %vm1454, %v1452, 0
      %v1893 = vsel %vm1454, %v1453, 0
      %1895 = vmatprep.subr.bf16.mxu0 0
      %1896 = vmatpush1.bf16.msra.mxu0 %v1806
      %1897 = vmatprep.subr.bf16.mxu0 0
      %1898 = vmatpush1.bf16.msra.mxu0 %v1805
      %1899 = vmatprep.subr.bf16.mxu0 0
      %1900 = vmatpush1.bf16.msra.mxu0 %v1804
      %1901 = vmatprep.subr.bf16.mxu0 0
      %1902 = vmatpush1.bf16.msra.mxu0 %v1803
      %1903 = vmatprep.subr.bf16.mxu0 0
      %1904 = vmatpush1.bf16.msra.mxu0 %v1802
      %1905 = vmatprep.subr.bf16.mxu0 0
      %1906 = vmatpush1.bf16.msra.mxu0 %v1801
      %1907 = vmatprep.subr.bf16.mxu0 0
      %1908 = vmatpush1.bf16.msra.mxu0 %v1800
      %1909 = vmatprep.subr.bf16.mxu0 0
      %1910 = vmatpush1.bf16.msra.mxu0 %v1799
      %1911 = vmatprep.subr.bf16.mxu0 0
      %1912 = vmatpush2.bf16.msra.mxu0 %v1814
      %1913 = vmatprep.subr.bf16.mxu0 0
      %1914 = vmatpush2.bf16.msra.mxu0 %v1813
      %1915 = vmatprep.subr.bf16.mxu0 0
      %1916 = vmatpush2.bf16.msra.mxu0 %v1812
      %1917 = vmatprep.subr.bf16.mxu0 0
      %1918 = vmatpush2.bf16.msra.mxu0 %v1811
      %1919 = vmatprep.subr.bf16.mxu0 0
      %1920 = vmatpush2.bf16.msra.mxu0 %v1810
      %1921 = vmatprep.subr.bf16.mxu0 0
      %1922 = vmatpush2.bf16.msra.mxu0 %v1809
      %1923 = vmatprep.subr.bf16.mxu0 0
      %1924 = vmatpush2.bf16.msra.mxu0 %v1808
      %1925 = vmatprep.subr.bf16.mxu0 0
      %1926 = vmatpush2.bf16.msra.mxu0 %v1807
      %1927 = vmatprep.mubr.bf16.mxu0 %v1489
      %1928 = vmatmul.mubr.bf16.gmra.mxu0 %v1457
      %v1929 = vpop.f32.mrf.mxu0
      %v1930 = vadd.f32 0.0, %v1929
      %v1931 = vpop.f32.mrf.mxu0
      %v1932 = vpop.f32.mrf.mxu0
      %v1933 = vadd.f32 0.0, %v1932
      %v1934 = vpop.f32.mrf.mxu0
      %1935 = vmatprep.mubr.bf16.mxu0 %v1493
      %1936 = vmatmul.mubr.bf16.gmra.mxu0 %v1461
      %v1937 = vpop.f32.mrf.mxu0
      %v1938 = vadd.f32 0.0, %v1937
      %v1939 = vpop.f32.mrf.mxu0
      %v1940 = vpop.f32.mrf.mxu0
      %v1941 = vadd.f32 0.0, %v1940
      %v1942 = vpop.f32.mrf.mxu0
      %1943 = vmatprep.mubr.bf16.mxu0 %v1497
      %1944 = vmatmul.mubr.bf16.gmra.mxu0 %v1465
      %v1945 = vpop.f32.mrf.mxu0
      %v1946 = vadd.f32 0.0, %v1945
      %v1947 = vpop.f32.mrf.mxu0
      %v1948 = vpop.f32.mrf.mxu0
      %v1949 = vadd.f32 0.0, %v1948
      %v1950 = vpop.f32.mrf.mxu0
      %1951 = vmatprep.mubr.bf16.mxu0 %v1501
      %1952 = vmatmul.mubr.bf16.gmra.mxu0 %v1469
      %v1953 = vpop.f32.mrf.mxu0
      %v1954 = vadd.f32 0.0, %v1953
      %v1955 = vpop.f32.mrf.mxu0
      %v1956 = vpop.f32.mrf.mxu0
      %v1957 = vadd.f32 0.0, %v1956
      %v1958 = vpop.f32.mrf.mxu0
      %1959 = vmatprep.mubr.bf16.mxu0 %v1505
      %1960 = vmatmul.mubr.bf16.gmra.mxu0 %v1473
      %v1961 = vpop.f32.mrf.mxu0
      %v1962 = vadd.f32 0.0, %v1961
      %v1963 = vpop.f32.mrf.mxu0
      %v1964 = vpop.f32.mrf.mxu0
      %v1965 = vadd.f32 0.0, %v1964
      %v1966 = vpop.f32.mrf.mxu0
      %1967 = vmatprep.mubr.bf16.mxu0 %v1509
      %1968 = vmatmul.mubr.bf16.gmra.mxu0 %v1477
      %v1969 = vpop.f32.mrf.mxu0
      %v1970 = vadd.f32 0.0, %v1969
      %v1971 = vpop.f32.mrf.mxu0
      %v1972 = vpop.f32.mrf.mxu0
      %v1973 = vadd.f32 0.0, %v1972
      %v1974 = vpop.f32.mrf.mxu0
      %1975 = vmatprep.mubr.bf16.mxu0 %v1513
      %1976 = vmatmul.mubr.bf16.gmra.mxu0 %v1481
      %v1977 = vpop.f32.mrf.mxu0
      %v1978 = vadd.f32 0.0, %v1977
      %v1979 = vpop.f32.mrf.mxu0
      %v1980 = vpop.f32.mrf.mxu0
      %v1981 = vadd.f32 0.0, %v1980
      %v1982 = vpop.f32.mrf.mxu0
      %1983 = vmatprep.mubr.bf16.mxu0 %v1517
      %1984 = vmatmul.mubr.bf16.gmra.mxu0 %v1485
      %v1985 = vpop.f32.mrf.mxu0
      %v1986 = vadd.f32 0.0, %v1985
      %v1987 = vpop.f32.mrf.mxu0
      %v1988 = vpop.f32.mrf.mxu0
      %v1989 = vadd.f32 0.0, %v1988
      %v1990 = vpop.f32.mrf.mxu0
      %1991 = vdwg.mxu0
      %1992 = vmatprep.subr.bf16.mxu0 0
      %1993 = vmatpush1.bf16.msra.mxu0 %v1822
      %1994 = vmatprep.subr.bf16.mxu0 0
      %1995 = vmatpush1.bf16.msra.mxu0 %v1821
      %1996 = vmatprep.subr.bf16.mxu0 0
      %1997 = vmatpush1.bf16.msra.mxu0 %v1820
      %1998 = vmatprep.subr.bf16.mxu0 0
      %1999 = vmatpush1.bf16.msra.mxu0 %v1819
      %2000 = vmatprep.subr.bf16.mxu0 0
      %2001 = vmatpush1.bf16.msra.mxu0 %v1818
      %2002 = vmatprep.subr.bf16.mxu0 0
      %2003 = vmatpush1.bf16.msra.mxu0 %v1817
      %2004 = vmatprep.subr.bf16.mxu0 0
      %2005 = vmatpush1.bf16.msra.mxu0 %v1816
      %2006 = vmatprep.subr.bf16.mxu0 0
      %2007 = vmatpush1.bf16.msra.mxu0 %v1815
      %2008 = vmatprep.subr.bf16.mxu0 0
      %2009 = vmatpush2.bf16.msra.mxu0 %v1830
      %2010 = vmatprep.subr.bf16.mxu0 0
      %2011 = vmatpush2.bf16.msra.mxu0 %v1829
      %2012 = vmatprep.subr.bf16.mxu0 0
      %2013 = vmatpush2.bf16.msra.mxu0 %v1828
      %2014 = vmatprep.subr.bf16.mxu0 0
      %2015 = vmatpush2.bf16.msra.mxu0 %v1827
      %2016 = vmatprep.subr.bf16.mxu0 0
      %2017 = vmatpush2.bf16.msra.mxu0 %v1826
      %2018 = vmatprep.subr.bf16.mxu0 0
      %2019 = vmatpush2.bf16.msra.mxu0 %v1825
      %2020 = vmatprep.subr.bf16.mxu0 0
      %2021 = vmatpush2.bf16.msra.mxu0 %v1824
      %2022 = vmatprep.subr.bf16.mxu0 0
      %2023 = vmatpush2.bf16.msra.mxu0 %v1823
      %2024 = vmatprep.mubr.bf16.mxu0 %v1553
      %2025 = vmatmul.mubr.bf16.gmra.mxu0 %v1521
      %v2026 = vpop.f32.mrf.mxu0
      %v2027 = vadd.f32 %v1930, %v2026
      %v2028 = vpop.f32.mrf.mxu0
      %v2029 = vpop.f32.mrf.mxu0
      %v2030 = vadd.f32 %v1933, %v2029
      %v2031 = vpop.f32.mrf.mxu0
      %2032 = vmatprep.mubr.bf16.mxu0 %v1557
      %2033 = vmatmul.mubr.bf16.gmra.mxu0 %v1525
      %v2034 = vpop.f32.mrf.mxu0
      %v2035 = vadd.f32 %v1938, %v2034
      %v2036 = vpop.f32.mrf.mxu0
      %v2037 = vpop.f32.mrf.mxu0
      %v2038 = vadd.f32 %v1941, %v2037
      %v2039 = vpop.f32.mrf.mxu0
      %2040 = vmatprep.mubr.bf16.mxu0 %v1561
      %2041 = vmatmul.mubr.bf16.gmra.mxu0 %v1529
      %v2042 = vpop.f32.mrf.mxu0
      %v2043 = vadd.f32 %v1946, %v2042
      %v2044 = vpop.f32.mrf.mxu0
      %v2045 = vpop.f32.mrf.mxu0
      %v2046 = vadd.f32 %v1949, %v2045
      %v2047 = vpop.f32.mrf.mxu0
      %2048 = vmatprep.mubr.bf16.mxu0 %v1565
      %2049 = vmatmul.mubr.bf16.gmra.mxu0 %v1533
      %v2050 = vpop.f32.mrf.mxu0
      %v2051 = vadd.f32 %v1954, %v2050
      %v2052 = vpop.f32.mrf.mxu0
      %v2053 = vpop.f32.mrf.mxu0
      %v2054 = vadd.f32 %v1957, %v2053
      %v2055 = vpop.f32.mrf.mxu0
      %2056 = vmatprep.mubr.bf16.mxu0 %v1569
      %2057 = vmatmul.mubr.bf16.gmra.mxu0 %v1537
      %v2058 = vpop.f32.mrf.mxu0
      %v2059 = vadd.f32 %v1962, %v2058
      %v2060 = vpop.f32.mrf.mxu0
      %v2061 = vpop.f32.mrf.mxu0
      %v2062 = vadd.f32 %v1965, %v2061
      %v2063 = vpop.f32.mrf.mxu0
      %2064 = vmatprep.mubr.bf16.mxu0 %v1573
      %2065 = vmatmul.mubr.bf16.gmra.mxu0 %v1541
      %v2066 = vpop.f32.mrf.mxu0
      %v2067 = vadd.f32 %v1970, %v2066
      %v2068 = vpop.f32.mrf.mxu0
      %v2069 = vpop.f32.mrf.mxu0
      %v2070 = vadd.f32 %v1973, %v2069
      %v2071 = vpop.f32.mrf.mxu0
      %2072 = vmatprep.mubr.bf16.mxu0 %v1577
      %2073 = vmatmul.mubr.bf16.gmra.mxu0 %v1545
      %v2074 = vpop.f32.mrf.mxu0
      %v2075 = vadd.f32 %v1978, %v2074
      %v2076 = vpop.f32.mrf.mxu0
      %v2077 = vpop.f32.mrf.mxu0
      %v2078 = vadd.f32 %v1981, %v2077
      %v2079 = vpop.f32.mrf.mxu0
      %2080 = vmatprep.mubr.bf16.mxu0 %v1581
      %2081 = vmatmul.mubr.bf16.gmra.mxu0 %v1549
      %v2082 = vpop.f32.mrf.mxu0
      %v2083 = vadd.f32 %v1986, %v2082
      %v2084 = vpop.f32.mrf.mxu0
      %v2085 = vpop.f32.mrf.mxu0
      %v2086 = vadd.f32 %v1989, %v2085
      %v2087 = vpop.f32.mrf.mxu0
      %2088 = vdwg.mxu0
      %2089 = vmatprep.subr.bf16.mxu0 0
      %2090 = vmatpush1.bf16.msra.mxu0 0
      %2091 = vmatprep.subr.bf16.mxu0 0
      %2092 = vmatpush1.bf16.msra.mxu0 0
      %2093 = vmatprep.subr.bf16.mxu0 0
      %2094 = vmatpush1.bf16.msra.mxu0 0
      %2095 = vmatprep.subr.bf16.mxu0 0
      %2096 = vmatpush1.bf16.msra.mxu0 0
      %2097 = vmatprep.subr.bf16.mxu0 0
      %2098 = vmatpush1.bf16.msra.mxu0 %v1834
      %2099 = vmatprep.subr.bf16.mxu0 0
      %2100 = vmatpush1.bf16.msra.mxu0 %v1833
      %2101 = vmatprep.subr.bf16.mxu0 0
      %2102 = vmatpush1.bf16.msra.mxu0 %v1832
      %2103 = vmatprep.subr.bf16.mxu0 0
      %2104 = vmatpush1.bf16.msra.mxu0 %v1831
      %2105 = vmatprep.subr.bf16.mxu0 0
      %2106 = vmatpush2.bf16.msra.mxu0 0
      %2107 = vmatprep.subr.bf16.mxu0 0
      %2108 = vmatpush2.bf16.msra.mxu0 0
      %2109 = vmatprep.subr.bf16.mxu0 0
      %2110 = vmatpush2.bf16.msra.mxu0 0
      %2111 = vmatprep.subr.bf16.mxu0 0
      %2112 = vmatpush2.bf16.msra.mxu0 0
      %2113 = vmatprep.subr.bf16.mxu0 0
      %2114 = vmatpush2.bf16.msra.mxu0 0
      %2115 = vmatprep.subr.bf16.mxu0 0
      %2116 = vmatpush2.bf16.msra.mxu0 0
      %2117 = vmatprep.subr.bf16.mxu0 0
      %2118 = vmatpush2.bf16.msra.mxu0 0
      %2119 = vmatprep.subr.bf16.mxu0 0
      %2120 = vmatpush2.bf16.msra.mxu0 0
      %2121 = vmatprep.mubr.bf16.mxu0 0
      %2122 = vmatmul.mubr.bf16.gmra.mxu0 %v1872
      %v2123 = vpop.f32.mrf.mxu0
      %v2124 = vadd.f32 %v2027, %v2123
      %v2125 = vpop.f32.mrf.mxu0
      %v2126 = vpop.f32.mrf.mxu0
      %v2127 = vadd.f32 %v2030, %v2126
      %v2128 = vpop.f32.mrf.mxu0
      %2129 = vmatprep.mubr.bf16.mxu0 0
      %2130 = vmatmul.mubr.bf16.gmra.mxu0 %v1875
      %v2131 = vpop.f32.mrf.mxu0
      %v2132 = vadd.f32 %v2035, %v2131
      %v2133 = vpop.f32.mrf.mxu0
      %v2134 = vpop.f32.mrf.mxu0
      %v2135 = vadd.f32 %v2038, %v2134
      %v2136 = vpop.f32.mrf.mxu0
      %2137 = vmatprep.mubr.bf16.mxu0 0
      %2138 = vmatmul.mubr.bf16.gmra.mxu0 %v1878
      %v2139 = vpop.f32.mrf.mxu0
      %v2140 = vadd.f32 %v2043, %v2139
      %v2141 = vpop.f32.mrf.mxu0
      %v2142 = vpop.f32.mrf.mxu0
      %v2143 = vadd.f32 %v2046, %v2142
      %v2144 = vpop.f32.mrf.mxu0
      %2145 = vmatprep.mubr.bf16.mxu0 0
      %2146 = vmatmul.mubr.bf16.gmra.mxu0 %v1881
      %v2147 = vpop.f32.mrf.mxu0
      %v2148 = vadd.f32 %v2051, %v2147
      %v2149 = vpop.f32.mrf.mxu0
      %v2150 = vpop.f32.mrf.mxu0
      %v2151 = vadd.f32 %v2054, %v2150
      %v2152 = vpop.f32.mrf.mxu0
      %2153 = vmatprep.mubr.bf16.mxu0 0
      %2154 = vmatmul.mubr.bf16.gmra.mxu0 %v1884
      %v2155 = vpop.f32.mrf.mxu0
      %v2156 = vadd.f32 %v2059, %v2155
      %v2157 = vpop.f32.mrf.mxu0
      %v2158 = vpop.f32.mrf.mxu0
      %v2159 = vadd.f32 %v2062, %v2158
      %v2160 = vpop.f32.mrf.mxu0
      %2161 = vmatprep.mubr.bf16.mxu0 0
      %2162 = vmatmul.mubr.bf16.gmra.mxu0 %v1887
      %v2163 = vpop.f32.mrf.mxu0
      %v2164 = vadd.f32 %v2067, %v2163
      %v2165 = vpop.f32.mrf.mxu0
      %v2166 = vpop.f32.mrf.mxu0
      %v2167 = vadd.f32 %v2070, %v2166
      %v2168 = vpop.f32.mrf.mxu0
      %2169 = vmatprep.mubr.bf16.mxu0 0
      %2170 = vmatmul.mubr.bf16.gmra.mxu0 %v1890
      %v2171 = vpop.f32.mrf.mxu0
      %v2172 = vadd.f32 %v2075, %v2171
      %v2173 = vpop.f32.mrf.mxu0
      %v2174 = vpop.f32.mrf.mxu0
      %v2175 = vadd.f32 %v2078, %v2174
      %v2176 = vpop.f32.mrf.mxu0
      %2177 = vmatprep.mubr.bf16.mxu0 0
      %2178 = vmatmul.mubr.bf16.gmra.mxu0 %v1893
      %v2179 = vpop.f32.mrf.mxu0
      %v2180 = vadd.f32 %v2083, %v2179
      %v2181 = vpop.f32.mrf.mxu0
      %v2182 = vpop.f32.mrf.mxu0
      %v2183 = vadd.f32 %v2086, %v2182
      %v2184 = vpop.f32.mrf.mxu0
      %2185 = vdwg.mxu0
      %v2186 = vld [vmem:[%s5] sm:$0x1]
      %v2188 = vlaneseq
      %v2189 = vshrl.u32 %v2188, 7
      %v2190 = vsub.s32 0, %v2189
      %v2191 = vrot.slane %v2186, %v2190
      %v2193 = vmul.f32 %v2124, %v2191
      %v2194 = vmul.f32 %v2127, %v2191
      %v2195 = vmul.f32 %v2132, %v2191
      %v2196 = vmul.f32 %v2135, %v2191
      %v2197 = vmul.f32 %v2140, %v2191
      %v2198 = vmul.f32 %v2143, %v2191
      %v2199 = vmul.f32 %v2148, %v2191
      %v2200 = vmul.f32 %v2151, %v2191
      %v2201 = vmul.f32 %v2156, %v2191
      %v2202 = vmul.f32 %v2159, %v2191
      %v2203 = vmul.f32 %v2164, %v2191
      %v2204 = vmul.f32 %v2167, %v2191
      %v2205 = vmul.f32 %v2172, %v2191
      %v2206 = vmul.f32 %v2175, %v2191
      %v2207 = vmul.f32 %v2180, %v2191
      %v2208 = vmul.f32 %v2183, %v2191
      %v2209 = vld [vmem:[%s6] sm:$0x1]
      %v2211 = vlaneseq
      %v2212 = vshrl.u32 %v2211, 7
      %v2213 = vsub.s32 0, %v2212
      %v2214 = vrot.slane %v2209, %v2213
      %v2216 = vadd.f32 %v2193, %v2214
      %v2217 = vadd.f32 %v2194, %v2214
      %v2218 = vadd.f32 %v2195, %v2214
      %v2219 = vadd.f32 %v2196, %v2214
      %v2220 = vadd.f32 %v2197, %v2214
      %v2221 = vadd.f32 %v2198, %v2214
      %v2222 = vadd.f32 %v2199, %v2214
      %v2223 = vadd.f32 %v2200, %v2214
      %v2224 = vadd.f32 %v2201, %v2214
      %v2225 = vadd.f32 %v2202, %v2214
      %v2226 = vadd.f32 %v2203, %v2214
      %v2227 = vadd.f32 %v2204, %v2214
      %v2228 = vadd.f32 %v2205, %v2214
      %v2229 = vadd.f32 %v2206, %v2214
      %v2230 = vadd.f32 %v2207, %v2214
      %v2231 = vadd.f32 %v2208, %v2214
      %v2232 = vmax.f32 %v2216, 0.0
      %v2233 = vmax.f32 %v2217, 0.0
      %v2234 = vmax.f32 %v2218, 0.0
      %v2235 = vmax.f32 %v2219, 0.0
      %v2236 = vmax.f32 %v2220, 0.0
      %v2237 = vmax.f32 %v2221, 0.0
      %v2238 = vmax.f32 %v2222, 0.0
      %v2239 = vmax.f32 %v2223, 0.0
      %v2240 = vmax.f32 %v2224, 0.0
      %v2241 = vmax.f32 %v2225, 0.0
      %v2242 = vmax.f32 %v2226, 0.0
      %v2243 = vmax.f32 %v2227, 0.0
      %v2244 = vmax.f32 %v2228, 0.0
      %v2245 = vmax.f32 %v2229, 0.0
      %v2246 = vmax.f32 %v2230, 0.0
      %v2247 = vmax.f32 %v2231, 0.0
      %v2248 = vpack.c.bf16 %v2233, %v2232
      %v2249 = vpack.c.bf16 %v2235, %v2234
      %v2250 = vpack.c.bf16 %v2237, %v2236
      %v2251 = vpack.c.bf16 %v2239, %v2238
      %v2252 = vpack.c.bf16 %v2241, %v2240
      %v2253 = vpack.c.bf16 %v2243, %v2242
      %v2254 = vpack.c.bf16 %v2245, %v2244
      %v2255 = vpack.c.bf16 %v2247, %v2246
      %v2264 = vunpack.c.l.b16 %v2248
      %v2265 = vunpack.c.h.b16 %v2248
      %v2266 = vunpack.c.l.b16 %v2249
      %v2267 = vunpack.c.h.b16 %v2249
      %v2268 = vunpack.c.l.b16 %v2250
      %v2269 = vunpack.c.h.b16 %v2250
      %v2270 = vunpack.c.l.b16 %v2251
      %v2271 = vunpack.c.h.b16 %v2251
      %v2272 = vunpack.c.l.b16 %v2252
      %v2273 = vunpack.c.h.b16 %v2252
      %v2274 = vunpack.c.l.b16 %v2253
      %v2275 = vunpack.c.h.b16 %v2253
      %v2276 = vunpack.c.l.b16 %v2254
      %v2277 = vunpack.c.h.b16 %v2254
      %v2278 = vunpack.c.l.b16 %v2255
      %v2279 = vunpack.c.h.b16 %v2255
      %v2280 = vpack.c.b16 %v2264, %v2264
      %v2281 = vpack.c.b16 %v2265, %v2265
      %v2282 = vpack.c.b16 %v2266, %v2266
      %v2283 = vpack.c.b16 %v2267, %v2267
      %v2284 = vpack.c.b16 %v2268, %v2268
      %v2285 = vpack.c.b16 %v2269, %v2269
      %v2286 = vpack.c.b16 %v2270, %v2270
      %v2287 = vpack.c.b16 %v2271, %v2271
      %v2288 = vpack.c.b16 %v2272, %v2272
      %v2289 = vpack.c.b16 %v2273, %v2273
      %v2290 = vpack.c.b16 %v2274, %v2274
      %v2291 = vpack.c.b16 %v2275, %v2275
      %v2292 = vpack.c.b16 %v2276, %v2276
      %v2293 = vpack.c.b16 %v2277, %v2277
      %v2294 = vpack.c.b16 %v2278, %v2278
      %v2295 = vpack.c.b16 %v2279, %v2279
      %2312 = vst [vmem:[%s360] sm:$0xf] %v2280
      %2313 = vst [vmem:[%s360 + $0x4] sm:$0xf] %v2281
      %2314 = vst [vmem:[%s360 + $0x8] sm:$0xf] %v2282
      %2315 = vst [vmem:[%s360 + $0xc] sm:$0xf] %v2283
      %2316 = vst [vmem:[%s360 + $0x10] sm:$0xf] %v2284
      %2317 = vst [vmem:[%s360 + $0x14] sm:$0xf] %v2285
      %2318 = vst [vmem:[%s360 + $0x18] sm:$0xf] %v2286
      %2319 = vst [vmem:[%s360 + $0x1c] sm:$0xf] %v2287
      %2320 = vst [vmem:[%s360 + $0x20] sm:$0xf] %v2288
      %2321 = vst [vmem:[%s360 + $0x24] sm:$0xf] %v2289
      %2322 = vst [vmem:[%s360 + $0x28] sm:$0xf] %v2290
      %2323 = vst [vmem:[%s360 + $0x2c] sm:$0xf] %v2291
      %2324 = vst [vmem:[%s360 + $0x30] sm:$0xf] %v2292
      %2325 = vst [vmem:[%s360 + $0x34] sm:$0xf] %v2293
      %2326 = vst [vmem:[%s360 + $0x38] sm:$0xf] %v2294
      %2327 = vst [vmem:[%s360 + $0x3c] sm:$0xf] %v2295
      %s2328 = smul.u32 16, %s23
      %p2329 = scmp.lt.s32.totalorder %s22, 1
      %s2330 = scalar_select %p2329, %s22, 1
      %p2331 = scmp.lt.s32.totalorder %s2328, 31
      %s2332 = scalar_select %p2331, %s2328, 31
      %s2333 = smul.addr %s2330, 32
      %s2334 = sadd.s32 %s2332, %s2333
      %s2335 = smul.addr %s2334, 4
      %s2336 = scalar_lea.vmem %s7, %s2335
      // Predicated region
      $region49: #{_lambda_.6} parent=47 // pred_check
        %p2337 = pneg %p217
      $region50: #{_lambda_.6} parent=47 // pred_check_branch
        %2339 = sbr.rel (%p2337) target = $region52
      $region51: #{_lambda_.6} parent=47 // pred_region
        %s2340 = smul.u32 16, %s23
      $region52: #{_lambda_.6} parent=47 // pred_fallthru
        _
    $region48: #{_lambda_.6} parent=5 // pred_fallthru
      _
    %p2341 = scmp.le.s32.totalorder 2, %s13
    // Predicated region
    $region53: #{_lambda_.6} parent=5 // pred_check
      %p2342 = pneg %p2341
    $region54: #{_lambda_.6} parent=5 // pred_check_branch
      %2344 = sbr.rel (%p2342) target = $region56
    $region55: #{_lambda_.6} parent=5 // pred_region
      %s2345 = ssub.s32 %s13, 2
      // Predicated region
      $region57: #{_lambda_.6} parent=55 // pred_check
        %p2346 = pneg %p223
      $region58: #{_lambda_.6} parent=55 // pred_check_branch
        %2348 = sbr.rel (%p2346) target = $region60
      $region59: #{_lambda_.6} parent=55 // pred_region
        %s2349 = smul.u32 16, %s25
        %p2350 = scmp.lt.s32.totalorder %s24, 1
        %s2351 = scalar_select %p2350, %s24, 1
        %p2352 = scmp.lt.s32.totalorder %s2349, 31
        %s2353 = scalar_select %p2352, %s2349, 31
        %s2354 = smul.addr %s2351, 32
        %s2355 = sadd.s32 %s2353, %s2354
        %s2356 = smul.addr %s2355, 4
        %s2357 = scalar_lea.vmem %s7, %s2356
      $region60: #{_lambda_.6} parent=55 // pred_fallthru
        _
    $region56: #{_lambda_.6} parent=5 // pred_fallthru
      _
  $region6: #{_lambda_.6} parent=0 // loop_footer
    %s17 = sadd.s32 1, %s13
  $region7: #{_lambda_.6} parent=0 // loop_footer_branch
    %12 = sbr.rel target = $region3
  $region8: #{_lambda_.6} parent=0 // loop_exit
    _

// kernel: _lambda_.7
$region0: #{_lambda_.7}
  #allocation0 [shape = 'u32[]', space=smem, size = 0x4, offset = 0x4, fixed_abs, tag = 'smem constant byte address 0x4 - core index']
  #allocation1 [shape = 'u32[144,128]{1,0:T(1,128)}', space=vmem, size = 0x12000, scoped, tag = 'internal scratch']
  %s0 = inlined_call_operand.vmem [shape: bf16[2,18,18,128], index: 0, kind: input, shape index: {}]
  %s1 = inlined_call_operand.vmem [shape: bf16[1152,128], index: 1, kind: input, shape index: {}]
  %s2 = inlined_call_operand.vmem [shape: f32[1,128], index: 2, kind: input, shape index: {}]
  %s3 = inlined_call_operand.vmem [shape: f32[1,128], index: 3, kind: input, shape index: {}]
  %s4 = inlined_call_operand.vmem [shape: bf16[2,256,64], index: 4, kind: input, shape index: {}]
  %s5 = inlined_call_operand.vmem [shape: bf16[64,128], index: 5, kind: input, shape index: {}]
  %s6 = inlined_call_operand.vmem [shape: f32[1,128], index: 6, kind: input, shape index: {}]
  %s7 = inlined_call_operand.vmem [shape: f32[1,128], index: 7, kind: input, shape index: {}]
  %s8 = inlined_call_operand.hbm [shape: f32[2,256,128], index: 8, kind: output, shape index: {}]
  %s9 = sld [smem:[#allocation0]]
  $region65: #{_lambda_.7} parent=0
    _
  %s11 = ssub.s32 1, %s9
  %s12 = scalar_select 0, %s11, %s9
  $region1: #{_lambda_.7} parent=0
    #allocation2 [shape = 'u8[131072]{0}', space=vmem, size = 0x20000, scoped, tag = 'output window, operand 0']
    #allocation3 [shape = 's32[2]{0}', space=sflag, size = 0x8, scoped, tag = 'scoped memory for _lambda_.7']
    %13 = vsyncpa [#allocation3], 0
    %s14 = scalar_lea.sflag [#allocation3], 1
    %15 = vsyncpa %s14, 0
    loop: start=0, step=1, limit=6
    $region2: #{_lambda_.7} parent=1 // loop_pre_header
      _
    $region3: #{_lambda_.7} parent=1 // loop_header
      %s17 = sphi 0, %s21
      %p18 = scmp.ge.s32.totalorder %s17, 6
      %s24 = sphi 0, %s36
      %s25 = sphi 0, %s32
      %s26 = sphi 0, %s24
      %s27 = sphi 0, %s25
      %s28 = sphi 0, %s26
      %s29 = sphi 0, %s27
      %s39 = sphi 0, %s41
      %s42 = sphi 0, %s39
      %s43 = sphi 0, %s42
      %s59 = sphi 0, %s43
      %s63 = sphi 0, %s63
      %s65 = sphi 0, %s63
      %s66 = sphi 0, %s65
      %s80 = sphi 0, %s66
      %s84 = sphi 0, %s84
      %s86 = sphi 0, %s84
      %s87 = sphi 0, %s86
      %s101 = sphi 0, %s87
      %s105 = sphi 0, %s105
      %s107 = sphi 0, %s105
      %s108 = sphi 0, %s107
      %s122 = sphi 0, %s108
      %s130 = sphi 0, %s132
      %s133 = sphi 0, %s130
      %s134 = sphi 0, %s133
      %s150 = sphi 0, %s134
      %s154 = sphi 0, %s154
      %s156 = sphi 0, %s154
      %s157 = sphi 0, %s156
      %s171 = sphi 0, %s157
      %s175 = sphi 0, %s175
      %s177 = sphi 0, %s175
      %s178 = sphi 0, %s177
      %s192 = sphi 0, %s178
      %s196 = sphi 0, %s196
      %s198 = sphi 0, %s196
      %s199 = sphi 0, %s198
      %s213 = sphi 0, %s199
      %s221 = sphi 0, %s223
      %s224 = sphi 0, %s221
      %s225 = sphi 0, %s224
      %s241 = sphi 0, %s225
    $region4: #{_lambda_.7} parent=1 // loop_header_branch
      %20 = sbr.rel (%p18) target = $region8
    $region5: #{_lambda_.7} parent=1 // loop_body
      %s22 = ssub.s32 %s17, 1
      %s23 = ssub.s32 %s17, 2
      %s30 = sadd.s32 1, %s25
      %p31 = scmp.ge.s32.totalorder %s30, 2
      %s32 = scalar_select %p31, 0, %s30
      %s33 = sadd.s32 1, %s24
      %s34 = scalar_select %p31, %s33, %s24
      %p35 = scmp.ge.s32.totalorder %s34, 2
      %s36 = scalar_select %p35, 0, %s34
      %s37 = ssub.s32 %s24, %s36
      %p38 = scmp.eq.s32.totalorder %s37, 0
      %s40 = sadd.s32 %s39, 1
      %s41 = scalar_select %p38, %s39, %s40
      %p44 = pneg %p38
      %p45 = scmp.eq.s32.totalorder %s17, 3
      %p46 = por %p44, %p45
      %p47 = scmp.ne.s32.totalorder %s39, %s42
      %p48 = scmp.eq.s32.totalorder %s17, 0
      %p49 = por %p47, %p48
      %p50 = scmp.ne.s32.totalorder %s39, %s42
      %p51 = scmp.eq.s32.totalorder %s22, 3
      %p52 = por %p50, %p51
      %p53 = scmp.ne.s32.totalorder %s42, %s43
      %p54 = scmp.eq.s32.totalorder %s22, 0
      %p55 = por %p53, %p54
      %p56 = scmp.ne.s32.totalorder %s42, %s43
      %p57 = scmp.eq.s32.totalorder %s23, 3
      %p58 = por %p56, %p57
      %p60 = scmp.ne.s32.totalorder %s43, %s59
      %p61 = scmp.eq.s32.totalorder %s23, 0
      %p62 = por %p60, %p61
      %s64 = sadd.s32 %s63, 1
      %p67 = scmp.eq.s32.totalorder %s17, 3
      %p68 = scmp.ne.s32.totalorder %s63, %s65
      %p69 = scmp.eq.s32.totalorder %s17, 0
      %p70 = por %p68, %p69
      %p71 = scmp.ne.s32.totalorder %s63, %s65
      %p72 = scmp.eq.s32.totalorder %s22, 3
      %p73 = por %p71, %p72
      %p74 = scmp.ne.s32.totalorder %s65, %s66
      %p75 = scmp.eq.s32.totalorder %s22, 0
      %p76 = por %p74, %p75
      %p77 = scmp.ne.s32.totalorder %s65, %s66
      %p78 = scmp.eq.s32.totalorder %s23, 3
      %p79 = por %p77, %p78
      %p81 = scmp.ne.s32.totalorder %s66, %s80
      %p82 = scmp.eq.s32.totalorder %s23, 0
      %p83 = por %p81, %p82
      %s85 = sadd.s32 %s84, 1
      %p88 = scmp.eq.s32.totalorder %s17, 3
      %p89 = scmp.ne.s32.totalorder %s84, %s86
      %p90 = scmp.eq.s32.totalorder %s17, 0
      %p91 = por %p89, %p90
      %p92 = scmp.ne.s32.totalorder %s84, %s86
      %p93 = scmp.eq.s32.totalorder %s22, 3
      %p94 = por %p92, %p93
      %p95 = scmp.ne.s32.totalorder %s86, %s87
      %p96 = scmp.eq.s32.totalorder %s22, 0
      %p97 = por %p95, %p96
      %p98 = scmp.ne.s32.totalorder %s86, %s87
      %p99 = scmp.eq.s32.totalorder %s23, 3
      %p100 = por %p98, %p99
      %p102 = scmp.ne.s32.totalorder %s87, %s101
      %p103 = scmp.eq.s32.totalorder %s23, 0
      %p104 = por %p102, %p103
      %s106 = sadd.s32 %s105, 1
      %p109 = scmp.eq.s32.totalorder %s17, 3
      %p110 = scmp.ne.s32.totalorder %s105, %s107
      %p111 = scmp.eq.s32.totalorder %s17, 0
      %p112 = por %p110, %p111
      %p113 = scmp.ne.s32.totalorder %s105, %s107
      %p114 = scmp.eq.s32.totalorder %s22, 3
      %p115 = por %p113, %p114
      %p116 = scmp.ne.s32.totalorder %s107, %s108
      %p117 = scmp.eq.s32.totalorder %s22, 0
      %p118 = por %p116, %p117
      %p119 = scmp.ne.s32.totalorder %s107, %s108
      %p120 = scmp.eq.s32.totalorder %s23, 3
      %p121 = por %p119, %p120
      %p123 = scmp.ne.s32.totalorder %s108, %s122
      %p124 = scmp.eq.s32.totalorder %s23, 0
      %p125 = por %p123, %p124
      %s126 = ssub.s32 %s24, %s36
      %s127 = ssub.s32 %s25, %s32
      %s128 = sor.u32 %s126, %s127
      %p129 = scmp.eq.s32.totalorder %s128, 0
      %s131 = sadd.s32 %s130, 1
      %s132 = scalar_select %p129, %s130, %s131
      %p135 = pneg %p129
      %p136 = scmp.eq.s32.totalorder %s17, 3
      %p137 = por %p135, %p136
      %p138 = scmp.ne.s32.totalorder %s130, %s133
      %p139 = scmp.eq.s32.totalorder %s17, 0
      %p140 = por %p138, %p139
      %p141 = scmp.ne.s32.totalorder %s130, %s133
      %p142 = scmp.eq.s32.totalorder %s22, 3
      %p143 = por %p141, %p142
      %p144 = scmp.ne.s32.totalorder %s133, %s134
      %p145 = scmp.eq.s32.totalorder %s22, 0
      %p146 = por %p144, %p145
      %p147 = scmp.ne.s32.totalorder %s133, %s134
      %p148 = scmp.eq.s32.totalorder %s23, 3
      %p149 = por %p147, %p148
      %p151 = scmp.ne.s32.totalorder %s134, %s150
      %p152 = scmp.eq.s32.totalorder %s23, 0
      %p153 = por %p151, %p152
      %s155 = sadd.s32 %s154, 1
      %p158 = scmp.eq.s32.totalorder %s17, 3
      %p159 = scmp.ne.s32.totalorder %s154, %s156
      %p160 = scmp.eq.s32.totalorder %s17, 0
      %p161 = por %p159, %p160
      %p162 = scmp.ne.s32.totalorder %s154, %s156
      %p163 = scmp.eq.s32.totalorder %s22, 3
      %p164 = por %p162, %p163
      %p165 = scmp.ne.s32.totalorder %s156, %s157
      %p166 = scmp.eq.s32.totalorder %s22, 0
      %p167 = por %p165, %p166
      %p168 = scmp.ne.s32.totalorder %s156, %s157
      %p169 = scmp.eq.s32.totalorder %s23, 3
      %p170 = por %p168, %p169
      %p172 = scmp.ne.s32.totalorder %s157, %s171
      %p173 = scmp.eq.s32.totalorder %s23, 0
      %p174 = por %p172, %p173
      %s176 = sadd.s32 %s175, 1
      %p179 = scmp.eq.s32.totalorder %s17, 3
      %p180 = scmp.ne.s32.totalorder %s175, %s177
      %p181 = scmp.eq.s32.totalorder %s17, 0
      %p182 = por %p180, %p181
      %p183 = scmp.ne.s32.totalorder %s175, %s177
      %p184 = scmp.eq.s32.totalorder %s22, 3
      %p185 = por %p183, %p184
      %p186 = scmp.ne.s32.totalorder %s177, %s178
      %p187 = scmp.eq.s32.totalorder %s22, 0
      %p188 = por %p186, %p187
      %p189 = scmp.ne.s32.totalorder %s177, %s178
      %p190 = scmp.eq.s32.totalorder %s23, 3
      %p191 = por %p189, %p190
      %p193 = scmp.ne.s32.totalorder %s178, %s192
      %p194 = scmp.eq.s32.totalorder %s23, 0
      %p195 = por %p193, %p194
      %s197 = sadd.s32 %s196, 1
      %p200 = scmp.eq.s32.totalorder %s17, 3
      %p201 = scmp.ne.s32.totalorder %s196, %s198
      %p202 = scmp.eq.s32.totalorder %s17, 0
      %p203 = por %p201, %p202
      %p204 = scmp.ne.s32.totalorder %s196, %s198
      %p205 = scmp.eq.s32.totalorder %s22, 3
      %p206 = por %p204, %p205
      %p207 = scmp.ne.s32.totalorder %s198, %s199
      %p208 = scmp.eq.s32.totalorder %s22, 0
      %p209 = por %p207, %p208
      %p210 = scmp.ne.s32.totalorder %s198, %s199
      %p211 = scmp.eq.s32.totalorder %s23, 3
      %p212 = por %p210, %p211
      %p214 = scmp.ne.s32.totalorder %s199, %s213
      %p215 = scmp.eq.s32.totalorder %s23, 0
      %p216 = por %p214, %p215
      %s217 = ssub.s32 %s24, %s36
      %s218 = ssub.s32 %s25, %s32
      %s219 = sor.u32 %s217, %s218
      %p220 = scmp.eq.s32.totalorder %s219, 0
      %s222 = sadd.s32 %s221, 1
      %s223 = scalar_select %p220, %s221, %s222
      %p226 = pneg %p220
      %p227 = scmp.eq.s32.totalorder %s17, 3
      %p228 = por %p226, %p227
      %p229 = scmp.ne.s32.totalorder %s221, %s224
      %p230 = scmp.eq.s32.totalorder %s17, 0
      %p231 = por %p229, %p230
      %p232 = scmp.ne.s32.totalorder %s221, %s224
      %p233 = scmp.eq.s32.totalorder %s22, 3
      %p234 = por %p232, %p233
      %p235 = scmp.ne.s32.totalorder %s224, %s225
      %p236 = scmp.eq.s32.totalorder %s22, 0
      %p237 = por %p235, %p236
      %p238 = scmp.ne.s32.totalorder %s224, %s225
      %p239 = scmp.eq.s32.totalorder %s23, 3
      %p240 = por %p238, %p239
      %p242 = scmp.ne.s32.totalorder %s225, %s241
      %p243 = scmp.eq.s32.totalorder %s23, 0
      %p244 = por %p242, %p243
      %p245 = scmp.le.s32.totalorder 1, %s17
      %p246 = scmp.lt.s32.totalorder %s17, 5
      %p247 = pnand %p245, %p246
      %p248 = pneg %p247
      // Predicated region
      $region9: #{_lambda_.7} parent=5 // pred_check
        _
      $region10: #{_lambda_.7} parent=5 // pred_check_branch
        %250 = sbr.rel (%p247) target = $region12
      $region11: #{_lambda_.7} parent=5 // pred_region
        %s251 = ssub.s32 %s17, 1
        // Predicated region
        $region13: #{_lambda_.7} parent=11 // pred_check
          %p252 = pneg %p76
        $region14: #{_lambda_.7} parent=11 // pred_check_branch
          %254 = sbr.rel (%p252) target = $region16
        $region15: #{_lambda_.7} parent=11 // pred_region
          _
        $region16: #{_lambda_.7} parent=11 // pred_fallthru
          _
        // Predicated region
        $region17: #{_lambda_.7} parent=11 // pred_check
          %p255 = pneg %p97
        $region18: #{_lambda_.7} parent=11 // pred_check_branch
          %257 = sbr.rel (%p255) target = $region20
        $region19: #{_lambda_.7} parent=11 // pred_region
          _
        $region20: #{_lambda_.7} parent=11 // pred_fallthru
          _
        // Predicated region
        $region21: #{_lambda_.7} parent=11 // pred_check
          %p258 = pneg %p118
        $region22: #{_lambda_.7} parent=11 // pred_check_branch
          %260 = sbr.rel (%p258) target = $region24
        $region23: #{_lambda_.7} parent=11 // pred_region
          _
        $region24: #{_lambda_.7} parent=11 // pred_fallthru
          _
        // Predicated region
        $region25: #{_lambda_.7} parent=11 // pred_check
          %p261 = pneg %p167
        $region26: #{_lambda_.7} parent=11 // pred_check_branch
          %263 = sbr.rel (%p261) target = $region28
        $region27: #{_lambda_.7} parent=11 // pred_region
          _
        $region28: #{_lambda_.7} parent=11 // pred_fallthru
          _
        // Predicated region
        $region29: #{_lambda_.7} parent=11 // pred_check
          %p264 = pneg %p188
        $region30: #{_lambda_.7} parent=11 // pred_check_branch
          %266 = sbr.rel (%p264) target = $region32
        $region31: #{_lambda_.7} parent=11 // pred_region
          _
        $region32: #{_lambda_.7} parent=11 // pred_fallthru
          _
        // Predicated region
        $region33: #{_lambda_.7} parent=11 // pred_check
          %p267 = pneg %p209
        $region34: #{_lambda_.7} parent=11 // pred_check_branch
          %269 = sbr.rel (%p267) target = $region36
        $region35: #{_lambda_.7} parent=11 // pred_region
          _
        $region36: #{_lambda_.7} parent=11 // pred_fallthru
          _
      $region12: #{_lambda_.7} parent=5 // pred_fallthru
        _
      %p270 = scmp.lt.s32.totalorder %s17, 4
      // Predicated region
      $region37: #{_lambda_.7} parent=5 // pred_check
        %p271 = pneg %p270
      $region38: #{_lambda_.7} parent=5 // pred_check_branch
        %273 = sbr.rel (%p271) target = $region40
      $region39: #{_lambda_.7} parent=5 // pred_region
        // Predicated region
        $region41: #{_lambda_.7} parent=39 // pred_check
          %p274 = pneg %p49
        $region42: #{_lambda_.7} parent=39 // pred_check_branch
          %276 = sbr.rel (%p274) target = $region44
        $region43: #{_lambda_.7} parent=39 // pred_region
          %p277 = scmp.lt.s32.totalorder %s24, 1
          %s278 = scalar_select %p277, %s24, 1
          %s279 = smul.addr %s278, 54
          %s280 = smul.addr %s279, 4
          %s281 = scalar_lea.vmem %s0, %s280
        $region44: #{_lambda_.7} parent=39 // pred_fallthru
          _
        // Predicated region
        $region45: #{_lambda_.7} parent=39 // pred_check
          %p282 = pneg %p140
        $region46: #{_lambda_.7} parent=39 // pred_check_branch
          %284 = sbr.rel (%p282) target = $region48
        $region47: #{_lambda_.7} parent=39 // pred_region
          %s285 = smul.u32 16, %s25
          %p286 = scmp.lt.s32.totalorder %s24, 1
          %s287 = scalar_select %p286, %s24, 1
          %p288 = scmp.lt.s32.totalorder %s285, 31
          %s289 = scalar_select %p288, %s285, 31
          %s290 = smul.addr %s287, 32
          %s291 = sadd.s32 %s289, %s290
          %s292 = smul.addr %s291, 4
          %s293 = scalar_lea.vmem %s4, %s292
          %s294 = smul.u32 16, %s25
        $region48: #{_lambda_.7} parent=39 // pred_fallthru
          _
      $region40: #{_lambda_.7} parent=5 // pred_fallthru
        _
      %p295 = scmp.le.s32.totalorder 1, %s17
      %p296 = scmp.lt.s32.totalorder %s17, 5
      %p297 = pnand %p295, %p296
      %p298 = pneg %p297
      // Predicated region
      $region49: #{_lambda_.7} parent=5 // pred_check
        _
      $region50: #{_lambda_.7} parent=5 // pred_check_branch
        %300 = sbr.rel (%p297) target = $region52
      $region51: #{_lambda_.7} parent=5 // pred_region
        %s301 = ssub.s32 %s17, 1
        %p302 = scmp.lt.s32.totalorder %s26, 1
        %s303 = scalar_select %p302, %s26, 1
        %s304 = smul.addr %s303, 54
        %s305 = smul.addr %s304, 4
        %s306 = scalar_lea.vmem %s0, %s305
        %p307 = pneg %p55
        %p308 = pneg %p52
        %p309 = pneg %p76
        %p310 = pneg %p73
        %p311 = pneg %p97
        %p312 = pneg %p94
        %p313 = pneg %p118
        %p314 = pneg %p115
        %s315 = smul.u32 16, %s27
        %p316 = scmp.lt.s32.totalorder %s26, 1
        %s317 = scalar_select %p316, %s26, 1
        %p318 = scmp.lt.s32.totalorder %s315, 31
        %s319 = scalar_select %p318, %s315, 31
        %s320 = smul.addr %s317, 32
        %s321 = sadd.s32 %s319, %s320
        %s322 = smul.addr %s321, 4
        %s323 = scalar_lea.vmem %s4, %s322
        %p324 = pneg %p146
        %p325 = pneg %p143
        %p326 = pneg %p167
        %p327 = pneg %p164
        %p328 = pneg %p188
        %p329 = pneg %p185
        %p330 = pneg %p209
        %p331 = pneg %p206
        %p332 = pneg %p237
        %p333 = pneg %p234
        %s334 = sand.u32 %s224, 1
        %s335 = scalar_lea.sflag [#allocation3], %s334
        %s336 = sand.u32 %s224, 1
        %s337 = smul.addr %s336, 128
        %s338 = scalar_lea.vmem [#allocation2], %s337
        %p339 = scmp.lt.s32.totalorder %s26, 1
        %s340 = scalar_select %p339, %s26, 1
        %s341 = smul.addr %s340, 54
        %s342 = smul.addr %s341, 4
        %s343 = scalar_lea.vmem %s0, %s342
        %s344 = smul.u32 16, %s27
        %p345 = scmp.lt.s32.totalorder %s26, 1
        %s346 = scalar_select %p345, %s26, 1
        %p347 = scmp.lt.s32.totalorder %s344, 31
        %s348 = scalar_select %p347, %s344, 31
        %s349 = smul.addr %s346, 32
        %s350 = sadd.s32 %s348, %s349
        %s351 = smul.addr %s350, 4
        %s352 = scalar_lea.vmem %s4, %s351
        %s353 = smul.u32 16, %s27
        %s354 = smul.u32 16, %s27
        %s356 = smul.u32 %s27, 8
        %s357 = smul.u32 %s356, 3
        %s358 = smul.addr %s357, 4
        %s359 = scalar_lea.vmem %s343, %s358
        %v360 = vld [vmem:[%s359] sm:$0xf]
        %v361 = vld [vmem:[%s359 + $0x4] sm:$0xf]
        %v362 = vld [vmem:[%s359 + $0xc] sm:$0xf]
        %v363 = vld [vmem:[%s359 + $0x10] sm:$0xf]
        %v364 = vld [vmem:[%s359 + $0x18] sm:$0xf]
        %v365 = vld [vmem:[%s359 + $0x1c] sm:$0xf]
        %v366 = vld [vmem:[%s359 + $0x24] sm:$0xf]
        %v367 = vld [vmem:[%s359 + $0x28] sm:$0xf]
        %v368 = vld [vmem:[%s359 + $0x30] sm:$0xf]
        %v369 = vld [vmem:[%s359 + $0x34] sm:$0xf]
        %v370 = vld [vmem:[%s359 + $0x3c] sm:$0xf]
        %v371 = vld [vmem:[%s359 + $0x40] sm:$0xf]
        %v372 = vld [vmem:[%s359 + $0x48] sm:$0xf]
        %v373 = vld [vmem:[%s359 + $0x4c] sm:$0xf]
        %v374 = vld [vmem:[%s359 + $0x54] sm:$0xf]
        %v375 = vld [vmem:[%s359 + $0x58] sm:$0xf]
        %v376 = vld [vmem:[%s359 + $0x8] sm:$0x1]
        %v377 = vld [vmem:[%s359 + $0x14] sm:$0x1]
        %v378 = vld [vmem:[%s359 + $0x20] sm:$0x1]
        %v379 = vld [vmem:[%s359 + $0x2c] sm:$0x1]
        %v380 = vld [vmem:[%s359 + $0x38] sm:$0x1]
        %v381 = vld [vmem:[%s359 + $0x44] sm:$0x1]
        %v382 = vld [vmem:[%s359 + $0x50] sm:$0x1]
        %v383 = vld [vmem:[%s359 + $0x5c] sm:$0x1]
        %vm384 = vsmask.f32 3328
        %vm385 = vsmask.f32 7440
        %vm386 = vmor %vm384, %vm385
        %v388 = vshrl.u32 %v360, 16
        %v390 = vrot.slane %v388, 4
        %v391 = vshll.u32 %v360, 16
        %v393 = vrot.slane %v391, 5
        %v394 = vor.u32 %v390, %v393
        %v395 = vrot.slane %v394, 4
        %v397 = vshll.u32 %v361, 16
        %v399 = vrot.slane %v397, 5
        %v400 = vsel %vm386, %v395, %v399
        %v401 = vshrl.u32 %v361, 16
        %v403 = vrot.slane %v401, 4
        %v404 = vor.u32 %v403, %v399
        %v405 = vrot.slane %v404, 4
        %v407 = vshll.u32 %v376, 16
        %v409 = vrot.slane %v407, 5
        %v410 = vsel %vm386, %v405, %v409
        %v412 = vshrl.u32 %v362, 16
        %v414 = vrot.slane %v412, 4
        %v415 = vshll.u32 %v362, 16
        %v417 = vrot.slane %v415, 5
        %v418 = vor.u32 %v414, %v417
        %v419 = vrot.slane %v418, 4
        %v421 = vshll.u32 %v363, 16
        %v423 = vrot.slane %v421, 5
        %v424 = vsel %vm386, %v419, %v423
        %v425 = vshrl.u32 %v363, 16
        %v427 = vrot.slane %v425, 4
        %v428 = vor.u32 %v427, %v423
        %v429 = vrot.slane %v428, 4
        %v431 = vshll.u32 %v377, 16
        %v433 = vrot.slane %v431, 5
        %v434 = vsel %vm386, %v429, %v433
        %v436 = vshrl.u32 %v364, 16
        %v438 = vrot.slane %v436, 4
        %v439 = vshll.u32 %v364, 16
        %v441 = vrot.slane %v439, 5
        %v442 = vor.u32 %v438, %v441
        %v443 = vrot.slane %v442, 4
        %v445 = vshll.u32 %v365, 16
        %v447 = vrot.slane %v445, 5
        %v448 = vsel %vm386, %v443, %v447
        %v449 = vshrl.u32 %v365, 16
        %v451 = vrot.slane %v449, 4
        %v452 = vor.u32 %v451, %v447
        %v453 = vrot.slane %v452, 4
        %v455 = vshll.u32 %v378, 16
        %v457 = vrot.slane %v455, 5
        %v458 = vsel %vm386, %v453, %v457
        %v460 = vshrl.u32 %v366, 16
        %v462 = vrot.slane %v460, 4
        %v463 = vshll.u32 %v366, 16
        %v465 = vrot.slane %v463, 5
        %v466 = vor.u32 %v462, %v465
        %v467 = vrot.slane %v466, 4
        %v469 = vshll.u32 %v367, 16
        %v471 = vrot.slane %v469, 5
        %v472 = vsel %vm386, %v467, %v471
        %v473 = vshrl.u32 %v367, 16
        %v475 = vrot.slane %v473, 4
        %v476 = vor.u32 %v475, %v471
        %v477 = vrot.slane %v476, 4
        %v479 = vshll.u32 %v379, 16
        %v481 = vrot.slane %v479, 5
        %v482 = vsel %vm386, %v477, %v481
        %v484 = vshrl.u32 %v368, 16
        %v486 = vrot.slane %v484, 4
        %v487 = vshll.u32 %v368, 16
        %v489 = vrot.slane %v487, 5
        %v490 = vor.u32 %v486, %v489
        %v491 = vrot.slane %v490, 4
        %v493 = vshll.u32 %v369, 16
        %v495 = vrot.slane %v493, 5
        %v496 = vsel %vm386, %v491, %v495
        %v497 = vshrl.u32 %v369, 16
        %v499 = vrot.slane %v497, 4
        %v500 = vor.u32 %v499, %v495
        %v501 = vrot.slane %v500, 4
        %v503 = vshll.u32 %v380, 16
        %v505 = vrot.slane %v503, 5
        %v506 = vsel %vm386, %v501, %v505
        %v508 = vshrl.u32 %v370, 16
        %v510 = vrot.slane %v508, 4
        %v511 = vshll.u32 %v370, 16
        %v513 = vrot.slane %v511, 5
        %v514 = vor.u32 %v510, %v513
        %v515 = vrot.slane %v514, 4
        %v517 = vshll.u32 %v371, 16
        %v519 = vrot.slane %v517, 5
        %v520 = vsel %vm386, %v515, %v519
        %v521 = vshrl.u32 %v371, 16
        %v523 = vrot.slane %v521, 4
        %v524 = vor.u32 %v523, %v519
        %v525 = vrot.slane %v524, 4
        %v527 = vshll.u32 %v381, 16
        %v529 = vrot.slane %v527, 5
        %v530 = vsel %vm386, %v525, %v529
        %v532 = vshrl.u32 %v372, 16
        %v534 = vrot.slane %v532, 4
        %v535 = vshll.u32 %v372, 16
        %v537 = vrot.slane %v535, 5
        %v538 = vor.u32 %v534, %v537
        %v539 = vrot.slane %v538, 4
        %v541 = vshll.u32 %v373, 16
        %v543 = vrot.slane %v541, 5
        %v544 = vsel %vm386, %v539, %v543
        %v545 = vshrl.u32 %v373, 16
        %v547 = vrot.slane %v545, 4
        %v548 = vor.u32 %v547, %v543
        %v549 = vrot.slane %v548, 4
        %v551 = vshll.u32 %v382, 16
        %v553 = vrot.slane %v551, 5
        %v554 = vsel %vm386, %v549, %v553
        %v556 = vshrl.u32 %v374, 16
        %v558 = vrot.slane %v556, 4
        %v559 = vshll.u32 %v374, 16
        %v561 = vrot.slane %v559, 5
        %v562 = vor.u32 %v558, %v561
        %v563 = vrot.slane %v562, 4
        %v565 = vshll.u32 %v375, 16
        %v567 = vrot.slane %v565, 5
        %v568 = vsel %vm386, %v563, %v567
        %v569 = vshrl.u32 %v375, 16
        %v571 = vrot.slane %v569, 4
        %v572 = vor.u32 %v571, %v567
        %v573 = vrot.slane %v572, 4
        %v575 = vshll.u32 %v383, 16
        %v577 = vrot.slane %v575, 5
        %v578 = vsel %vm386, %v573, %v577
        %v579 = vld [vmem:[%s359] sm:$0xe]
        %v580 = vld [vmem:[%s359 + $0xc] sm:$0xe]
        %v581 = vld [vmem:[%s359 + $0x18] sm:$0xe]
        %v582 = vld [vmem:[%s359 + $0x24] sm:$0xe]
        %v583 = vld [vmem:[%s359 + $0x30] sm:$0xe]
        %v584 = vld [vmem:[%s359 + $0x3c] sm:$0xe]
        %v585 = vld [vmem:[%s359 + $0x48] sm:$0xe]
        %v586 = vld [vmem:[%s359 + $0x54] sm:$0xe]
        %vm611 = vcmask 1042432
        %vm612 = vcmask 1046532
        %vm613 = vmor %vm611, %vm612
        %v614 = vrot.slane %v579, 5
        %v615 = vrot.slane %v614, 4
        %v616 = vrot.slane %v361, 5
        %v617 = vsel %vm613, %v615, %v616
        %v618 = vrot.slane %v616, 4
        %v619 = vrot.slane %v376, 5
        %v620 = vsel %vm613, %v618, %v619
        %v621 = vrot.slane %v580, 5
        %v622 = vrot.slane %v621, 4
        %v623 = vrot.slane %v363, 5
        %v624 = vsel %vm613, %v622, %v623
        %v625 = vrot.slane %v623, 4
        %v626 = vrot.slane %v377, 5
        %v627 = vsel %vm613, %v625, %v626
        %v628 = vrot.slane %v581, 5
        %v629 = vrot.slane %v628, 4
        %v630 = vrot.slane %v365, 5
        %v631 = vsel %vm613, %v629, %v630
        %v632 = vrot.slane %v630, 4
        %v633 = vrot.slane %v378, 5
        %v634 = vsel %vm613, %v632, %v633
        %v635 = vrot.slane %v582, 5
        %v636 = vrot.slane %v635, 4
        %v637 = vrot.slane %v367, 5
        %v638 = vsel %vm613, %v636, %v637
        %v639 = vrot.slane %v637, 4
        %v640 = vrot.slane %v379, 5
        %v641 = vsel %vm613, %v639, %v640
        %v642 = vrot.slane %v583, 5
        %v643 = vrot.slane %v642, 4
        %v644 = vrot.slane %v369, 5
        %v645 = vsel %vm613, %v643, %v644
        %v646 = vrot.slane %v644, 4
        %v647 = vrot.slane %v380, 5
        %v648 = vsel %vm613, %v646, %v647
        %v649 = vrot.slane %v584, 5
        %v650 = vrot.slane %v649, 4
        %v651 = vrot.slane %v371, 5
        %v652 = vsel %vm613, %v650, %v651
        %v653 = vrot.slane %v651, 4
        %v654 = vrot.slane %v381, 5
        %v655 = vsel %vm613, %v653, %v654
        %v656 = vrot.slane %v585, 5
        %v657 = vrot.slane %v656, 4
        %v658 = vrot.slane %v373, 5
        %v659 = vsel %vm613, %v657, %v658
        %v660 = vrot.slane %v658, 4
        %v661 = vrot.slane %v382, 5
        %v662 = vsel %vm613, %v660, %v661
        %v663 = vrot.slane %v586, 5
        %v664 = vrot.slane %v663, 4
        %v665 = vrot.slane %v375, 5
        %v666 = vsel %vm613, %v664, %v665
        %v667 = vrot.slane %v665, 4
        %v668 = vrot.slane %v383, 5
        %v669 = vsel %vm613, %v667, %v668
        %s670 = sadd.s32 %s356, 1
        %s671 = smul.u32 %s670, 3
        %s672 = smul.addr %s671, 4
        %s673 = scalar_lea.vmem %s343, %s672
        %v674 = vld [vmem:[%s673] sm:$0xf]
        %v675 = vld [vmem:[%s673 + $0x4] sm:$0xf]
        %v676 = vld [vmem:[%s673 + $0xc] sm:$0xf]
        %v677 = vld [vmem:[%s673 + $0x10] sm:$0xf]
        %v678 = vld [vmem:[%s673 + $0x18] sm:$0xf]
        %v679 = vld [vmem:[%s673 + $0x1c] sm:$0xf]
        %v680 = vld [vmem:[%s673 + $0x24] sm:$0xf]
        %v681 = vld [vmem:[%s673 + $0x28] sm:$0xf]
        %v682 = vld [vmem:[%s673 + $0x30] sm:$0xf]
        %v683 = vld [vmem:[%s673 + $0x34] sm:$0xf]
        %v684 = vld [vmem:[%s673 + $0x3c] sm:$0xf]
        %v685 = vld [vmem:[%s673 + $0x40] sm:$0xf]
        %v686 = vld [vmem:[%s673 + $0x48] sm:$0xf]
        %v687 = vld [vmem:[%s673 + $0x4c] sm:$0xf]
        %v688 = vld [vmem:[%s673 + $0x54] sm:$0xf]
        %v689 = vld [vmem:[%s673 + $0x58] sm:$0xf]
        %v690 = vld [vmem:[%s673 + $0x8] sm:$0x1]
        %v691 = vld [vmem:[%s673 + $0x14] sm:$0x1]
        %v692 = vld [vmem:[%s673 + $0x20] sm:$0x1]
        %v693 = vld [vmem:[%s673 + $0x2c] sm:$0x1]
        %v694 = vld [vmem:[%s673 + $0x38] sm:$0x1]
        %v695 = vld [vmem:[%s673 + $0x44] sm:$0x1]
        %v696 = vld [vmem:[%s673 + $0x50] sm:$0x1]
        %v697 = vld [vmem:[%s673 + $0x5c] sm:$0x1]
        %v699 = vshrl.u32 %v674, 16
        %v701 = vrot.slane %v699, 4
        %v702 = vshll.u32 %v674, 16
        %v704 = vrot.slane %v702, 5
        %v705 = vor.u32 %v701, %v704
        %v706 = vrot.slane %v705, 4
        %v708 = vshll.u32 %v675, 16
        %v710 = vrot.slane %v708, 5
        %v711 = vsel %vm386, %v706, %v710
        %v712 = vshrl.u32 %v675, 16
        %v714 = vrot.slane %v712, 4
        %v715 = vor.u32 %v714, %v710
        %v716 = vrot.slane %v715, 4
        %v718 = vshll.u32 %v690, 16
        %v720 = vrot.slane %v718, 5
        %v721 = vsel %vm386, %v716, %v720
        %v723 = vshrl.u32 %v676, 16
        %v725 = vrot.slane %v723, 4
        %v726 = vshll.u32 %v676, 16
        %v728 = vrot.slane %v726, 5
        %v729 = vor.u32 %v725, %v728
        %v730 = vrot.slane %v729, 4
        %v732 = vshll.u32 %v677, 16
        %v734 = vrot.slane %v732, 5
        %v735 = vsel %vm386, %v730, %v734
        %v736 = vshrl.u32 %v677, 16
        %v738 = vrot.slane %v736, 4
        %v739 = vor.u32 %v738, %v734
        %v740 = vrot.slane %v739, 4
        %v742 = vshll.u32 %v691, 16
        %v744 = vrot.slane %v742, 5
        %v745 = vsel %vm386, %v740, %v744
        %v747 = vshrl.u32 %v678, 16
        %v749 = vrot.slane %v747, 4
        %v750 = vshll.u32 %v678, 16
        %v752 = vrot.slane %v750, 5
        %v753 = vor.u32 %v749, %v752
        %v754 = vrot.slane %v753, 4
        %v756 = vshll.u32 %v679, 16
        %v758 = vrot.slane %v756, 5
        %v759 = vsel %vm386, %v754, %v758
        %v760 = vshrl.u32 %v679, 16
        %v762 = vrot.slane %v760, 4
        %v763 = vor.u32 %v762, %v758
        %v764 = vrot.slane %v763, 4
        %v766 = vshll.u32 %v692, 16
        %v768 = vrot.slane %v766, 5
        %v769 = vsel %vm386, %v764, %v768
        %v771 = vshrl.u32 %v680, 16
        %v773 = vrot.slane %v771, 4
        %v774 = vshll.u32 %v680, 16
        %v776 = vrot.slane %v774, 5
        %v777 = vor.u32 %v773, %v776
        %v778 = vrot.slane %v777, 4
        %v780 = vshll.u32 %v681, 16
        %v782 = vrot.slane %v780, 5
        %v783 = vsel %vm386, %v778, %v782
        %v784 = vshrl.u32 %v681, 16
        %v786 = vrot.slane %v784, 4
        %v787 = vor.u32 %v786, %v782
        %v788 = vrot.slane %v787, 4
        %v790 = vshll.u32 %v693, 16
        %v792 = vrot.slane %v790, 5
        %v793 = vsel %vm386, %v788, %v792
        %v795 = vshrl.u32 %v682, 16
        %v797 = vrot.slane %v795, 4
        %v798 = vshll.u32 %v682, 16
        %v800 = vrot.slane %v798, 5
        %v801 = vor.u32 %v797, %v800
        %v802 = vrot.slane %v801, 4
        %v804 = vshll.u32 %v683, 16
        %v806 = vrot.slane %v804, 5
        %v807 = vsel %vm386, %v802, %v806
        %v808 = vshrl.u32 %v683, 16
        %v810 = vrot.slane %v808, 4
        %v811 = vor.u32 %v810, %v806
        %v812 = vrot.slane %v811, 4
        %v814 = vshll.u32 %v694, 16
        %v816 = vrot.slane %v814, 5
        %v817 = vsel %vm386, %v812, %v816
        %v819 = vshrl.u32 %v684, 16
        %v821 = vrot.slane %v819, 4
        %v822 = vshll.u32 %v684, 16
        %v824 = vrot.slane %v822, 5
        %v825 = vor.u32 %v821, %v824
        %v826 = vrot.slane %v825, 4
        %v828 = vshll.u32 %v685, 16
        %v830 = vrot.slane %v828, 5
        %v831 = vsel %vm386, %v826, %v830
        %v832 = vshrl.u32 %v685, 16
        %v834 = vrot.slane %v832, 4
        %v835 = vor.u32 %v834, %v830
        %v836 = vrot.slane %v835, 4
        %v838 = vshll.u32 %v695, 16
        %v840 = vrot.slane %v838, 5
        %v841 = vsel %vm386, %v836, %v840
        %v843 = vshrl.u32 %v686, 16
        %v845 = vrot.slane %v843, 4
        %v846 = vshll.u32 %v686, 16
        %v848 = vrot.slane %v846, 5
        %v849 = vor.u32 %v845, %v848
        %v850 = vrot.slane %v849, 4
        %v852 = vshll.u32 %v687, 16
        %v854 = vrot.slane %v852, 5
        %v855 = vsel %vm386, %v850, %v854
        %v856 = vshrl.u32 %v687, 16
        %v858 = vrot.slane %v856, 4
        %v859 = vor.u32 %v858, %v854
        %v860 = vrot.slane %v859, 4
        %v862 = vshll.u32 %v696, 16
        %v864 = vrot.slane %v862, 5
        %v865 = vsel %vm386, %v860, %v864
        %v867 = vshrl.u32 %v688, 16
        %v869 = vrot.slane %v867, 4
        %v870 = vshll.u32 %v688, 16
        %v872 = vrot.slane %v870, 5
        %v873 = vor.u32 %v869, %v872
        %v874 = vrot.slane %v873, 4
        %v876 = vshll.u32 %v689, 16
        %v878 = vrot.slane %v876, 5
        %v879 = vsel %vm386, %v874, %v878
        %v880 = vshrl.u32 %v689, 16
        %v882 = vrot.slane %v880, 4
        %v883 = vor.u32 %v882, %v878
        %v884 = vrot.slane %v883, 4
        %v886 = vshll.u32 %v697, 16
        %v888 = vrot.slane %v886, 5
        %v889 = vsel %vm386, %v884, %v888
        %v890 = vld [vmem:[%s673] sm:$0xe]
        %v891 = vld [vmem:[%s673 + $0xc] sm:$0xe]
        %v892 = vld [vmem:[%s673 + $0x18] sm:$0xe]
        %v893 = vld [vmem:[%s673 + $0x24] sm:$0xe]
        %v894 = vld [vmem:[%s673 + $0x30] sm:$0xe]
        %v895 = vld [vmem:[%s673 + $0x3c] sm:$0xe]
        %v896 = vld [vmem:[%s673 + $0x48] sm:$0xe]
        %v897 = vld [vmem:[%s673 + $0x54] sm:$0xe]
        %v922 = vrot.slane %v890, 5
        %v923 = vrot.slane %v922, 4
        %v924 = vrot.slane %v675, 5
        %v925 = vsel %vm613, %v923, %v924
        %v926 = vrot.slane %v924, 4
        %v927 = vrot.slane %v690, 5
        %v928 = vsel %vm613, %v926, %v927
        %v929 = vrot.slane %v891, 5
        %v930 = vrot.slane %v929, 4
        %v931 = vrot.slane %v677, 5
        %v932 = vsel %vm613, %v930, %v931
        %v933 = vrot.slane %v931, 4
        %v934 = vrot.slane %v691, 5
        %v935 = vsel %vm613, %v933, %v934
        %v936 = vrot.slane %v892, 5
        %v937 = vrot.slane %v936, 4
        %v938 = vrot.slane %v679, 5
        %v939 = vsel %vm613, %v937, %v938
        %v940 = vrot.slane %v938, 4
        %v941 = vrot.slane %v692, 5
        %v942 = vsel %vm613, %v940, %v941
        %v943 = vrot.slane %v893, 5
        %v944 = vrot.slane %v943, 4
        %v945 = vrot.slane %v681, 5
        %v946 = vsel %vm613, %v944, %v945
        %v947 = vrot.slane %v945, 4
        %v948 = vrot.slane %v693, 5
        %v949 = vsel %vm613, %v947, %v948
        %v950 = vrot.slane %v894, 5
        %v951 = vrot.slane %v950, 4
        %v952 = vrot.slane %v683, 5
        %v953 = vsel %vm613, %v951, %v952
        %v954 = vrot.slane %v952, 4
        %v955 = vrot.slane %v694, 5
        %v956 = vsel %vm613, %v954, %v955
        %v957 = vrot.slane %v895, 5
        %v958 = vrot.slane %v957, 4
        %v959 = vrot.slane %v685, 5
        %v960 = vsel %vm613, %v958, %v959
        %v961 = vrot.slane %v959, 4
        %v962 = vrot.slane %v695, 5
        %v963 = vsel %vm613, %v961, %v962
        %v964 = vrot.slane %v896, 5
        %v965 = vrot.slane %v964, 4
        %v966 = vrot.slane %v687, 5
        %v967 = vsel %vm613, %v965, %v966
        %v968 = vrot.slane %v966, 4
        %v969 = vrot.slane %v696, 5
        %v970 = vsel %vm613, %v968, %v969
        %v971 = vrot.slane %v897, 5
        %v972 = vrot.slane %v971, 4
        %v973 = vrot.slane %v689, 5
        %v974 = vsel %vm613, %v972, %v973
        %v975 = vrot.slane %v973, 4
        %v976 = vrot.slane %v697, 5
        %v977 = vsel %vm613, %v975, %v976
        %s978 = sadd.s32 %s356, 2
        %s979 = smul.u32 %s978, 3
        %s980 = smul.addr %s979, 4
        %s981 = scalar_lea.vmem %s343, %s980
        %v982 = vld [vmem:[%s981] sm:$0xf]
        %v983 = vld [vmem:[%s981 + $0x4] sm:$0xf]
        %v984 = vld [vmem:[%s981 + $0xc] sm:$0xf]
        %v985 = vld [vmem:[%s981 + $0x10] sm:$0xf]
        %v986 = vld [vmem:[%s981 + $0x18] sm:$0xf]
        %v987 = vld [vmem:[%s981 + $0x1c] sm:$0xf]
        %v988 = vld [vmem:[%s981 + $0x24] sm:$0xf]
        %v989 = vld [vmem:[%s981 + $0x28] sm:$0xf]
        %v990 = vld [vmem:[%s981 + $0x30] sm:$0xf]
        %v991 = vld [vmem:[%s981 + $0x34] sm:$0xf]
        %v992 = vld [vmem:[%s981 + $0x3c] sm:$0xf]
        %v993 = vld [vmem:[%s981 + $0x40] sm:$0xf]
        %v994 = vld [vmem:[%s981 + $0x48] sm:$0xf]
        %v995 = vld [vmem:[%s981 + $0x4c] sm:$0xf]
        %v996 = vld [vmem:[%s981 + $0x54] sm:$0xf]
        %v997 = vld [vmem:[%s981 + $0x58] sm:$0xf]
        %v998 = vld [vmem:[%s981 + $0x8] sm:$0x1]
        %v999 = vld [vmem:[%s981 + $0x14] sm:$0x1]
        %v1000 = vld [vmem:[%s981 + $0x20] sm:$0x1]
        %v1001 = vld [vmem:[%s981 + $0x2c] sm:$0x1]
        %v1002 = vld [vmem:[%s981 + $0x38] sm:$0x1]
        %v1003 = vld [vmem:[%s981 + $0x44] sm:$0x1]
        %v1004 = vld [vmem:[%s981 + $0x50] sm:$0x1]
        %v1005 = vld [vmem:[%s981 + $0x5c] sm:$0x1]
        %v1007 = vshrl.u32 %v982, 16
        %v1009 = vrot.slane %v1007, 4
        %v1010 = vshll.u32 %v982, 16
        %v1012 = vrot.slane %v1010, 5
        %v1013 = vor.u32 %v1009, %v1012
        %v1014 = vrot.slane %v1013, 4
        %v1016 = vshll.u32 %v983, 16
        %v1018 = vrot.slane %v1016, 5
        %v1019 = vsel %vm386, %v1014, %v1018
        %v1020 = vshrl.u32 %v983, 16
        %v1022 = vrot.slane %v1020, 4
        %v1023 = vor.u32 %v1022, %v1018
        %v1024 = vrot.slane %v1023, 4
        %v1026 = vshll.u32 %v998, 16
        %v1028 = vrot.slane %v1026, 5
        %v1029 = vsel %vm386, %v1024, %v1028
        %v1031 = vshrl.u32 %v984, 16
        %v1033 = vrot.slane %v1031, 4
        %v1034 = vshll.u32 %v984, 16
        %v1036 = vrot.slane %v1034, 5
        %v1037 = vor.u32 %v1033, %v1036
        %v1038 = vrot.slane %v1037, 4
        %v1040 = vshll.u32 %v985, 16
        %v1042 = vrot.slane %v1040, 5
        %v1043 = vsel %vm386, %v1038, %v1042
        %v1044 = vshrl.u32 %v985, 16
        %v1046 = vrot.slane %v1044, 4
        %v1047 = vor.u32 %v1046, %v1042
        %v1048 = vrot.slane %v1047, 4
        %v1050 = vshll.u32 %v999, 16
        %v1052 = vrot.slane %v1050, 5
        %v1053 = vsel %vm386, %v1048, %v1052
        %v1055 = vshrl.u32 %v986, 16
        %v1057 = vrot.slane %v1055, 4
        %v1058 = vshll.u32 %v986, 16
        %v1060 = vrot.slane %v1058, 5
        %v1061 = vor.u32 %v1057, %v1060
        %v1062 = vrot.slane %v1061, 4
        %v1064 = vshll.u32 %v987, 16
        %v1066 = vrot.slane %v1064, 5
        %v1067 = vsel %vm386, %v1062, %v1066
        %v1068 = vshrl.u32 %v987, 16
        %v1070 = vrot.slane %v1068, 4
        %v1071 = vor.u32 %v1070, %v1066
        %v1072 = vrot.slane %v1071, 4
        %v1074 = vshll.u32 %v1000, 16
        %v1076 = vrot.slane %v1074, 5
        %v1077 = vsel %vm386, %v1072, %v1076
        %v1079 = vshrl.u32 %v988, 16
        %v1081 = vrot.slane %v1079, 4
        %v1082 = vshll.u32 %v988, 16
        %v1084 = vrot.slane %v1082, 5
        %v1085 = vor.u32 %v1081, %v1084
        %v1086 = vrot.slane %v1085, 4
        %v1088 = vshll.u32 %v989, 16
        %v1090 = vrot.slane %v1088, 5
        %v1091 = vsel %vm386, %v1086, %v1090
        %v1092 = vshrl.u32 %v989, 16
        %v1094 = vrot.slane %v1092, 4
        %v1095 = vor.u32 %v1094, %v1090
        %v1096 = vrot.slane %v1095, 4
        %v1098 = vshll.u32 %v1001, 16
        %v1100 = vrot.slane %v1098, 5
        %v1101 = vsel %vm386, %v1096, %v1100
        %v1103 = vshrl.u32 %v990, 16
        %v1105 = vrot.slane %v1103, 4
        %v1106 = vshll.u32 %v990, 16
        %v1108 = vrot.slane %v1106, 5
        %v1109 = vor.u32 %v1105, %v1108
        %v1110 = vrot.slane %v1109, 4
        %v1112 = vshll.u32 %v991, 16
        %v1114 = vrot.slane %v1112, 5
        %v1115 = vsel %vm386, %v1110, %v1114
        %v1116 = vshrl.u32 %v991, 16
        %v1118 = vrot.slane %v1116, 4
        %v1119 = vor.u32 %v1118, %v1114
        %v1120 = vrot.slane %v1119, 4
        %v1122 = vshll.u32 %v1002, 16
        %v1124 = vrot.slane %v1122, 5
        %v1125 = vsel %vm386, %v1120, %v1124
        %v1127 = vshrl.u32 %v992, 16
        %v1129 = vrot.slane %v1127, 4
        %v1130 = vshll.u32 %v992, 16
        %v1132 = vrot.slane %v1130, 5
        %v1133 = vor.u32 %v1129, %v1132
        %v1134 = vrot.slane %v1133, 4
        %v1136 = vshll.u32 %v993, 16
        %v1138 = vrot.slane %v1136, 5
        %v1139 = vsel %vm386, %v1134, %v1138
        %v1140 = vshrl.u32 %v993, 16
        %v1142 = vrot.slane %v1140, 4
        %v1143 = vor.u32 %v1142, %v1138
        %v1144 = vrot.slane %v1143, 4
        %v1146 = vshll.u32 %v1003, 16
        %v1148 = vrot.slane %v1146, 5
        %v1149 = vsel %vm386, %v1144, %v1148
        %v1151 = vshrl.u32 %v994, 16
        %v1153 = vrot.slane %v1151, 4
        %v1154 = vshll.u32 %v994, 16
        %v1156 = vrot.slane %v1154, 5
        %v1157 = vor.u32 %v1153, %v1156
        %v1158 = vrot.slane %v1157, 4
        %v1160 = vshll.u32 %v995, 16
        %v1162 = vrot.slane %v1160, 5
        %v1163 = vsel %vm386, %v1158, %v1162
        %v1164 = vshrl.u32 %v995, 16
        %v1166 = vrot.slane %v1164, 4
        %v1167 = vor.u32 %v1166, %v1162
        %v1168 = vrot.slane %v1167, 4
        %v1170 = vshll.u32 %v1004, 16
        %v1172 = vrot.slane %v1170, 5
        %v1173 = vsel %vm386, %v1168, %v1172
        %v1175 = vshrl.u32 %v996, 16
        %v1177 = vrot.slane %v1175, 4
        %v1178 = vshll.u32 %v996, 16
        %v1180 = vrot.slane %v1178, 5
        %v1181 = vor.u32 %v1177, %v1180
        %v1182 = vrot.slane %v1181, 4
        %v1184 = vshll.u32 %v997, 16
        %v1186 = vrot.slane %v1184, 5
        %v1187 = vsel %vm386, %v1182, %v1186
        %v1188 = vshrl.u32 %v997, 16
        %v1190 = vrot.slane %v1188, 4
        %v1191 = vor.u32 %v1190, %v1186
        %v1192 = vrot.slane %v1191, 4
        %v1194 = vshll.u32 %v1005, 16
        %v1196 = vrot.slane %v1194, 5
        %v1197 = vsel %vm386, %v1192, %v1196
        %v1198 = vld [vmem:[%s981] sm:$0xe]
        %v1199 = vld [vmem:[%s981 + $0xc] sm:$0xe]
        %v1200 = vld [vmem:[%s981 + $0x18] sm:$0xe]
        %v1201 = vld [vmem:[%s981 + $0x24] sm:$0xe]
        %v1202 = vld [vmem:[%s981 + $0x30] sm:$0xe]
        %v1203 = vld [vmem:[%s981 + $0x3c] sm:$0xe]
        %v1204 = vld [vmem:[%s981 + $0x48] sm:$0xe]
        %v1205 = vld [vmem:[%s981 + $0x54] sm:$0xe]
        %v1230 = vrot.slane %v1198, 5
        %v1231 = vrot.slane %v1230, 4
        %v1232 = vrot.slane %v983, 5
        %v1233 = vsel %vm613, %v1231, %v1232
        %v1234 = vrot.slane %v1232, 4
        %v1235 = vrot.slane %v998, 5
        %v1236 = vsel %vm613, %v1234, %v1235
        %v1237 = vrot.slane %v1199, 5
        %v1238 = vrot.slane %v1237, 4
        %v1239 = vrot.slane %v985, 5
        %v1240 = vsel %vm613, %v1238, %v1239
        %v1241 = vrot.slane %v1239, 4
        %v1242 = vrot.slane %v999, 5
        %v1243 = vsel %vm613, %v1241, %v1242
        %v1244 = vrot.slane %v1200, 5
        %v1245 = vrot.slane %v1244, 4
        %v1246 = vrot.slane %v987, 5
        %v1247 = vsel %vm613, %v1245, %v1246
        %v1248 = vrot.slane %v1246, 4
        %v1249 = vrot.slane %v1000, 5
        %v1250 = vsel %vm613, %v1248, %v1249
        %v1251 = vrot.slane %v1201, 5
        %v1252 = vrot.slane %v1251, 4
        %v1253 = vrot.slane %v989, 5
        %v1254 = vsel %vm613, %v1252, %v1253
        %v1255 = vrot.slane %v1253, 4
        %v1256 = vrot.slane %v1001, 5
        %v1257 = vsel %vm613, %v1255, %v1256
        %v1258 = vrot.slane %v1202, 5
        %v1259 = vrot.slane %v1258, 4
        %v1260 = vrot.slane %v991, 5
        %v1261 = vsel %vm613, %v1259, %v1260
        %v1262 = vrot.slane %v1260, 4
        %v1263 = vrot.slane %v1002, 5
        %v1264 = vsel %vm613, %v1262, %v1263
        %v1265 = vrot.slane %v1203, 5
        %v1266 = vrot.slane %v1265, 4
        %v1267 = vrot.slane %v993, 5
        %v1268 = vsel %vm613, %v1266, %v1267
        %v1269 = vrot.slane %v1267, 4
        %v1270 = vrot.slane %v1003, 5
        %v1271 = vsel %vm613, %v1269, %v1270
        %v1272 = vrot.slane %v1204, 5
        %v1273 = vrot.slane %v1272, 4
        %v1274 = vrot.slane %v995, 5
        %v1275 = vsel %vm613, %v1273, %v1274
        %v1276 = vrot.slane %v1274, 4
        %v1277 = vrot.slane %v1004, 5
        %v1278 = vsel %vm613, %v1276, %v1277
        %v1279 = vrot.slane %v1205, 5
        %v1280 = vrot.slane %v1279, 4
        %v1281 = vrot.slane %v997, 5
        %v1282 = vsel %vm613, %v1280, %v1281
        %v1283 = vrot.slane %v1281, 4
        %v1284 = vrot.slane %v1005, 5
        %v1285 = vsel %vm613, %v1283, %v1284
        %v1294 = vunpack.c.l.b16 %v360
        %v1295 = vunpack.c.l.b16 %v361
        %v1296 = vunpack.c.l.b16 %v362
        %v1297 = vunpack.c.l.b16 %v363
        %v1298 = vunpack.c.l.b16 %v364
        %v1299 = vunpack.c.l.b16 %v365
        %v1300 = vunpack.c.l.b16 %v366
        %v1301 = vunpack.c.l.b16 %v367
        %v1302 = vunpack.c.l.b16 %v368
        %v1303 = vunpack.c.l.b16 %v369
        %v1304 = vunpack.c.l.b16 %v370
        %v1305 = vunpack.c.l.b16 %v371
        %v1306 = vunpack.c.l.b16 %v372
        %v1307 = vunpack.c.l.b16 %v373
        %v1308 = vunpack.c.l.b16 %v374
        %v1309 = vunpack.c.l.b16 %v375
        %v1310 = vpack.c.b16 %v1295, %v1294
        %v1311 = vpack.c.b16 %v1297, %v1296
        %v1312 = vpack.c.b16 %v1299, %v1298
        %v1313 = vpack.c.b16 %v1301, %v1300
        %v1314 = vpack.c.b16 %v1303, %v1302
        %v1315 = vpack.c.b16 %v1305, %v1304
        %v1316 = vpack.c.b16 %v1307, %v1306
        %v1317 = vpack.c.b16 %v1309, %v1308
        %v1326 = vunpack.c.l.b16 %v400
        %v1327 = vunpack.c.l.b16 %v410
        %v1328 = vunpack.c.l.b16 %v424
        %v1329 = vunpack.c.l.b16 %v434
        %v1330 = vunpack.c.l.b16 %v448
        %v1331 = vunpack.c.l.b16 %v458
        %v1332 = vunpack.c.l.b16 %v472
        %v1333 = vunpack.c.l.b16 %v482
        %v1334 = vunpack.c.l.b16 %v496
        %v1335 = vunpack.c.l.b16 %v506
        %v1336 = vunpack.c.l.b16 %v520
        %v1337 = vunpack.c.l.b16 %v530
        %v1338 = vunpack.c.l.b16 %v544
        %v1339 = vunpack.c.l.b16 %v554
        %v1340 = vunpack.c.l.b16 %v568
        %v1341 = vunpack.c.l.b16 %v578
        %v1342 = vpack.c.b16 %v1327, %v1326
        %v1343 = vpack.c.b16 %v1329, %v1328
        %v1344 = vpack.c.b16 %v1331, %v1330
        %v1345 = vpack.c.b16 %v1333, %v1332
        %v1346 = vpack.c.b16 %v1335, %v1334
        %v1347 = vpack.c.b16 %v1337, %v1336
        %v1348 = vpack.c.b16 %v1339, %v1338
        %v1349 = vpack.c.b16 %v1341, %v1340
        %v1358 = vunpack.c.l.b16 %v617
        %v1359 = vunpack.c.l.b16 %v620
        %v1360 = vunpack.c.l.b16 %v624
        %v1361 = vunpack.c.l.b16 %v627
        %v1362 = vunpack.c.l.b16 %v631
        %v1363 = vunpack.c.l.b16 %v634
        %v1364 = vunpack.c.l.b16 %v638
        %v1365 = vunpack.c.l.b16 %v641
        %v1366 = vunpack.c.l.b16 %v645
        %v1367 = vunpack.c.l.b16 %v648
        %v1368 = vunpack.c.l.b16 %v652
        %v1369 = vunpack.c.l.b16 %v655
        %v1370 = vunpack.c.l.b16 %v659
        %v1371 = vunpack.c.l.b16 %v662
        %v1372 = vunpack.c.l.b16 %v666
        %v1373 = vunpack.c.l.b16 %v669
        %v1374 = vpack.c.b16 %v1359, %v1358
        %v1375 = vpack.c.b16 %v1361, %v1360
        %v1376 = vpack.c.b16 %v1363, %v1362
        %v1377 = vpack.c.b16 %v1365, %v1364
        %v1378 = vpack.c.b16 %v1367, %v1366
        %v1379 = vpack.c.b16 %v1369, %v1368
        %v1380 = vpack.c.b16 %v1371, %v1370
        %v1381 = vpack.c.b16 %v1373, %v1372
        %v1398 = vunpack.c.l.b16 %v674
        %v1399 = vunpack.c.l.b16 %v675
        %v1400 = vunpack.c.l.b16 %v676
        %v1401 = vunpack.c.l.b16 %v677
        %v1402 = vunpack.c.l.b16 %v678
        %v1403 = vunpack.c.l.b16 %v679
        %v1404 = vunpack.c.l.b16 %v680
        %v1405 = vunpack.c.l.b16 %v681
        %v1406 = vunpack.c.l.b16 %v682
        %v1407 = vunpack.c.l.b16 %v683
        %v1408 = vunpack.c.l.b16 %v684
        %v1409 = vunpack.c.l.b16 %v685
        %v1410 = vunpack.c.l.b16 %v686
        %v1411 = vunpack.c.l.b16 %v687
        %v1412 = vunpack.c.l.b16 %v688
        %v1413 = vunpack.c.l.b16 %v689
        %v1414 = vpack.c.b16 %v1399, %v1398
        %v1415 = vpack.c.b16 %v1401, %v1400
        %v1416 = vpack.c.b16 %v1403, %v1402
        %v1417 = vpack.c.b16 %v1405, %v1404
        %v1418 = vpack.c.b16 %v1407, %v1406
        %v1419 = vpack.c.b16 %v1409, %v1408
        %v1420 = vpack.c.b16 %v1411, %v1410
        %v1421 = vpack.c.b16 %v1413, %v1412
        %v1430 = vunpack.c.l.b16 %v711
        %v1431 = vunpack.c.l.b16 %v721
        %v1432 = vunpack.c.l.b16 %v735
        %v1433 = vunpack.c.l.b16 %v745
        %v1434 = vunpack.c.l.b16 %v759
        %v1435 = vunpack.c.l.b16 %v769
        %v1436 = vunpack.c.l.b16 %v783
        %v1437 = vunpack.c.l.b16 %v793
        %v1438 = vunpack.c.l.b16 %v807
        %v1439 = vunpack.c.l.b16 %v817
        %v1440 = vunpack.c.l.b16 %v831
        %v1441 = vunpack.c.l.b16 %v841
        %v1442 = vunpack.c.l.b16 %v855
        %v1443 = vunpack.c.l.b16 %v865
        %v1444 = vunpack.c.l.b16 %v879
        %v1445 = vunpack.c.l.b16 %v889
        %v1446 = vpack.c.b16 %v1431, %v1430
        %v1447 = vpack.c.b16 %v1433, %v1432
        %v1448 = vpack.c.b16 %v1435, %v1434
        %v1449 = vpack.c.b16 %v1437, %v1436
        %v1450 = vpack.c.b16 %v1439, %v1438
        %v1451 = vpack.c.b16 %v1441, %v1440
        %v1452 = vpack.c.b16 %v1443, %v1442
        %v1453 = vpack.c.b16 %v1445, %v1444
        %v1462 = vunpack.c.l.b16 %v925
        %v1463 = vunpack.c.l.b16 %v928
        %v1464 = vunpack.c.l.b16 %v932
        %v1465 = vunpack.c.l.b16 %v935
        %v1466 = vunpack.c.l.b16 %v939
        %v1467 = vunpack.c.l.b16 %v942
        %v1468 = vunpack.c.l.b16 %v946
        %v1469 = vunpack.c.l.b16 %v949
        %v1470 = vunpack.c.l.b16 %v953
        %v1471 = vunpack.c.l.b16 %v956
        %v1472 = vunpack.c.l.b16 %v960
        %v1473 = vunpack.c.l.b16 %v963
        %v1474 = vunpack.c.l.b16 %v967
        %v1475 = vunpack.c.l.b16 %v970
        %v1476 = vunpack.c.l.b16 %v974
        %v1477 = vunpack.c.l.b16 %v977
        %v1478 = vpack.c.b16 %v1463, %v1462
        %v1479 = vpack.c.b16 %v1465, %v1464
        %v1480 = vpack.c.b16 %v1467, %v1466
        %v1481 = vpack.c.b16 %v1469, %v1468
        %v1482 = vpack.c.b16 %v1471, %v1470
        %v1483 = vpack.c.b16 %v1473, %v1472
        %v1484 = vpack.c.b16 %v1475, %v1474
        %v1485 = vpack.c.b16 %v1477, %v1476
        %v1502 = vunpack.c.l.b16 %v982
        %v1503 = vunpack.c.l.b16 %v983
        %v1504 = vunpack.c.l.b16 %v984
        %v1505 = vunpack.c.l.b16 %v985
        %v1506 = vunpack.c.l.b16 %v986
        %v1507 = vunpack.c.l.b16 %v987
        %v1508 = vunpack.c.l.b16 %v988
        %v1509 = vunpack.c.l.b16 %v989
        %v1510 = vunpack.c.l.b16 %v990
        %v1511 = vunpack.c.l.b16 %v991
        %v1512 = vunpack.c.l.b16 %v992
        %v1513 = vunpack.c.l.b16 %v993
        %v1514 = vunpack.c.l.b16 %v994
        %v1515 = vunpack.c.l.b16 %v995
        %v1516 = vunpack.c.l.b16 %v996
        %v1517 = vunpack.c.l.b16 %v997
        %v1518 = vpack.c.b16 %v1503, %v1502
        %v1519 = vpack.c.b16 %v1505, %v1504
        %v1520 = vpack.c.b16 %v1507, %v1506
        %v1521 = vpack.c.b16 %v1509, %v1508
        %v1522 = vpack.c.b16 %v1511, %v1510
        %v1523 = vpack.c.b16 %v1513, %v1512
        %v1524 = vpack.c.b16 %v1515, %v1514
        %v1525 = vpack.c.b16 %v1517, %v1516
        %v1534 = vunpack.c.l.b16 %v1019
        %v1535 = vunpack.c.l.b16 %v1029
        %v1536 = vunpack.c.l.b16 %v1043
        %v1537 = vunpack.c.l.b16 %v1053
        %v1538 = vunpack.c.l.b16 %v1067
        %v1539 = vunpack.c.l.b16 %v1077
        %v1540 = vunpack.c.l.b16 %v1091
        %v1541 = vunpack.c.l.b16 %v1101
        %v1542 = vunpack.c.l.b16 %v1115
        %v1543 = vunpack.c.l.b16 %v1125
        %v1544 = vunpack.c.l.b16 %v1139
        %v1545 = vunpack.c.l.b16 %v1149
        %v1546 = vunpack.c.l.b16 %v1163
        %v1547 = vunpack.c.l.b16 %v1173
        %v1548 = vunpack.c.l.b16 %v1187
        %v1549 = vunpack.c.l.b16 %v1197
        %v1550 = vpack.c.b16 %v1535, %v1534
        %v1551 = vpack.c.b16 %v1537, %v1536
        %v1552 = vpack.c.b16 %v1539, %v1538
        %v1553 = vpack.c.b16 %v1541, %v1540
        %v1554 = vpack.c.b16 %v1543, %v1542
        %v1555 = vpack.c.b16 %v1545, %v1544
        %v1556 = vpack.c.b16 %v1547, %v1546
        %v1557 = vpack.c.b16 %v1549, %v1548
        %v1566 = vunpack.c.l.b16 %v1233
        %v1567 = vunpack.c.l.b16 %v1236
        %v1568 = vunpack.c.l.b16 %v1240
        %v1569 = vunpack.c.l.b16 %v1243
        %v1570 = vunpack.c.l.b16 %v1247
        %v1571 = vunpack.c.l.b16 %v1250
        %v1572 = vunpack.c.l.b16 %v1254
        %v1573 = vunpack.c.l.b16 %v1257
        %v1574 = vunpack.c.l.b16 %v1261
        %v1575 = vunpack.c.l.b16 %v1264
        %v1576 = vunpack.c.l.b16 %v1268
        %v1577 = vunpack.c.l.b16 %v1271
        %v1578 = vunpack.c.l.b16 %v1275
        %v1579 = vunpack.c.l.b16 %v1278
        %v1580 = vunpack.c.l.b16 %v1282
        %v1581 = vunpack.c.l.b16 %v1285
        %v1582 = vpack.c.b16 %v1567, %v1566
        %v1583 = vpack.c.b16 %v1569, %v1568
        %v1584 = vpack.c.b16 %v1571, %v1570
        %v1585 = vpack.c.b16 %v1573, %v1572
        %v1586 = vpack.c.b16 %v1575, %v1574
        %v1587 = vpack.c.b16 %v1577, %v1576
        %v1588 = vpack.c.b16 %v1579, %v1578
        %v1589 = vpack.c.b16 %v1581, %v1580
        %v1598 = vld [vmem:[%s1] sm:$0xf]
        %v1599 = vld [vmem:[%s1 + $0x4] sm:$0xf]
        %v1600 = vld [vmem:[%s1 + $0x8] sm:$0xf]
        %v1601 = vld [vmem:[%s1 + $0xc] sm:$0xf]
        %v1602 = vld [vmem:[%s1 + $0x10] sm:$0xf]
        %v1603 = vld [vmem:[%s1 + $0x14] sm:$0xf]
        %v1604 = vld [vmem:[%s1 + $0x18] sm:$0xf]
        %v1605 = vld [vmem:[%s1 + $0x1c] sm:$0xf]
        %v1606 = vld [vmem:[%s1 + $0x20] sm:$0xf]
        %v1607 = vld [vmem:[%s1 + $0x24] sm:$0xf]
        %v1608 = vld [vmem:[%s1 + $0x28] sm:$0xf]
        %v1609 = vld [vmem:[%s1 + $0x2c] sm:$0xf]
        %v1610 = vld [vmem:[%s1 + $0x30] sm:$0xf]
        %v1611 = vld [vmem:[%s1 + $0x34] sm:$0xf]
        %v1612 = vld [vmem:[%s1 + $0x38] sm:$0xf]
        %v1613 = vld [vmem:[%s1 + $0x3c] sm:$0xf]
        %v1614 = vld [vmem:[%s1 + $0x40] sm:$0xf]
        %v1615 = vld [vmem:[%s1 + $0x44] sm:$0xf]
        %v1616 = vld [vmem:[%s1 + $0x48] sm:$0xf]
        %v1617 = vld [vmem:[%s1 + $0x4c] sm:$0xf]
        %v1618 = vld [vmem:[%s1 + $0x50] sm:$0xf]
        %v1619 = vld [vmem:[%s1 + $0x54] sm:$0xf]
        %v1620 = vld [vmem:[%s1 + $0x58] sm:$0xf]
        %v1621 = vld [vmem:[%s1 + $0x5c] sm:$0xf]
        %v1622 = vld [vmem:[%s1 + $0x60] sm:$0xf]
        %v1623 = vld [vmem:[%s1 + $0x64] sm:$0xf]
        %v1624 = vld [vmem:[%s1 + $0x68] sm:$0xf]
        %v1625 = vld [vmem:[%s1 + $0x6c] sm:$0xf]
        %v1626 = vld [vmem:[%s1 + $0x70] sm:$0xf]
        %v1627 = vld [vmem:[%s1 + $0x74] sm:$0xf]
        %v1628 = vld [vmem:[%s1 + $0x78] sm:$0xf]
        %v1629 = vld [vmem:[%s1 + $0x7c] sm:$0xf]
        %v1630 = vld [vmem:[%s1 + $0x80] sm:$0xf]
        %v1631 = vld [vmem:[%s1 + $0x84] sm:$0xf]
        %v1632 = vld [vmem:[%s1 + $0x88] sm:$0xf]
        %v1633 = vld [vmem:[%s1 + $0x8c] sm:$0xf]
        %v1634 = vld [vmem:[%s1 + $0x90] sm:$0xf]
        %v1635 = vld [vmem:[%s1 + $0x94] sm:$0xf]
        %v1636 = vld [vmem:[%s1 + $0x98] sm:$0xf]
        %v1637 = vld [vmem:[%s1 + $0x9c] sm:$0xf]
        %v1638 = vld [vmem:[%s1 + $0xa0] sm:$0xf]
        %v1639 = vld [vmem:[%s1 + $0xa4] sm:$0xf]
        %v1640 = vld [vmem:[%s1 + $0xa8] sm:$0xf]
        %v1641 = vld [vmem:[%s1 + $0xac] sm:$0xf]
        %v1642 = vld [vmem:[%s1 + $0xb0] sm:$0xf]
        %v1643 = vld [vmem:[%s1 + $0xb4] sm:$0xf]
        %v1644 = vld [vmem:[%s1 + $0xb8] sm:$0xf]
        %v1645 = vld [vmem:[%s1 + $0xbc] sm:$0xf]
        %v1646 = vld [vmem:[%s1 + $0xc0] sm:$0xf]
        %v1647 = vld [vmem:[%s1 + $0xc4] sm:$0xf]
        %v1648 = vld [vmem:[%s1 + $0xc8] sm:$0xf]
        %v1649 = vld [vmem:[%s1 + $0xcc] sm:$0xf]
        %v1650 = vld [vmem:[%s1 + $0xd0] sm:$0xf]
        %v1651 = vld [vmem:[%s1 + $0xd4] sm:$0xf]
        %v1652 = vld [vmem:[%s1 + $0xd8] sm:$0xf]
        %v1653 = vld [vmem:[%s1 + $0xdc] sm:$0xf]
        %v1654 = vld [vmem:[%s1 + $0xe0] sm:$0xf]
        %v1655 = vld [vmem:[%s1 + $0xe4] sm:$0xf]
        %v1656 = vld [vmem:[%s1 + $0xe8] sm:$0xf]
        %v1657 = vld [vmem:[%s1 + $0xec] sm:$0xf]
        %v1658 = vld [vmem:[%s1 + $0xf0] sm:$0xf]
        %v1659 = vld [vmem:[%s1 + $0xf4] sm:$0xf]
        %v1660 = vld [vmem:[%s1 + $0xf8] sm:$0xf]
        %v1661 = vld [vmem:[%s1 + $0xfc] sm:$0xf]
        %v1662 = vld [vmem:[%s1 + $0x100] sm:$0xf]
        %v1663 = vld [vmem:[%s1 + $0x104] sm:$0xf]
        %v1664 = vld [vmem:[%s1 + $0x108] sm:$0xf]
        %v1665 = vld [vmem:[%s1 + $0x10c] sm:$0xf]
        %v1666 = vld [vmem:[%s1 + $0x110] sm:$0xf]
        %v1667 = vld [vmem:[%s1 + $0x114] sm:$0xf]
        %v1668 = vld [vmem:[%s1 + $0x118] sm:$0xf]
        %v1669 = vld [vmem:[%s1 + $0x11c] sm:$0xf]
        %v1670 = vld [vmem:[%s1 + $0x120] sm:$0xf]
        %v1671 = vld [vmem:[%s1 + $0x124] sm:$0xf]
        %v1672 = vld [vmem:[%s1 + $0x128] sm:$0xf]
        %v1673 = vld [vmem:[%s1 + $0x12c] sm:$0xf]
        %v1674 = vld [vmem:[%s1 + $0x130] sm:$0xf]
        %v1675 = vld [vmem:[%s1 + $0x134] sm:$0xf]
        %v1676 = vld [vmem:[%s1 + $0x138] sm:$0xf]
        %v1677 = vld [vmem:[%s1 + $0x13c] sm:$0xf]
        %v1678 = vld [vmem:[%s1 + $0x140] sm:$0xf]
        %v1679 = vld [vmem:[%s1 + $0x144] sm:$0xf]
        %v1680 = vld [vmem:[%s1 + $0x148] sm:$0xf]
        %v1681 = vld [vmem:[%s1 + $0x14c] sm:$0xf]
        %v1682 = vld [vmem:[%s1 + $0x150] sm:$0xf]
        %v1683 = vld [vmem:[%s1 + $0x154] sm:$0xf]
        %v1684 = vld [vmem:[%s1 + $0x158] sm:$0xf]
        %v1685 = vld [vmem:[%s1 + $0x15c] sm:$0xf]
        %v1686 = vld [vmem:[%s1 + $0x160] sm:$0xf]
        %v1687 = vld [vmem:[%s1 + $0x164] sm:$0xf]
        %v1688 = vld [vmem:[%s1 + $0x168] sm:$0xf]
        %v1689 = vld [vmem:[%s1 + $0x16c] sm:$0xf]
        %v1690 = vld [vmem:[%s1 + $0x170] sm:$0xf]
        %v1691 = vld [vmem:[%s1 + $0x174] sm:$0xf]
        %v1692 = vld [vmem:[%s1 + $0x178] sm:$0xf]
        %v1693 = vld [vmem:[%s1 + $0x17c] sm:$0xf]
        %v1694 = vld [vmem:[%s1 + $0x180] sm:$0xf]
        %v1695 = vld [vmem:[%s1 + $0x184] sm:$0xf]
        %v1696 = vld [vmem:[%s1 + $0x188] sm:$0xf]
        %v1697 = vld [vmem:[%s1 + $0x18c] sm:$0xf]
        %v1698 = vld [vmem:[%s1 + $0x190] sm:$0xf]
        %v1699 = vld [vmem:[%s1 + $0x194] sm:$0xf]
        %v1700 = vld [vmem:[%s1 + $0x198] sm:$0xf]
        %v1701 = vld [vmem:[%s1 + $0x19c] sm:$0xf]
        %v1702 = vld [vmem:[%s1 + $0x1a0] sm:$0xf]
        %v1703 = vld [vmem:[%s1 + $0x1a4] sm:$0xf]
        %v1704 = vld [vmem:[%s1 + $0x1a8] sm:$0xf]
        %v1705 = vld [vmem:[%s1 + $0x1ac] sm:$0xf]
        %v1706 = vld [vmem:[%s1 + $0x1b0] sm:$0xf]
        %v1707 = vld [vmem:[%s1 + $0x1b4] sm:$0xf]
        %v1708 = vld [vmem:[%s1 + $0x1b8] sm:$0xf]
        %v1709 = vld [vmem:[%s1 + $0x1bc] sm:$0xf]
        %v1710 = vld [vmem:[%s1 + $0x1c0] sm:$0xf]
        %v1711 = vld [vmem:[%s1 + $0x1c4] sm:$0xf]
        %v1712 = vld [vmem:[%s1 + $0x1c8] sm:$0xf]
        %v1713 = vld [vmem:[%s1 + $0x1cc] sm:$0xf]
        %v1714 = vld [vmem:[%s1 + $0x1d0] sm:$0xf]
        %v1715 = vld [vmem:[%s1 + $0x1d4] sm:$0xf]
        %v1716 = vld [vmem:[%s1 + $0x1d8] sm:$0xf]
        %v1717 = vld [vmem:[%s1 + $0x1dc] sm:$0xf]
        %v1718 = vld [vmem:[%s1 + $0x1e0] sm:$0xf]
        %v1719 = vld [vmem:[%s1 + $0x1e4] sm:$0xf]
        %v1720 = vld [vmem:[%s1 + $0x1e8] sm:$0xf]
        %v1721 = vld [vmem:[%s1 + $0x1ec] sm:$0xf]
        %v1722 = vld [vmem:[%s1 + $0x1f0] sm:$0xf]
        %v1723 = vld [vmem:[%s1 + $0x1f4] sm:$0xf]
        %v1724 = vld [vmem:[%s1 + $0x1f8] sm:$0xf]
        %v1725 = vld [vmem:[%s1 + $0x1fc] sm:$0xf]
        %v1726 = vld [vmem:[%s1 + $0x200] sm:$0xf]
        %v1727 = vld [vmem:[%s1 + $0x204] sm:$0xf]
        %v1728 = vld [vmem:[%s1 + $0x208] sm:$0xf]
        %v1729 = vld [vmem:[%s1 + $0x20c] sm:$0xf]
        %v1730 = vld [vmem:[%s1 + $0x210] sm:$0xf]
        %v1731 = vld [vmem:[%s1 + $0x214] sm:$0xf]
        %v1732 = vld [vmem:[%s1 + $0x218] sm:$0xf]
        %v1733 = vld [vmem:[%s1 + $0x21c] sm:$0xf]
        %v1734 = vld [vmem:[%s1 + $0x220] sm:$0xf]
        %v1735 = vld [vmem:[%s1 + $0x224] sm:$0xf]
        %v1736 = vld [vmem:[%s1 + $0x228] sm:$0xf]
        %v1737 = vld [vmem:[%s1 + $0x22c] sm:$0xf]
        %v1738 = vld [vmem:[%s1 + $0x230] sm:$0xf]
        %v1739 = vld [vmem:[%s1 + $0x234] sm:$0xf]
        %v1740 = vld [vmem:[%s1 + $0x238] sm:$0xf]
        %v1741 = vld [vmem:[%s1 + $0x23c] sm:$0xf]
        %v1886 = vunpack.c.l.b16 %v1598
        %v1887 = vunpack.c.l.b16 %v1599
        %v1888 = vunpack.c.l.b16 %v1600
        %v1889 = vunpack.c.l.b16 %v1601
        %v1890 = vunpack.c.l.b16 %v1602
        %v1891 = vunpack.c.l.b16 %v1603
        %v1892 = vunpack.c.l.b16 %v1604
        %v1893 = vunpack.c.l.b16 %v1605
        %v1894 = vunpack.c.l.b16 %v1606
        %v1895 = vunpack.c.l.b16 %v1607
        %v1896 = vunpack.c.l.b16 %v1608
        %v1897 = vunpack.c.l.b16 %v1609
        %v1898 = vunpack.c.l.b16 %v1610
        %v1899 = vunpack.c.l.b16 %v1611
        %v1900 = vunpack.c.l.b16 %v1612
        %v1901 = vunpack.c.l.b16 %v1613
        %v1902 = vunpack.c.l.b16 %v1614
        %v1903 = vunpack.c.l.b16 %v1615
        %v1904 = vunpack.c.l.b16 %v1616
        %v1905 = vunpack.c.l.b16 %v1617
        %v1906 = vunpack.c.l.b16 %v1618
        %v1907 = vunpack.c.l.b16 %v1619
        %v1908 = vunpack.c.l.b16 %v1620
        %v1909 = vunpack.c.l.b16 %v1621
        %v1910 = vunpack.c.l.b16 %v1622
        %v1911 = vunpack.c.l.b16 %v1623
        %v1912 = vunpack.c.l.b16 %v1624
        %v1913 = vunpack.c.l.b16 %v1625
        %v1914 = vunpack.c.l.b16 %v1626
        %v1915 = vunpack.c.l.b16 %v1627
        %v1916 = vunpack.c.l.b16 %v1628
        %v1917 = vunpack.c.l.b16 %v1629
        %v1918 = vunpack.c.l.b16 %v1630
        %v1919 = vunpack.c.l.b16 %v1631
        %v1920 = vunpack.c.l.b16 %v1632
        %v1921 = vunpack.c.l.b16 %v1633
        %v1922 = vunpack.c.l.b16 %v1634
        %v1923 = vunpack.c.l.b16 %v1635
        %v1924 = vunpack.c.l.b16 %v1636
        %v1925 = vunpack.c.l.b16 %v1637
        %v1926 = vunpack.c.l.b16 %v1638
        %v1927 = vunpack.c.l.b16 %v1639
        %v1928 = vunpack.c.l.b16 %v1640
        %v1929 = vunpack.c.l.b16 %v1641
        %v1930 = vunpack.c.l.b16 %v1642
        %v1931 = vunpack.c.l.b16 %v1643
        %v1932 = vunpack.c.l.b16 %v1644
        %v1933 = vunpack.c.l.b16 %v1645
        %v1934 = vunpack.c.l.b16 %v1646
        %v1935 = vunpack.c.l.b16 %v1647
        %v1936 = vunpack.c.l.b16 %v1648
        %v1937 = vunpack.c.l.b16 %v1649
        %v1938 = vunpack.c.l.b16 %v1650
        %v1939 = vunpack.c.l.b16 %v1651
        %v1940 = vunpack.c.l.b16 %v1652
        %v1941 = vunpack.c.l.b16 %v1653
        %v1942 = vunpack.c.l.b16 %v1654
        %v1943 = vunpack.c.l.b16 %v1655
        %v1944 = vunpack.c.l.b16 %v1656
        %v1945 = vunpack.c.l.b16 %v1657
        %v1946 = vunpack.c.l.b16 %v1658
        %v1947 = vunpack.c.l.b16 %v1659
        %v1948 = vunpack.c.l.b16 %v1660
        %v1949 = vunpack.c.l.b16 %v1661
        %v1950 = vunpack.c.l.b16 %v1662
        %v1951 = vunpack.c.l.b16 %v1663
        %v1952 = vunpack.c.l.b16 %v1664
        %v1953 = vunpack.c.l.b16 %v1665
        %v1954 = vunpack.c.l.b16 %v1666
        %v1955 = vunpack.c.l.b16 %v1667
        %v1956 = vunpack.c.l.b16 %v1668
        %v1957 = vunpack.c.l.b16 %v1669
        %v1958 = vunpack.c.l.b16 %v1670
        %v1959 = vunpack.c.l.b16 %v1671
        %v1960 = vunpack.c.l.b16 %v1672
        %v1961 = vunpack.c.l.b16 %v1673
        %v1962 = vunpack.c.l.b16 %v1674
        %v1963 = vunpack.c.l.b16 %v1675
        %v1964 = vunpack.c.l.b16 %v1676
        %v1965 = vunpack.c.l.b16 %v1677
        %v1966 = vunpack.c.l.b16 %v1678
        %v1967 = vunpack.c.l.b16 %v1679
        %v1968 = vunpack.c.l.b16 %v1680
        %v1969 = vunpack.c.l.b16 %v1681
        %v1970 = vunpack.c.l.b16 %v1682
        %v1971 = vunpack.c.l.b16 %v1683
        %v1972 = vunpack.c.l.b16 %v1684
        %v1973 = vunpack.c.l.b16 %v1685
        %v1974 = vunpack.c.l.b16 %v1686
        %v1975 = vunpack.c.l.b16 %v1687
        %v1976 = vunpack.c.l.b16 %v1688
        %v1977 = vunpack.c.l.b16 %v1689
        %v1978 = vunpack.c.l.b16 %v1690
        %v1979 = vunpack.c.l.b16 %v1691
        %v1980 = vunpack.c.l.b16 %v1692
        %v1981 = vunpack.c.l.b16 %v1693
        %v1982 = vunpack.c.l.b16 %v1694
        %v1983 = vunpack.c.l.b16 %v1695
        %v1984 = vunpack.c.l.b16 %v1696
        %v1985 = vunpack.c.l.b16 %v1697
        %v1986 = vunpack.c.l.b16 %v1698
        %v1987 = vunpack.c.l.b16 %v1699
        %v1988 = vunpack.c.l.b16 %v1700
        %v1989 = vunpack.c.l.b16 %v1701
        %v1990 = vunpack.c.l.b16 %v1702
        %v1991 = vunpack.c.l.b16 %v1703
        %v1992 = vunpack.c.l.b16 %v1704
        %v1993 = vunpack.c.l.b16 %v1705
        %v1994 = vunpack.c.l.b16 %v1706
        %v1995 = vunpack.c.l.b16 %v1707
        %v1996 = vunpack.c.l.b16 %v1708
        %v1997 = vunpack.c.l.b16 %v1709
        %v1998 = vunpack.c.l.b16 %v1710
        %v1999 = vunpack.c.l.b16 %v1711
        %v2000 = vunpack.c.l.b16 %v1712
        %v2001 = vunpack.c.l.b16 %v1713
        %v2002 = vunpack.c.l.b16 %v1714
        %v2003 = vunpack.c.l.b16 %v1715
        %v2004 = vunpack.c.l.b16 %v1716
        %v2005 = vunpack.c.l.b16 %v1717
        %v2006 = vunpack.c.l.b16 %v1718
        %v2007 = vunpack.c.l.b16 %v1719
        %v2008 = vunpack.c.l.b16 %v1720
        %v2009 = vunpack.c.l.b16 %v1721
        %v2010 = vunpack.c.l.b16 %v1722
        %v2011 = vunpack.c.l.b16 %v1723
        %v2012 = vunpack.c.l.b16 %v1724
        %v2013 = vunpack.c.l.b16 %v1725
        %v2014 = vunpack.c.l.b16 %v1726
        %v2015 = vunpack.c.l.b16 %v1727
        %v2016 = vunpack.c.l.b16 %v1728
        %v2017 = vunpack.c.l.b16 %v1729
        %v2018 = vunpack.c.l.b16 %v1730
        %v2019 = vunpack.c.l.b16 %v1731
        %v2020 = vunpack.c.l.b16 %v1732
        %v2021 = vunpack.c.l.b16 %v1733
        %v2022 = vunpack.c.l.b16 %v1734
        %v2023 = vunpack.c.l.b16 %v1735
        %v2024 = vunpack.c.l.b16 %v1736
        %v2025 = vunpack.c.l.b16 %v1737
        %v2026 = vunpack.c.l.b16 %v1738
        %v2027 = vunpack.c.l.b16 %v1739
        %v2028 = vunpack.c.l.b16 %v1740
        %v2029 = vunpack.c.l.b16 %v1741
        %v2030 = vpack.c.b16 %v1887, %v1886
        %v2031 = vpack.c.b16 %v1889, %v1888
        %v2032 = vpack.c.b16 %v1891, %v1890
        %v2033 = vpack.c.b16 %v1893, %v1892
        %v2034 = vpack.c.b16 %v1895, %v1894
        %v2035 = vpack.c.b16 %v1897, %v1896
        %v2036 = vpack.c.b16 %v1899, %v1898
        %v2037 = vpack.c.b16 %v1901, %v1900
        %v2038 = vpack.c.b16 %v1903, %v1902
        %v2039 = vpack.c.b16 %v1905, %v1904
        %v2040 = vpack.c.b16 %v1907, %v1906
        %v2041 = vpack.c.b16 %v1909, %v1908
        %v2042 = vpack.c.b16 %v1911, %v1910
        %v2043 = vpack.c.b16 %v1913, %v1912
        %v2044 = vpack.c.b16 %v1915, %v1914
        %v2045 = vpack.c.b16 %v1917, %v1916
        %v2046 = vpack.c.b16 %v1919, %v1918
        %v2047 = vpack.c.b16 %v1921, %v1920
        %v2048 = vpack.c.b16 %v1923, %v1922
        %v2049 = vpack.c.b16 %v1925, %v1924
        %v2050 = vpack.c.b16 %v1927, %v1926
        %v2051 = vpack.c.b16 %v1929, %v1928
        %v2052 = vpack.c.b16 %v1931, %v1930
        %v2053 = vpack.c.b16 %v1933, %v1932
        %v2054 = vpack.c.b16 %v1935, %v1934
        %v2055 = vpack.c.b16 %v1937, %v1936
        %v2056 = vpack.c.b16 %v1939, %v1938
        %v2057 = vpack.c.b16 %v1941, %v1940
        %v2058 = vpack.c.b16 %v1943, %v1942
        %v2059 = vpack.c.b16 %v1945, %v1944
        %v2060 = vpack.c.b16 %v1947, %v1946
        %v2061 = vpack.c.b16 %v1949, %v1948
        %v2062 = vpack.c.b16 %v1951, %v1950
        %v2063 = vpack.c.b16 %v1953, %v1952
        %v2064 = vpack.c.b16 %v1955, %v1954
        %v2065 = vpack.c.b16 %v1957, %v1956
        %v2066 = vpack.c.b16 %v1959, %v1958
        %v2067 = vpack.c.b16 %v1961, %v1960
        %v2068 = vpack.c.b16 %v1963, %v1962
        %v2069 = vpack.c.b16 %v1965, %v1964
        %v2070 = vpack.c.b16 %v1967, %v1966
        %v2071 = vpack.c.b16 %v1969, %v1968
        %v2072 = vpack.c.b16 %v1971, %v1970
        %v2073 = vpack.c.b16 %v1973, %v1972
        %v2074 = vpack.c.b16 %v1975, %v1974
        %v2075 = vpack.c.b16 %v1977, %v1976
        %v2076 = vpack.c.b16 %v1979, %v1978
        %v2077 = vpack.c.b16 %v1981, %v1980
        %v2078 = vpack.c.b16 %v1983, %v1982
        %v2079 = vpack.c.b16 %v1985, %v1984
        %v2080 = vpack.c.b16 %v1987, %v1986
        %v2081 = vpack.c.b16 %v1989, %v1988
        %v2082 = vpack.c.b16 %v1991, %v1990
        %v2083 = vpack.c.b16 %v1993, %v1992
        %v2084 = vpack.c.b16 %v1995, %v1994
        %v2085 = vpack.c.b16 %v1997, %v1996
        %v2086 = vpack.c.b16 %v1999, %v1998
        %v2087 = vpack.c.b16 %v2001, %v2000
        %v2088 = vpack.c.b16 %v2003, %v2002
        %v2089 = vpack.c.b16 %v2005, %v2004
        %v2090 = vpack.c.b16 %v2007, %v2006
        %v2091 = vpack.c.b16 %v2009, %v2008
        %v2092 = vpack.c.b16 %v2011, %v2010
        %v2093 = vpack.c.b16 %v2013, %v2012
        %v2094 = vpack.c.b16 %v2015, %v2014
        %v2095 = vpack.c.b16 %v2017, %v2016
        %v2096 = vpack.c.b16 %v2019, %v2018
        %v2097 = vpack.c.b16 %v2021, %v2020
        %v2098 = vpack.c.b16 %v2023, %v2022
        %v2099 = vpack.c.b16 %v2025, %v2024
        %v2100 = vpack.c.b16 %v2027, %v2026
        %v2101 = vpack.c.b16 %v2029, %v2028
        %2174 = vmatprep.subr.bf16.mxu0 0
        %2175 = vmatpush1.bf16.msra.mxu0 %v2037
        %2176 = vmatprep.subr.bf16.mxu0 0
        %2177 = vmatpush1.bf16.msra.mxu0 %v2036
        %2178 = vmatprep.subr.bf16.mxu0 0
        %2179 = vmatpush1.bf16.msra.mxu0 %v2035
        %2180 = vmatprep.subr.bf16.mxu0 0
        %2181 = vmatpush1.bf16.msra.mxu0 %v2034
        %2182 = vmatprep.subr.bf16.mxu0 0
        %2183 = vmatpush1.bf16.msra.mxu0 %v2033
        %2184 = vmatprep.subr.bf16.mxu0 0
        %2185 = vmatpush1.bf16.msra.mxu0 %v2032
        %2186 = vmatprep.subr.bf16.mxu0 0
        %2187 = vmatpush1.bf16.msra.mxu0 %v2031
        %2188 = vmatprep.subr.bf16.mxu0 0
        %2189 = vmatpush1.bf16.msra.mxu0 %v2030
        %2190 = vmatprep.subr.bf16.mxu0 0
        %2191 = vmatpush2.bf16.msra.mxu0 %v2045
        %2192 = vmatprep.subr.bf16.mxu0 0
        %2193 = vmatpush2.bf16.msra.mxu0 %v2044
        %2194 = vmatprep.subr.bf16.mxu0 0
        %2195 = vmatpush2.bf16.msra.mxu0 %v2043
        %2196 = vmatprep.subr.bf16.mxu0 0
        %2197 = vmatpush2.bf16.msra.mxu0 %v2042
        %2198 = vmatprep.subr.bf16.mxu0 0
        %2199 = vmatpush2.bf16.msra.mxu0 %v2041
        %2200 = vmatprep.subr.bf16.mxu0 0
        %2201 = vmatpush2.bf16.msra.mxu0 %v2040
        %2202 = vmatprep.subr.bf16.mxu0 0
        %2203 = vmatpush2.bf16.msra.mxu0 %v2039
        %2204 = vmatprep.subr.bf16.mxu0 0
        %2205 = vmatpush2.bf16.msra.mxu0 %v2038
        %2206 = vmatprep.mubr.bf16.mxu0 %v1342
        %2207 = vmatmul.mubr.bf16.gmra.mxu0 %v1310
        %v2208 = vpop.f32.mrf.mxu0
        %v2209 = vadd.f32 0.0, %v2208
        %v2210 = vpop.f32.mrf.mxu0
        %v2211 = vpop.f32.mrf.mxu0
        %v2212 = vadd.f32 0.0, %v2211
        %v2213 = vpop.f32.mrf.mxu0
        %2214 = vmatprep.mubr.bf16.mxu0 %v1343
        %2215 = vmatmul.mubr.bf16.gmra.mxu0 %v1311
        %v2216 = vpop.f32.mrf.mxu0
        %v2217 = vadd.f32 0.0, %v2216
        %v2218 = vpop.f32.mrf.mxu0
        %v2219 = vpop.f32.mrf.mxu0
        %v2220 = vadd.f32 0.0, %v2219
        %v2221 = vpop.f32.mrf.mxu0
        %2222 = vmatprep.mubr.bf16.mxu0 %v1344
        %2223 = vmatmul.mubr.bf16.gmra.mxu0 %v1312
        %v2224 = vpop.f32.mrf.mxu0
        %v2225 = vadd.f32 0.0, %v2224
        %v2226 = vpop.f32.mrf.mxu0
        %v2227 = vpop.f32.mrf.mxu0
        %v2228 = vadd.f32 0.0, %v2227
        %v2229 = vpop.f32.mrf.mxu0
        %2230 = vmatprep.mubr.bf16.mxu0 %v1345
        %2231 = vmatmul.mubr.bf16.gmra.mxu0 %v1313
        %v2232 = vpop.f32.mrf.mxu0
        %v2233 = vadd.f32 0.0, %v2232
        %v2234 = vpop.f32.mrf.mxu0
        %v2235 = vpop.f32.mrf.mxu0
        %v2236 = vadd.f32 0.0, %v2235
        %v2237 = vpop.f32.mrf.mxu0
        %2238 = vmatprep.mubr.bf16.mxu0 %v1346
        %2239 = vmatmul.mubr.bf16.gmra.mxu0 %v1314
        %v2240 = vpop.f32.mrf.mxu0
        %v2241 = vadd.f32 0.0, %v2240
        %v2242 = vpop.f32.mrf.mxu0
        %v2243 = vpop.f32.mrf.mxu0
        %v2244 = vadd.f32 0.0, %v2243
        %v2245 = vpop.f32.mrf.mxu0
        %2246 = vmatprep.mubr.bf16.mxu0 %v1347
        %2247 = vmatmul.mubr.bf16.gmra.mxu0 %v1315
        %v2248 = vpop.f32.mrf.mxu0
        %v2249 = vadd.f32 0.0, %v2248
        %v2250 = vpop.f32.mrf.mxu0
        %v2251 = vpop.f32.mrf.mxu0
        %v2252 = vadd.f32 0.0, %v2251
        %v2253 = vpop.f32.mrf.mxu0
        %2254 = vmatprep.mubr.bf16.mxu0 %v1348
        %2255 = vmatmul.mubr.bf16.gmra.mxu0 %v1316
        %v2256 = vpop.f32.mrf.mxu0
        %v2257 = vadd.f32 0.0, %v2256
        %v2258 = vpop.f32.mrf.mxu0
        %v2259 = vpop.f32.mrf.mxu0
        %v2260 = vadd.f32 0.0, %v2259
        %v2261 = vpop.f32.mrf.mxu0
        %2262 = vmatprep.mubr.bf16.mxu0 %v1349
        %2263 = vmatmul.mubr.bf16.gmra.mxu0 %v1317
        %v2264 = vpop.f32.mrf.mxu0
        %v2265 = vadd.f32 0.0, %v2264
        %v2266 = vpop.f32.mrf.mxu0
        %v2267 = vpop.f32.mrf.mxu0
        %v2268 = vadd.f32 0.0, %v2267
        %v2269 = vpop.f32.mrf.mxu0
        %2270 = vdwg.mxu0
        %2271 = vmatprep.subr.bf16.mxu0 0
        %2272 = vmatpush1.bf16.msra.mxu0 %v2053
        %2273 = vmatprep.subr.bf16.mxu0 0
        %2274 = vmatpush1.bf16.msra.mxu0 %v2052
        %2275 = vmatprep.subr.bf16.mxu0 0
        %2276 = vmatpush1.bf16.msra.mxu0 %v2051
        %2277 = vmatprep.subr.bf16.mxu0 0
        %2278 = vmatpush1.bf16.msra.mxu0 %v2050
        %2279 = vmatprep.subr.bf16.mxu0 0
        %2280 = vmatpush1.bf16.msra.mxu0 %v2049
        %2281 = vmatprep.subr.bf16.mxu0 0
        %2282 = vmatpush1.bf16.msra.mxu0 %v2048
        %2283 = vmatprep.subr.bf16.mxu0 0
        %2284 = vmatpush1.bf16.msra.mxu0 %v2047
        %2285 = vmatprep.subr.bf16.mxu0 0
        %2286 = vmatpush1.bf16.msra.mxu0 %v2046
        %2287 = vmatprep.subr.bf16.mxu0 0
        %2288 = vmatpush2.bf16.msra.mxu0 %v2061
        %2289 = vmatprep.subr.bf16.mxu0 0
        %2290 = vmatpush2.bf16.msra.mxu0 %v2060
        %2291 = vmatprep.subr.bf16.mxu0 0
        %2292 = vmatpush2.bf16.msra.mxu0 %v2059
        %2293 = vmatprep.subr.bf16.mxu0 0
        %2294 = vmatpush2.bf16.msra.mxu0 %v2058
        %2295 = vmatprep.subr.bf16.mxu0 0
        %2296 = vmatpush2.bf16.msra.mxu0 %v2057
        %2297 = vmatprep.subr.bf16.mxu0 0
        %2298 = vmatpush2.bf16.msra.mxu0 %v2056
        %2299 = vmatprep.subr.bf16.mxu0 0
        %2300 = vmatpush2.bf16.msra.mxu0 %v2055
        %2301 = vmatprep.subr.bf16.mxu0 0
        %2302 = vmatpush2.bf16.msra.mxu0 %v2054
        %2303 = vmatprep.mubr.bf16.mxu0 %v1414
        %2304 = vmatmul.mubr.bf16.gmra.mxu0 %v1374
        %v2305 = vpop.f32.mrf.mxu0
        %v2306 = vadd.f32 %v2209, %v2305
        %v2307 = vpop.f32.mrf.mxu0
        %v2308 = vpop.f32.mrf.mxu0
        %v2309 = vadd.f32 %v2212, %v2308
        %v2310 = vpop.f32.mrf.mxu0
        %2311 = vmatprep.mubr.bf16.mxu0 %v1415
        %2312 = vmatmul.mubr.bf16.gmra.mxu0 %v1375
        %v2313 = vpop.f32.mrf.mxu0
        %v2314 = vadd.f32 %v2217, %v2313
        %v2315 = vpop.f32.mrf.mxu0
        %v2316 = vpop.f32.mrf.mxu0
        %v2317 = vadd.f32 %v2220, %v2316
        %v2318 = vpop.f32.mrf.mxu0
        %2319 = vmatprep.mubr.bf16.mxu0 %v1416
        %2320 = vmatmul.mubr.bf16.gmra.mxu0 %v1376
        %v2321 = vpop.f32.mrf.mxu0
        %v2322 = vadd.f32 %v2225, %v2321
        %v2323 = vpop.f32.mrf.mxu0
        %v2324 = vpop.f32.mrf.mxu0
        %v2325 = vadd.f32 %v2228, %v2324
        %v2326 = vpop.f32.mrf.mxu0
        %2327 = vmatprep.mubr.bf16.mxu0 %v1417
        %2328 = vmatmul.mubr.bf16.gmra.mxu0 %v1377
        %v2329 = vpop.f32.mrf.mxu0
        %v2330 = vadd.f32 %v2233, %v2329
        %v2331 = vpop.f32.mrf.mxu0
        %v2332 = vpop.f32.mrf.mxu0
        %v2333 = vadd.f32 %v2236, %v2332
        %v2334 = vpop.f32.mrf.mxu0
        %2335 = vmatprep.mubr.bf16.mxu0 %v1418
        %2336 = vmatmul.mubr.bf16.gmra.mxu0 %v1378
        %v2337 = vpop.f32.mrf.mxu0
        %v2338 = vadd.f32 %v2241, %v2337
        %v2339 = vpop.f32.mrf.mxu0
        %v2340 = vpop.f32.mrf.mxu0
        %v2341 = vadd.f32 %v2244, %v2340
        %v2342 = vpop.f32.mrf.mxu0
        %2343 = vmatprep.mubr.bf16.mxu0 %v1419
        %2344 = vmatmul.mubr.bf16.gmra.mxu0 %v1379
        %v2345 = vpop.f32.mrf.mxu0
        %v2346 = vadd.f32 %v2249, %v2345
        %v2347 = vpop.f32.mrf.mxu0
        %v2348 = vpop.f32.mrf.mxu0
        %v2349 = vadd.f32 %v2252, %v2348
        %v2350 = vpop.f32.mrf.mxu0
        %2351 = vmatprep.mubr.bf16.mxu0 %v1420
        %2352 = vmatmul.mubr.bf16.gmra.mxu0 %v1380
        %v2353 = vpop.f32.mrf.mxu0
        %v2354 = vadd.f32 %v2257, %v2353
        %v2355 = vpop.f32.mrf.mxu0
        %v2356 = vpop.f32.mrf.mxu0
        %v2357 = vadd.f32 %v2260, %v2356
        %v2358 = vpop.f32.mrf.mxu0
        %2359 = vmatprep.mubr.bf16.mxu0 %v1421
        %2360 = vmatmul.mubr.bf16.gmra.mxu0 %v1381
        %v2361 = vpop.f32.mrf.mxu0
        %v2362 = vadd.f32 %v2265, %v2361
        %v2363 = vpop.f32.mrf.mxu0
        %v2364 = vpop.f32.mrf.mxu0
        %v2365 = vadd.f32 %v2268, %v2364
        %v2366 = vpop.f32.mrf.mxu0
        %2367 = vdwg.mxu0
        %2368 = vmatprep.subr.bf16.mxu0 0
        %2369 = vmatpush1.bf16.msra.mxu0 %v2069
        %2370 = vmatprep.subr.bf16.mxu0 0
        %2371 = vmatpush1.bf16.msra.mxu0 %v2068
        %2372 = vmatprep.subr.bf16.mxu0 0
        %2373 = vmatpush1.bf16.msra.mxu0 %v2067
        %2374 = vmatprep.subr.bf16.mxu0 0
        %2375 = vmatpush1.bf16.msra.mxu0 %v2066
        %2376 = vmatprep.subr.bf16.mxu0 0
        %2377 = vmatpush1.bf16.msra.mxu0 %v2065
        %2378 = vmatprep.subr.bf16.mxu0 0
        %2379 = vmatpush1.bf16.msra.mxu0 %v2064
        %2380 = vmatprep.subr.bf16.mxu0 0
        %2381 = vmatpush1.bf16.msra.mxu0 %v2063
        %2382 = vmatprep.subr.bf16.mxu0 0
        %2383 = vmatpush1.bf16.msra.mxu0 %v2062
        %2384 = vmatprep.subr.bf16.mxu0 0
        %2385 = vmatpush2.bf16.msra.mxu0 %v2077
        %2386 = vmatprep.subr.bf16.mxu0 0
        %2387 = vmatpush2.bf16.msra.mxu0 %v2076
        %2388 = vmatprep.subr.bf16.mxu0 0
        %2389 = vmatpush2.bf16.msra.mxu0 %v2075
        %2390 = vmatprep.subr.bf16.mxu0 0
        %2391 = vmatpush2.bf16.msra.mxu0 %v2074
        %2392 = vmatprep.subr.bf16.mxu0 0
        %2393 = vmatpush2.bf16.msra.mxu0 %v2073
        %2394 = vmatprep.subr.bf16.mxu0 0
        %2395 = vmatpush2.bf16.msra.mxu0 %v2072
        %2396 = vmatprep.subr.bf16.mxu0 0
        %2397 = vmatpush2.bf16.msra.mxu0 %v2071
        %2398 = vmatprep.subr.bf16.mxu0 0
        %2399 = vmatpush2.bf16.msra.mxu0 %v2070
        %2400 = vmatprep.mubr.bf16.mxu0 %v1478
        %2401 = vmatmul.mubr.bf16.gmra.mxu0 %v1446
        %v2402 = vpop.f32.mrf.mxu0
        %v2403 = vadd.f32 %v2306, %v2402
        %v2404 = vpop.f32.mrf.mxu0
        %v2405 = vpop.f32.mrf.mxu0
        %v2406 = vadd.f32 %v2309, %v2405
        %v2407 = vpop.f32.mrf.mxu0
        %2408 = vmatprep.mubr.bf16.mxu0 %v1479
        %2409 = vmatmul.mubr.bf16.gmra.mxu0 %v1447
        %v2410 = vpop.f32.mrf.mxu0
        %v2411 = vadd.f32 %v2314, %v2410
        %v2412 = vpop.f32.mrf.mxu0
        %v2413 = vpop.f32.mrf.mxu0
        %v2414 = vadd.f32 %v2317, %v2413
        %v2415 = vpop.f32.mrf.mxu0
        %2416 = vmatprep.mubr.bf16.mxu0 %v1480
        %2417 = vmatmul.mubr.bf16.gmra.mxu0 %v1448
        %v2418 = vpop.f32.mrf.mxu0
        %v2419 = vadd.f32 %v2322, %v2418
        %v2420 = vpop.f32.mrf.mxu0
        %v2421 = vpop.f32.mrf.mxu0
        %v2422 = vadd.f32 %v2325, %v2421
        %v2423 = vpop.f32.mrf.mxu0
        %2424 = vmatprep.mubr.bf16.mxu0 %v1481
        %2425 = vmatmul.mubr.bf16.gmra.mxu0 %v1449
        %v2426 = vpop.f32.mrf.mxu0
        %v2427 = vadd.f32 %v2330, %v2426
        %v2428 = vpop.f32.mrf.mxu0
        %v2429 = vpop.f32.mrf.mxu0
        %v2430 = vadd.f32 %v2333, %v2429
        %v2431 = vpop.f32.mrf.mxu0
        %2432 = vmatprep.mubr.bf16.mxu0 %v1482
        %2433 = vmatmul.mubr.bf16.gmra.mxu0 %v1450
        %v2434 = vpop.f32.mrf.mxu0
        %v2435 = vadd.f32 %v2338, %v2434
        %v2436 = vpop.f32.mrf.mxu0
        %v2437 = vpop.f32.mrf.mxu0
        %v2438 = vadd.f32 %v2341, %v2437
        %v2439 = vpop.f32.mrf.mxu0
        %2440 = vmatprep.mubr.bf16.mxu0 %v1483
        %2441 = vmatmul.mubr.bf16.gmra.mxu0 %v1451
        %v2442 = vpop.f32.mrf.mxu0
        %v2443 = vadd.f32 %v2346, %v2442
        %v2444 = vpop.f32.mrf.mxu0
        %v2445 = vpop.f32.mrf.mxu0
        %v2446 = vadd.f32 %v2349, %v2445
        %v2447 = vpop.f32.mrf.mxu0
        %2448 = vmatprep.mubr.bf16.mxu0 %v1484
        %2449 = vmatmul.mubr.bf16.gmra.mxu0 %v1452
        %v2450 = vpop.f32.mrf.mxu0
        %v2451 = vadd.f32 %v2354, %v2450
        %v2452 = vpop.f32.mrf.mxu0
        %v2453 = vpop.f32.mrf.mxu0
        %v2454 = vadd.f32 %v2357, %v2453
        %v2455 = vpop.f32.mrf.mxu0
        %2456 = vmatprep.mubr.bf16.mxu0 %v1485
        %2457 = vmatmul.mubr.bf16.gmra.mxu0 %v1453
        %v2458 = vpop.f32.mrf.mxu0
        %v2459 = vadd.f32 %v2362, %v2458
        %v2460 = vpop.f32.mrf.mxu0
        %v2461 = vpop.f32.mrf.mxu0
        %v2462 = vadd.f32 %v2365, %v2461
        %v2463 = vpop.f32.mrf.mxu0
        %2464 = vdwg.mxu0
        %2465 = vmatprep.subr.bf16.mxu0 0
        %2466 = vmatpush1.bf16.msra.mxu0 %v2085
        %2467 = vmatprep.subr.bf16.mxu0 0
        %2468 = vmatpush1.bf16.msra.mxu0 %v2084
        %2469 = vmatprep.subr.bf16.mxu0 0
        %2470 = vmatpush1.bf16.msra.mxu0 %v2083
        %2471 = vmatprep.subr.bf16.mxu0 0
        %2472 = vmatpush1.bf16.msra.mxu0 %v2082
        %2473 = vmatprep.subr.bf16.mxu0 0
        %2474 = vmatpush1.bf16.msra.mxu0 %v2081
        %2475 = vmatprep.subr.bf16.mxu0 0
        %2476 = vmatpush1.bf16.msra.mxu0 %v2080
        %2477 = vmatprep.subr.bf16.mxu0 0
        %2478 = vmatpush1.bf16.msra.mxu0 %v2079
        %2479 = vmatprep.subr.bf16.mxu0 0
        %2480 = vmatpush1.bf16.msra.mxu0 %v2078
        %2481 = vmatprep.subr.bf16.mxu0 0
        %2482 = vmatpush2.bf16.msra.mxu0 %v2093
        %2483 = vmatprep.subr.bf16.mxu0 0
        %2484 = vmatpush2.bf16.msra.mxu0 %v2092
        %2485 = vmatprep.subr.bf16.mxu0 0
        %2486 = vmatpush2.bf16.msra.mxu0 %v2091
        %2487 = vmatprep.subr.bf16.mxu0 0
        %2488 = vmatpush2.bf16.msra.mxu0 %v2090
        %2489 = vmatprep.subr.bf16.mxu0 0
        %2490 = vmatpush2.bf16.msra.mxu0 %v2089
        %2491 = vmatprep.subr.bf16.mxu0 0
        %2492 = vmatpush2.bf16.msra.mxu0 %v2088
        %2493 = vmatprep.subr.bf16.mxu0 0
        %2494 = vmatpush2.bf16.msra.mxu0 %v2087
        %2495 = vmatprep.subr.bf16.mxu0 0
        %2496 = vmatpush2.bf16.msra.mxu0 %v2086
        %2497 = vmatprep.mubr.bf16.mxu0 %v1550
        %2498 = vmatmul.mubr.bf16.gmra.mxu0 %v1518
        %v2499 = vpop.f32.mrf.mxu0
        %v2500 = vadd.f32 %v2403, %v2499
        %v2501 = vpop.f32.mrf.mxu0
        %v2502 = vpop.f32.mrf.mxu0
        %v2503 = vadd.f32 %v2406, %v2502
        %v2504 = vpop.f32.mrf.mxu0
        %2505 = vmatprep.mubr.bf16.mxu0 %v1551
        %2506 = vmatmul.mubr.bf16.gmra.mxu0 %v1519
        %v2507 = vpop.f32.mrf.mxu0
        %v2508 = vadd.f32 %v2411, %v2507
        %v2509 = vpop.f32.mrf.mxu0
        %v2510 = vpop.f32.mrf.mxu0
        %v2511 = vadd.f32 %v2414, %v2510
        %v2512 = vpop.f32.mrf.mxu0
        %2513 = vmatprep.mubr.bf16.mxu0 %v1552
        %2514 = vmatmul.mubr.bf16.gmra.mxu0 %v1520
        %v2515 = vpop.f32.mrf.mxu0
        %v2516 = vadd.f32 %v2419, %v2515
        %v2517 = vpop.f32.mrf.mxu0
        %v2518 = vpop.f32.mrf.mxu0
        %v2519 = vadd.f32 %v2422, %v2518
        %v2520 = vpop.f32.mrf.mxu0
        %2521 = vmatprep.mubr.bf16.mxu0 %v1553
        %2522 = vmatmul.mubr.bf16.gmra.mxu0 %v1521
        %v2523 = vpop.f32.mrf.mxu0
        %v2524 = vadd.f32 %v2427, %v2523
        %v2525 = vpop.f32.mrf.mxu0
        %v2526 = vpop.f32.mrf.mxu0
        %v2527 = vadd.f32 %v2430, %v2526
        %v2528 = vpop.f32.mrf.mxu0
        %2529 = vmatprep.mubr.bf16.mxu0 %v1554
        %2530 = vmatmul.mubr.bf16.gmra.mxu0 %v1522
        %v2531 = vpop.f32.mrf.mxu0
        %v2532 = vadd.f32 %v2435, %v2531
        %v2533 = vpop.f32.mrf.mxu0
        %v2534 = vpop.f32.mrf.mxu0
        %v2535 = vadd.f32 %v2438, %v2534
        %v2536 = vpop.f32.mrf.mxu0
        %2537 = vmatprep.mubr.bf16.mxu0 %v1555
        %2538 = vmatmul.mubr.bf16.gmra.mxu0 %v1523
        %v2539 = vpop.f32.mrf.mxu0
        %v2540 = vadd.f32 %v2443, %v2539
        %v2541 = vpop.f32.mrf.mxu0
        %v2542 = vpop.f32.mrf.mxu0
        %v2543 = vadd.f32 %v2446, %v2542
        %v2544 = vpop.f32.mrf.mxu0
        %2545 = vmatprep.mubr.bf16.mxu0 %v1556
        %2546 = vmatmul.mubr.bf16.gmra.mxu0 %v1524
        %v2547 = vpop.f32.mrf.mxu0
        %v2548 = vadd.f32 %v2451, %v2547
        %v2549 = vpop.f32.mrf.mxu0
        %v2550 = vpop.f32.mrf.mxu0
        %v2551 = vadd.f32 %v2454, %v2550
        %v2552 = vpop.f32.mrf.mxu0
        %2553 = vmatprep.mubr.bf16.mxu0 %v1557
        %2554 = vmatmul.mubr.bf16.gmra.mxu0 %v1525
        %v2555 = vpop.f32.mrf.mxu0
        %v2556 = vadd.f32 %v2459, %v2555
        %v2557 = vpop.f32.mrf.mxu0
        %v2558 = vpop.f32.mrf.mxu0
        %v2559 = vadd.f32 %v2462, %v2558
        %v2560 = vpop.f32.mrf.mxu0
        %2561 = vdwg.mxu0
        %2562 = vmatprep.subr.bf16.mxu0 0
        %2563 = vmatpush1.bf16.msra.mxu0 %v2101
        %2564 = vmatprep.subr.bf16.mxu0 0
        %2565 = vmatpush1.bf16.msra.mxu0 %v2100
        %2566 = vmatprep.subr.bf16.mxu0 0
        %2567 = vmatpush1.bf16.msra.mxu0 %v2099
        %2568 = vmatprep.subr.bf16.mxu0 0
        %2569 = vmatpush1.bf16.msra.mxu0 %v2098
        %2570 = vmatprep.subr.bf16.mxu0 0
        %2571 = vmatpush1.bf16.msra.mxu0 %v2097
        %2572 = vmatprep.subr.bf16.mxu0 0
        %2573 = vmatpush1.bf16.msra.mxu0 %v2096
        %2574 = vmatprep.subr.bf16.mxu0 0
        %2575 = vmatpush1.bf16.msra.mxu0 %v2095
        %2576 = vmatprep.subr.bf16.mxu0 0
        %2577 = vmatpush1.bf16.msra.mxu0 %v2094
        %2578 = vmatprep.subr.bf16.mxu0 0
        %2579 = vmatpush2.bf16.msra.mxu0 0
        %2580 = vmatprep.subr.bf16.mxu0 0
        %2581 = vmatpush2.bf16.msra.mxu0 0
        %2582 = vmatprep.subr.bf16.mxu0 0
        %2583 = vmatpush2.bf16.msra.mxu0 0
        %2584 = vmatprep.subr.bf16.mxu0 0
        %2585 = vmatpush2.bf16.msra.mxu0 0
        %2586 = vmatprep.subr.bf16.mxu0 0
        %2587 = vmatpush2.bf16.msra.mxu0 0
        %2588 = vmatprep.subr.bf16.mxu0 0
        %2589 = vmatpush2.bf16.msra.mxu0 0
        %2590 = vmatprep.subr.bf16.mxu0 0
        %2591 = vmatpush2.bf16.msra.mxu0 0
        %2592 = vmatprep.subr.bf16.mxu0 0
        %2593 = vmatpush2.bf16.msra.mxu0 0
        %2594 = vmatprep.mubr.bf16.mxu0 0
        %2595 = vmatmul.mubr.bf16.gmra.mxu0 %v1582
        %v2596 = vpop.f32.mrf.mxu0
        %v2597 = vadd.f32 %v2500, %v2596
        %v2598 = vpop.f32.mrf.mxu0
        %v2599 = vpop.f32.mrf.mxu0
        %v2600 = vadd.f32 %v2503, %v2599
        %v2601 = vpop.f32.mrf.mxu0
        %2602 = vmatprep.mubr.bf16.mxu0 0
        %2603 = vmatmul.mubr.bf16.gmra.mxu0 %v1583
        %v2604 = vpop.f32.mrf.mxu0
        %v2605 = vadd.f32 %v2508, %v2604
        %v2606 = vpop.f32.mrf.mxu0
        %v2607 = vpop.f32.mrf.mxu0
        %v2608 = vadd.f32 %v2511, %v2607
        %v2609 = vpop.f32.mrf.mxu0
        %2610 = vmatprep.mubr.bf16.mxu0 0
        %2611 = vmatmul.mubr.bf16.gmra.mxu0 %v1584
        %v2612 = vpop.f32.mrf.mxu0
        %v2613 = vadd.f32 %v2516, %v2612
        %v2614 = vpop.f32.mrf.mxu0
        %v2615 = vpop.f32.mrf.mxu0
        %v2616 = vadd.f32 %v2519, %v2615
        %v2617 = vpop.f32.mrf.mxu0
        %2618 = vmatprep.mubr.bf16.mxu0 0
        %2619 = vmatmul.mubr.bf16.gmra.mxu0 %v1585
        %v2620 = vpop.f32.mrf.mxu0
        %v2621 = vadd.f32 %v2524, %v2620
        %v2622 = vpop.f32.mrf.mxu0
        %v2623 = vpop.f32.mrf.mxu0
        %v2624 = vadd.f32 %v2527, %v2623
        %v2625 = vpop.f32.mrf.mxu0
        %2626 = vmatprep.mubr.bf16.mxu0 0
        %2627 = vmatmul.mubr.bf16.gmra.mxu0 %v1586
        %v2628 = vpop.f32.mrf.mxu0
        %v2629 = vadd.f32 %v2532, %v2628
        %v2630 = vpop.f32.mrf.mxu0
        %v2631 = vpop.f32.mrf.mxu0
        %v2632 = vadd.f32 %v2535, %v2631
        %v2633 = vpop.f32.mrf.mxu0
        %2634 = vmatprep.mubr.bf16.mxu0 0
        %2635 = vmatmul.mubr.bf16.gmra.mxu0 %v1587
        %v2636 = vpop.f32.mrf.mxu0
        %v2637 = vadd.f32 %v2540, %v2636
        %v2638 = vpop.f32.mrf.mxu0
        %v2639 = vpop.f32.mrf.mxu0
        %v2640 = vadd.f32 %v2543, %v2639
        %v2641 = vpop.f32.mrf.mxu0
        %2642 = vmatprep.mubr.bf16.mxu0 0
        %2643 = vmatmul.mubr.bf16.gmra.mxu0 %v1588
        %v2644 = vpop.f32.mrf.mxu0
        %v2645 = vadd.f32 %v2548, %v2644
        %v2646 = vpop.f32.mrf.mxu0
        %v2647 = vpop.f32.mrf.mxu0
        %v2648 = vadd.f32 %v2551, %v2647
        %v2649 = vpop.f32.mrf.mxu0
        %2650 = vmatprep.mubr.bf16.mxu0 0
        %2651 = vmatmul.mubr.bf16.gmra.mxu0 %v1589
        %v2652 = vpop.f32.mrf.mxu0
        %v2653 = vadd.f32 %v2556, %v2652
        %v2654 = vpop.f32.mrf.mxu0
        %v2655 = vpop.f32.mrf.mxu0
        %v2656 = vadd.f32 %v2559, %v2655
        %v2657 = vpop.f32.mrf.mxu0
        %2658 = vdwg.mxu0
        %v2659 = vld [vmem:[%s2] sm:$0x1]
        %v2661 = vlaneseq
        %v2662 = vshrl.u32 %v2661, 7
        %v2663 = vsub.s32 0, %v2662
        %v2664 = vrot.slane %v2659, %v2663
        %v2666 = vmul.f32 %v2597, %v2664
        %v2667 = vmul.f32 %v2600, %v2664
        %v2668 = vmul.f32 %v2605, %v2664
        %v2669 = vmul.f32 %v2608, %v2664
        %v2670 = vmul.f32 %v2613, %v2664
        %v2671 = vmul.f32 %v2616, %v2664
        %v2672 = vmul.f32 %v2621, %v2664
        %v2673 = vmul.f32 %v2624, %v2664
        %v2674 = vmul.f32 %v2629, %v2664
        %v2675 = vmul.f32 %v2632, %v2664
        %v2676 = vmul.f32 %v2637, %v2664
        %v2677 = vmul.f32 %v2640, %v2664
        %v2678 = vmul.f32 %v2645, %v2664
        %v2679 = vmul.f32 %v2648, %v2664
        %v2680 = vmul.f32 %v2653, %v2664
        %v2681 = vmul.f32 %v2656, %v2664
        %v2682 = vld [vmem:[%s3] sm:$0x1]
        %v2684 = vlaneseq
        %v2685 = vshrl.u32 %v2684, 7
        %v2686 = vsub.s32 0, %v2685
        %v2687 = vrot.slane %v2682, %v2686
        %v2689 = vadd.f32 %v2666, %v2687
        %v2690 = vadd.f32 %v2667, %v2687
        %v2691 = vadd.f32 %v2668, %v2687
        %v2692 = vadd.f32 %v2669, %v2687
        %v2693 = vadd.f32 %v2670, %v2687
        %v2694 = vadd.f32 %v2671, %v2687
        %v2695 = vadd.f32 %v2672, %v2687
        %v2696 = vadd.f32 %v2673, %v2687
        %v2697 = vadd.f32 %v2674, %v2687
        %v2698 = vadd.f32 %v2675, %v2687
        %v2699 = vadd.f32 %v2676, %v2687
        %v2700 = vadd.f32 %v2677, %v2687
        %v2701 = vadd.f32 %v2678, %v2687
        %v2702 = vadd.f32 %v2679, %v2687
        %v2703 = vadd.f32 %v2680, %v2687
        %v2704 = vadd.f32 %v2681, %v2687
        %v2705 = vld [vmem:[%s352] sm:$0xf]
        %v2706 = vld [vmem:[%s352 + $0x4] sm:$0xf]
        %v2707 = vld [vmem:[%s352 + $0x8] sm:$0xf]
        %v2708 = vld [vmem:[%s352 + $0xc] sm:$0xf]
        %v2709 = vld [vmem:[%s352 + $0x10] sm:$0xf]
        %v2710 = vld [vmem:[%s352 + $0x14] sm:$0xf]
        %v2711 = vld [vmem:[%s352 + $0x18] sm:$0xf]
        %v2712 = vld [vmem:[%s352 + $0x1c] sm:$0xf]
        %v2713 = vld [vmem:[%s352 + $0x20] sm:$0xf]
        %v2714 = vld [vmem:[%s352 + $0x24] sm:$0xf]
        %v2715 = vld [vmem:[%s352 + $0x28] sm:$0xf]
        %v2716 = vld [vmem:[%s352 + $0x2c] sm:$0xf]
        %v2717 = vld [vmem:[%s352 + $0x30] sm:$0xf]
        %v2718 = vld [vmem:[%s352 + $0x34] sm:$0xf]
        %v2719 = vld [vmem:[%s352 + $0x38] sm:$0xf]
        %v2720 = vld [vmem:[%s352 + $0x3c] sm:$0xf]
        %v2721 = vld [vmem:[%s5] sm:$0xf]
        %v2722 = vld [vmem:[%s5 + $0x4] sm:$0xf]
        %v2723 = vld [vmem:[%s5 + $0x8] sm:$0xf]
        %v2724 = vld [vmem:[%s5 + $0xc] sm:$0xf]
        %v2725 = vld [vmem:[%s5 + $0x10] sm:$0xf]
        %v2726 = vld [vmem:[%s5 + $0x14] sm:$0xf]
        %v2727 = vld [vmem:[%s5 + $0x18] sm:$0xf]
        %v2728 = vld [vmem:[%s5 + $0x1c] sm:$0xf]
        %v2745 = vunpack.c.l.b16 %v2705
        %v2746 = vunpack.c.l.b16 %v2706
        %v2747 = vunpack.c.l.b16 %v2707
        %v2748 = vunpack.c.l.b16 %v2708
        %v2749 = vunpack.c.l.b16 %v2709
        %v2750 = vunpack.c.l.b16 %v2710
        %v2751 = vunpack.c.l.b16 %v2711
        %v2752 = vunpack.c.l.b16 %v2712
        %v2753 = vunpack.c.l.b16 %v2713
        %v2754 = vunpack.c.l.b16 %v2714
        %v2755 = vunpack.c.l.b16 %v2715
        %v2756 = vunpack.c.l.b16 %v2716
        %v2757 = vunpack.c.l.b16 %v2717
        %v2758 = vunpack.c.l.b16 %v2718
        %v2759 = vunpack.c.l.b16 %v2719
        %v2760 = vunpack.c.l.b16 %v2720
        %v2761 = vpack.c.b16 %v2746, %v2745
        %v2762 = vpack.c.b16 %v2748, %v2747
        %v2763 = vpack.c.b16 %v2750, %v2749
        %v2764 = vpack.c.b16 %v2752, %v2751
        %v2765 = vpack.c.b16 %v2754, %v2753
        %v2766 = vpack.c.b16 %v2756, %v2755
        %v2767 = vpack.c.b16 %v2758, %v2757
        %v2768 = vpack.c.b16 %v2760, %v2759
        %v2777 = vunpack.c.l.b16 %v2721
        %v2778 = vunpack.c.l.b16 %v2722
        %v2779 = vunpack.c.l.b16 %v2723
        %v2780 = vunpack.c.l.b16 %v2724
        %v2781 = vunpack.c.l.b16 %v2725
        %v2782 = vunpack.c.l.b16 %v2726
        %v2783 = vunpack.c.l.b16 %v2727
        %v2784 = vunpack.c.l.b16 %v2728
        %v2785 = vpack.c.b16 %v2778, %v2777
        %v2786 = vpack.c.b16 %v2780, %v2779
        %v2787 = vpack.c.b16 %v2782, %v2781
        %v2788 = vpack.c.b16 %v2784, %v2783
        %vm2793 = vcmask 523264
        %v2795 = vsel %vm2793, %v2761, 0
        %v2798 = vsel %vm2793, %v2762, 0
        %v2801 = vsel %vm2793, %v2763, 0
        %v2804 = vsel %vm2793, %v2764, 0
        %v2807 = vsel %vm2793, %v2765, 0
        %v2810 = vsel %vm2793, %v2766, 0
        %v2813 = vsel %vm2793, %v2767, 0
        %v2816 = vsel %vm2793, %v2768, 0
        %2818 = vmatprep.subr.bf16.mxu0 0
        %2819 = vmatpush1.bf16.msra.mxu0 0
        %2820 = vmatprep.subr.bf16.mxu0 0
        %2821 = vmatpush1.bf16.msra.mxu0 0
        %2822 = vmatprep.subr.bf16.mxu0 0
        %2823 = vmatpush1.bf16.msra.mxu0 0
        %2824 = vmatprep.subr.bf16.mxu0 0
        %2825 = vmatpush1.bf16.msra.mxu0 0
        %2826 = vmatprep.subr.bf16.mxu0 0
        %2827 = vmatpush1.bf16.msra.mxu0 %v2788
        %2828 = vmatprep.subr.bf16.mxu0 0
        %2829 = vmatpush1.bf16.msra.mxu0 %v2787
        %2830 = vmatprep.subr.bf16.mxu0 0
        %2831 = vmatpush1.bf16.msra.mxu0 %v2786
        %2832 = vmatprep.subr.bf16.mxu0 0
        %2833 = vmatpush1.bf16.msra.mxu0 %v2785
        %2834 = vmatprep.subr.bf16.mxu0 0
        %2835 = vmatpush2.bf16.msra.mxu0 0
        %2836 = vmatprep.subr.bf16.mxu0 0
        %2837 = vmatpush2.bf16.msra.mxu0 0
        %2838 = vmatprep.subr.bf16.mxu0 0
        %2839 = vmatpush2.bf16.msra.mxu0 0
        %2840 = vmatprep.subr.bf16.mxu0 0
        %2841 = vmatpush2.bf16.msra.mxu0 0
        %2842 = vmatprep.subr.bf16.mxu0 0
        %2843 = vmatpush2.bf16.msra.mxu0 0
        %2844 = vmatprep.subr.bf16.mxu0 0
        %2845 = vmatpush2.bf16.msra.mxu0 0
        %2846 = vmatprep.subr.bf16.mxu0 0
        %2847 = vmatpush2.bf16.msra.mxu0 0
        %2848 = vmatprep.subr.bf16.mxu0 0
        %2849 = vmatpush2.bf16.msra.mxu0 0
        %2850 = vmatprep.mubr.bf16.mxu0 0
        %2851 = vmatmul.mubr.bf16.gmra.mxu0 %v2795
        %v2852 = vpop.f32.mrf.mxu0
        %v2853 = vadd.f32 0.0, %v2852
        %v2854 = vpop.f32.mrf.mxu0
        %v2855 = vpop.f32.mrf.mxu0
        %v2856 = vadd.f32 0.0, %v2855
        %v2857 = vpop.f32.mrf.mxu0
        %2858 = vmatprep.mubr.bf16.mxu0 0
        %2859 = vmatmul.mubr.bf16.gmra.mxu0 %v2798
        %v2860 = vpop.f32.mrf.mxu0
        %v2861 = vadd.f32 0.0, %v2860
        %v2862 = vpop.f32.mrf.mxu0
        %v2863 = vpop.f32.mrf.mxu0
        %v2864 = vadd.f32 0.0, %v2863
        %v2865 = vpop.f32.mrf.mxu0
        %2866 = vmatprep.mubr.bf16.mxu0 0
        %2867 = vmatmul.mubr.bf16.gmra.mxu0 %v2801
        %v2868 = vpop.f32.mrf.mxu0
        %v2869 = vadd.f32 0.0, %v2868
        %v2870 = vpop.f32.mrf.mxu0
        %v2871 = vpop.f32.mrf.mxu0
        %v2872 = vadd.f32 0.0, %v2871
        %v2873 = vpop.f32.mrf.mxu0
        %2874 = vmatprep.mubr.bf16.mxu0 0
        %2875 = vmatmul.mubr.bf16.gmra.mxu0 %v2804
        %v2876 = vpop.f32.mrf.mxu0
        %v2877 = vadd.f32 0.0, %v2876
        %v2878 = vpop.f32.mrf.mxu0
        %v2879 = vpop.f32.mrf.mxu0
        %v2880 = vadd.f32 0.0, %v2879
        %v2881 = vpop.f32.mrf.mxu0
        %2882 = vmatprep.mubr.bf16.mxu0 0
        %2883 = vmatmul.mubr.bf16.gmra.mxu0 %v2807
        %v2884 = vpop.f32.mrf.mxu0
        %v2885 = vadd.f32 0.0, %v2884
        %v2886 = vpop.f32.mrf.mxu0
        %v2887 = vpop.f32.mrf.mxu0
        %v2888 = vadd.f32 0.0, %v2887
        %v2889 = vpop.f32.mrf.mxu0
        %2890 = vmatprep.mubr.bf16.mxu0 0
        %2891 = vmatmul.mubr.bf16.gmra.mxu0 %v2810
        %v2892 = vpop.f32.mrf.mxu0
        %v2893 = vadd.f32 0.0, %v2892
        %v2894 = vpop.f32.mrf.mxu0
        %v2895 = vpop.f32.mrf.mxu0
        %v2896 = vadd.f32 0.0, %v2895
        %v2897 = vpop.f32.mrf.mxu0
        %2898 = vmatprep.mubr.bf16.mxu0 0
        %2899 = vmatmul.mubr.bf16.gmra.mxu0 %v2813
        %v2900 = vpop.f32.mrf.mxu0
        %v2901 = vadd.f32 0.0, %v2900
        %v2902 = vpop.f32.mrf.mxu0
        %v2903 = vpop.f32.mrf.mxu0
        %v2904 = vadd.f32 0.0, %v2903
        %v2905 = vpop.f32.mrf.mxu0
        %2906 = vmatprep.mubr.bf16.mxu0 0
        %2907 = vmatmul.mubr.bf16.gmra.mxu0 %v2816
        %v2908 = vpop.f32.mrf.mxu0
        %v2909 = vadd.f32 0.0, %v2908
        %v2910 = vpop.f32.mrf.mxu0
        %v2911 = vpop.f32.mrf.mxu0
        %v2912 = vadd.f32 0.0, %v2911
        %v2913 = vpop.f32.mrf.mxu0
        %2914 = vdwg.mxu0
        %v2915 = vld [vmem:[%s6] sm:$0x1]
        %v2917 = vlaneseq
        %v2918 = vshrl.u32 %v2917, 7
        %v2919 = vsub.s32 0, %v2918
        %v2920 = vrot.slane %v2915, %v2919
        %v2922 = vmul.f32 %v2853, %v2920
        %v2923 = vmul.f32 %v2856, %v2920
        %v2924 = vmul.f32 %v2861, %v2920
        %v2925 = vmul.f32 %v2864, %v2920
        %v2926 = vmul.f32 %v2869, %v2920
        %v2927 = vmul.f32 %v2872, %v2920
        %v2928 = vmul.f32 %v2877, %v2920
        %v2929 = vmul.f32 %v2880, %v2920
        %v2930 = vmul.f32 %v2885, %v2920
        %v2931 = vmul.f32 %v2888, %v2920
        %v2932 = vmul.f32 %v2893, %v2920
        %v2933 = vmul.f32 %v2896, %v2920
        %v2934 = vmul.f32 %v2901, %v2920
        %v2935 = vmul.f32 %v2904, %v2920
        %v2936 = vmul.f32 %v2909, %v2920
        %v2937 = vmul.f32 %v2912, %v2920
        %v2938 = vld [vmem:[%s7] sm:$0x1]
        %v2940 = vlaneseq
        %v2941 = vshrl.u32 %v2940, 7
        %v2942 = vsub.s32 0, %v2941
        %v2943 = vrot.slane %v2938, %v2942
        %v2945 = vadd.f32 %v2922, %v2943
        %v2946 = vadd.f32 %v2923, %v2943
        %v2947 = vadd.f32 %v2924, %v2943
        %v2948 = vadd.f32 %v2925, %v2943
        %v2949 = vadd.f32 %v2926, %v2943
        %v2950 = vadd.f32 %v2927, %v2943
        %v2951 = vadd.f32 %v2928, %v2943
        %v2952 = vadd.f32 %v2929, %v2943
        %v2953 = vadd.f32 %v2930, %v2943
        %v2954 = vadd.f32 %v2931, %v2943
        %v2955 = vadd.f32 %v2932, %v2943
        %v2956 = vadd.f32 %v2933, %v2943
        %v2957 = vadd.f32 %v2934, %v2943
        %v2958 = vadd.f32 %v2935, %v2943
        %v2959 = vadd.f32 %v2936, %v2943
        %v2960 = vadd.f32 %v2937, %v2943
        %v2961 = vadd.f32 %v2689, %v2945
        %v2962 = vadd.f32 %v2690, %v2946
        %v2963 = vadd.f32 %v2691, %v2947
        %v2964 = vadd.f32 %v2692, %v2948
        %v2965 = vadd.f32 %v2693, %v2949
        %v2966 = vadd.f32 %v2694, %v2950
        %v2967 = vadd.f32 %v2695, %v2951
        %v2968 = vadd.f32 %v2696, %v2952
        %v2969 = vadd.f32 %v2697, %v2953
        %v2970 = vadd.f32 %v2698, %v2954
        %v2971 = vadd.f32 %v2699, %v2955
        %v2972 = vadd.f32 %v2700, %v2956
        %v2973 = vadd.f32 %v2701, %v2957
        %v2974 = vadd.f32 %v2702, %v2958
        %v2975 = vadd.f32 %v2703, %v2959
        %v2976 = vadd.f32 %v2704, %v2960
        %v2977 = vmax.f32 %v2961, 0.0
        %v2978 = vmax.f32 %v2962, 0.0
        %v2979 = vmax.f32 %v2963, 0.0
        %v2980 = vmax.f32 %v2964, 0.0
        %v2981 = vmax.f32 %v2965, 0.0
        %v2982 = vmax.f32 %v2966, 0.0
        %v2983 = vmax.f32 %v2967, 0.0
        %v2984 = vmax.f32 %v2968, 0.0
        %v2985 = vmax.f32 %v2969, 0.0
        %v2986 = vmax.f32 %v2970, 0.0
        %v2987 = vmax.f32 %v2971, 0.0
        %v2988 = vmax.f32 %v2972, 0.0
        %v2989 = vmax.f32 %v2973, 0.0
        %v2990 = vmax.f32 %v2974, 0.0
        %v2991 = vmax.f32 %v2975, 0.0
        %v2992 = vmax.f32 %v2976, 0.0
        %2993 = vst [vmem:[%s338] sm:$0xff] %v2977
        %2994 = vst [vmem:[%s338 + $0x8] sm:$0xff] %v2978
        %2995 = vst [vmem:[%s338 + $0x10] sm:$0xff] %v2979
        %2996 = vst [vmem:[%s338 + $0x18] sm:$0xff] %v2980
        %2997 = vst [vmem:[%s338 + $0x20] sm:$0xff] %v2981
        %2998 = vst [vmem:[%s338 + $0x28] sm:$0xff] %v2982
        %2999 = vst [vmem:[%s338 + $0x30] sm:$0xff] %v2983
        %3000 = vst [vmem:[%s338 + $0x38] sm:$0xff] %v2984
        %3001 = vst [vmem:[%s338 + $0x40] sm:$0xff] %v2985
        %3002 = vst [vmem:[%s338 + $0x48] sm:$0xff] %v2986
        %3003 = vst [vmem:[%s338 + $0x50] sm:$0xff] %v2987
        %3004 = vst [vmem:[%s338 + $0x58] sm:$0xff] %v2988
        %3005 = vst [vmem:[%s338 + $0x60] sm:$0xff] %v2989
        %3006 = vst [vmem:[%s338 + $0x68] sm:$0xff] %v2990
        %3007 = vst [vmem:[%s338 + $0x70] sm:$0xff] %v2991
        %3008 = vst [vmem:[%s338 + $0x78] sm:$0xff] %v2992
        %s3009 = sand.u32 %s224, 1
        %s3010 = scalar_lea.sflag [#allocation3], %s3009
        %s3011 = sand.u32 %s224, 1
        %s3012 = smul.addr %s3011, 128
        %s3013 = scalar_lea.vmem [#allocation2], %s3012
        // Predicated region
        $region53: #{_lambda_.7} parent=51 // pred_check
          %p3014 = pneg %p234
        $region54: #{_lambda_.7} parent=51 // pred_check_branch
          %3016 = sbr.rel (%p3014) target = $region56
        $region55: #{_lambda_.7} parent=51 // pred_region
          %s3017 = smul.u32 16, %s27
          %s3019 = ssub.s32 2048, 2048
          %3020 = vsyncadd %s3010, %s3019
          %s3021 = smul.addr %s26, 32
          %s3022 = sadd.s32 %s3017, %s3021
          %s3023 = smul.addr %s3022, 128
          %s3024 = scalar_lea.hbm %s8, %s3023
          %s3025 = sshll.u32 %s3013, 4
          %s3026 = int_to_ptr.vmem [resolvable:$true] %s3025
          %3031 = dma.vmem_to_hbm [thread:$0]  %s3026, 2048, %s3024, %s3010, 128, 128, 8
        $region56: #{_lambda_.7} parent=51 // pred_fallthru
          _
      $region52: #{_lambda_.7} parent=5 // pred_fallthru
        _
      %p3032 = scmp.le.s32.totalorder 2, %s17
      // Predicated region
      $region57: #{_lambda_.7} parent=5 // pred_check
        %p3033 = pneg %p3032
      $region58: #{_lambda_.7} parent=5 // pred_check_branch
        %3035 = sbr.rel (%p3033) target = $region60
      $region59: #{_lambda_.7} parent=5 // pred_region
        %s3036 = ssub.s32 %s17, 2
        // Predicated region
        $region61: #{_lambda_.7} parent=59 // pred_check
          %p3037 = pneg %p240
        $region62: #{_lambda_.7} parent=59 // pred_check_branch
          %3039 = sbr.rel (%p3037) target = $region64
        $region63: #{_lambda_.7} parent=59 // pred_region
          %s3040 = sand.u32 %s225, 1
          %s3041 = scalar_lea.sflag [#allocation3], %s3040
          %s3042 = sand.u32 %s225, 1
          %s3043 = smul.addr %s3042, 128
          %s3044 = scalar_lea.vmem [#allocation2], %s3043
          %3045 = dma.done %s3041, 2048
        $region64: #{_lambda_.7} parent=59 // pred_fallthru
          _
      $region60: #{_lambda_.7} parent=5 // pred_fallthru
        _
    $region6: #{_lambda_.7} parent=1 // loop_footer
      %s21 = sadd.s32 1, %s17
    $region7: #{_lambda_.7} parent=1 // loop_footer_branch
      %16 = sbr.rel target = $region3
    $region8: #{_lambda_.7} parent=1 // loop_exit
      _
    %3046 = vsyncpa [#allocation3], 1
    %s3047 = scalar_lea.sflag [#allocation3], 1
    %3048 = vsyncpa %s3047, 1

// kernel: _lambda_.4
$region0: #{_lambda_.4}
  #allocation0 [shape = 'u32[]', space=smem, size = 0x4, offset = 0x4, fixed_abs, tag = 'smem constant byte address 0x4 - core index']
  #allocation1 [shape = 'u32[144,128]{1,0:T(1,128)}', space=vmem, size = 0x12000, scoped, tag = 'internal scratch']
  %s0 = inlined_call_operand.vmem [shape: bf16[2,34,34,64], index: 0, kind: input, shape index: {}]
  %s1 = inlined_call_operand.vmem [shape: bf16[576,64], index: 1, kind: input, shape index: {}]
  %s2 = inlined_call_operand.vmem [shape: f32[1,64], index: 2, kind: input, shape index: {}]
  %s3 = inlined_call_operand.vmem [shape: f32[1,64], index: 3, kind: input, shape index: {}]
  %s4 = inlined_call_operand.vmem [shape: bf16[2,1024,64], index: 4, kind: output, shape index: {}]
  %s5 = sld [smem:[#allocation0]]
  $region49: #{_lambda_.4} parent=0
    _
  %s7 = ssub.s32 1, %s5
  %s8 = scalar_select 0, %s7, %s5
  loop: start=0, step=1, limit=10
  $region2: #{_lambda_.4} parent=0 // loop_pre_header
    _
  $region3: #{_lambda_.4} parent=0 // loop_header
    %s10 = sphi 0, %s14
    %p11 = scmp.ge.s32.totalorder %s10, 10
    %s17 = sphi 0, %s29
    %s18 = sphi 0, %s25
    %s19 = sphi 0, %s17
    %s20 = sphi 0, %s18
    %s21 = sphi 0, %s19
    %s22 = sphi 0, %s20
    %s32 = sphi 0, %s34
    %s35 = sphi 0, %s32
    %s36 = sphi 0, %s35
    %s52 = sphi 0, %s36
    %s56 = sphi 0, %s56
    %s58 = sphi 0, %s56
    %s59 = sphi 0, %s58
    %s73 = sphi 0, %s59
    %s77 = sphi 0, %s77
    %s79 = sphi 0, %s77
    %s80 = sphi 0, %s79
    %s94 = sphi 0, %s80
    %s98 = sphi 0, %s98
    %s100 = sphi 0, %s98
    %s101 = sphi 0, %s100
    %s115 = sphi 0, %s101
    %s123 = sphi 0, %s125
    %s126 = sphi 0, %s123
    %s127 = sphi 0, %s126
    %s143 = sphi 0, %s127
  $region4: #{_lambda_.4} parent=0 // loop_header_branch
    %13 = sbr.rel (%p11) target = $region8
  $region5: #{_lambda_.4} parent=0 // loop_body
    %s15 = ssub.s32 %s10, 1
    %s16 = ssub.s32 %s10, 2
    %s23 = sadd.s32 1, %s18
    %p24 = scmp.ge.s32.totalorder %s23, 4
    %s25 = scalar_select %p24, 0, %s23
    %s26 = sadd.s32 1, %s17
    %s27 = scalar_select %p24, %s26, %s17
    %p28 = scmp.ge.s32.totalorder %s27, 2
    %s29 = scalar_select %p28, 0, %s27
    %s30 = ssub.s32 %s17, %s29
    %p31 = scmp.eq.s32.totalorder %s30, 0
    %s33 = sadd.s32 %s32, 1
    %s34 = scalar_select %p31, %s32, %s33
    %p37 = pneg %p31
    %p38 = scmp.eq.s32.totalorder %s10, 7
    %p39 = por %p37, %p38
    %p40 = scmp.ne.s32.totalorder %s32, %s35
    %p41 = scmp.eq.s32.totalorder %s10, 0
    %p42 = por %p40, %p41
    %p43 = scmp.ne.s32.totalorder %s32, %s35
    %p44 = scmp.eq.s32.totalorder %s15, 7
    %p45 = por %p43, %p44
    %p46 = scmp.ne.s32.totalorder %s35, %s36
    %p47 = scmp.eq.s32.totalorder %s15, 0
    %p48 = por %p46, %p47
    %p49 = scmp.ne.s32.totalorder %s35, %s36
    %p50 = scmp.eq.s32.totalorder %s16, 7
    %p51 = por %p49, %p50
    %p53 = scmp.ne.s32.totalorder %s36, %s52
    %p54 = scmp.eq.s32.totalorder %s16, 0
    %p55 = por %p53, %p54
    %s57 = sadd.s32 %s56, 1
    %p60 = scmp.eq.s32.totalorder %s10, 7
    %p61 = scmp.ne.s32.totalorder %s56, %s58
    %p62 = scmp.eq.s32.totalorder %s10, 0
    %p63 = por %p61, %p62
    %p64 = scmp.ne.s32.totalorder %s56, %s58
    %p65 = scmp.eq.s32.totalorder %s15, 7
    %p66 = por %p64, %p65
    %p67 = scmp.ne.s32.totalorder %s58, %s59
    %p68 = scmp.eq.s32.totalorder %s15, 0
    %p69 = por %p67, %p68
    %p70 = scmp.ne.s32.totalorder %s58, %s59
    %p71 = scmp.eq.s32.totalorder %s16, 7
    %p72 = por %p70, %p71
    %p74 = scmp.ne.s32.totalorder %s59, %s73
    %p75 = scmp.eq.s32.totalorder %s16, 0
    %p76 = por %p74, %p75
    %s78 = sadd.s32 %s77, 1
    %p81 = scmp.eq.s32.totalorder %s10, 7
    %p82 = scmp.ne.s32.totalorder %s77, %s79
    %p83 = scmp.eq.s32.totalorder %s10, 0
    %p84 = por %p82, %p83
    %p85 = scmp.ne.s32.totalorder %s77, %s79
    %p86 = scmp.eq.s32.totalorder %s15, 7
    %p87 = por %p85, %p86
    %p88 = scmp.ne.s32.totalorder %s79, %s80
    %p89 = scmp.eq.s32.totalorder %s15, 0
    %p90 = por %p88, %p89
    %p91 = scmp.ne.s32.totalorder %s79, %s80
    %p92 = scmp.eq.s32.totalorder %s16, 7
    %p93 = por %p91, %p92
    %p95 = scmp.ne.s32.totalorder %s80, %s94
    %p96 = scmp.eq.s32.totalorder %s16, 0
    %p97 = por %p95, %p96
    %s99 = sadd.s32 %s98, 1
    %p102 = scmp.eq.s32.totalorder %s10, 7
    %p103 = scmp.ne.s32.totalorder %s98, %s100
    %p104 = scmp.eq.s32.totalorder %s10, 0
    %p105 = por %p103, %p104
    %p106 = scmp.ne.s32.totalorder %s98, %s100
    %p107 = scmp.eq.s32.totalorder %s15, 7
    %p108 = por %p106, %p107
    %p109 = scmp.ne.s32.totalorder %s100, %s101
    %p110 = scmp.eq.s32.totalorder %s15, 0
    %p111 = por %p109, %p110
    %p112 = scmp.ne.s32.totalorder %s100, %s101
    %p113 = scmp.eq.s32.totalorder %s16, 7
    %p114 = por %p112, %p113
    %p116 = scmp.ne.s32.totalorder %s101, %s115
    %p117 = scmp.eq.s32.totalorder %s16, 0
    %p118 = por %p116, %p117
    %s119 = ssub.s32 %s17, %s29
    %s120 = ssub.s32 %s18, %s25
    %s121 = sor.u32 %s119, %s120
    %p122 = scmp.eq.s32.totalorder %s121, 0
    %s124 = sadd.s32 %s123, 1
    %s125 = scalar_select %p122, %s123, %s124
    %p128 = pneg %p122
    %p129 = scmp.eq.s32.totalorder %s10, 7
    %p130 = por %p128, %p129
    %p131 = scmp.ne.s32.totalorder %s123, %s126
    %p132 = scmp.eq.s32.totalorder %s10, 0
    %p133 = por %p131, %p132
    %p134 = scmp.ne.s32.totalorder %s123, %s126
    %p135 = scmp.eq.s32.totalorder %s15, 7
    %p136 = por %p134, %p135
    %p137 = scmp.ne.s32.totalorder %s126, %s127
    %p138 = scmp.eq.s32.totalorder %s15, 0
    %p139 = por %p137, %p138
    %p140 = scmp.ne.s32.totalorder %s126, %s127
    %p141 = scmp.eq.s32.totalorder %s16, 7
    %p142 = por %p140, %p141
    %p144 = scmp.ne.s32.totalorder %s127, %s143
    %p145 = scmp.eq.s32.totalorder %s16, 0
    %p146 = por %p144, %p145
    %p147 = scmp.le.s32.totalorder 1, %s10
    %p148 = scmp.lt.s32.totalorder %s10, 9
    %p149 = pnand %p147, %p148
    %p150 = pneg %p149
    // Predicated region
    $region9: #{_lambda_.4} parent=5 // pred_check
      _
    $region10: #{_lambda_.4} parent=5 // pred_check_branch
      %152 = sbr.rel (%p149) target = $region12
    $region11: #{_lambda_.4} parent=5 // pred_region
      %s153 = ssub.s32 %s10, 1
      // Predicated region
      $region13: #{_lambda_.4} parent=11 // pred_check
        %p154 = pneg %p69
      $region14: #{_lambda_.4} parent=11 // pred_check_branch
        %156 = sbr.rel (%p154) target = $region16
      $region15: #{_lambda_.4} parent=11 // pred_region
        _
      $region16: #{_lambda_.4} parent=11 // pred_fallthru
        _
      // Predicated region
      $region17: #{_lambda_.4} parent=11 // pred_check
        %p157 = pneg %p90
      $region18: #{_lambda_.4} parent=11 // pred_check_branch
        %159 = sbr.rel (%p157) target = $region20
      $region19: #{_lambda_.4} parent=11 // pred_region
        _
      $region20: #{_lambda_.4} parent=11 // pred_fallthru
        _
      // Predicated region
      $region21: #{_lambda_.4} parent=11 // pred_check
        %p160 = pneg %p111
      $region22: #{_lambda_.4} parent=11 // pred_check_branch
        %162 = sbr.rel (%p160) target = $region24
      $region23: #{_lambda_.4} parent=11 // pred_region
        _
      $region24: #{_lambda_.4} parent=11 // pred_fallthru
        _
    $region12: #{_lambda_.4} parent=5 // pred_fallthru
      _
    %p163 = scmp.lt.s32.totalorder %s10, 8
    // Predicated region
    $region25: #{_lambda_.4} parent=5 // pred_check
      %p164 = pneg %p163
    $region26: #{_lambda_.4} parent=5 // pred_check_branch
      %166 = sbr.rel (%p164) target = $region28
    $region27: #{_lambda_.4} parent=5 // pred_region
      // Predicated region
      $region29: #{_lambda_.4} parent=27 // pred_check
        %p167 = pneg %p42
      $region30: #{_lambda_.4} parent=27 // pred_check_branch
        %169 = sbr.rel (%p167) target = $region32
      $region31: #{_lambda_.4} parent=27 // pred_region
        %p170 = scmp.lt.s32.totalorder %s17, 1
        %s171 = scalar_select %p170, %s17, 1
        %s172 = smul.addr %s171, 170
        %s173 = smul.addr %s172, 4
        %s174 = scalar_lea.vmem %s0, %s173
      $region32: #{_lambda_.4} parent=27 // pred_fallthru
        _
    $region28: #{_lambda_.4} parent=5 // pred_fallthru
      _
    %p175 = scmp.le.s32.totalorder 1, %s10
    %p176 = scmp.lt.s32.totalorder %s10, 9
    %p177 = pnand %p175, %p176
    %p178 = pneg %p177
    // Predicated region
    $region33: #{_lambda_.4} parent=5 // pred_check
      _
    $region34: #{_lambda_.4} parent=5 // pred_check_branch
      %180 = sbr.rel (%p177) target = $region36
    $region35: #{_lambda_.4} parent=5 // pred_region
      %s181 = ssub.s32 %s10, 1
      %p182 = scmp.lt.s32.totalorder %s19, 1
      %s183 = scalar_select %p182, %s19, 1
      %s184 = smul.addr %s183, 170
      %s185 = smul.addr %s184, 4
      %s186 = scalar_lea.vmem %s0, %s185
      %p187 = pneg %p48
      %p188 = pneg %p45
      %p189 = pneg %p69
      %p190 = pneg %p66
      %p191 = pneg %p90
      %p192 = pneg %p87
      %p193 = pneg %p111
      %p194 = pneg %p108
      %p195 = pneg %p139
      %p196 = pneg %p136
      %s197 = smul.u32 32, %s20
      %p198 = scmp.lt.s32.totalorder %s19, 1
      %s199 = scalar_select %p198, %s19, 1
      %p200 = scmp.lt.s32.totalorder %s197, 127
      %s201 = scalar_select %p200, %s197, 127
      %s202 = smul.addr %s199, 128
      %s203 = sadd.s32 %s201, %s202
      %s204 = smul.addr %s203, 4
      %s205 = scalar_lea.vmem %s4, %s204
      %p206 = scmp.lt.s32.totalorder %s19, 1
      %s207 = scalar_select %p206, %s19, 1
      %s208 = smul.addr %s207, 170
      %s209 = smul.addr %s208, 4
      %s210 = scalar_lea.vmem %s0, %s209
      %s211 = smul.u32 32, %s20
      %p212 = scmp.lt.s32.totalorder %s19, 1
      %s213 = scalar_select %p212, %s19, 1
      %p214 = scmp.lt.s32.totalorder %s211, 127
      %s215 = scalar_select %p214, %s211, 127
      %s216 = smul.addr %s213, 128
      %s217 = sadd.s32 %s215, %s216
      %s218 = smul.addr %s217, 4
      %s219 = scalar_lea.vmem %s4, %s218
      %s220 = smul.u32 32, %s20
      %s222 = smul.u32 %s20, 8
      %s223 = smul.u32 %s222, 5
      %s224 = smul.addr %s223, 4
      %s225 = scalar_lea.vmem %s210, %s224
      %v226 = vld [vmem:[%s225] sm:$0xf]
      %v227 = vld [vmem:[%s225 + $0x4] sm:$0xf]
      %v228 = vld [vmem:[%s225 + $0x8] sm:$0xf]
      %v229 = vld [vmem:[%s225 + $0xc] sm:$0xf]
      %v230 = vld [vmem:[%s225 + $0x14] sm:$0xf]
      %v231 = vld [vmem:[%s225 + $0x18] sm:$0xf]
      %v232 = vld [vmem:[%s225 + $0x1c] sm:$0xf]
      %v233 = vld [vmem:[%s225 + $0x20] sm:$0xf]
      %v234 = vld [vmem:[%s225 + $0x28] sm:$0xf]
      %v235 = vld [vmem:[%s225 + $0x2c] sm:$0xf]
      %v236 = vld [vmem:[%s225 + $0x30] sm:$0xf]
      %v237 = vld [vmem:[%s225 + $0x34] sm:$0xf]
      %v238 = vld [vmem:[%s225 + $0x3c] sm:$0xf]
      %v239 = vld [vmem:[%s225 + $0x40] sm:$0xf]
      %v240 = vld [vmem:[%s225 + $0x44] sm:$0xf]
      %v241 = vld [vmem:[%s225 + $0x48] sm:$0xf]
      %v242 = vld [vmem:[%s225 + $0x50] sm:$0xf]
      %v243 = vld [vmem:[%s225 + $0x54] sm:$0xf]
      %v244 = vld [vmem:[%s225 + $0x58] sm:$0xf]
      %v245 = vld [vmem:[%s225 + $0x5c] sm:$0xf]
      %v246 = vld [vmem:[%s225 + $0x64] sm:$0xf]
      %v247 = vld [vmem:[%s225 + $0x68] sm:$0xf]
      %v248 = vld [vmem:[%s225 + $0x6c] sm:$0xf]
      %v249 = vld [vmem:[%s225 + $0x70] sm:$0xf]
      %v250 = vld [vmem:[%s225 + $0x78] sm:$0xf]
      %v251 = vld [vmem:[%s225 + $0x7c] sm:$0xf]
      %v252 = vld [vmem:[%s225 + $0x80] sm:$0xf]
      %v253 = vld [vmem:[%s225 + $0x84] sm:$0xf]
      %v254 = vld [vmem:[%s225 + $0x8c] sm:$0xf]
      %v255 = vld [vmem:[%s225 + $0x90] sm:$0xf]
      %v256 = vld [vmem:[%s225 + $0x94] sm:$0xf]
      %v257 = vld [vmem:[%s225 + $0x98] sm:$0xf]
      %v258 = vld [vmem:[%s225 + $0x10] sm:$0x1]
      %v259 = vld [vmem:[%s225 + $0x24] sm:$0x1]
      %v260 = vld [vmem:[%s225 + $0x38] sm:$0x1]
      %v261 = vld [vmem:[%s225 + $0x4c] sm:$0x1]
      %v262 = vld [vmem:[%s225 + $0x60] sm:$0x1]
      %v263 = vld [vmem:[%s225 + $0x74] sm:$0x1]
      %v264 = vld [vmem:[%s225 + $0x88] sm:$0x1]
      %v265 = vld [vmem:[%s225 + $0x9c] sm:$0x1]
      %vm266 = vsmask.f32 3328
      %vm267 = vsmask.f32 7440
      %vm268 = vmor %vm266, %vm267
      %v270 = vshrl.u32 %v226, 16
      %v272 = vrot.slane %v270, 4
      %v273 = vshll.u32 %v226, 16
      %v275 = vrot.slane %v273, 5
      %v276 = vor.u32 %v272, %v275
      %v277 = vrot.slane %v276, 4
      %v279 = vshll.u32 %v227, 16
      %v281 = vrot.slane %v279, 5
      %v282 = vsel %vm268, %v277, %v281
      %v283 = vshrl.u32 %v227, 16
      %v285 = vrot.slane %v283, 4
      %v286 = vor.u32 %v285, %v281
      %v287 = vrot.slane %v286, 4
      %v289 = vshll.u32 %v228, 16
      %v291 = vrot.slane %v289, 5
      %v292 = vsel %vm268, %v287, %v291
      %v293 = vshrl.u32 %v228, 16
      %v295 = vrot.slane %v293, 4
      %v296 = vor.u32 %v295, %v291
      %v297 = vrot.slane %v296, 4
      %v299 = vshll.u32 %v229, 16
      %v301 = vrot.slane %v299, 5
      %v302 = vsel %vm268, %v297, %v301
      %v303 = vshrl.u32 %v229, 16
      %v305 = vrot.slane %v303, 4
      %v306 = vor.u32 %v305, %v301
      %v307 = vrot.slane %v306, 4
      %v309 = vshll.u32 %v258, 16
      %v311 = vrot.slane %v309, 5
      %v312 = vsel %vm268, %v307, %v311
      %v314 = vshrl.u32 %v230, 16
      %v316 = vrot.slane %v314, 4
      %v317 = vshll.u32 %v230, 16
      %v319 = vrot.slane %v317, 5
      %v320 = vor.u32 %v316, %v319
      %v321 = vrot.slane %v320, 4
      %v323 = vshll.u32 %v231, 16
      %v325 = vrot.slane %v323, 5
      %v326 = vsel %vm268, %v321, %v325
      %v327 = vshrl.u32 %v231, 16
      %v329 = vrot.slane %v327, 4
      %v330 = vor.u32 %v329, %v325
      %v331 = vrot.slane %v330, 4
      %v333 = vshll.u32 %v232, 16
      %v335 = vrot.slane %v333, 5
      %v336 = vsel %vm268, %v331, %v335
      %v337 = vshrl.u32 %v232, 16
      %v339 = vrot.slane %v337, 4
      %v340 = vor.u32 %v339, %v335
      %v341 = vrot.slane %v340, 4
      %v343 = vshll.u32 %v233, 16
      %v345 = vrot.slane %v343, 5
      %v346 = vsel %vm268, %v341, %v345
      %v347 = vshrl.u32 %v233, 16
      %v349 = vrot.slane %v347, 4
      %v350 = vor.u32 %v349, %v345
      %v351 = vrot.slane %v350, 4
      %v353 = vshll.u32 %v259, 16
      %v355 = vrot.slane %v353, 5
      %v356 = vsel %vm268, %v351, %v355
      %v358 = vshrl.u32 %v234, 16
      %v360 = vrot.slane %v358, 4
      %v361 = vshll.u32 %v234, 16
      %v363 = vrot.slane %v361, 5
      %v364 = vor.u32 %v360, %v363
      %v365 = vrot.slane %v364, 4
      %v367 = vshll.u32 %v235, 16
      %v369 = vrot.slane %v367, 5
      %v370 = vsel %vm268, %v365, %v369
      %v371 = vshrl.u32 %v235, 16
      %v373 = vrot.slane %v371, 4
      %v374 = vor.u32 %v373, %v369
      %v375 = vrot.slane %v374, 4
      %v377 = vshll.u32 %v236, 16
      %v379 = vrot.slane %v377, 5
      %v380 = vsel %vm268, %v375, %v379
      %v381 = vshrl.u32 %v236, 16
      %v383 = vrot.slane %v381, 4
      %v384 = vor.u32 %v383, %v379
      %v385 = vrot.slane %v384, 4
      %v387 = vshll.u32 %v237, 16
      %v389 = vrot.slane %v387, 5
      %v390 = vsel %vm268, %v385, %v389
      %v391 = vshrl.u32 %v237, 16
      %v393 = vrot.slane %v391, 4
      %v394 = vor.u32 %v393, %v389
      %v395 = vrot.slane %v394, 4
      %v397 = vshll.u32 %v260, 16
      %v399 = vrot.slane %v397, 5
      %v400 = vsel %vm268, %v395, %v399
      %v402 = vshrl.u32 %v238, 16
      %v404 = vrot.slane %v402, 4
      %v405 = vshll.u32 %v238, 16
      %v407 = vrot.slane %v405, 5
      %v408 = vor.u32 %v404, %v407
      %v409 = vrot.slane %v408, 4
      %v411 = vshll.u32 %v239, 16
      %v413 = vrot.slane %v411, 5
      %v414 = vsel %vm268, %v409, %v413
      %v415 = vshrl.u32 %v239, 16
      %v417 = vrot.slane %v415, 4
      %v418 = vor.u32 %v417, %v413
      %v419 = vrot.slane %v418, 4
      %v421 = vshll.u32 %v240, 16
      %v423 = vrot.slane %v421, 5
      %v424 = vsel %vm268, %v419, %v423
      %v425 = vshrl.u32 %v240, 16
      %v427 = vrot.slane %v425, 4
      %v428 = vor.u32 %v427, %v423
      %v429 = vrot.slane %v428, 4
      %v431 = vshll.u32 %v241, 16
      %v433 = vrot.slane %v431, 5
      %v434 = vsel %vm268, %v429, %v433
      %v435 = vshrl.u32 %v241, 16
      %v437 = vrot.slane %v435, 4
      %v438 = vor.u32 %v437, %v433
      %v439 = vrot.slane %v438, 4
      %v441 = vshll.u32 %v261, 16
      %v443 = vrot.slane %v441, 5
      %v444 = vsel %vm268, %v439, %v443
      %v446 = vshrl.u32 %v242, 16
      %v448 = vrot.slane %v446, 4
      %v449 = vshll.u32 %v242, 16
      %v451 = vrot.slane %v449, 5
      %v452 = vor.u32 %v448, %v451
      %v453 = vrot.slane %v452, 4
      %v455 = vshll.u32 %v243, 16
      %v457 = vrot.slane %v455, 5
      %v458 = vsel %vm268, %v453, %v457
      %v459 = vshrl.u32 %v243, 16
      %v461 = vrot.slane %v459, 4
      %v462 = vor.u32 %v461, %v457
      %v463 = vrot.slane %v462, 4
      %v465 = vshll.u32 %v244, 16
      %v467 = vrot.slane %v465, 5
      %v468 = vsel %vm268, %v463, %v467
      %v469 = vshrl.u32 %v244, 16
      %v471 = vrot.slane %v469, 4
      %v472 = vor.u32 %v471, %v467
      %v473 = vrot.slane %v472, 4
      %v475 = vshll.u32 %v245, 16
      %v477 = vrot.slane %v475, 5
      %v478 = vsel %vm268, %v473, %v477
      %v479 = vshrl.u32 %v245, 16
      %v481 = vrot.slane %v479, 4
      %v482 = vor.u32 %v481, %v477
      %v483 = vrot.slane %v482, 4
      %v485 = vshll.u32 %v262, 16
      %v487 = vrot.slane %v485, 5
      %v488 = vsel %vm268, %v483, %v487
      %v490 = vshrl.u32 %v246, 16
      %v492 = vrot.slane %v490, 4
      %v493 = vshll.u32 %v246, 16
      %v495 = vrot.slane %v493, 5
      %v496 = vor.u32 %v492, %v495
      %v497 = vrot.slane %v496, 4
      %v499 = vshll.u32 %v247, 16
      %v501 = vrot.slane %v499, 5
      %v502 = vsel %vm268, %v497, %v501
      %v503 = vshrl.u32 %v247, 16
      %v505 = vrot.slane %v503, 4
      %v506 = vor.u32 %v505, %v501
      %v507 = vrot.slane %v506, 4
      %v509 = vshll.u32 %v248, 16
      %v511 = vrot.slane %v509, 5
      %v512 = vsel %vm268, %v507, %v511
      %v513 = vshrl.u32 %v248, 16
      %v515 = vrot.slane %v513, 4
      %v516 = vor.u32 %v515, %v511
      %v517 = vrot.slane %v516, 4
      %v519 = vshll.u32 %v249, 16
      %v521 = vrot.slane %v519, 5
      %v522 = vsel %vm268, %v517, %v521
      %v523 = vshrl.u32 %v249, 16
      %v525 = vrot.slane %v523, 4
      %v526 = vor.u32 %v525, %v521
      %v527 = vrot.slane %v526, 4
      %v529 = vshll.u32 %v263, 16
      %v531 = vrot.slane %v529, 5
      %v532 = vsel %vm268, %v527, %v531
      %v534 = vshrl.u32 %v250, 16
      %v536 = vrot.slane %v534, 4
      %v537 = vshll.u32 %v250, 16
      %v539 = vrot.slane %v537, 5
      %v540 = vor.u32 %v536, %v539
      %v541 = vrot.slane %v540, 4
      %v543 = vshll.u32 %v251, 16
      %v545 = vrot.slane %v543, 5
      %v546 = vsel %vm268, %v541, %v545
      %v547 = vshrl.u32 %v251, 16
      %v549 = vrot.slane %v547, 4
      %v550 = vor.u32 %v549, %v545
      %v551 = vrot.slane %v550, 4
      %v553 = vshll.u32 %v252, 16
      %v555 = vrot.slane %v553, 5
      %v556 = vsel %vm268, %v551, %v555
      %v557 = vshrl.u32 %v252, 16
      %v559 = vrot.slane %v557, 4
      %v560 = vor.u32 %v559, %v555
      %v561 = vrot.slane %v560, 4
      %v563 = vshll.u32 %v253, 16
      %v565 = vrot.slane %v563, 5
      %v566 = vsel %vm268, %v561, %v565
      %v567 = vshrl.u32 %v253, 16
      %v569 = vrot.slane %v567, 4
      %v570 = vor.u32 %v569, %v565
      %v571 = vrot.slane %v570, 4
      %v573 = vshll.u32 %v264, 16
      %v575 = vrot.slane %v573, 5
      %v576 = vsel %vm268, %v571, %v575
      %v578 = vshrl.u32 %v254, 16
      %v580 = vrot.slane %v578, 4
      %v581 = vshll.u32 %v254, 16
      %v583 = vrot.slane %v581, 5
      %v584 = vor.u32 %v580, %v583
      %v585 = vrot.slane %v584, 4
      %v587 = vshll.u32 %v255, 16
      %v589 = vrot.slane %v587, 5
      %v590 = vsel %vm268, %v585, %v589
      %v591 = vshrl.u32 %v255, 16
      %v593 = vrot.slane %v591, 4
      %v594 = vor.u32 %v593, %v589
      %v595 = vrot.slane %v594, 4
      %v597 = vshll.u32 %v256, 16
      %v599 = vrot.slane %v597, 5
      %v600 = vsel %vm268, %v595, %v599
      %v601 = vshrl.u32 %v256, 16
      %v603 = vrot.slane %v601, 4
      %v604 = vor.u32 %v603, %v599
      %v605 = vrot.slane %v604, 4
      %v607 = vshll.u32 %v257, 16
      %v609 = vrot.slane %v607, 5
      %v610 = vsel %vm268, %v605, %v609
      %v611 = vshrl.u32 %v257, 16
      %v613 = vrot.slane %v611, 4
      %v614 = vor.u32 %v613, %v609
      %v615 = vrot.slane %v614, 4
      %v617 = vshll.u32 %v265, 16
      %v619 = vrot.slane %v617, 5
      %v620 = vsel %vm268, %v615, %v619
      %v621 = vld [vmem:[%s225] sm:$0xe]
      %v622 = vld [vmem:[%s225 + $0x14] sm:$0xe]
      %v623 = vld [vmem:[%s225 + $0x28] sm:$0xe]
      %v624 = vld [vmem:[%s225 + $0x3c] sm:$0xe]
      %v625 = vld [vmem:[%s225 + $0x50] sm:$0xe]
      %v626 = vld [vmem:[%s225 + $0x64] sm:$0xe]
      %v627 = vld [vmem:[%s225 + $0x78] sm:$0xe]
      %v628 = vld [vmem:[%s225 + $0x8c] sm:$0xe]
      %vm669 = vcmask 1042432
      %vm670 = vcmask 1046532
      %vm671 = vmor %vm669, %vm670
      %v672 = vrot.slane %v621, 5
      %v673 = vrot.slane %v672, 4
      %v674 = vrot.slane %v227, 5
      %v675 = vsel %vm671, %v673, %v674
      %v676 = vrot.slane %v674, 4
      %v677 = vrot.slane %v228, 5
      %v678 = vsel %vm671, %v676, %v677
      %v679 = vrot.slane %v677, 4
      %v680 = vrot.slane %v229, 5
      %v681 = vsel %vm671, %v679, %v680
      %v682 = vrot.slane %v680, 4
      %v683 = vrot.slane %v258, 5
      %v684 = vsel %vm671, %v682, %v683
      %v685 = vrot.slane %v622, 5
      %v686 = vrot.slane %v685, 4
      %v687 = vrot.slane %v231, 5
      %v688 = vsel %vm671, %v686, %v687
      %v689 = vrot.slane %v687, 4
      %v690 = vrot.slane %v232, 5
      %v691 = vsel %vm671, %v689, %v690
      %v692 = vrot.slane %v690, 4
      %v693 = vrot.slane %v233, 5
      %v694 = vsel %vm671, %v692, %v693
      %v695 = vrot.slane %v693, 4
      %v696 = vrot.slane %v259, 5
      %v697 = vsel %vm671, %v695, %v696
      %v698 = vrot.slane %v623, 5
      %v699 = vrot.slane %v698, 4
      %v700 = vrot.slane %v235, 5
      %v701 = vsel %vm671, %v699, %v700
      %v702 = vrot.slane %v700, 4
      %v703 = vrot.slane %v236, 5
      %v704 = vsel %vm671, %v702, %v703
      %v705 = vrot.slane %v703, 4
      %v706 = vrot.slane %v237, 5
      %v707 = vsel %vm671, %v705, %v706
      %v708 = vrot.slane %v706, 4
      %v709 = vrot.slane %v260, 5
      %v710 = vsel %vm671, %v708, %v709
      %v711 = vrot.slane %v624, 5
      %v712 = vrot.slane %v711, 4
      %v713 = vrot.slane %v239, 5
      %v714 = vsel %vm671, %v712, %v713
      %v715 = vrot.slane %v713, 4
      %v716 = vrot.slane %v240, 5
      %v717 = vsel %vm671, %v715, %v716
      %v718 = vrot.slane %v716, 4
      %v719 = vrot.slane %v241, 5
      %v720 = vsel %vm671, %v718, %v719
      %v721 = vrot.slane %v719, 4
      %v722 = vrot.slane %v261, 5
      %v723 = vsel %vm671, %v721, %v722
      %v724 = vrot.slane %v625, 5
      %v725 = vrot.slane %v724, 4
      %v726 = vrot.slane %v243, 5
      %v727 = vsel %vm671, %v725, %v726
      %v728 = vrot.slane %v726, 4
      %v729 = vrot.slane %v244, 5
      %v730 = vsel %vm671, %v728, %v729
      %v731 = vrot.slane %v729, 4
      %v732 = vrot.slane %v245, 5
      %v733 = vsel %vm671, %v731, %v732
      %v734 = vrot.slane %v732, 4
      %v735 = vrot.slane %v262, 5
      %v736 = vsel %vm671, %v734, %v735
      %v737 = vrot.slane %v626, 5
      %v738 = vrot.slane %v737, 4
      %v739 = vrot.slane %v247, 5
      %v740 = vsel %vm671, %v738, %v739
      %v741 = vrot.slane %v739, 4
      %v742 = vrot.slane %v248, 5
      %v743 = vsel %vm671, %v741, %v742
      %v744 = vrot.slane %v742, 4
      %v745 = vrot.slane %v249, 5
      %v746 = vsel %vm671, %v744, %v745
      %v747 = vrot.slane %v745, 4
      %v748 = vrot.slane %v263, 5
      %v749 = vsel %vm671, %v747, %v748
      %v750 = vrot.slane %v627, 5
      %v751 = vrot.slane %v750, 4
      %v752 = vrot.slane %v251, 5
      %v753 = vsel %vm671, %v751, %v752
      %v754 = vrot.slane %v752, 4
      %v755 = vrot.slane %v252, 5
      %v756 = vsel %vm671, %v754, %v755
      %v757 = vrot.slane %v755, 4
      %v758 = vrot.slane %v253, 5
      %v759 = vsel %vm671, %v757, %v758
      %v760 = vrot.slane %v758, 4
      %v761 = vrot.slane %v264, 5
      %v762 = vsel %vm671, %v760, %v761
      %v763 = vrot.slane %v628, 5
      %v764 = vrot.slane %v763, 4
      %v765 = vrot.slane %v255, 5
      %v766 = vsel %vm671, %v764, %v765
      %v767 = vrot.slane %v765, 4
      %v768 = vrot.slane %v256, 5
      %v769 = vsel %vm671, %v767, %v768
      %v770 = vrot.slane %v768, 4
      %v771 = vrot.slane %v257, 5
      %v772 = vsel %vm671, %v770, %v771
      %v773 = vrot.slane %v771, 4
      %v774 = vrot.slane %v265, 5
      %v775 = vsel %vm671, %v773, %v774
      %s776 = sadd.s32 %s222, 1
      %s777 = smul.u32 %s776, 5
      %s778 = smul.addr %s777, 4
      %s779 = scalar_lea.vmem %s210, %s778
      %v780 = vld [vmem:[%s779] sm:$0xf]
      %v781 = vld [vmem:[%s779 + $0x4] sm:$0xf]
      %v782 = vld [vmem:[%s779 + $0x8] sm:$0xf]
      %v783 = vld [vmem:[%s779 + $0xc] sm:$0xf]
      %v784 = vld [vmem:[%s779 + $0x14] sm:$0xf]
      %v785 = vld [vmem:[%s779 + $0x18] sm:$0xf]
      %v786 = vld [vmem:[%s779 + $0x1c] sm:$0xf]
      %v787 = vld [vmem:[%s779 + $0x20] sm:$0xf]
      %v788 = vld [vmem:[%s779 + $0x28] sm:$0xf]
      %v789 = vld [vmem:[%s779 + $0x2c] sm:$0xf]
      %v790 = vld [vmem:[%s779 + $0x30] sm:$0xf]
      %v791 = vld [vmem:[%s779 + $0x34] sm:$0xf]
      %v792 = vld [vmem:[%s779 + $0x3c] sm:$0xf]
      %v793 = vld [vmem:[%s779 + $0x40] sm:$0xf]
      %v794 = vld [vmem:[%s779 + $0x44] sm:$0xf]
      %v795 = vld [vmem:[%s779 + $0x48] sm:$0xf]
      %v796 = vld [vmem:[%s779 + $0x50] sm:$0xf]
      %v797 = vld [vmem:[%s779 + $0x54] sm:$0xf]
      %v798 = vld [vmem:[%s779 + $0x58] sm:$0xf]
      %v799 = vld [vmem:[%s779 + $0x5c] sm:$0xf]
      %v800 = vld [vmem:[%s779 + $0x64] sm:$0xf]
      %v801 = vld [vmem:[%s779 + $0x68] sm:$0xf]
      %v802 = vld [vmem:[%s779 + $0x6c] sm:$0xf]
      %v803 = vld [vmem:[%s779 + $0x70] sm:$0xf]
      %v804 = vld [vmem:[%s779 + $0x78] sm:$0xf]
      %v805 = vld [vmem:[%s779 + $0x7c] sm:$0xf]
      %v806 = vld [vmem:[%s779 + $0x80] sm:$0xf]
      %v807 = vld [vmem:[%s779 + $0x84] sm:$0xf]
      %v808 = vld [vmem:[%s779 + $0x8c] sm:$0xf]
      %v809 = vld [vmem:[%s779 + $0x90] sm:$0xf]
      %v810 = vld [vmem:[%s779 + $0x94] sm:$0xf]
      %v811 = vld [vmem:[%s779 + $0x98] sm:$0xf]
      %v812 = vld [vmem:[%s779 + $0x10] sm:$0x1]
      %v813 = vld [vmem:[%s779 + $0x24] sm:$0x1]
      %v814 = vld [vmem:[%s779 + $0x38] sm:$0x1]
      %v815 = vld [vmem:[%s779 + $0x4c] sm:$0x1]
      %v816 = vld [vmem:[%s779 + $0x60] sm:$0x1]
      %v817 = vld [vmem:[%s779 + $0x74] sm:$0x1]
      %v818 = vld [vmem:[%s779 + $0x88] sm:$0x1]
      %v819 = vld [vmem:[%s779 + $0x9c] sm:$0x1]
      %v821 = vshrl.u32 %v780, 16
      %v823 = vrot.slane %v821, 4
      %v824 = vshll.u32 %v780, 16
      %v826 = vrot.slane %v824, 5
      %v827 = vor.u32 %v823, %v826
      %v828 = vrot.slane %v827, 4
      %v830 = vshll.u32 %v781, 16
      %v832 = vrot.slane %v830, 5
      %v833 = vsel %vm268, %v828, %v832
      %v834 = vshrl.u32 %v781, 16
      %v836 = vrot.slane %v834, 4
      %v837 = vor.u32 %v836, %v832
      %v838 = vrot.slane %v837, 4
      %v840 = vshll.u32 %v782, 16
      %v842 = vrot.slane %v840, 5
      %v843 = vsel %vm268, %v838, %v842
      %v844 = vshrl.u32 %v782, 16
      %v846 = vrot.slane %v844, 4
      %v847 = vor.u32 %v846, %v842
      %v848 = vrot.slane %v847, 4
      %v850 = vshll.u32 %v783, 16
      %v852 = vrot.slane %v850, 5
      %v853 = vsel %vm268, %v848, %v852
      %v854 = vshrl.u32 %v783, 16
      %v856 = vrot.slane %v854, 4
      %v857 = vor.u32 %v856, %v852
      %v858 = vrot.slane %v857, 4
      %v860 = vshll.u32 %v812, 16
      %v862 = vrot.slane %v860, 5
      %v863 = vsel %vm268, %v858, %v862
      %v865 = vshrl.u32 %v784, 16
      %v867 = vrot.slane %v865, 4
      %v868 = vshll.u32 %v784, 16
      %v870 = vrot.slane %v868, 5
      %v871 = vor.u32 %v867, %v870
      %v872 = vrot.slane %v871, 4
      %v874 = vshll.u32 %v785, 16
      %v876 = vrot.slane %v874, 5
      %v877 = vsel %vm268, %v872, %v876
      %v878 = vshrl.u32 %v785, 16
      %v880 = vrot.slane %v878, 4
      %v881 = vor.u32 %v880, %v876
      %v882 = vrot.slane %v881, 4
      %v884 = vshll.u32 %v786, 16
      %v886 = vrot.slane %v884, 5
      %v887 = vsel %vm268, %v882, %v886
      %v888 = vshrl.u32 %v786, 16
      %v890 = vrot.slane %v888, 4
      %v891 = vor.u32 %v890, %v886
      %v892 = vrot.slane %v891, 4
      %v894 = vshll.u32 %v787, 16
      %v896 = vrot.slane %v894, 5
      %v897 = vsel %vm268, %v892, %v896
      %v898 = vshrl.u32 %v787, 16
      %v900 = vrot.slane %v898, 4
      %v901 = vor.u32 %v900, %v896
      %v902 = vrot.slane %v901, 4
      %v904 = vshll.u32 %v813, 16
      %v906 = vrot.slane %v904, 5
      %v907 = vsel %vm268, %v902, %v906
      %v909 = vshrl.u32 %v788, 16
      %v911 = vrot.slane %v909, 4
      %v912 = vshll.u32 %v788, 16
      %v914 = vrot.slane %v912, 5
      %v915 = vor.u32 %v911, %v914
      %v916 = vrot.slane %v915, 4
      %v918 = vshll.u32 %v789, 16
      %v920 = vrot.slane %v918, 5
      %v921 = vsel %vm268, %v916, %v920
      %v922 = vshrl.u32 %v789, 16
      %v924 = vrot.slane %v922, 4
      %v925 = vor.u32 %v924, %v920
      %v926 = vrot.slane %v925, 4
      %v928 = vshll.u32 %v790, 16
      %v930 = vrot.slane %v928, 5
      %v931 = vsel %vm268, %v926, %v930
      %v932 = vshrl.u32 %v790, 16
      %v934 = vrot.slane %v932, 4
      %v935 = vor.u32 %v934, %v930
      %v936 = vrot.slane %v935, 4
      %v938 = vshll.u32 %v791, 16
      %v940 = vrot.slane %v938, 5
      %v941 = vsel %vm268, %v936, %v940
      %v942 = vshrl.u32 %v791, 16
      %v944 = vrot.slane %v942, 4
      %v945 = vor.u32 %v944, %v940
      %v946 = vrot.slane %v945, 4
      %v948 = vshll.u32 %v814, 16
      %v950 = vrot.slane %v948, 5
      %v951 = vsel %vm268, %v946, %v950
      %v953 = vshrl.u32 %v792, 16
      %v955 = vrot.slane %v953, 4
      %v956 = vshll.u32 %v792, 16
      %v958 = vrot.slane %v956, 5
      %v959 = vor.u32 %v955, %v958
      %v960 = vrot.slane %v959, 4
      %v962 = vshll.u32 %v793, 16
      %v964 = vrot.slane %v962, 5
      %v965 = vsel %vm268, %v960, %v964
      %v966 = vshrl.u32 %v793, 16
      %v968 = vrot.slane %v966, 4
      %v969 = vor.u32 %v968, %v964
      %v970 = vrot.slane %v969, 4
      %v972 = vshll.u32 %v794, 16
      %v974 = vrot.slane %v972, 5
      %v975 = vsel %vm268, %v970, %v974
      %v976 = vshrl.u32 %v794, 16
      %v978 = vrot.slane %v976, 4
      %v979 = vor.u32 %v978, %v974
      %v980 = vrot.slane %v979, 4
      %v982 = vshll.u32 %v795, 16
      %v984 = vrot.slane %v982, 5
      %v985 = vsel %vm268, %v980, %v984
      %v986 = vshrl.u32 %v795, 16
      %v988 = vrot.slane %v986, 4
      %v989 = vor.u32 %v988, %v984
      %v990 = vrot.slane %v989, 4
      %v992 = vshll.u32 %v815, 16
      %v994 = vrot.slane %v992, 5
      %v995 = vsel %vm268, %v990, %v994
      %v997 = vshrl.u32 %v796, 16
      %v999 = vrot.slane %v997, 4
      %v1000 = vshll.u32 %v796, 16
      %v1002 = vrot.slane %v1000, 5
      %v1003 = vor.u32 %v999, %v1002
      %v1004 = vrot.slane %v1003, 4
      %v1006 = vshll.u32 %v797, 16
      %v1008 = vrot.slane %v1006, 5
      %v1009 = vsel %vm268, %v1004, %v1008
      %v1010 = vshrl.u32 %v797, 16
      %v1012 = vrot.slane %v1010, 4
      %v1013 = vor.u32 %v1012, %v1008
      %v1014 = vrot.slane %v1013, 4
      %v1016 = vshll.u32 %v798, 16
      %v1018 = vrot.slane %v1016, 5
      %v1019 = vsel %vm268, %v1014, %v1018
      %v1020 = vshrl.u32 %v798, 16
      %v1022 = vrot.slane %v1020, 4
      %v1023 = vor.u32 %v1022, %v1018
      %v1024 = vrot.slane %v1023, 4
      %v1026 = vshll.u32 %v799, 16
      %v1028 = vrot.slane %v1026, 5
      %v1029 = vsel %vm268, %v1024, %v1028
      %v1030 = vshrl.u32 %v799, 16
      %v1032 = vrot.slane %v1030, 4
      %v1033 = vor.u32 %v1032, %v1028
      %v1034 = vrot.slane %v1033, 4
      %v1036 = vshll.u32 %v816, 16
      %v1038 = vrot.slane %v1036, 5
      %v1039 = vsel %vm268, %v1034, %v1038
      %v1041 = vshrl.u32 %v800, 16
      %v1043 = vrot.slane %v1041, 4
      %v1044 = vshll.u32 %v800, 16
      %v1046 = vrot.slane %v1044, 5
      %v1047 = vor.u32 %v1043, %v1046
      %v1048 = vrot.slane %v1047, 4
      %v1050 = vshll.u32 %v801, 16
      %v1052 = vrot.slane %v1050, 5
      %v1053 = vsel %vm268, %v1048, %v1052
      %v1054 = vshrl.u32 %v801, 16
      %v1056 = vrot.slane %v1054, 4
      %v1057 = vor.u32 %v1056, %v1052
      %v1058 = vrot.slane %v1057, 4
      %v1060 = vshll.u32 %v802, 16
      %v1062 = vrot.slane %v1060, 5
      %v1063 = vsel %vm268, %v1058, %v1062
      %v1064 = vshrl.u32 %v802, 16
      %v1066 = vrot.slane %v1064, 4
      %v1067 = vor.u32 %v1066, %v1062
      %v1068 = vrot.slane %v1067, 4
      %v1070 = vshll.u32 %v803, 16
      %v1072 = vrot.slane %v1070, 5
      %v1073 = vsel %vm268, %v1068, %v1072
      %v1074 = vshrl.u32 %v803, 16
      %v1076 = vrot.slane %v1074, 4
      %v1077 = vor.u32 %v1076, %v1072
      %v1078 = vrot.slane %v1077, 4
      %v1080 = vshll.u32 %v817, 16
      %v1082 = vrot.slane %v1080, 5
      %v1083 = vsel %vm268, %v1078, %v1082
      %v1085 = vshrl.u32 %v804, 16
      %v1087 = vrot.slane %v1085, 4
      %v1088 = vshll.u32 %v804, 16
      %v1090 = vrot.slane %v1088, 5
      %v1091 = vor.u32 %v1087, %v1090
      %v1092 = vrot.slane %v1091, 4
      %v1094 = vshll.u32 %v805, 16
      %v1096 = vrot.slane %v1094, 5
      %v1097 = vsel %vm268, %v1092, %v1096
      %v1098 = vshrl.u32 %v805, 16
      %v1100 = vrot.slane %v1098, 4
      %v1101 = vor.u32 %v1100, %v1096
      %v1102 = vrot.slane %v1101, 4
      %v1104 = vshll.u32 %v806, 16
      %v1106 = vrot.slane %v1104, 5
      %v1107 = vsel %vm268, %v1102, %v1106
      %v1108 = vshrl.u32 %v806, 16
      %v1110 = vrot.slane %v1108, 4
      %v1111 = vor.u32 %v1110, %v1106
      %v1112 = vrot.slane %v1111, 4
      %v1114 = vshll.u32 %v807, 16
      %v1116 = vrot.slane %v1114, 5
      %v1117 = vsel %vm268, %v1112, %v1116
      %v1118 = vshrl.u32 %v807, 16
      %v1120 = vrot.slane %v1118, 4
      %v1121 = vor.u32 %v1120, %v1116
      %v1122 = vrot.slane %v1121, 4
      %v1124 = vshll.u32 %v818, 16
      %v1126 = vrot.slane %v1124, 5
      %v1127 = vsel %vm268, %v1122, %v1126
      %v1129 = vshrl.u32 %v808, 16
      %v1131 = vrot.slane %v1129, 4
      %v1132 = vshll.u32 %v808, 16
      %v1134 = vrot.slane %v1132, 5
      %v1135 = vor.u32 %v1131, %v1134
      %v1136 = vrot.slane %v1135, 4
      %v1138 = vshll.u32 %v809, 16
      %v1140 = vrot.slane %v1138, 5
      %v1141 = vsel %vm268, %v1136, %v1140
      %v1142 = vshrl.u32 %v809, 16
      %v1144 = vrot.slane %v1142, 4
      %v1145 = vor.u32 %v1144, %v1140
      %v1146 = vrot.slane %v1145, 4
      %v1148 = vshll.u32 %v810, 16
      %v1150 = vrot.slane %v1148, 5
      %v1151 = vsel %vm268, %v1146, %v1150
      %v1152 = vshrl.u32 %v810, 16
      %v1154 = vrot.slane %v1152, 4
      %v1155 = vor.u32 %v1154, %v1150
      %v1156 = vrot.slane %v1155, 4
      %v1158 = vshll.u32 %v811, 16
      %v1160 = vrot.slane %v1158, 5
      %v1161 = vsel %vm268, %v1156, %v1160
      %v1162 = vshrl.u32 %v811, 16
      %v1164 = vrot.slane %v1162, 4
      %v1165 = vor.u32 %v1164, %v1160
      %v1166 = vrot.slane %v1165, 4
      %v1168 = vshll.u32 %v819, 16
      %v1170 = vrot.slane %v1168, 5
      %v1171 = vsel %vm268, %v1166, %v1170
      %v1172 = vld [vmem:[%s779] sm:$0xe]
      %v1173 = vld [vmem:[%s779 + $0x14] sm:$0xe]
      %v1174 = vld [vmem:[%s779 + $0x28] sm:$0xe]
      %v1175 = vld [vmem:[%s779 + $0x3c] sm:$0xe]
      %v1176 = vld [vmem:[%s779 + $0x50] sm:$0xe]
      %v1177 = vld [vmem:[%s779 + $0x64] sm:$0xe]
      %v1178 = vld [vmem:[%s779 + $0x78] sm:$0xe]
      %v1179 = vld [vmem:[%s779 + $0x8c] sm:$0xe]
      %v1220 = vrot.slane %v1172, 5
      %v1221 = vrot.slane %v1220, 4
      %v1222 = vrot.slane %v781, 5
      %v1223 = vsel %vm671, %v1221, %v1222
      %v1224 = vrot.slane %v1222, 4
      %v1225 = vrot.slane %v782, 5
      %v1226 = vsel %vm671, %v1224, %v1225
      %v1227 = vrot.slane %v1225, 4
      %v1228 = vrot.slane %v783, 5
      %v1229 = vsel %vm671, %v1227, %v1228
      %v1230 = vrot.slane %v1228, 4
      %v1231 = vrot.slane %v812, 5
      %v1232 = vsel %vm671, %v1230, %v1231
      %v1233 = vrot.slane %v1173, 5
      %v1234 = vrot.slane %v1233, 4
      %v1235 = vrot.slane %v785, 5
      %v1236 = vsel %vm671, %v1234, %v1235
      %v1237 = vrot.slane %v1235, 4
      %v1238 = vrot.slane %v786, 5
      %v1239 = vsel %vm671, %v1237, %v1238
      %v1240 = vrot.slane %v1238, 4
      %v1241 = vrot.slane %v787, 5
      %v1242 = vsel %vm671, %v1240, %v1241
      %v1243 = vrot.slane %v1241, 4
      %v1244 = vrot.slane %v813, 5
      %v1245 = vsel %vm671, %v1243, %v1244
      %v1246 = vrot.slane %v1174, 5
      %v1247 = vrot.slane %v1246, 4
      %v1248 = vrot.slane %v789, 5
      %v1249 = vsel %vm671, %v1247, %v1248
      %v1250 = vrot.slane %v1248, 4
      %v1251 = vrot.slane %v790, 5
      %v1252 = vsel %vm671, %v1250, %v1251
      %v1253 = vrot.slane %v1251, 4
      %v1254 = vrot.slane %v791, 5
      %v1255 = vsel %vm671, %v1253, %v1254
      %v1256 = vrot.slane %v1254, 4
      %v1257 = vrot.slane %v814, 5
      %v1258 = vsel %vm671, %v1256, %v1257
      %v1259 = vrot.slane %v1175, 5
      %v1260 = vrot.slane %v1259, 4
      %v1261 = vrot.slane %v793, 5
      %v1262 = vsel %vm671, %v1260, %v1261
      %v1263 = vrot.slane %v1261, 4
      %v1264 = vrot.slane %v794, 5
      %v1265 = vsel %vm671, %v1263, %v1264
      %v1266 = vrot.slane %v1264, 4
      %v1267 = vrot.slane %v795, 5
      %v1268 = vsel %vm671, %v1266, %v1267
      %v1269 = vrot.slane %v1267, 4
      %v1270 = vrot.slane %v815, 5
      %v1271 = vsel %vm671, %v1269, %v1270
      %v1272 = vrot.slane %v1176, 5
      %v1273 = vrot.slane %v1272, 4
      %v1274 = vrot.slane %v797, 5
      %v1275 = vsel %vm671, %v1273, %v1274
      %v1276 = vrot.slane %v1274, 4
      %v1277 = vrot.slane %v798, 5
      %v1278 = vsel %vm671, %v1276, %v1277
      %v1279 = vrot.slane %v1277, 4
      %v1280 = vrot.slane %v799, 5
      %v1281 = vsel %vm671, %v1279, %v1280
      %v1282 = vrot.slane %v1280, 4
      %v1283 = vrot.slane %v816, 5
      %v1284 = vsel %vm671, %v1282, %v1283
      %v1285 = vrot.slane %v1177, 5
      %v1286 = vrot.slane %v1285, 4
      %v1287 = vrot.slane %v801, 5
      %v1288 = vsel %vm671, %v1286, %v1287
      %v1289 = vrot.slane %v1287, 4
      %v1290 = vrot.slane %v802, 5
      %v1291 = vsel %vm671, %v1289, %v1290
      %v1292 = vrot.slane %v1290, 4
      %v1293 = vrot.slane %v803, 5
      %v1294 = vsel %vm671, %v1292, %v1293
      %v1295 = vrot.slane %v1293, 4
      %v1296 = vrot.slane %v817, 5
      %v1297 = vsel %vm671, %v1295, %v1296
      %v1298 = vrot.slane %v1178, 5
      %v1299 = vrot.slane %v1298, 4
      %v1300 = vrot.slane %v805, 5
      %v1301 = vsel %vm671, %v1299, %v1300
      %v1302 = vrot.slane %v1300, 4
      %v1303 = vrot.slane %v806, 5
      %v1304 = vsel %vm671, %v1302, %v1303
      %v1305 = vrot.slane %v1303, 4
      %v1306 = vrot.slane %v807, 5
      %v1307 = vsel %vm671, %v1305, %v1306
      %v1308 = vrot.slane %v1306, 4
      %v1309 = vrot.slane %v818, 5
      %v1310 = vsel %vm671, %v1308, %v1309
      %v1311 = vrot.slane %v1179, 5
      %v1312 = vrot.slane %v1311, 4
      %v1313 = vrot.slane %v809, 5
      %v1314 = vsel %vm671, %v1312, %v1313
      %v1315 = vrot.slane %v1313, 4
      %v1316 = vrot.slane %v810, 5
      %v1317 = vsel %vm671, %v1315, %v1316
      %v1318 = vrot.slane %v1316, 4
      %v1319 = vrot.slane %v811, 5
      %v1320 = vsel %vm671, %v1318, %v1319
      %v1321 = vrot.slane %v1319, 4
      %v1322 = vrot.slane %v819, 5
      %v1323 = vsel %vm671, %v1321, %v1322
      %s1324 = sadd.s32 %s222, 2
      %s1325 = smul.u32 %s1324, 5
      %s1326 = smul.addr %s1325, 4
      %s1327 = scalar_lea.vmem %s210, %s1326
      %v1328 = vld [vmem:[%s1327] sm:$0xf]
      %v1329 = vld [vmem:[%s1327 + $0x4] sm:$0xf]
      %v1330 = vld [vmem:[%s1327 + $0x8] sm:$0xf]
      %v1331 = vld [vmem:[%s1327 + $0xc] sm:$0xf]
      %v1332 = vld [vmem:[%s1327 + $0x14] sm:$0xf]
      %v1333 = vld [vmem:[%s1327 + $0x18] sm:$0xf]
      %v1334 = vld [vmem:[%s1327 + $0x1c] sm:$0xf]
      %v1335 = vld [vmem:[%s1327 + $0x20] sm:$0xf]
      %v1336 = vld [vmem:[%s1327 + $0x28] sm:$0xf]
      %v1337 = vld [vmem:[%s1327 + $0x2c] sm:$0xf]
      %v1338 = vld [vmem:[%s1327 + $0x30] sm:$0xf]
      %v1339 = vld [vmem:[%s1327 + $0x34] sm:$0xf]
      %v1340 = vld [vmem:[%s1327 + $0x3c] sm:$0xf]
      %v1341 = vld [vmem:[%s1327 + $0x40] sm:$0xf]
      %v1342 = vld [vmem:[%s1327 + $0x44] sm:$0xf]
      %v1343 = vld [vmem:[%s1327 + $0x48] sm:$0xf]
      %v1344 = vld [vmem:[%s1327 + $0x50] sm:$0xf]
      %v1345 = vld [vmem:[%s1327 + $0x54] sm:$0xf]
      %v1346 = vld [vmem:[%s1327 + $0x58] sm:$0xf]
      %v1347 = vld [vmem:[%s1327 + $0x5c] sm:$0xf]
      %v1348 = vld [vmem:[%s1327 + $0x64] sm:$0xf]
      %v1349 = vld [vmem:[%s1327 + $0x68] sm:$0xf]
      %v1350 = vld [vmem:[%s1327 + $0x6c] sm:$0xf]
      %v1351 = vld [vmem:[%s1327 + $0x70] sm:$0xf]
      %v1352 = vld [vmem:[%s1327 + $0x78] sm:$0xf]
      %v1353 = vld [vmem:[%s1327 + $0x7c] sm:$0xf]
      %v1354 = vld [vmem:[%s1327 + $0x80] sm:$0xf]
      %v1355 = vld [vmem:[%s1327 + $0x84] sm:$0xf]
      %v1356 = vld [vmem:[%s1327 + $0x8c] sm:$0xf]
      %v1357 = vld [vmem:[%s1327 + $0x90] sm:$0xf]
      %v1358 = vld [vmem:[%s1327 + $0x94] sm:$0xf]
      %v1359 = vld [vmem:[%s1327 + $0x98] sm:$0xf]
      %v1360 = vld [vmem:[%s1327 + $0x10] sm:$0x1]
      %v1361 = vld [vmem:[%s1327 + $0x24] sm:$0x1]
      %v1362 = vld [vmem:[%s1327 + $0x38] sm:$0x1]
      %v1363 = vld [vmem:[%s1327 + $0x4c] sm:$0x1]
      %v1364 = vld [vmem:[%s1327 + $0x60] sm:$0x1]
      %v1365 = vld [vmem:[%s1327 + $0x74] sm:$0x1]
      %v1366 = vld [vmem:[%s1327 + $0x88] sm:$0x1]
      %v1367 = vld [vmem:[%s1327 + $0x9c] sm:$0x1]
      %v1369 = vshrl.u32 %v1328, 16
      %v1371 = vrot.slane %v1369, 4
      %v1372 = vshll.u32 %v1328, 16
      %v1374 = vrot.slane %v1372, 5
      %v1375 = vor.u32 %v1371, %v1374
      %v1376 = vrot.slane %v1375, 4
      %v1378 = vshll.u32 %v1329, 16
      %v1380 = vrot.slane %v1378, 5
      %v1381 = vsel %vm268, %v1376, %v1380
      %v1382 = vshrl.u32 %v1329, 16
      %v1384 = vrot.slane %v1382, 4
      %v1385 = vor.u32 %v1384, %v1380
      %v1386 = vrot.slane %v1385, 4
      %v1388 = vshll.u32 %v1330, 16
      %v1390 = vrot.slane %v1388, 5
      %v1391 = vsel %vm268, %v1386, %v1390
      %v1392 = vshrl.u32 %v1330, 16
      %v1394 = vrot.slane %v1392, 4
      %v1395 = vor.u32 %v1394, %v1390
      %v1396 = vrot.slane %v1395, 4
      %v1398 = vshll.u32 %v1331, 16
      %v1400 = vrot.slane %v1398, 5
      %v1401 = vsel %vm268, %v1396, %v1400
      %v1402 = vshrl.u32 %v1331, 16
      %v1404 = vrot.slane %v1402, 4
      %v1405 = vor.u32 %v1404, %v1400
      %v1406 = vrot.slane %v1405, 4
      %v1408 = vshll.u32 %v1360, 16
      %v1410 = vrot.slane %v1408, 5
      %v1411 = vsel %vm268, %v1406, %v1410
      %v1413 = vshrl.u32 %v1332, 16
      %v1415 = vrot.slane %v1413, 4
      %v1416 = vshll.u32 %v1332, 16
      %v1418 = vrot.slane %v1416, 5
      %v1419 = vor.u32 %v1415, %v1418
      %v1420 = vrot.slane %v1419, 4
      %v1422 = vshll.u32 %v1333, 16
      %v1424 = vrot.slane %v1422, 5
      %v1425 = vsel %vm268, %v1420, %v1424
      %v1426 = vshrl.u32 %v1333, 16
      %v1428 = vrot.slane %v1426, 4
      %v1429 = vor.u32 %v1428, %v1424
      %v1430 = vrot.slane %v1429, 4
      %v1432 = vshll.u32 %v1334, 16
      %v1434 = vrot.slane %v1432, 5
      %v1435 = vsel %vm268, %v1430, %v1434
      %v1436 = vshrl.u32 %v1334, 16
      %v1438 = vrot.slane %v1436, 4
      %v1439 = vor.u32 %v1438, %v1434
      %v1440 = vrot.slane %v1439, 4
      %v1442 = vshll.u32 %v1335, 16
      %v1444 = vrot.slane %v1442, 5
      %v1445 = vsel %vm268, %v1440, %v1444
      %v1446 = vshrl.u32 %v1335, 16
      %v1448 = vrot.slane %v1446, 4
      %v1449 = vor.u32 %v1448, %v1444
      %v1450 = vrot.slane %v1449, 4
      %v1452 = vshll.u32 %v1361, 16
      %v1454 = vrot.slane %v1452, 5
      %v1455 = vsel %vm268, %v1450, %v1454
      %v1457 = vshrl.u32 %v1336, 16
      %v1459 = vrot.slane %v1457, 4
      %v1460 = vshll.u32 %v1336, 16
      %v1462 = vrot.slane %v1460, 5
      %v1463 = vor.u32 %v1459, %v1462
      %v1464 = vrot.slane %v1463, 4
      %v1466 = vshll.u32 %v1337, 16
      %v1468 = vrot.slane %v1466, 5
      %v1469 = vsel %vm268, %v1464, %v1468
      %v1470 = vshrl.u32 %v1337, 16
      %v1472 = vrot.slane %v1470, 4
      %v1473 = vor.u32 %v1472, %v1468
      %v1474 = vrot.slane %v1473, 4
      %v1476 = vshll.u32 %v1338, 16
      %v1478 = vrot.slane %v1476, 5
      %v1479 = vsel %vm268, %v1474, %v1478
      %v1480 = vshrl.u32 %v1338, 16
      %v1482 = vrot.slane %v1480, 4
      %v1483 = vor.u32 %v1482, %v1478
      %v1484 = vrot.slane %v1483, 4
      %v1486 = vshll.u32 %v1339, 16
      %v1488 = vrot.slane %v1486, 5
      %v1489 = vsel %vm268, %v1484, %v1488
      %v1490 = vshrl.u32 %v1339, 16
      %v1492 = vrot.slane %v1490, 4
      %v1493 = vor.u32 %v1492, %v1488
      %v1494 = vrot.slane %v1493, 4
      %v1496 = vshll.u32 %v1362, 16
      %v1498 = vrot.slane %v1496, 5
      %v1499 = vsel %vm268, %v1494, %v1498
      %v1501 = vshrl.u32 %v1340, 16
      %v1503 = vrot.slane %v1501, 4
      %v1504 = vshll.u32 %v1340, 16
      %v1506 = vrot.slane %v1504, 5
      %v1507 = vor.u32 %v1503, %v1506
      %v1508 = vrot.slane %v1507, 4
      %v1510 = vshll.u32 %v1341, 16
      %v1512 = vrot.slane %v1510, 5
      %v1513 = vsel %vm268, %v1508, %v1512
      %v1514 = vshrl.u32 %v1341, 16
      %v1516 = vrot.slane %v1514, 4
      %v1517 = vor.u32 %v1516, %v1512
      %v1518 = vrot.slane %v1517, 4
      %v1520 = vshll.u32 %v1342, 16
      %v1522 = vrot.slane %v1520, 5
      %v1523 = vsel %vm268, %v1518, %v1522
      %v1524 = vshrl.u32 %v1342, 16
      %v1526 = vrot.slane %v1524, 4
      %v1527 = vor.u32 %v1526, %v1522
      %v1528 = vrot.slane %v1527, 4
      %v1530 = vshll.u32 %v1343, 16
      %v1532 = vrot.slane %v1530, 5
      %v1533 = vsel %vm268, %v1528, %v1532
      %v1534 = vshrl.u32 %v1343, 16
      %v1536 = vrot.slane %v1534, 4
      %v1537 = vor.u32 %v1536, %v1532
      %v1538 = vrot.slane %v1537, 4
      %v1540 = vshll.u32 %v1363, 16
      %v1542 = vrot.slane %v1540, 5
      %v1543 = vsel %vm268, %v1538, %v1542
      %v1545 = vshrl.u32 %v1344, 16
      %v1547 = vrot.slane %v1545, 4
      %v1548 = vshll.u32 %v1344, 16
      %v1550 = vrot.slane %v1548, 5
      %v1551 = vor.u32 %v1547, %v1550
      %v1552 = vrot.slane %v1551, 4
      %v1554 = vshll.u32 %v1345, 16
      %v1556 = vrot.slane %v1554, 5
      %v1557 = vsel %vm268, %v1552, %v1556
      %v1558 = vshrl.u32 %v1345, 16
      %v1560 = vrot.slane %v1558, 4
      %v1561 = vor.u32 %v1560, %v1556
      %v1562 = vrot.slane %v1561, 4
      %v1564 = vshll.u32 %v1346, 16
      %v1566 = vrot.slane %v1564, 5
      %v1567 = vsel %vm268, %v1562, %v1566
      %v1568 = vshrl.u32 %v1346, 16
      %v1570 = vrot.slane %v1568, 4
      %v1571 = vor.u32 %v1570, %v1566
      %v1572 = vrot.slane %v1571, 4
      %v1574 = vshll.u32 %v1347, 16
      %v1576 = vrot.slane %v1574, 5
      %v1577 = vsel %vm268, %v1572, %v1576
      %v1578 = vshrl.u32 %v1347, 16
      %v1580 = vrot.slane %v1578, 4
      %v1581 = vor.u32 %v1580, %v1576
      %v1582 = vrot.slane %v1581, 4
      %v1584 = vshll.u32 %v1364, 16
      %v1586 = vrot.slane %v1584, 5
      %v1587 = vsel %vm268, %v1582, %v1586
      %v1589 = vshrl.u32 %v1348, 16
      %v1591 = vrot.slane %v1589, 4
      %v1592 = vshll.u32 %v1348, 16
      %v1594 = vrot.slane %v1592, 5
      %v1595 = vor.u32 %v1591, %v1594
      %v1596 = vrot.slane %v1595, 4
      %v1598 = vshll.u32 %v1349, 16
      %v1600 = vrot.slane %v1598, 5
      %v1601 = vsel %vm268, %v1596, %v1600
      %v1602 = vshrl.u32 %v1349, 16
      %v1604 = vrot.slane %v1602, 4
      %v1605 = vor.u32 %v1604, %v1600
      %v1606 = vrot.slane %v1605, 4
      %v1608 = vshll.u32 %v1350, 16
      %v1610 = vrot.slane %v1608, 5
      %v1611 = vsel %vm268, %v1606, %v1610
      %v1612 = vshrl.u32 %v1350, 16
      %v1614 = vrot.slane %v1612, 4
      %v1615 = vor.u32 %v1614, %v1610
      %v1616 = vrot.slane %v1615, 4
      %v1618 = vshll.u32 %v1351, 16
      %v1620 = vrot.slane %v1618, 5
      %v1621 = vsel %vm268, %v1616, %v1620
      %v1622 = vshrl.u32 %v1351, 16
      %v1624 = vrot.slane %v1622, 4
      %v1625 = vor.u32 %v1624, %v1620
      %v1626 = vrot.slane %v1625, 4
      %v1628 = vshll.u32 %v1365, 16
      %v1630 = vrot.slane %v1628, 5
      %v1631 = vsel %vm268, %v1626, %v1630
      %v1633 = vshrl.u32 %v1352, 16
      %v1635 = vrot.slane %v1633, 4
      %v1636 = vshll.u32 %v1352, 16
      %v1638 = vrot.slane %v1636, 5
      %v1639 = vor.u32 %v1635, %v1638
      %v1640 = vrot.slane %v1639, 4
      %v1642 = vshll.u32 %v1353, 16
      %v1644 = vrot.slane %v1642, 5
      %v1645 = vsel %vm268, %v1640, %v1644
      %v1646 = vshrl.u32 %v1353, 16
      %v1648 = vrot.slane %v1646, 4
      %v1649 = vor.u32 %v1648, %v1644
      %v1650 = vrot.slane %v1649, 4
      %v1652 = vshll.u32 %v1354, 16
      %v1654 = vrot.slane %v1652, 5
      %v1655 = vsel %vm268, %v1650, %v1654
      %v1656 = vshrl.u32 %v1354, 16
      %v1658 = vrot.slane %v1656, 4
      %v1659 = vor.u32 %v1658, %v1654
      %v1660 = vrot.slane %v1659, 4
      %v1662 = vshll.u32 %v1355, 16
      %v1664 = vrot.slane %v1662, 5
      %v1665 = vsel %vm268, %v1660, %v1664
      %v1666 = vshrl.u32 %v1355, 16
      %v1668 = vrot.slane %v1666, 4
      %v1669 = vor.u32 %v1668, %v1664
      %v1670 = vrot.slane %v1669, 4
      %v1672 = vshll.u32 %v1366, 16
      %v1674 = vrot.slane %v1672, 5
      %v1675 = vsel %vm268, %v1670, %v1674
      %v1677 = vshrl.u32 %v1356, 16
      %v1679 = vrot.slane %v1677, 4
      %v1680 = vshll.u32 %v1356, 16
      %v1682 = vrot.slane %v1680, 5
      %v1683 = vor.u32 %v1679, %v1682
      %v1684 = vrot.slane %v1683, 4
      %v1686 = vshll.u32 %v1357, 16
      %v1688 = vrot.slane %v1686, 5
      %v1689 = vsel %vm268, %v1684, %v1688
      %v1690 = vshrl.u32 %v1357, 16
      %v1692 = vrot.slane %v1690, 4
      %v1693 = vor.u32 %v1692, %v1688
      %v1694 = vrot.slane %v1693, 4
      %v1696 = vshll.u32 %v1358, 16
      %v1698 = vrot.slane %v1696, 5
      %v1699 = vsel %vm268, %v1694, %v1698
      %v1700 = vshrl.u32 %v1358, 16
      %v1702 = vrot.slane %v1700, 4
      %v1703 = vor.u32 %v1702, %v1698
      %v1704 = vrot.slane %v1703, 4
      %v1706 = vshll.u32 %v1359, 16
      %v1708 = vrot.slane %v1706, 5
      %v1709 = vsel %vm268, %v1704, %v1708
      %v1710 = vshrl.u32 %v1359, 16
      %v1712 = vrot.slane %v1710, 4
      %v1713 = vor.u32 %v1712, %v1708
      %v1714 = vrot.slane %v1713, 4
      %v1716 = vshll.u32 %v1367, 16
      %v1718 = vrot.slane %v1716, 5
      %v1719 = vsel %vm268, %v1714, %v1718
      %v1720 = vld [vmem:[%s1327] sm:$0xe]
      %v1721 = vld [vmem:[%s1327 + $0x14] sm:$0xe]
      %v1722 = vld [vmem:[%s1327 + $0x28] sm:$0xe]
      %v1723 = vld [vmem:[%s1327 + $0x3c] sm:$0xe]
      %v1724 = vld [vmem:[%s1327 + $0x50] sm:$0xe]
      %v1725 = vld [vmem:[%s1327 + $0x64] sm:$0xe]
      %v1726 = vld [vmem:[%s1327 + $0x78] sm:$0xe]
      %v1727 = vld [vmem:[%s1327 + $0x8c] sm:$0xe]
      %v1768 = vrot.slane %v1720, 5
      %v1769 = vrot.slane %v1768, 4
      %v1770 = vrot.slane %v1329, 5
      %v1771 = vsel %vm671, %v1769, %v1770
      %v1772 = vrot.slane %v1770, 4
      %v1773 = vrot.slane %v1330, 5
      %v1774 = vsel %vm671, %v1772, %v1773
      %v1775 = vrot.slane %v1773, 4
      %v1776 = vrot.slane %v1331, 5
      %v1777 = vsel %vm671, %v1775, %v1776
      %v1778 = vrot.slane %v1776, 4
      %v1779 = vrot.slane %v1360, 5
      %v1780 = vsel %vm671, %v1778, %v1779
      %v1781 = vrot.slane %v1721, 5
      %v1782 = vrot.slane %v1781, 4
      %v1783 = vrot.slane %v1333, 5
      %v1784 = vsel %vm671, %v1782, %v1783
      %v1785 = vrot.slane %v1783, 4
      %v1786 = vrot.slane %v1334, 5
      %v1787 = vsel %vm671, %v1785, %v1786
      %v1788 = vrot.slane %v1786, 4
      %v1789 = vrot.slane %v1335, 5
      %v1790 = vsel %vm671, %v1788, %v1789
      %v1791 = vrot.slane %v1789, 4
      %v1792 = vrot.slane %v1361, 5
      %v1793 = vsel %vm671, %v1791, %v1792
      %v1794 = vrot.slane %v1722, 5
      %v1795 = vrot.slane %v1794, 4
      %v1796 = vrot.slane %v1337, 5
      %v1797 = vsel %vm671, %v1795, %v1796
      %v1798 = vrot.slane %v1796, 4
      %v1799 = vrot.slane %v1338, 5
      %v1800 = vsel %vm671, %v1798, %v1799
      %v1801 = vrot.slane %v1799, 4
      %v1802 = vrot.slane %v1339, 5
      %v1803 = vsel %vm671, %v1801, %v1802
      %v1804 = vrot.slane %v1802, 4
      %v1805 = vrot.slane %v1362, 5
      %v1806 = vsel %vm671, %v1804, %v1805
      %v1807 = vrot.slane %v1723, 5
      %v1808 = vrot.slane %v1807, 4
      %v1809 = vrot.slane %v1341, 5
      %v1810 = vsel %vm671, %v1808, %v1809
      %v1811 = vrot.slane %v1809, 4
      %v1812 = vrot.slane %v1342, 5
      %v1813 = vsel %vm671, %v1811, %v1812
      %v1814 = vrot.slane %v1812, 4
      %v1815 = vrot.slane %v1343, 5
      %v1816 = vsel %vm671, %v1814, %v1815
      %v1817 = vrot.slane %v1815, 4
      %v1818 = vrot.slane %v1363, 5
      %v1819 = vsel %vm671, %v1817, %v1818
      %v1820 = vrot.slane %v1724, 5
      %v1821 = vrot.slane %v1820, 4
      %v1822 = vrot.slane %v1345, 5
      %v1823 = vsel %vm671, %v1821, %v1822
      %v1824 = vrot.slane %v1822, 4
      %v1825 = vrot.slane %v1346, 5
      %v1826 = vsel %vm671, %v1824, %v1825
      %v1827 = vrot.slane %v1825, 4
      %v1828 = vrot.slane %v1347, 5
      %v1829 = vsel %vm671, %v1827, %v1828
      %v1830 = vrot.slane %v1828, 4
      %v1831 = vrot.slane %v1364, 5
      %v1832 = vsel %vm671, %v1830, %v1831
      %v1833 = vrot.slane %v1725, 5
      %v1834 = vrot.slane %v1833, 4
      %v1835 = vrot.slane %v1349, 5
      %v1836 = vsel %vm671, %v1834, %v1835
      %v1837 = vrot.slane %v1835, 4
      %v1838 = vrot.slane %v1350, 5
      %v1839 = vsel %vm671, %v1837, %v1838
      %v1840 = vrot.slane %v1838, 4
      %v1841 = vrot.slane %v1351, 5
      %v1842 = vsel %vm671, %v1840, %v1841
      %v1843 = vrot.slane %v1841, 4
      %v1844 = vrot.slane %v1365, 5
      %v1845 = vsel %vm671, %v1843, %v1844
      %v1846 = vrot.slane %v1726, 5
      %v1847 = vrot.slane %v1846, 4
      %v1848 = vrot.slane %v1353, 5
      %v1849 = vsel %vm671, %v1847, %v1848
      %v1850 = vrot.slane %v1848, 4
      %v1851 = vrot.slane %v1354, 5
      %v1852 = vsel %vm671, %v1850, %v1851
      %v1853 = vrot.slane %v1851, 4
      %v1854 = vrot.slane %v1355, 5
      %v1855 = vsel %vm671, %v1853, %v1854
      %v1856 = vrot.slane %v1854, 4
      %v1857 = vrot.slane %v1366, 5
      %v1858 = vsel %vm671, %v1856, %v1857
      %v1859 = vrot.slane %v1727, 5
      %v1860 = vrot.slane %v1859, 4
      %v1861 = vrot.slane %v1357, 5
      %v1862 = vsel %vm671, %v1860, %v1861
      %v1863 = vrot.slane %v1861, 4
      %v1864 = vrot.slane %v1358, 5
      %v1865 = vsel %vm671, %v1863, %v1864
      %v1866 = vrot.slane %v1864, 4
      %v1867 = vrot.slane %v1359, 5
      %v1868 = vsel %vm671, %v1866, %v1867
      %v1869 = vrot.slane %v1867, 4
      %v1870 = vrot.slane %v1367, 5
      %v1871 = vsel %vm671, %v1869, %v1870
      %v1880 = vunpack.c.l.b16 %v226
      %v1881 = vunpack.c.l.b16 %v227
      %v1882 = vunpack.c.l.b16 %v228
      %v1883 = vunpack.c.l.b16 %v229
      %v1884 = vunpack.c.l.b16 %v230
      %v1885 = vunpack.c.l.b16 %v231
      %v1886 = vunpack.c.l.b16 %v232
      %v1887 = vunpack.c.l.b16 %v233
      %v1888 = vunpack.c.l.b16 %v234
      %v1889 = vunpack.c.l.b16 %v235
      %v1890 = vunpack.c.l.b16 %v236
      %v1891 = vunpack.c.l.b16 %v237
      %v1892 = vunpack.c.l.b16 %v238
      %v1893 = vunpack.c.l.b16 %v239
      %v1894 = vunpack.c.l.b16 %v240
      %v1895 = vunpack.c.l.b16 %v241
      %v1896 = vunpack.c.l.b16 %v242
      %v1897 = vunpack.c.l.b16 %v243
      %v1898 = vunpack.c.l.b16 %v244
      %v1899 = vunpack.c.l.b16 %v245
      %v1900 = vunpack.c.l.b16 %v246
      %v1901 = vunpack.c.l.b16 %v247
      %v1902 = vunpack.c.l.b16 %v248
      %v1903 = vunpack.c.l.b16 %v249
      %v1904 = vunpack.c.l.b16 %v250
      %v1905 = vunpack.c.l.b16 %v251
      %v1906 = vunpack.c.l.b16 %v252
      %v1907 = vunpack.c.l.b16 %v253
      %v1908 = vunpack.c.l.b16 %v254
      %v1909 = vunpack.c.l.b16 %v255
      %v1910 = vunpack.c.l.b16 %v256
      %v1911 = vunpack.c.l.b16 %v257
      %v1912 = vpack.c.b16 %v1881, %v1880
      %v1913 = vpack.c.b16 %v1883, %v1882
      %v1914 = vpack.c.b16 %v1885, %v1884
      %v1915 = vpack.c.b16 %v1887, %v1886
      %v1916 = vpack.c.b16 %v1889, %v1888
      %v1917 = vpack.c.b16 %v1891, %v1890
      %v1918 = vpack.c.b16 %v1893, %v1892
      %v1919 = vpack.c.b16 %v1895, %v1894
      %v1920 = vpack.c.b16 %v1897, %v1896
      %v1921 = vpack.c.b16 %v1899, %v1898
      %v1922 = vpack.c.b16 %v1901, %v1900
      %v1923 = vpack.c.b16 %v1903, %v1902
      %v1924 = vpack.c.b16 %v1905, %v1904
      %v1925 = vpack.c.b16 %v1907, %v1906
      %v1926 = vpack.c.b16 %v1909, %v1908
      %v1927 = vpack.c.b16 %v1911, %v1910
      %v1928 = vunpack.c.l.b16 %v282
      %v1929 = vunpack.c.l.b16 %v292
      %v1930 = vunpack.c.l.b16 %v302
      %v1931 = vunpack.c.l.b16 %v312
      %v1932 = vunpack.c.l.b16 %v326
      %v1933 = vunpack.c.l.b16 %v336
      %v1934 = vunpack.c.l.b16 %v346
      %v1935 = vunpack.c.l.b16 %v356
      %v1936 = vunpack.c.l.b16 %v370
      %v1937 = vunpack.c.l.b16 %v380
      %v1938 = vunpack.c.l.b16 %v390
      %v1939 = vunpack.c.l.b16 %v400
      %v1940 = vunpack.c.l.b16 %v414
      %v1941 = vunpack.c.l.b16 %v424
      %v1942 = vunpack.c.l.b16 %v434
      %v1943 = vunpack.c.l.b16 %v444
      %v1944 = vunpack.c.l.b16 %v458
      %v1945 = vunpack.c.l.b16 %v468
      %v1946 = vunpack.c.l.b16 %v478
      %v1947 = vunpack.c.l.b16 %v488
      %v1948 = vunpack.c.l.b16 %v502
      %v1949 = vunpack.c.l.b16 %v512
      %v1950 = vunpack.c.l.b16 %v522
      %v1951 = vunpack.c.l.b16 %v532
      %v1952 = vunpack.c.l.b16 %v546
      %v1953 = vunpack.c.l.b16 %v556
      %v1954 = vunpack.c.l.b16 %v566
      %v1955 = vunpack.c.l.b16 %v576
      %v1956 = vunpack.c.l.b16 %v590
      %v1957 = vunpack.c.l.b16 %v600
      %v1958 = vunpack.c.l.b16 %v610
      %v1959 = vunpack.c.l.b16 %v620
      %v1960 = vpack.c.b16 %v1929, %v1928
      %v1961 = vpack.c.b16 %v1931, %v1930
      %v1962 = vpack.c.b16 %v1933, %v1932
      %v1963 = vpack.c.b16 %v1935, %v1934
      %v1964 = vpack.c.b16 %v1937, %v1936
      %v1965 = vpack.c.b16 %v1939, %v1938
      %v1966 = vpack.c.b16 %v1941, %v1940
      %v1967 = vpack.c.b16 %v1943, %v1942
      %v1968 = vpack.c.b16 %v1945, %v1944
      %v1969 = vpack.c.b16 %v1947, %v1946
      %v1970 = vpack.c.b16 %v1949, %v1948
      %v1971 = vpack.c.b16 %v1951, %v1950
      %v1972 = vpack.c.b16 %v1953, %v1952
      %v1973 = vpack.c.b16 %v1955, %v1954
      %v1974 = vpack.c.b16 %v1957, %v1956
      %v1975 = vpack.c.b16 %v1959, %v1958
      %1976 = vrot.lane.b32.xlu0 %v1960, 64
      %v1977 = vpop.permute.xlu0 %1976
      %1978 = vrot.lane.b32.xlu0 %v1961, 64
      %v1979 = vpop.permute.xlu0 %1978
      %1980 = vrot.lane.b32.xlu0 %v1962, 64
      %v1981 = vpop.permute.xlu0 %1980
      %1982 = vrot.lane.b32.xlu0 %v1963, 64
      %v1983 = vpop.permute.xlu0 %1982
      %1984 = vrot.lane.b32.xlu0 %v1964, 64
      %v1985 = vpop.permute.xlu0 %1984
      %1986 = vrot.lane.b32.xlu0 %v1965, 64
      %v1987 = vpop.permute.xlu0 %1986
      %1988 = vrot.lane.b32.xlu0 %v1966, 64
      %v1989 = vpop.permute.xlu0 %1988
      %1990 = vrot.lane.b32.xlu0 %v1967, 64
      %v1991 = vpop.permute.xlu0 %1990
      %1992 = vrot.lane.b32.xlu0 %v1968, 64
      %v1993 = vpop.permute.xlu0 %1992
      %1994 = vrot.lane.b32.xlu0 %v1969, 64
      %v1995 = vpop.permute.xlu0 %1994
      %1996 = vrot.lane.b32.xlu0 %v1970, 64
      %v1997 = vpop.permute.xlu0 %1996
      %1998 = vrot.lane.b32.xlu0 %v1971, 64
      %v1999 = vpop.permute.xlu0 %1998
      %2000 = vrot.lane.b32.xlu0 %v1972, 64
      %v2001 = vpop.permute.xlu0 %2000
      %2002 = vrot.lane.b32.xlu0 %v1973, 64
      %v2003 = vpop.permute.xlu0 %2002
      %2004 = vrot.lane.b32.xlu0 %v1974, 64
      %v2005 = vpop.permute.xlu0 %2004
      %2006 = vrot.lane.b32.xlu0 %v1975, 64
      %v2007 = vpop.permute.xlu0 %2006
      %v2008 = vunpack.c.l.b16 %v675
      %v2009 = vunpack.c.l.b16 %v678
      %v2010 = vunpack.c.l.b16 %v681
      %v2011 = vunpack.c.l.b16 %v684
      %v2012 = vunpack.c.l.b16 %v688
      %v2013 = vunpack.c.l.b16 %v691
      %v2014 = vunpack.c.l.b16 %v694
      %v2015 = vunpack.c.l.b16 %v697
      %v2016 = vunpack.c.l.b16 %v701
      %v2017 = vunpack.c.l.b16 %v704
      %v2018 = vunpack.c.l.b16 %v707
      %v2019 = vunpack.c.l.b16 %v710
      %v2020 = vunpack.c.l.b16 %v714
      %v2021 = vunpack.c.l.b16 %v717
      %v2022 = vunpack.c.l.b16 %v720
      %v2023 = vunpack.c.l.b16 %v723
      %v2024 = vunpack.c.l.b16 %v727
      %v2025 = vunpack.c.l.b16 %v730
      %v2026 = vunpack.c.l.b16 %v733
      %v2027 = vunpack.c.l.b16 %v736
      %v2028 = vunpack.c.l.b16 %v740
      %v2029 = vunpack.c.l.b16 %v743
      %v2030 = vunpack.c.l.b16 %v746
      %v2031 = vunpack.c.l.b16 %v749
      %v2032 = vunpack.c.l.b16 %v753
      %v2033 = vunpack.c.l.b16 %v756
      %v2034 = vunpack.c.l.b16 %v759
      %v2035 = vunpack.c.l.b16 %v762
      %v2036 = vunpack.c.l.b16 %v766
      %v2037 = vunpack.c.l.b16 %v769
      %v2038 = vunpack.c.l.b16 %v772
      %v2039 = vunpack.c.l.b16 %v775
      %v2040 = vpack.c.b16 %v2009, %v2008
      %v2041 = vpack.c.b16 %v2011, %v2010
      %v2042 = vpack.c.b16 %v2013, %v2012
      %v2043 = vpack.c.b16 %v2015, %v2014
      %v2044 = vpack.c.b16 %v2017, %v2016
      %v2045 = vpack.c.b16 %v2019, %v2018
      %v2046 = vpack.c.b16 %v2021, %v2020
      %v2047 = vpack.c.b16 %v2023, %v2022
      %v2048 = vpack.c.b16 %v2025, %v2024
      %v2049 = vpack.c.b16 %v2027, %v2026
      %v2050 = vpack.c.b16 %v2029, %v2028
      %v2051 = vpack.c.b16 %v2031, %v2030
      %v2052 = vpack.c.b16 %v2033, %v2032
      %v2053 = vpack.c.b16 %v2035, %v2034
      %v2054 = vpack.c.b16 %v2037, %v2036
      %v2055 = vpack.c.b16 %v2039, %v2038
      %v2064 = vunpack.c.l.b16 %v780
      %v2065 = vunpack.c.l.b16 %v781
      %v2066 = vunpack.c.l.b16 %v782
      %v2067 = vunpack.c.l.b16 %v783
      %v2068 = vunpack.c.l.b16 %v784
      %v2069 = vunpack.c.l.b16 %v785
      %v2070 = vunpack.c.l.b16 %v786
      %v2071 = vunpack.c.l.b16 %v787
      %v2072 = vunpack.c.l.b16 %v788
      %v2073 = vunpack.c.l.b16 %v789
      %v2074 = vunpack.c.l.b16 %v790
      %v2075 = vunpack.c.l.b16 %v791
      %v2076 = vunpack.c.l.b16 %v792
      %v2077 = vunpack.c.l.b16 %v793
      %v2078 = vunpack.c.l.b16 %v794
      %v2079 = vunpack.c.l.b16 %v795
      %v2080 = vunpack.c.l.b16 %v796
      %v2081 = vunpack.c.l.b16 %v797
      %v2082 = vunpack.c.l.b16 %v798
      %v2083 = vunpack.c.l.b16 %v799
      %v2084 = vunpack.c.l.b16 %v800
      %v2085 = vunpack.c.l.b16 %v801
      %v2086 = vunpack.c.l.b16 %v802
      %v2087 = vunpack.c.l.b16 %v803
      %v2088 = vunpack.c.l.b16 %v804
      %v2089 = vunpack.c.l.b16 %v805
      %v2090 = vunpack.c.l.b16 %v806
      %v2091 = vunpack.c.l.b16 %v807
      %v2092 = vunpack.c.l.b16 %v808
      %v2093 = vunpack.c.l.b16 %v809
      %v2094 = vunpack.c.l.b16 %v810
      %v2095 = vunpack.c.l.b16 %v811
      %v2096 = vpack.c.b16 %v2065, %v2064
      %v2097 = vpack.c.b16 %v2067, %v2066
      %v2098 = vpack.c.b16 %v2069, %v2068
      %v2099 = vpack.c.b16 %v2071, %v2070
      %v2100 = vpack.c.b16 %v2073, %v2072
      %v2101 = vpack.c.b16 %v2075, %v2074
      %v2102 = vpack.c.b16 %v2077, %v2076
      %v2103 = vpack.c.b16 %v2079, %v2078
      %v2104 = vpack.c.b16 %v2081, %v2080
      %v2105 = vpack.c.b16 %v2083, %v2082
      %v2106 = vpack.c.b16 %v2085, %v2084
      %v2107 = vpack.c.b16 %v2087, %v2086
      %v2108 = vpack.c.b16 %v2089, %v2088
      %v2109 = vpack.c.b16 %v2091, %v2090
      %v2110 = vpack.c.b16 %v2093, %v2092
      %v2111 = vpack.c.b16 %v2095, %v2094
      %2112 = vrot.lane.b32.xlu0 %v2096, 64
      %v2113 = vpop.permute.xlu0 %2112
      %2114 = vrot.lane.b32.xlu0 %v2097, 64
      %v2115 = vpop.permute.xlu0 %2114
      %2116 = vrot.lane.b32.xlu0 %v2098, 64
      %v2117 = vpop.permute.xlu0 %2116
      %2118 = vrot.lane.b32.xlu0 %v2099, 64
      %v2119 = vpop.permute.xlu0 %2118
      %2120 = vrot.lane.b32.xlu0 %v2100, 64
      %v2121 = vpop.permute.xlu0 %2120
      %2122 = vrot.lane.b32.xlu0 %v2101, 64
      %v2123 = vpop.permute.xlu0 %2122
      %2124 = vrot.lane.b32.xlu0 %v2102, 64
      %v2125 = vpop.permute.xlu0 %2124
      %2126 = vrot.lane.b32.xlu0 %v2103, 64
      %v2127 = vpop.permute.xlu0 %2126
      %2128 = vrot.lane.b32.xlu0 %v2104, 64
      %v2129 = vpop.permute.xlu0 %2128
      %2130 = vrot.lane.b32.xlu0 %v2105, 64
      %v2131 = vpop.permute.xlu0 %2130
      %2132 = vrot.lane.b32.xlu0 %v2106, 64
      %v2133 = vpop.permute.xlu0 %2132
      %2134 = vrot.lane.b32.xlu0 %v2107, 64
      %v2135 = vpop.permute.xlu0 %2134
      %2136 = vrot.lane.b32.xlu0 %v2108, 64
      %v2137 = vpop.permute.xlu0 %2136
      %2138 = vrot.lane.b32.xlu0 %v2109, 64
      %v2139 = vpop.permute.xlu0 %2138
      %2140 = vrot.lane.b32.xlu0 %v2110, 64
      %v2141 = vpop.permute.xlu0 %2140
      %2142 = vrot.lane.b32.xlu0 %v2111, 64
      %v2143 = vpop.permute.xlu0 %2142
      %v2144 = vunpack.c.l.b16 %v833
      %v2145 = vunpack.c.l.b16 %v843
      %v2146 = vunpack.c.l.b16 %v853
      %v2147 = vunpack.c.l.b16 %v863
      %v2148 = vunpack.c.l.b16 %v877
      %v2149 = vunpack.c.l.b16 %v887
      %v2150 = vunpack.c.l.b16 %v897
      %v2151 = vunpack.c.l.b16 %v907
      %v2152 = vunpack.c.l.b16 %v921
      %v2153 = vunpack.c.l.b16 %v931
      %v2154 = vunpack.c.l.b16 %v941
      %v2155 = vunpack.c.l.b16 %v951
      %v2156 = vunpack.c.l.b16 %v965
      %v2157 = vunpack.c.l.b16 %v975
      %v2158 = vunpack.c.l.b16 %v985
      %v2159 = vunpack.c.l.b16 %v995
      %v2160 = vunpack.c.l.b16 %v1009
      %v2161 = vunpack.c.l.b16 %v1019
      %v2162 = vunpack.c.l.b16 %v1029
      %v2163 = vunpack.c.l.b16 %v1039
      %v2164 = vunpack.c.l.b16 %v1053
      %v2165 = vunpack.c.l.b16 %v1063
      %v2166 = vunpack.c.l.b16 %v1073
      %v2167 = vunpack.c.l.b16 %v1083
      %v2168 = vunpack.c.l.b16 %v1097
      %v2169 = vunpack.c.l.b16 %v1107
      %v2170 = vunpack.c.l.b16 %v1117
      %v2171 = vunpack.c.l.b16 %v1127
      %v2172 = vunpack.c.l.b16 %v1141
      %v2173 = vunpack.c.l.b16 %v1151
      %v2174 = vunpack.c.l.b16 %v1161
      %v2175 = vunpack.c.l.b16 %v1171
      %v2176 = vpack.c.b16 %v2145, %v2144
      %v2177 = vpack.c.b16 %v2147, %v2146
      %v2178 = vpack.c.b16 %v2149, %v2148
      %v2179 = vpack.c.b16 %v2151, %v2150
      %v2180 = vpack.c.b16 %v2153, %v2152
      %v2181 = vpack.c.b16 %v2155, %v2154
      %v2182 = vpack.c.b16 %v2157, %v2156
      %v2183 = vpack.c.b16 %v2159, %v2158
      %v2184 = vpack.c.b16 %v2161, %v2160
      %v2185 = vpack.c.b16 %v2163, %v2162
      %v2186 = vpack.c.b16 %v2165, %v2164
      %v2187 = vpack.c.b16 %v2167, %v2166
      %v2188 = vpack.c.b16 %v2169, %v2168
      %v2189 = vpack.c.b16 %v2171, %v2170
      %v2190 = vpack.c.b16 %v2173, %v2172
      %v2191 = vpack.c.b16 %v2175, %v2174
      %v2192 = vunpack.c.l.b16 %v1223
      %v2193 = vunpack.c.l.b16 %v1226
      %v2194 = vunpack.c.l.b16 %v1229
      %v2195 = vunpack.c.l.b16 %v1232
      %v2196 = vunpack.c.l.b16 %v1236
      %v2197 = vunpack.c.l.b16 %v1239
      %v2198 = vunpack.c.l.b16 %v1242
      %v2199 = vunpack.c.l.b16 %v1245
      %v2200 = vunpack.c.l.b16 %v1249
      %v2201 = vunpack.c.l.b16 %v1252
      %v2202 = vunpack.c.l.b16 %v1255
      %v2203 = vunpack.c.l.b16 %v1258
      %v2204 = vunpack.c.l.b16 %v1262
      %v2205 = vunpack.c.l.b16 %v1265
      %v2206 = vunpack.c.l.b16 %v1268
      %v2207 = vunpack.c.l.b16 %v1271
      %v2208 = vunpack.c.l.b16 %v1275
      %v2209 = vunpack.c.l.b16 %v1278
      %v2210 = vunpack.c.l.b16 %v1281
      %v2211 = vunpack.c.l.b16 %v1284
      %v2212 = vunpack.c.l.b16 %v1288
      %v2213 = vunpack.c.l.b16 %v1291
      %v2214 = vunpack.c.l.b16 %v1294
      %v2215 = vunpack.c.l.b16 %v1297
      %v2216 = vunpack.c.l.b16 %v1301
      %v2217 = vunpack.c.l.b16 %v1304
      %v2218 = vunpack.c.l.b16 %v1307
      %v2219 = vunpack.c.l.b16 %v1310
      %v2220 = vunpack.c.l.b16 %v1314
      %v2221 = vunpack.c.l.b16 %v1317
      %v2222 = vunpack.c.l.b16 %v1320
      %v2223 = vunpack.c.l.b16 %v1323
      %v2224 = vpack.c.b16 %v2193, %v2192
      %v2225 = vpack.c.b16 %v2195, %v2194
      %v2226 = vpack.c.b16 %v2197, %v2196
      %v2227 = vpack.c.b16 %v2199, %v2198
      %v2228 = vpack.c.b16 %v2201, %v2200
      %v2229 = vpack.c.b16 %v2203, %v2202
      %v2230 = vpack.c.b16 %v2205, %v2204
      %v2231 = vpack.c.b16 %v2207, %v2206
      %v2232 = vpack.c.b16 %v2209, %v2208
      %v2233 = vpack.c.b16 %v2211, %v2210
      %v2234 = vpack.c.b16 %v2213, %v2212
      %v2235 = vpack.c.b16 %v2215, %v2214
      %v2236 = vpack.c.b16 %v2217, %v2216
      %v2237 = vpack.c.b16 %v2219, %v2218
      %v2238 = vpack.c.b16 %v2221, %v2220
      %v2239 = vpack.c.b16 %v2223, %v2222
      %2240 = vrot.lane.b32.xlu0 %v2224, 64
      %v2241 = vpop.permute.xlu0 %2240
      %2242 = vrot.lane.b32.xlu0 %v2225, 64
      %v2243 = vpop.permute.xlu0 %2242
      %2244 = vrot.lane.b32.xlu0 %v2226, 64
      %v2245 = vpop.permute.xlu0 %2244
      %2246 = vrot.lane.b32.xlu0 %v2227, 64
      %v2247 = vpop.permute.xlu0 %2246
      %2248 = vrot.lane.b32.xlu0 %v2228, 64
      %v2249 = vpop.permute.xlu0 %2248
      %2250 = vrot.lane.b32.xlu0 %v2229, 64
      %v2251 = vpop.permute.xlu0 %2250
      %2252 = vrot.lane.b32.xlu0 %v2230, 64
      %v2253 = vpop.permute.xlu0 %2252
      %2254 = vrot.lane.b32.xlu0 %v2231, 64
      %v2255 = vpop.permute.xlu0 %2254
      %2256 = vrot.lane.b32.xlu0 %v2232, 64
      %v2257 = vpop.permute.xlu0 %2256
      %2258 = vrot.lane.b32.xlu0 %v2233, 64
      %v2259 = vpop.permute.xlu0 %2258
      %2260 = vrot.lane.b32.xlu0 %v2234, 64
      %v2261 = vpop.permute.xlu0 %2260
      %2262 = vrot.lane.b32.xlu0 %v2235, 64
      %v2263 = vpop.permute.xlu0 %2262
      %2264 = vrot.lane.b32.xlu0 %v2236, 64
      %v2265 = vpop.permute.xlu0 %2264
      %2266 = vrot.lane.b32.xlu0 %v2237, 64
      %v2267 = vpop.permute.xlu0 %2266
      %2268 = vrot.lane.b32.xlu0 %v2238, 64
      %v2269 = vpop.permute.xlu0 %2268
      %2270 = vrot.lane.b32.xlu0 %v2239, 64
      %v2271 = vpop.permute.xlu0 %2270
      %v2280 = vunpack.c.l.b16 %v1328
      %v2281 = vunpack.c.l.b16 %v1329
      %v2282 = vunpack.c.l.b16 %v1330
      %v2283 = vunpack.c.l.b16 %v1331
      %v2284 = vunpack.c.l.b16 %v1332
      %v2285 = vunpack.c.l.b16 %v1333
      %v2286 = vunpack.c.l.b16 %v1334
      %v2287 = vunpack.c.l.b16 %v1335
      %v2288 = vunpack.c.l.b16 %v1336
      %v2289 = vunpack.c.l.b16 %v1337
      %v2290 = vunpack.c.l.b16 %v1338
      %v2291 = vunpack.c.l.b16 %v1339
      %v2292 = vunpack.c.l.b16 %v1340
      %v2293 = vunpack.c.l.b16 %v1341
      %v2294 = vunpack.c.l.b16 %v1342
      %v2295 = vunpack.c.l.b16 %v1343
      %v2296 = vunpack.c.l.b16 %v1344
      %v2297 = vunpack.c.l.b16 %v1345
      %v2298 = vunpack.c.l.b16 %v1346
      %v2299 = vunpack.c.l.b16 %v1347
      %v2300 = vunpack.c.l.b16 %v1348
      %v2301 = vunpack.c.l.b16 %v1349
      %v2302 = vunpack.c.l.b16 %v1350
      %v2303 = vunpack.c.l.b16 %v1351
      %v2304 = vunpack.c.l.b16 %v1352
      %v2305 = vunpack.c.l.b16 %v1353
      %v2306 = vunpack.c.l.b16 %v1354
      %v2307 = vunpack.c.l.b16 %v1355
      %v2308 = vunpack.c.l.b16 %v1356
      %v2309 = vunpack.c.l.b16 %v1357
      %v2310 = vunpack.c.l.b16 %v1358
      %v2311 = vunpack.c.l.b16 %v1359
      %v2312 = vpack.c.b16 %v2281, %v2280
      %v2313 = vpack.c.b16 %v2283, %v2282
      %v2314 = vpack.c.b16 %v2285, %v2284
      %v2315 = vpack.c.b16 %v2287, %v2286
      %v2316 = vpack.c.b16 %v2289, %v2288
      %v2317 = vpack.c.b16 %v2291, %v2290
      %v2318 = vpack.c.b16 %v2293, %v2292
      %v2319 = vpack.c.b16 %v2295, %v2294
      %v2320 = vpack.c.b16 %v2297, %v2296
      %v2321 = vpack.c.b16 %v2299, %v2298
      %v2322 = vpack.c.b16 %v2301, %v2300
      %v2323 = vpack.c.b16 %v2303, %v2302
      %v2324 = vpack.c.b16 %v2305, %v2304
      %v2325 = vpack.c.b16 %v2307, %v2306
      %v2326 = vpack.c.b16 %v2309, %v2308
      %v2327 = vpack.c.b16 %v2311, %v2310
      %v2328 = vunpack.c.l.b16 %v1381
      %v2329 = vunpack.c.l.b16 %v1391
      %v2330 = vunpack.c.l.b16 %v1401
      %v2331 = vunpack.c.l.b16 %v1411
      %v2332 = vunpack.c.l.b16 %v1425
      %v2333 = vunpack.c.l.b16 %v1435
      %v2334 = vunpack.c.l.b16 %v1445
      %v2335 = vunpack.c.l.b16 %v1455
      %v2336 = vunpack.c.l.b16 %v1469
      %v2337 = vunpack.c.l.b16 %v1479
      %v2338 = vunpack.c.l.b16 %v1489
      %v2339 = vunpack.c.l.b16 %v1499
      %v2340 = vunpack.c.l.b16 %v1513
      %v2341 = vunpack.c.l.b16 %v1523
      %v2342 = vunpack.c.l.b16 %v1533
      %v2343 = vunpack.c.l.b16 %v1543
      %v2344 = vunpack.c.l.b16 %v1557
      %v2345 = vunpack.c.l.b16 %v1567
      %v2346 = vunpack.c.l.b16 %v1577
      %v2347 = vunpack.c.l.b16 %v1587
      %v2348 = vunpack.c.l.b16 %v1601
      %v2349 = vunpack.c.l.b16 %v1611
      %v2350 = vunpack.c.l.b16 %v1621
      %v2351 = vunpack.c.l.b16 %v1631
      %v2352 = vunpack.c.l.b16 %v1645
      %v2353 = vunpack.c.l.b16 %v1655
      %v2354 = vunpack.c.l.b16 %v1665
      %v2355 = vunpack.c.l.b16 %v1675
      %v2356 = vunpack.c.l.b16 %v1689
      %v2357 = vunpack.c.l.b16 %v1699
      %v2358 = vunpack.c.l.b16 %v1709
      %v2359 = vunpack.c.l.b16 %v1719
      %v2360 = vpack.c.b16 %v2329, %v2328
      %v2361 = vpack.c.b16 %v2331, %v2330
      %v2362 = vpack.c.b16 %v2333, %v2332
      %v2363 = vpack.c.b16 %v2335, %v2334
      %v2364 = vpack.c.b16 %v2337, %v2336
      %v2365 = vpack.c.b16 %v2339, %v2338
      %v2366 = vpack.c.b16 %v2341, %v2340
      %v2367 = vpack.c.b16 %v2343, %v2342
      %v2368 = vpack.c.b16 %v2345, %v2344
      %v2369 = vpack.c.b16 %v2347, %v2346
      %v2370 = vpack.c.b16 %v2349, %v2348
      %v2371 = vpack.c.b16 %v2351, %v2350
      %v2372 = vpack.c.b16 %v2353, %v2352
      %v2373 = vpack.c.b16 %v2355, %v2354
      %v2374 = vpack.c.b16 %v2357, %v2356
      %v2375 = vpack.c.b16 %v2359, %v2358
      %2376 = vrot.lane.b32.xlu0 %v2360, 64
      %v2377 = vpop.permute.xlu0 %2376
      %2378 = vrot.lane.b32.xlu0 %v2361, 64
      %v2379 = vpop.permute.xlu0 %2378
      %2380 = vrot.lane.b32.xlu0 %v2362, 64
      %v2381 = vpop.permute.xlu0 %2380
      %2382 = vrot.lane.b32.xlu0 %v2363, 64
      %v2383 = vpop.permute.xlu0 %2382
      %2384 = vrot.lane.b32.xlu0 %v2364, 64
      %v2385 = vpop.permute.xlu0 %2384
      %2386 = vrot.lane.b32.xlu0 %v2365, 64
      %v2387 = vpop.permute.xlu0 %2386
      %2388 = vrot.lane.b32.xlu0 %v2366, 64
      %v2389 = vpop.permute.xlu0 %2388
      %2390 = vrot.lane.b32.xlu0 %v2367, 64
      %v2391 = vpop.permute.xlu0 %2390
      %2392 = vrot.lane.b32.xlu0 %v2368, 64
      %v2393 = vpop.permute.xlu0 %2392
      %2394 = vrot.lane.b32.xlu0 %v2369, 64
      %v2395 = vpop.permute.xlu0 %2394
      %2396 = vrot.lane.b32.xlu0 %v2370, 64
      %v2397 = vpop.permute.xlu0 %2396
      %2398 = vrot.lane.b32.xlu0 %v2371, 64
      %v2399 = vpop.permute.xlu0 %2398
      %2400 = vrot.lane.b32.xlu0 %v2372, 64
      %v2401 = vpop.permute.xlu0 %2400
      %2402 = vrot.lane.b32.xlu0 %v2373, 64
      %v2403 = vpop.permute.xlu0 %2402
      %2404 = vrot.lane.b32.xlu0 %v2374, 64
      %v2405 = vpop.permute.xlu0 %2404
      %2406 = vrot.lane.b32.xlu0 %v2375, 64
      %v2407 = vpop.permute.xlu0 %2406
      %v2408 = vunpack.c.l.b16 %v1771
      %v2409 = vunpack.c.l.b16 %v1774
      %v2410 = vunpack.c.l.b16 %v1777
      %v2411 = vunpack.c.l.b16 %v1780
      %v2412 = vunpack.c.l.b16 %v1784
      %v2413 = vunpack.c.l.b16 %v1787
      %v2414 = vunpack.c.l.b16 %v1790
      %v2415 = vunpack.c.l.b16 %v1793
      %v2416 = vunpack.c.l.b16 %v1797
      %v2417 = vunpack.c.l.b16 %v1800
      %v2418 = vunpack.c.l.b16 %v1803
      %v2419 = vunpack.c.l.b16 %v1806
      %v2420 = vunpack.c.l.b16 %v1810
      %v2421 = vunpack.c.l.b16 %v1813
      %v2422 = vunpack.c.l.b16 %v1816
      %v2423 = vunpack.c.l.b16 %v1819
      %v2424 = vunpack.c.l.b16 %v1823
      %v2425 = vunpack.c.l.b16 %v1826
      %v2426 = vunpack.c.l.b16 %v1829
      %v2427 = vunpack.c.l.b16 %v1832
      %v2428 = vunpack.c.l.b16 %v1836
      %v2429 = vunpack.c.l.b16 %v1839
      %v2430 = vunpack.c.l.b16 %v1842
      %v2431 = vunpack.c.l.b16 %v1845
      %v2432 = vunpack.c.l.b16 %v1849
      %v2433 = vunpack.c.l.b16 %v1852
      %v2434 = vunpack.c.l.b16 %v1855
      %v2435 = vunpack.c.l.b16 %v1858
      %v2436 = vunpack.c.l.b16 %v1862
      %v2437 = vunpack.c.l.b16 %v1865
      %v2438 = vunpack.c.l.b16 %v1868
      %v2439 = vunpack.c.l.b16 %v1871
      %v2440 = vpack.c.b16 %v2409, %v2408
      %v2441 = vpack.c.b16 %v2411, %v2410
      %v2442 = vpack.c.b16 %v2413, %v2412
      %v2443 = vpack.c.b16 %v2415, %v2414
      %v2444 = vpack.c.b16 %v2417, %v2416
      %v2445 = vpack.c.b16 %v2419, %v2418
      %v2446 = vpack.c.b16 %v2421, %v2420
      %v2447 = vpack.c.b16 %v2423, %v2422
      %v2448 = vpack.c.b16 %v2425, %v2424
      %v2449 = vpack.c.b16 %v2427, %v2426
      %v2450 = vpack.c.b16 %v2429, %v2428
      %v2451 = vpack.c.b16 %v2431, %v2430
      %v2452 = vpack.c.b16 %v2433, %v2432
      %v2453 = vpack.c.b16 %v2435, %v2434
      %v2454 = vpack.c.b16 %v2437, %v2436
      %v2455 = vpack.c.b16 %v2439, %v2438
      %vm2456 = vcmask 523264
      %v2459 = vsel %vm2456, %v1912, %v1977
      %v2463 = vsel %vm2456, %v1913, %v1979
      %v2467 = vsel %vm2456, %v1914, %v1981
      %v2471 = vsel %vm2456, %v1915, %v1983
      %v2475 = vsel %vm2456, %v1916, %v1985
      %v2479 = vsel %vm2456, %v1917, %v1987
      %v2483 = vsel %vm2456, %v1918, %v1989
      %v2487 = vsel %vm2456, %v1919, %v1991
      %v2491 = vsel %vm2456, %v1920, %v1993
      %v2495 = vsel %vm2456, %v1921, %v1995
      %v2499 = vsel %vm2456, %v1922, %v1997
      %v2503 = vsel %vm2456, %v1923, %v1999
      %v2507 = vsel %vm2456, %v1924, %v2001
      %v2511 = vsel %vm2456, %v1925, %v2003
      %v2515 = vsel %vm2456, %v1926, %v2005
      %v2519 = vsel %vm2456, %v1927, %v2007
      %v2523 = vsel %vm2456, %v2040, %v2113
      %v2527 = vsel %vm2456, %v2041, %v2115
      %v2531 = vsel %vm2456, %v2042, %v2117
      %v2535 = vsel %vm2456, %v2043, %v2119
      %v2539 = vsel %vm2456, %v2044, %v2121
      %v2543 = vsel %vm2456, %v2045, %v2123
      %v2547 = vsel %vm2456, %v2046, %v2125
      %v2551 = vsel %vm2456, %v2047, %v2127
      %v2555 = vsel %vm2456, %v2048, %v2129
      %v2559 = vsel %vm2456, %v2049, %v2131
      %v2563 = vsel %vm2456, %v2050, %v2133
      %v2567 = vsel %vm2456, %v2051, %v2135
      %v2571 = vsel %vm2456, %v2052, %v2137
      %v2575 = vsel %vm2456, %v2053, %v2139
      %v2579 = vsel %vm2456, %v2054, %v2141
      %v2583 = vsel %vm2456, %v2055, %v2143
      %v2587 = vsel %vm2456, %v2176, %v2241
      %v2591 = vsel %vm2456, %v2177, %v2243
      %v2595 = vsel %vm2456, %v2178, %v2245
      %v2599 = vsel %vm2456, %v2179, %v2247
      %v2603 = vsel %vm2456, %v2180, %v2249
      %v2607 = vsel %vm2456, %v2181, %v2251
      %v2611 = vsel %vm2456, %v2182, %v2253
      %v2615 = vsel %vm2456, %v2183, %v2255
      %v2619 = vsel %vm2456, %v2184, %v2257
      %v2623 = vsel %vm2456, %v2185, %v2259
      %v2627 = vsel %vm2456, %v2186, %v2261
      %v2631 = vsel %vm2456, %v2187, %v2263
      %v2635 = vsel %vm2456, %v2188, %v2265
      %v2639 = vsel %vm2456, %v2189, %v2267
      %v2643 = vsel %vm2456, %v2190, %v2269
      %v2647 = vsel %vm2456, %v2191, %v2271
      %v2651 = vsel %vm2456, %v2312, %v2377
      %v2655 = vsel %vm2456, %v2313, %v2379
      %v2659 = vsel %vm2456, %v2314, %v2381
      %v2663 = vsel %vm2456, %v2315, %v2383
      %v2667 = vsel %vm2456, %v2316, %v2385
      %v2671 = vsel %vm2456, %v2317, %v2387
      %v2675 = vsel %vm2456, %v2318, %v2389
      %v2679 = vsel %vm2456, %v2319, %v2391
      %v2683 = vsel %vm2456, %v2320, %v2393
      %v2687 = vsel %vm2456, %v2321, %v2395
      %v2691 = vsel %vm2456, %v2322, %v2397
      %v2695 = vsel %vm2456, %v2323, %v2399
      %v2699 = vsel %vm2456, %v2324, %v2401
      %v2703 = vsel %vm2456, %v2325, %v2403
      %v2707 = vsel %vm2456, %v2326, %v2405
      %v2711 = vsel %vm2456, %v2327, %v2407
      %v2713 = vld [vmem:[%s1] sm:$0xf]
      %v2714 = vld [vmem:[%s1 + $0x4] sm:$0xf]
      %v2715 = vld [vmem:[%s1 + $0x8] sm:$0xf]
      %v2716 = vld [vmem:[%s1 + $0xc] sm:$0xf]
      %v2717 = vld [vmem:[%s1 + $0x10] sm:$0xf]
      %v2718 = vld [vmem:[%s1 + $0x14] sm:$0xf]
      %v2719 = vld [vmem:[%s1 + $0x18] sm:$0xf]
      %v2720 = vld [vmem:[%s1 + $0x1c] sm:$0xf]
      %v2721 = vld [vmem:[%s1 + $0x20] sm:$0xf]
      %v2722 = vld [vmem:[%s1 + $0x24] sm:$0xf]
      %v2723 = vld [vmem:[%s1 + $0x28] sm:$0xf]
      %v2724 = vld [vmem:[%s1 + $0x2c] sm:$0xf]
      %v2725 = vld [vmem:[%s1 + $0x30] sm:$0xf]
      %v2726 = vld [vmem:[%s1 + $0x34] sm:$0xf]
      %v2727 = vld [vmem:[%s1 + $0x38] sm:$0xf]
      %v2728 = vld [vmem:[%s1 + $0x3c] sm:$0xf]
      %v2729 = vld [vmem:[%s1 + $0x40] sm:$0xf]
      %v2730 = vld [vmem:[%s1 + $0x44] sm:$0xf]
      %v2731 = vld [vmem:[%s1 + $0x48] sm:$0xf]
      %v2732 = vld [vmem:[%s1 + $0x4c] sm:$0xf]
      %v2733 = vld [vmem:[%s1 + $0x50] sm:$0xf]
      %v2734 = vld [vmem:[%s1 + $0x54] sm:$0xf]
      %v2735 = vld [vmem:[%s1 + $0x58] sm:$0xf]
      %v2736 = vld [vmem:[%s1 + $0x5c] sm:$0xf]
      %v2737 = vld [vmem:[%s1 + $0x60] sm:$0xf]
      %v2738 = vld [vmem:[%s1 + $0x64] sm:$0xf]
      %v2739 = vld [vmem:[%s1 + $0x68] sm:$0xf]
      %v2740 = vld [vmem:[%s1 + $0x6c] sm:$0xf]
      %v2741 = vld [vmem:[%s1 + $0x70] sm:$0xf]
      %v2742 = vld [vmem:[%s1 + $0x74] sm:$0xf]
      %v2743 = vld [vmem:[%s1 + $0x78] sm:$0xf]
      %v2744 = vld [vmem:[%s1 + $0x7c] sm:$0xf]
      %v2745 = vld [vmem:[%s1 + $0x80] sm:$0xf]
      %v2746 = vld [vmem:[%s1 + $0x84] sm:$0xf]
      %v2747 = vld [vmem:[%s1 + $0x88] sm:$0xf]
      %v2748 = vld [vmem:[%s1 + $0x8c] sm:$0xf]
      %v2749 = vld [vmem:[%s1 + $0x90] sm:$0xf]
      %v2750 = vld [vmem:[%s1 + $0x94] sm:$0xf]
      %v2751 = vld [vmem:[%s1 + $0x98] sm:$0xf]
      %v2752 = vld [vmem:[%s1 + $0x9c] sm:$0xf]
      %v2753 = vld [vmem:[%s1 + $0xa0] sm:$0xf]
      %v2754 = vld [vmem:[%s1 + $0xa4] sm:$0xf]
      %v2755 = vld [vmem:[%s1 + $0xa8] sm:$0xf]
      %v2756 = vld [vmem:[%s1 + $0xac] sm:$0xf]
      %v2757 = vld [vmem:[%s1 + $0xb0] sm:$0xf]
      %v2758 = vld [vmem:[%s1 + $0xb4] sm:$0xf]
      %v2759 = vld [vmem:[%s1 + $0xb8] sm:$0xf]
      %v2760 = vld [vmem:[%s1 + $0xbc] sm:$0xf]
      %v2761 = vld [vmem:[%s1 + $0xc0] sm:$0xf]
      %v2762 = vld [vmem:[%s1 + $0xc4] sm:$0xf]
      %v2763 = vld [vmem:[%s1 + $0xc8] sm:$0xf]
      %v2764 = vld [vmem:[%s1 + $0xcc] sm:$0xf]
      %v2765 = vld [vmem:[%s1 + $0xd0] sm:$0xf]
      %v2766 = vld [vmem:[%s1 + $0xd4] sm:$0xf]
      %v2767 = vld [vmem:[%s1 + $0xd8] sm:$0xf]
      %v2768 = vld [vmem:[%s1 + $0xdc] sm:$0xf]
      %v2769 = vld [vmem:[%s1 + $0xe0] sm:$0xf]
      %v2770 = vld [vmem:[%s1 + $0xe4] sm:$0xf]
      %v2771 = vld [vmem:[%s1 + $0xe8] sm:$0xf]
      %v2772 = vld [vmem:[%s1 + $0xec] sm:$0xf]
      %v2773 = vld [vmem:[%s1 + $0xf0] sm:$0xf]
      %v2774 = vld [vmem:[%s1 + $0xf4] sm:$0xf]
      %v2775 = vld [vmem:[%s1 + $0xf8] sm:$0xf]
      %v2776 = vld [vmem:[%s1 + $0xfc] sm:$0xf]
      %v2777 = vld [vmem:[%s1 + $0x100] sm:$0xf]
      %v2778 = vld [vmem:[%s1 + $0x104] sm:$0xf]
      %v2779 = vld [vmem:[%s1 + $0x108] sm:$0xf]
      %v2780 = vld [vmem:[%s1 + $0x10c] sm:$0xf]
      %v2781 = vld [vmem:[%s1 + $0x110] sm:$0xf]
      %v2782 = vld [vmem:[%s1 + $0x114] sm:$0xf]
      %v2783 = vld [vmem:[%s1 + $0x118] sm:$0xf]
      %v2784 = vld [vmem:[%s1 + $0x11c] sm:$0xf]
      %v2857 = vunpack.c.l.b16 %v2713
      %v2858 = vunpack.c.l.b16 %v2714
      %v2859 = vunpack.c.l.b16 %v2715
      %v2860 = vunpack.c.l.b16 %v2716
      %v2861 = vunpack.c.l.b16 %v2717
      %v2862 = vunpack.c.l.b16 %v2718
      %v2863 = vunpack.c.l.b16 %v2719
      %v2864 = vunpack.c.l.b16 %v2720
      %v2865 = vunpack.c.l.b16 %v2721
      %v2866 = vunpack.c.l.b16 %v2722
      %v2867 = vunpack.c.l.b16 %v2723
      %v2868 = vunpack.c.l.b16 %v2724
      %v2869 = vunpack.c.l.b16 %v2725
      %v2870 = vunpack.c.l.b16 %v2726
      %v2871 = vunpack.c.l.b16 %v2727
      %v2872 = vunpack.c.l.b16 %v2728
      %v2873 = vunpack.c.l.b16 %v2729
      %v2874 = vunpack.c.l.b16 %v2730
      %v2875 = vunpack.c.l.b16 %v2731
      %v2876 = vunpack.c.l.b16 %v2732
      %v2877 = vunpack.c.l.b16 %v2733
      %v2878 = vunpack.c.l.b16 %v2734
      %v2879 = vunpack.c.l.b16 %v2735
      %v2880 = vunpack.c.l.b16 %v2736
      %v2881 = vunpack.c.l.b16 %v2737
      %v2882 = vunpack.c.l.b16 %v2738
      %v2883 = vunpack.c.l.b16 %v2739
      %v2884 = vunpack.c.l.b16 %v2740
      %v2885 = vunpack.c.l.b16 %v2741
      %v2886 = vunpack.c.l.b16 %v2742
      %v2887 = vunpack.c.l.b16 %v2743
      %v2888 = vunpack.c.l.b16 %v2744
      %v2889 = vunpack.c.l.b16 %v2745
      %v2890 = vunpack.c.l.b16 %v2746
      %v2891 = vunpack.c.l.b16 %v2747
      %v2892 = vunpack.c.l.b16 %v2748
      %v2893 = vunpack.c.l.b16 %v2749
      %v2894 = vunpack.c.l.b16 %v2750
      %v2895 = vunpack.c.l.b16 %v2751
      %v2896 = vunpack.c.l.b16 %v2752
      %v2897 = vunpack.c.l.b16 %v2753
      %v2898 = vunpack.c.l.b16 %v2754
      %v2899 = vunpack.c.l.b16 %v2755
      %v2900 = vunpack.c.l.b16 %v2756
      %v2901 = vunpack.c.l.b16 %v2757
      %v2902 = vunpack.c.l.b16 %v2758
      %v2903 = vunpack.c.l.b16 %v2759
      %v2904 = vunpack.c.l.b16 %v2760
      %v2905 = vunpack.c.l.b16 %v2761
      %v2906 = vunpack.c.l.b16 %v2762
      %v2907 = vunpack.c.l.b16 %v2763
      %v2908 = vunpack.c.l.b16 %v2764
      %v2909 = vunpack.c.l.b16 %v2765
      %v2910 = vunpack.c.l.b16 %v2766
      %v2911 = vunpack.c.l.b16 %v2767
      %v2912 = vunpack.c.l.b16 %v2768
      %v2913 = vunpack.c.l.b16 %v2769
      %v2914 = vunpack.c.l.b16 %v2770
      %v2915 = vunpack.c.l.b16 %v2771
      %v2916 = vunpack.c.l.b16 %v2772
      %v2917 = vunpack.c.l.b16 %v2773
      %v2918 = vunpack.c.l.b16 %v2774
      %v2919 = vunpack.c.l.b16 %v2775
      %v2920 = vunpack.c.l.b16 %v2776
      %v2921 = vunpack.c.l.b16 %v2777
      %v2922 = vunpack.c.l.b16 %v2778
      %v2923 = vunpack.c.l.b16 %v2779
      %v2924 = vunpack.c.l.b16 %v2780
      %v2925 = vunpack.c.l.b16 %v2781
      %v2926 = vunpack.c.l.b16 %v2782
      %v2927 = vunpack.c.l.b16 %v2783
      %v2928 = vunpack.c.l.b16 %v2784
      %v2929 = vpack.c.b16 %v2858, %v2857
      %v2930 = vpack.c.b16 %v2860, %v2859
      %v2931 = vpack.c.b16 %v2862, %v2861
      %v2932 = vpack.c.b16 %v2864, %v2863
      %v2933 = vpack.c.b16 %v2866, %v2865
      %v2934 = vpack.c.b16 %v2868, %v2867
      %v2935 = vpack.c.b16 %v2870, %v2869
      %v2936 = vpack.c.b16 %v2872, %v2871
      %v2937 = vpack.c.b16 %v2874, %v2873
      %v2938 = vpack.c.b16 %v2876, %v2875
      %v2939 = vpack.c.b16 %v2878, %v2877
      %v2940 = vpack.c.b16 %v2880, %v2879
      %v2941 = vpack.c.b16 %v2882, %v2881
      %v2942 = vpack.c.b16 %v2884, %v2883
      %v2943 = vpack.c.b16 %v2886, %v2885
      %v2944 = vpack.c.b16 %v2888, %v2887
      %v2945 = vpack.c.b16 %v2890, %v2889
      %v2946 = vpack.c.b16 %v2892, %v2891
      %v2947 = vpack.c.b16 %v2894, %v2893
      %v2948 = vpack.c.b16 %v2896, %v2895
      %v2949 = vpack.c.b16 %v2898, %v2897
      %v2950 = vpack.c.b16 %v2900, %v2899
      %v2951 = vpack.c.b16 %v2902, %v2901
      %v2952 = vpack.c.b16 %v2904, %v2903
      %v2953 = vpack.c.b16 %v2906, %v2905
      %v2954 = vpack.c.b16 %v2908, %v2907
      %v2955 = vpack.c.b16 %v2910, %v2909
      %v2956 = vpack.c.b16 %v2912, %v2911
      %v2957 = vpack.c.b16 %v2914, %v2913
      %v2958 = vpack.c.b16 %v2916, %v2915
      %v2959 = vpack.c.b16 %v2918, %v2917
      %v2960 = vpack.c.b16 %v2920, %v2919
      %v2961 = vpack.c.b16 %v2922, %v2921
      %v2962 = vpack.c.b16 %v2924, %v2923
      %v2963 = vpack.c.b16 %v2926, %v2925
      %v2964 = vpack.c.b16 %v2928, %v2927
      %v3002 = vsel %vm2456, %v2440, 0
      %v3005 = vsel %vm2456, %v2441, 0
      %v3008 = vsel %vm2456, %v2442, 0
      %v3011 = vsel %vm2456, %v2443, 0
      %v3014 = vsel %vm2456, %v2444, 0
      %v3017 = vsel %vm2456, %v2445, 0
      %v3020 = vsel %vm2456, %v2446, 0
      %v3023 = vsel %vm2456, %v2447, 0
      %v3026 = vsel %vm2456, %v2448, 0
      %v3029 = vsel %vm2456, %v2449, 0
      %v3032 = vsel %vm2456, %v2450, 0
      %v3035 = vsel %vm2456, %v2451, 0
      %v3038 = vsel %vm2456, %v2452, 0
      %v3041 = vsel %vm2456, %v2453, 0
      %v3044 = vsel %vm2456, %v2454, 0
      %v3047 = vsel %vm2456, %v2455, 0
      %3049 = vmatprep.subr.bf16.mxu0 0
      %3050 = vmatpush1.bf16.msra.mxu0 %v2936
      %3051 = vmatprep.subr.bf16.mxu0 0
      %3052 = vmatpush1.bf16.msra.mxu0 %v2935
      %3053 = vmatprep.subr.bf16.mxu0 0
      %3054 = vmatpush1.bf16.msra.mxu0 %v2934
      %3055 = vmatprep.subr.bf16.mxu0 0
      %3056 = vmatpush1.bf16.msra.mxu0 %v2933
      %3057 = vmatprep.subr.bf16.mxu0 0
      %3058 = vmatpush1.bf16.msra.mxu0 %v2932
      %3059 = vmatprep.subr.bf16.mxu0 0
      %3060 = vmatpush1.bf16.msra.mxu0 %v2931
      %3061 = vmatprep.subr.bf16.mxu0 0
      %3062 = vmatpush1.bf16.msra.mxu0 %v2930
      %3063 = vmatprep.subr.bf16.mxu0 0
      %3064 = vmatpush1.bf16.msra.mxu0 %v2929
      %3065 = vmatprep.subr.bf16.mxu0 0
      %3066 = vmatpush2.bf16.msra.mxu0 %v2944
      %3067 = vmatprep.subr.bf16.mxu0 0
      %3068 = vmatpush2.bf16.msra.mxu0 %v2943
      %3069 = vmatprep.subr.bf16.mxu0 0
      %3070 = vmatpush2.bf16.msra.mxu0 %v2942
      %3071 = vmatprep.subr.bf16.mxu0 0
      %3072 = vmatpush2.bf16.msra.mxu0 %v2941
      %3073 = vmatprep.subr.bf16.mxu0 0
      %3074 = vmatpush2.bf16.msra.mxu0 %v2940
      %3075 = vmatprep.subr.bf16.mxu0 0
      %3076 = vmatpush2.bf16.msra.mxu0 %v2939
      %3077 = vmatprep.subr.bf16.mxu0 0
      %3078 = vmatpush2.bf16.msra.mxu0 %v2938
      %3079 = vmatprep.subr.bf16.mxu0 0
      %3080 = vmatpush2.bf16.msra.mxu0 %v2937
      %3081 = vmatprep.mubr.bf16.mxu0 %v2523
      %3082 = vmatmul.mubr.bf16.gmra.mxu0 %v2459
      %v3083 = vpop.f32.mrf.mxu0
      %v3084 = vadd.f32 0.0, %v3083
      %v3085 = vpop.f32.mrf.mxu0
      %v3086 = vpop.f32.mrf.mxu0
      %v3087 = vadd.f32 0.0, %v3086
      %v3088 = vpop.f32.mrf.mxu0
      %3089 = vmatprep.mubr.bf16.mxu0 %v2527
      %3090 = vmatmul.mubr.bf16.gmra.mxu0 %v2463
      %v3091 = vpop.f32.mrf.mxu0
      %v3092 = vadd.f32 0.0, %v3091
      %v3093 = vpop.f32.mrf.mxu0
      %v3094 = vpop.f32.mrf.mxu0
      %v3095 = vadd.f32 0.0, %v3094
      %v3096 = vpop.f32.mrf.mxu0
      %3097 = vmatprep.mubr.bf16.mxu0 %v2531
      %3098 = vmatmul.mubr.bf16.gmra.mxu0 %v2467
      %v3099 = vpop.f32.mrf.mxu0
      %v3100 = vadd.f32 0.0, %v3099
      %v3101 = vpop.f32.mrf.mxu0
      %v3102 = vpop.f32.mrf.mxu0
      %v3103 = vadd.f32 0.0, %v3102
      %v3104 = vpop.f32.mrf.mxu0
      %3105 = vmatprep.mubr.bf16.mxu0 %v2535
      %3106 = vmatmul.mubr.bf16.gmra.mxu0 %v2471
      %v3107 = vpop.f32.mrf.mxu0
      %v3108 = vadd.f32 0.0, %v3107
      %v3109 = vpop.f32.mrf.mxu0
      %v3110 = vpop.f32.mrf.mxu0
      %v3111 = vadd.f32 0.0, %v3110
      %v3112 = vpop.f32.mrf.mxu0
      %3113 = vmatprep.mubr.bf16.mxu0 %v2539
      %3114 = vmatmul.mubr.bf16.gmra.mxu0 %v2475
      %v3115 = vpop.f32.mrf.mxu0
      %v3116 = vadd.f32 0.0, %v3115
      %v3117 = vpop.f32.mrf.mxu0
      %v3118 = vpop.f32.mrf.mxu0
      %v3119 = vadd.f32 0.0, %v3118
      %v3120 = vpop.f32.mrf.mxu0
      %3121 = vmatprep.mubr.bf16.mxu0 %v2543
      %3122 = vmatmul.mubr.bf16.gmra.mxu0 %v2479
      %v3123 = vpop.f32.mrf.mxu0
      %v3124 = vadd.f32 0.0, %v3123
      %v3125 = vpop.f32.mrf.mxu0
      %v3126 = vpop.f32.mrf.mxu0
      %v3127 = vadd.f32 0.0, %v3126
      %v3128 = vpop.f32.mrf.mxu0
      %3129 = vmatprep.mubr.bf16.mxu0 %v2547
      %3130 = vmatmul.mubr.bf16.gmra.mxu0 %v2483
      %v3131 = vpop.f32.mrf.mxu0
      %v3132 = vadd.f32 0.0, %v3131
      %v3133 = vpop.f32.mrf.mxu0
      %v3134 = vpop.f32.mrf.mxu0
      %v3135 = vadd.f32 0.0, %v3134
      %v3136 = vpop.f32.mrf.mxu0
      %3137 = vmatprep.mubr.bf16.mxu0 %v2551
      %3138 = vmatmul.mubr.bf16.gmra.mxu0 %v2487
      %v3139 = vpop.f32.mrf.mxu0
      %v3140 = vadd.f32 0.0, %v3139
      %v3141 = vpop.f32.mrf.mxu0
      %v3142 = vpop.f32.mrf.mxu0
      %v3143 = vadd.f32 0.0, %v3142
      %v3144 = vpop.f32.mrf.mxu0
      %3145 = vmatprep.mubr.bf16.mxu0 %v2555
      %3146 = vmatmul.mubr.bf16.gmra.mxu0 %v2491
      %v3147 = vpop.f32.mrf.mxu0
      %v3148 = vadd.f32 0.0, %v3147
      %v3149 = vpop.f32.mrf.mxu0
      %v3150 = vpop.f32.mrf.mxu0
      %v3151 = vadd.f32 0.0, %v3150
      %v3152 = vpop.f32.mrf.mxu0
      %3153 = vmatprep.mubr.bf16.mxu0 %v2559
      %3154 = vmatmul.mubr.bf16.gmra.mxu0 %v2495
      %v3155 = vpop.f32.mrf.mxu0
      %v3156 = vadd.f32 0.0, %v3155
      %v3157 = vpop.f32.mrf.mxu0
      %v3158 = vpop.f32.mrf.mxu0
      %v3159 = vadd.f32 0.0, %v3158
      %v3160 = vpop.f32.mrf.mxu0
      %3161 = vmatprep.mubr.bf16.mxu0 %v2563
      %3162 = vmatmul.mubr.bf16.gmra.mxu0 %v2499
      %v3163 = vpop.f32.mrf.mxu0
      %v3164 = vadd.f32 0.0, %v3163
      %v3165 = vpop.f32.mrf.mxu0
      %v3166 = vpop.f32.mrf.mxu0
      %v3167 = vadd.f32 0.0, %v3166
      %v3168 = vpop.f32.mrf.mxu0
      %3169 = vmatprep.mubr.bf16.mxu0 %v2567
      %3170 = vmatmul.mubr.bf16.gmra.mxu0 %v2503
      %v3171 = vpop.f32.mrf.mxu0
      %v3172 = vadd.f32 0.0, %v3171
      %v3173 = vpop.f32.mrf.mxu0
      %v3174 = vpop.f32.mrf.mxu0
      %v3175 = vadd.f32 0.0, %v3174
      %v3176 = vpop.f32.mrf.mxu0
      %3177 = vmatprep.mubr.bf16.mxu0 %v2571
      %3178 = vmatmul.mubr.bf16.gmra.mxu0 %v2507
      %v3179 = vpop.f32.mrf.mxu0
      %v3180 = vadd.f32 0.0, %v3179
      %v3181 = vpop.f32.mrf.mxu0
      %v3182 = vpop.f32.mrf.mxu0
      %v3183 = vadd.f32 0.0, %v3182
      %v3184 = vpop.f32.mrf.mxu0
      %3185 = vmatprep.mubr.bf16.mxu0 %v2575
      %3186 = vmatmul.mubr.bf16.gmra.mxu0 %v2511
      %v3187 = vpop.f32.mrf.mxu0
      %v3188 = vadd.f32 0.0, %v3187
      %v3189 = vpop.f32.mrf.mxu0
      %v3190 = vpop.f32.mrf.mxu0
      %v3191 = vadd.f32 0.0, %v3190
      %v3192 = vpop.f32.mrf.mxu0
      %3193 = vmatprep.mubr.bf16.mxu0 %v2579
      %3194 = vmatmul.mubr.bf16.gmra.mxu0 %v2515
      %v3195 = vpop.f32.mrf.mxu0
      %v3196 = vadd.f32 0.0, %v3195
      %v3197 = vpop.f32.mrf.mxu0
      %v3198 = vpop.f32.mrf.mxu0
      %v3199 = vadd.f32 0.0, %v3198
      %v3200 = vpop.f32.mrf.mxu0
      %3201 = vmatprep.mubr.bf16.mxu0 %v2583
      %3202 = vmatmul.mubr.bf16.gmra.mxu0 %v2519
      %v3203 = vpop.f32.mrf.mxu0
      %v3204 = vadd.f32 0.0, %v3203
      %v3205 = vpop.f32.mrf.mxu0
      %v3206 = vpop.f32.mrf.mxu0
      %v3207 = vadd.f32 0.0, %v3206
      %v3208 = vpop.f32.mrf.mxu0
      %3209 = vdwg.mxu0
      %3210 = vmatprep.subr.bf16.mxu0 0
      %3211 = vmatpush1.bf16.msra.mxu0 %v2952
      %3212 = vmatprep.subr.bf16.mxu0 0
      %3213 = vmatpush1.bf16.msra.mxu0 %v2951
      %3214 = vmatprep.subr.bf16.mxu0 0
      %3215 = vmatpush1.bf16.msra.mxu0 %v2950
      %3216 = vmatprep.subr.bf16.mxu0 0
      %3217 = vmatpush1.bf16.msra.mxu0 %v2949
      %3218 = vmatprep.subr.bf16.mxu0 0
      %3219 = vmatpush1.bf16.msra.mxu0 %v2948
      %3220 = vmatprep.subr.bf16.mxu0 0
      %3221 = vmatpush1.bf16.msra.mxu0 %v2947
      %3222 = vmatprep.subr.bf16.mxu0 0
      %3223 = vmatpush1.bf16.msra.mxu0 %v2946
      %3224 = vmatprep.subr.bf16.mxu0 0
      %3225 = vmatpush1.bf16.msra.mxu0 %v2945
      %3226 = vmatprep.subr.bf16.mxu0 0
      %3227 = vmatpush2.bf16.msra.mxu0 %v2960
      %3228 = vmatprep.subr.bf16.mxu0 0
      %3229 = vmatpush2.bf16.msra.mxu0 %v2959
      %3230 = vmatprep.subr.bf16.mxu0 0
      %3231 = vmatpush2.bf16.msra.mxu0 %v2958
      %3232 = vmatprep.subr.bf16.mxu0 0
      %3233 = vmatpush2.bf16.msra.mxu0 %v2957
      %3234 = vmatprep.subr.bf16.mxu0 0
      %3235 = vmatpush2.bf16.msra.mxu0 %v2956
      %3236 = vmatprep.subr.bf16.mxu0 0
      %3237 = vmatpush2.bf16.msra.mxu0 %v2955
      %3238 = vmatprep.subr.bf16.mxu0 0
      %3239 = vmatpush2.bf16.msra.mxu0 %v2954
      %3240 = vmatprep.subr.bf16.mxu0 0
      %3241 = vmatpush2.bf16.msra.mxu0 %v2953
      %3242 = vmatprep.mubr.bf16.mxu0 %v2651
      %3243 = vmatmul.mubr.bf16.gmra.mxu0 %v2587
      %v3244 = vpop.f32.mrf.mxu0
      %v3245 = vadd.f32 %v3084, %v3244
      %v3246 = vpop.f32.mrf.mxu0
      %v3247 = vpop.f32.mrf.mxu0
      %v3248 = vadd.f32 %v3087, %v3247
      %v3249 = vpop.f32.mrf.mxu0
      %3250 = vmatprep.mubr.bf16.mxu0 %v2655
      %3251 = vmatmul.mubr.bf16.gmra.mxu0 %v2591
      %v3252 = vpop.f32.mrf.mxu0
      %v3253 = vadd.f32 %v3092, %v3252
      %v3254 = vpop.f32.mrf.mxu0
      %v3255 = vpop.f32.mrf.mxu0
      %v3256 = vadd.f32 %v3095, %v3255
      %v3257 = vpop.f32.mrf.mxu0
      %3258 = vmatprep.mubr.bf16.mxu0 %v2659
      %3259 = vmatmul.mubr.bf16.gmra.mxu0 %v2595
      %v3260 = vpop.f32.mrf.mxu0
      %v3261 = vadd.f32 %v3100, %v3260
      %v3262 = vpop.f32.mrf.mxu0
      %v3263 = vpop.f32.mrf.mxu0
      %v3264 = vadd.f32 %v3103, %v3263
      %v3265 = vpop.f32.mrf.mxu0
      %3266 = vmatprep.mubr.bf16.mxu0 %v2663
      %3267 = vmatmul.mubr.bf16.gmra.mxu0 %v2599
      %v3268 = vpop.f32.mrf.mxu0
      %v3269 = vadd.f32 %v3108, %v3268
      %v3270 = vpop.f32.mrf.mxu0
      %v3271 = vpop.f32.mrf.mxu0
      %v3272 = vadd.f32 %v3111, %v3271
      %v3273 = vpop.f32.mrf.mxu0
      %3274 = vmatprep.mubr.bf16.mxu0 %v2667
      %3275 = vmatmul.mubr.bf16.gmra.mxu0 %v2603
      %v3276 = vpop.f32.mrf.mxu0
      %v3277 = vadd.f32 %v3116, %v3276
      %v3278 = vpop.f32.mrf.mxu0
      %v3279 = vpop.f32.mrf.mxu0
      %v3280 = vadd.f32 %v3119, %v3279
      %v3281 = vpop.f32.mrf.mxu0
      %3282 = vmatprep.mubr.bf16.mxu0 %v2671
      %3283 = vmatmul.mubr.bf16.gmra.mxu0 %v2607
      %v3284 = vpop.f32.mrf.mxu0
      %v3285 = vadd.f32 %v3124, %v3284
      %v3286 = vpop.f32.mrf.mxu0
      %v3287 = vpop.f32.mrf.mxu0
      %v3288 = vadd.f32 %v3127, %v3287
      %v3289 = vpop.f32.mrf.mxu0
      %3290 = vmatprep.mubr.bf16.mxu0 %v2675
      %3291 = vmatmul.mubr.bf16.gmra.mxu0 %v2611
      %v3292 = vpop.f32.mrf.mxu0
      %v3293 = vadd.f32 %v3132, %v3292
      %v3294 = vpop.f32.mrf.mxu0
      %v3295 = vpop.f32.mrf.mxu0
      %v3296 = vadd.f32 %v3135, %v3295
      %v3297 = vpop.f32.mrf.mxu0
      %3298 = vmatprep.mubr.bf16.mxu0 %v2679
      %3299 = vmatmul.mubr.bf16.gmra.mxu0 %v2615
      %v3300 = vpop.f32.mrf.mxu0
      %v3301 = vadd.f32 %v3140, %v3300
      %v3302 = vpop.f32.mrf.mxu0
      %v3303 = vpop.f32.mrf.mxu0
      %v3304 = vadd.f32 %v3143, %v3303
      %v3305 = vpop.f32.mrf.mxu0
      %3306 = vmatprep.mubr.bf16.mxu0 %v2683
      %3307 = vmatmul.mubr.bf16.gmra.mxu0 %v2619
      %v3308 = vpop.f32.mrf.mxu0
      %v3309 = vadd.f32 %v3148, %v3308
      %v3310 = vpop.f32.mrf.mxu0
      %v3311 = vpop.f32.mrf.mxu0
      %v3312 = vadd.f32 %v3151, %v3311
      %v3313 = vpop.f32.mrf.mxu0
      %3314 = vmatprep.mubr.bf16.mxu0 %v2687
      %3315 = vmatmul.mubr.bf16.gmra.mxu0 %v2623
      %v3316 = vpop.f32.mrf.mxu0
      %v3317 = vadd.f32 %v3156, %v3316
      %v3318 = vpop.f32.mrf.mxu0
      %v3319 = vpop.f32.mrf.mxu0
      %v3320 = vadd.f32 %v3159, %v3319
      %v3321 = vpop.f32.mrf.mxu0
      %3322 = vmatprep.mubr.bf16.mxu0 %v2691
      %3323 = vmatmul.mubr.bf16.gmra.mxu0 %v2627
      %v3324 = vpop.f32.mrf.mxu0
      %v3325 = vadd.f32 %v3164, %v3324
      %v3326 = vpop.f32.mrf.mxu0
      %v3327 = vpop.f32.mrf.mxu0
      %v3328 = vadd.f32 %v3167, %v3327
      %v3329 = vpop.f32.mrf.mxu0
      %3330 = vmatprep.mubr.bf16.mxu0 %v2695
      %3331 = vmatmul.mubr.bf16.gmra.mxu0 %v2631
      %v3332 = vpop.f32.mrf.mxu0
      %v3333 = vadd.f32 %v3172, %v3332
      %v3334 = vpop.f32.mrf.mxu0
      %v3335 = vpop.f32.mrf.mxu0
      %v3336 = vadd.f32 %v3175, %v3335
      %v3337 = vpop.f32.mrf.mxu0
      %3338 = vmatprep.mubr.bf16.mxu0 %v2699
      %3339 = vmatmul.mubr.bf16.gmra.mxu0 %v2635
      %v3340 = vpop.f32.mrf.mxu0
      %v3341 = vadd.f32 %v3180, %v3340
      %v3342 = vpop.f32.mrf.mxu0
      %v3343 = vpop.f32.mrf.mxu0
      %v3344 = vadd.f32 %v3183, %v3343
      %v3345 = vpop.f32.mrf.mxu0
      %3346 = vmatprep.mubr.bf16.mxu0 %v2703
      %3347 = vmatmul.mubr.bf16.gmra.mxu0 %v2639
      %v3348 = vpop.f32.mrf.mxu0
      %v3349 = vadd.f32 %v3188, %v3348
      %v3350 = vpop.f32.mrf.mxu0
      %v3351 = vpop.f32.mrf.mxu0
      %v3352 = vadd.f32 %v3191, %v3351
      %v3353 = vpop.f32.mrf.mxu0
      %3354 = vmatprep.mubr.bf16.mxu0 %v2707
      %3355 = vmatmul.mubr.bf16.gmra.mxu0 %v2643
      %v3356 = vpop.f32.mrf.mxu0
      %v3357 = vadd.f32 %v3196, %v3356
      %v3358 = vpop.f32.mrf.mxu0
      %v3359 = vpop.f32.mrf.mxu0
      %v3360 = vadd.f32 %v3199, %v3359
      %v3361 = vpop.f32.mrf.mxu0
      %3362 = vmatprep.mubr.bf16.mxu0 %v2711
      %3363 = vmatmul.mubr.bf16.gmra.mxu0 %v2647
      %v3364 = vpop.f32.mrf.mxu0
      %v3365 = vadd.f32 %v3204, %v3364
      %v3366 = vpop.f32.mrf.mxu0
      %v3367 = vpop.f32.mrf.mxu0
      %v3368 = vadd.f32 %v3207, %v3367
      %v3369 = vpop.f32.mrf.mxu0
      %3370 = vdwg.mxu0
      %3371 = vmatprep.subr.bf16.mxu0 0
      %3372 = vmatpush1.bf16.msra.mxu0 0
      %3373 = vmatprep.subr.bf16.mxu0 0
      %3374 = vmatpush1.bf16.msra.mxu0 0
      %3375 = vmatprep.subr.bf16.mxu0 0
      %3376 = vmatpush1.bf16.msra.mxu0 0
      %3377 = vmatprep.subr.bf16.mxu0 0
      %3378 = vmatpush1.bf16.msra.mxu0 0
      %3379 = vmatprep.subr.bf16.mxu0 0
      %3380 = vmatpush1.bf16.msra.mxu0 %v2964
      %3381 = vmatprep.subr.bf16.mxu0 0
      %3382 = vmatpush1.bf16.msra.mxu0 %v2963
      %3383 = vmatprep.subr.bf16.mxu0 0
      %3384 = vmatpush1.bf16.msra.mxu0 %v2962
      %3385 = vmatprep.subr.bf16.mxu0 0
      %3386 = vmatpush1.bf16.msra.mxu0 %v2961
      %3387 = vmatprep.subr.bf16.mxu0 0
      %3388 = vmatpush2.bf16.msra.mxu0 0
      %3389 = vmatprep.subr.bf16.mxu0 0
      %3390 = vmatpush2.bf16.msra.mxu0 0
      %3391 = vmatprep.subr.bf16.mxu0 0
      %3392 = vmatpush2.bf16.msra.mxu0 0
      %3393 = vmatprep.subr.bf16.mxu0 0
      %3394 = vmatpush2.bf16.msra.mxu0 0
      %3395 = vmatprep.subr.bf16.mxu0 0
      %3396 = vmatpush2.bf16.msra.mxu0 0
      %3397 = vmatprep.subr.bf16.mxu0 0
      %3398 = vmatpush2.bf16.msra.mxu0 0
      %3399 = vmatprep.subr.bf16.mxu0 0
      %3400 = vmatpush2.bf16.msra.mxu0 0
      %3401 = vmatprep.subr.bf16.mxu0 0
      %3402 = vmatpush2.bf16.msra.mxu0 0
      %3403 = vmatprep.mubr.bf16.mxu0 0
      %3404 = vmatmul.mubr.bf16.gmra.mxu0 %v3002
      %v3405 = vpop.f32.mrf.mxu0
      %v3406 = vadd.f32 %v3245, %v3405
      %v3407 = vpop.f32.mrf.mxu0
      %v3408 = vpop.f32.mrf.mxu0
      %v3409 = vadd.f32 %v3248, %v3408
      %v3410 = vpop.f32.mrf.mxu0
      %3411 = vmatprep.mubr.bf16.mxu0 0
      %3412 = vmatmul.mubr.bf16.gmra.mxu0 %v3005
      %v3413 = vpop.f32.mrf.mxu0
      %v3414 = vadd.f32 %v3253, %v3413
      %v3415 = vpop.f32.mrf.mxu0
      %v3416 = vpop.f32.mrf.mxu0
      %v3417 = vadd.f32 %v3256, %v3416
      %v3418 = vpop.f32.mrf.mxu0
      %3419 = vmatprep.mubr.bf16.mxu0 0
      %3420 = vmatmul.mubr.bf16.gmra.mxu0 %v3008
      %v3421 = vpop.f32.mrf.mxu0
      %v3422 = vadd.f32 %v3261, %v3421
      %v3423 = vpop.f32.mrf.mxu0
      %v3424 = vpop.f32.mrf.mxu0
      %v3425 = vadd.f32 %v3264, %v3424
      %v3426 = vpop.f32.mrf.mxu0
      %3427 = vmatprep.mubr.bf16.mxu0 0
      %3428 = vmatmul.mubr.bf16.gmra.mxu0 %v3011
      %v3429 = vpop.f32.mrf.mxu0
      %v3430 = vadd.f32 %v3269, %v3429
      %v3431 = vpop.f32.mrf.mxu0
      %v3432 = vpop.f32.mrf.mxu0
      %v3433 = vadd.f32 %v3272, %v3432
      %v3434 = vpop.f32.mrf.mxu0
      %3435 = vmatprep.mubr.bf16.mxu0 0
      %3436 = vmatmul.mubr.bf16.gmra.mxu0 %v3014
      %v3437 = vpop.f32.mrf.mxu0
      %v3438 = vadd.f32 %v3277, %v3437
      %v3439 = vpop.f32.mrf.mxu0
      %v3440 = vpop.f32.mrf.mxu0
      %v3441 = vadd.f32 %v3280, %v3440
      %v3442 = vpop.f32.mrf.mxu0
      %3443 = vmatprep.mubr.bf16.mxu0 0
      %3444 = vmatmul.mubr.bf16.gmra.mxu0 %v3017
      %v3445 = vpop.f32.mrf.mxu0
      %v3446 = vadd.f32 %v3285, %v3445
      %v3447 = vpop.f32.mrf.mxu0
      %v3448 = vpop.f32.mrf.mxu0
      %v3449 = vadd.f32 %v3288, %v3448
      %v3450 = vpop.f32.mrf.mxu0
      %3451 = vmatprep.mubr.bf16.mxu0 0
      %3452 = vmatmul.mubr.bf16.gmra.mxu0 %v3020
      %v3453 = vpop.f32.mrf.mxu0
      %v3454 = vadd.f32 %v3293, %v3453
      %v3455 = vpop.f32.mrf.mxu0
      %v3456 = vpop.f32.mrf.mxu0
      %v3457 = vadd.f32 %v3296, %v3456
      %v3458 = vpop.f32.mrf.mxu0
      %3459 = vmatprep.mubr.bf16.mxu0 0
      %3460 = vmatmul.mubr.bf16.gmra.mxu0 %v3023
      %v3461 = vpop.f32.mrf.mxu0
      %v3462 = vadd.f32 %v3301, %v3461
      %v3463 = vpop.f32.mrf.mxu0
      %v3464 = vpop.f32.mrf.mxu0
      %v3465 = vadd.f32 %v3304, %v3464
      %v3466 = vpop.f32.mrf.mxu0
      %3467 = vmatprep.mubr.bf16.mxu0 0
      %3468 = vmatmul.mubr.bf16.gmra.mxu0 %v3026
      %v3469 = vpop.f32.mrf.mxu0
      %v3470 = vadd.f32 %v3309, %v3469
      %v3471 = vpop.f32.mrf.mxu0
      %v3472 = vpop.f32.mrf.mxu0
      %v3473 = vadd.f32 %v3312, %v3472
      %v3474 = vpop.f32.mrf.mxu0
      %3475 = vmatprep.mubr.bf16.mxu0 0
      %3476 = vmatmul.mubr.bf16.gmra.mxu0 %v3029
      %v3477 = vpop.f32.mrf.mxu0
      %v3478 = vadd.f32 %v3317, %v3477
      %v3479 = vpop.f32.mrf.mxu0
      %v3480 = vpop.f32.mrf.mxu0
      %v3481 = vadd.f32 %v3320, %v3480
      %v3482 = vpop.f32.mrf.mxu0
      %3483 = vmatprep.mubr.bf16.mxu0 0
      %3484 = vmatmul.mubr.bf16.gmra.mxu0 %v3032
      %v3485 = vpop.f32.mrf.mxu0
      %v3486 = vadd.f32 %v3325, %v3485
      %v3487 = vpop.f32.mrf.mxu0
      %v3488 = vpop.f32.mrf.mxu0
      %v3489 = vadd.f32 %v3328, %v3488
      %v3490 = vpop.f32.mrf.mxu0
      %3491 = vmatprep.mubr.bf16.mxu0 0
      %3492 = vmatmul.mubr.bf16.gmra.mxu0 %v3035
      %v3493 = vpop.f32.mrf.mxu0
      %v3494 = vadd.f32 %v3333, %v3493
      %v3495 = vpop.f32.mrf.mxu0
      %v3496 = vpop.f32.mrf.mxu0
      %v3497 = vadd.f32 %v3336, %v3496
      %v3498 = vpop.f32.mrf.mxu0
      %3499 = vmatprep.mubr.bf16.mxu0 0
      %3500 = vmatmul.mubr.bf16.gmra.mxu0 %v3038
      %v3501 = vpop.f32.mrf.mxu0
      %v3502 = vadd.f32 %v3341, %v3501
      %v3503 = vpop.f32.mrf.mxu0
      %v3504 = vpop.f32.mrf.mxu0
      %v3505 = vadd.f32 %v3344, %v3504
      %v3506 = vpop.f32.mrf.mxu0
      %3507 = vmatprep.mubr.bf16.mxu0 0
      %3508 = vmatmul.mubr.bf16.gmra.mxu0 %v3041
      %v3509 = vpop.f32.mrf.mxu0
      %v3510 = vadd.f32 %v3349, %v3509
      %v3511 = vpop.f32.mrf.mxu0
      %v3512 = vpop.f32.mrf.mxu0
      %v3513 = vadd.f32 %v3352, %v3512
      %v3514 = vpop.f32.mrf.mxu0
      %3515 = vmatprep.mubr.bf16.mxu0 0
      %3516 = vmatmul.mubr.bf16.gmra.mxu0 %v3044
      %v3517 = vpop.f32.mrf.mxu0
      %v3518 = vadd.f32 %v3357, %v3517
      %v3519 = vpop.f32.mrf.mxu0
      %v3520 = vpop.f32.mrf.mxu0
      %v3521 = vadd.f32 %v3360, %v3520
      %v3522 = vpop.f32.mrf.mxu0
      %3523 = vmatprep.mubr.bf16.mxu0 0
      %3524 = vmatmul.mubr.bf16.gmra.mxu0 %v3047
      %v3525 = vpop.f32.mrf.mxu0
      %v3526 = vadd.f32 %v3365, %v3525
      %v3527 = vpop.f32.mrf.mxu0
      %v3528 = vpop.f32.mrf.mxu0
      %v3529 = vadd.f32 %v3368, %v3528
      %v3530 = vpop.f32.mrf.mxu0
      %3531 = vdwg.mxu0
      %v3532 = vld [vmem:[%s2] sm:$0x1]
      %v3534 = vlaneseq
      %v3535 = vshrl.u32 %v3534, 7
      %v3536 = vsub.s32 0, %v3535
      %v3537 = vrot.slane %v3532, %v3536
      %v3539 = vmul.f32 %v3406, %v3537
      %v3540 = vmul.f32 %v3409, %v3537
      %v3541 = vmul.f32 %v3414, %v3537
      %v3542 = vmul.f32 %v3417, %v3537
      %v3543 = vmul.f32 %v3422, %v3537
      %v3544 = vmul.f32 %v3425, %v3537
      %v3545 = vmul.f32 %v3430, %v3537
      %v3546 = vmul.f32 %v3433, %v3537
      %v3547 = vmul.f32 %v3438, %v3537
      %v3548 = vmul.f32 %v3441, %v3537
      %v3549 = vmul.f32 %v3446, %v3537
      %v3550 = vmul.f32 %v3449, %v3537
      %v3551 = vmul.f32 %v3454, %v3537
      %v3552 = vmul.f32 %v3457, %v3537
      %v3553 = vmul.f32 %v3462, %v3537
      %v3554 = vmul.f32 %v3465, %v3537
      %v3555 = vmul.f32 %v3470, %v3537
      %v3556 = vmul.f32 %v3473, %v3537
      %v3557 = vmul.f32 %v3478, %v3537
      %v3558 = vmul.f32 %v3481, %v3537
      %v3559 = vmul.f32 %v3486, %v3537
      %v3560 = vmul.f32 %v3489, %v3537
      %v3561 = vmul.f32 %v3494, %v3537
      %v3562 = vmul.f32 %v3497, %v3537
      %v3563 = vmul.f32 %v3502, %v3537
      %v3564 = vmul.f32 %v3505, %v3537
      %v3565 = vmul.f32 %v3510, %v3537
      %v3566 = vmul.f32 %v3513, %v3537
      %v3567 = vmul.f32 %v3518, %v3537
      %v3568 = vmul.f32 %v3521, %v3537
      %v3569 = vmul.f32 %v3526, %v3537
      %v3570 = vmul.f32 %v3529, %v3537
      %v3571 = vld [vmem:[%s3] sm:$0x1]
      %v3573 = vlaneseq
      %v3574 = vshrl.u32 %v3573, 7
      %v3575 = vsub.s32 0, %v3574
      %v3576 = vrot.slane %v3571, %v3575
      %v3578 = vadd.f32 %v3539, %v3576
      %v3579 = vadd.f32 %v3540, %v3576
      %v3580 = vadd.f32 %v3541, %v3576
      %v3581 = vadd.f32 %v3542, %v3576
      %v3582 = vadd.f32 %v3543, %v3576
      %v3583 = vadd.f32 %v3544, %v3576
      %v3584 = vadd.f32 %v3545, %v3576
      %v3585 = vadd.f32 %v3546, %v3576
      %v3586 = vadd.f32 %v3547, %v3576
      %v3587 = vadd.f32 %v3548, %v3576
      %v3588 = vadd.f32 %v3549, %v3576
      %v3589 = vadd.f32 %v3550, %v3576
      %v3590 = vadd.f32 %v3551, %v3576
      %v3591 = vadd.f32 %v3552, %v3576
      %v3592 = vadd.f32 %v3553, %v3576
      %v3593 = vadd.f32 %v3554, %v3576
      %v3594 = vadd.f32 %v3555, %v3576
      %v3595 = vadd.f32 %v3556, %v3576
      %v3596 = vadd.f32 %v3557, %v3576
      %v3597 = vadd.f32 %v3558, %v3576
      %v3598 = vadd.f32 %v3559, %v3576
      %v3599 = vadd.f32 %v3560, %v3576
      %v3600 = vadd.f32 %v3561, %v3576
      %v3601 = vadd.f32 %v3562, %v3576
      %v3602 = vadd.f32 %v3563, %v3576
      %v3603 = vadd.f32 %v3564, %v3576
      %v3604 = vadd.f32 %v3565, %v3576
      %v3605 = vadd.f32 %v3566, %v3576
      %v3606 = vadd.f32 %v3567, %v3576
      %v3607 = vadd.f32 %v3568, %v3576
      %v3608 = vadd.f32 %v3569, %v3576
      %v3609 = vadd.f32 %v3570, %v3576
      %v3610 = vmax.f32 %v3578, 0.0
      %v3611 = vmax.f32 %v3579, 0.0
      %v3612 = vmax.f32 %v3580, 0.0
      %v3613 = vmax.f32 %v3581, 0.0
      %v3614 = vmax.f32 %v3582, 0.0
      %v3615 = vmax.f32 %v3583, 0.0
      %v3616 = vmax.f32 %v3584, 0.0
      %v3617 = vmax.f32 %v3585, 0.0
      %v3618 = vmax.f32 %v3586, 0.0
      %v3619 = vmax.f32 %v3587, 0.0
      %v3620 = vmax.f32 %v3588, 0.0
      %v3621 = vmax.f32 %v3589, 0.0
      %v3622 = vmax.f32 %v3590, 0.0
      %v3623 = vmax.f32 %v3591, 0.0
      %v3624 = vmax.f32 %v3592, 0.0
      %v3625 = vmax.f32 %v3593, 0.0
      %v3626 = vmax.f32 %v3594, 0.0
      %v3627 = vmax.f32 %v3595, 0.0
      %v3628 = vmax.f32 %v3596, 0.0
      %v3629 = vmax.f32 %v3597, 0.0
      %v3630 = vmax.f32 %v3598, 0.0
      %v3631 = vmax.f32 %v3599, 0.0
      %v3632 = vmax.f32 %v3600, 0.0
      %v3633 = vmax.f32 %v3601, 0.0
      %v3634 = vmax.f32 %v3602, 0.0
      %v3635 = vmax.f32 %v3603, 0.0
      %v3636 = vmax.f32 %v3604, 0.0
      %v3637 = vmax.f32 %v3605, 0.0
      %v3638 = vmax.f32 %v3606, 0.0
      %v3639 = vmax.f32 %v3607, 0.0
      %v3640 = vmax.f32 %v3608, 0.0
      %v3641 = vmax.f32 %v3609, 0.0
      %v3642 = vpack.c.bf16 %v3611, %v3610
      %v3643 = vpack.c.bf16 %v3613, %v3612
      %v3644 = vpack.c.bf16 %v3615, %v3614
      %v3645 = vpack.c.bf16 %v3617, %v3616
      %v3646 = vpack.c.bf16 %v3619, %v3618
      %v3647 = vpack.c.bf16 %v3621, %v3620
      %v3648 = vpack.c.bf16 %v3623, %v3622
      %v3649 = vpack.c.bf16 %v3625, %v3624
      %v3650 = vpack.c.bf16 %v3627, %v3626
      %v3651 = vpack.c.bf16 %v3629, %v3628
      %v3652 = vpack.c.bf16 %v3631, %v3630
      %v3653 = vpack.c.bf16 %v3633, %v3632
      %v3654 = vpack.c.bf16 %v3635, %v3634
      %v3655 = vpack.c.bf16 %v3637, %v3636
      %v3656 = vpack.c.bf16 %v3639, %v3638
      %v3657 = vpack.c.bf16 %v3641, %v3640
      %v3674 = vunpack.c.l.b16 %v3642
      %v3675 = vunpack.c.h.b16 %v3642
      %v3676 = vunpack.c.l.b16 %v3643
      %v3677 = vunpack.c.h.b16 %v3643
      %v3678 = vunpack.c.l.b16 %v3644
      %v3679 = vunpack.c.h.b16 %v3644
      %v3680 = vunpack.c.l.b16 %v3645
      %v3681 = vunpack.c.h.b16 %v3645
      %v3682 = vunpack.c.l.b16 %v3646
      %v3683 = vunpack.c.h.b16 %v3646
      %v3684 = vunpack.c.l.b16 %v3647
      %v3685 = vunpack.c.h.b16 %v3647
      %v3686 = vunpack.c.l.b16 %v3648
      %v3687 = vunpack.c.h.b16 %v3648
      %v3688 = vunpack.c.l.b16 %v3649
      %v3689 = vunpack.c.h.b16 %v3649
      %v3690 = vunpack.c.l.b16 %v3650
      %v3691 = vunpack.c.h.b16 %v3650
      %v3692 = vunpack.c.l.b16 %v3651
      %v3693 = vunpack.c.h.b16 %v3651
      %v3694 = vunpack.c.l.b16 %v3652
      %v3695 = vunpack.c.h.b16 %v3652
      %v3696 = vunpack.c.l.b16 %v3653
      %v3697 = vunpack.c.h.b16 %v3653
      %v3698 = vunpack.c.l.b16 %v3654
      %v3699 = vunpack.c.h.b16 %v3654
      %v3700 = vunpack.c.l.b16 %v3655
      %v3701 = vunpack.c.h.b16 %v3655
      %v3702 = vunpack.c.l.b16 %v3656
      %v3703 = vunpack.c.h.b16 %v3656
      %v3704 = vunpack.c.l.b16 %v3657
      %v3705 = vunpack.c.h.b16 %v3657
      %v3706 = vpack.c.b16 %v3674, %v3674
      %v3707 = vpack.c.b16 %v3675, %v3675
      %v3708 = vpack.c.b16 %v3676, %v3676
      %v3709 = vpack.c.b16 %v3677, %v3677
      %v3710 = vpack.c.b16 %v3678, %v3678
      %v3711 = vpack.c.b16 %v3679, %v3679
      %v3712 = vpack.c.b16 %v3680, %v3680
      %v3713 = vpack.c.b16 %v3681, %v3681
      %v3714 = vpack.c.b16 %v3682, %v3682
      %v3715 = vpack.c.b16 %v3683, %v3683
      %v3716 = vpack.c.b16 %v3684, %v3684
      %v3717 = vpack.c.b16 %v3685, %v3685
      %v3718 = vpack.c.b16 %v3686, %v3686
      %v3719 = vpack.c.b16 %v3687, %v3687
      %v3720 = vpack.c.b16 %v3688, %v3688
      %v3721 = vpack.c.b16 %v3689, %v3689
      %v3722 = vpack.c.b16 %v3690, %v3690
      %v3723 = vpack.c.b16 %v3691, %v3691
      %v3724 = vpack.c.b16 %v3692, %v3692
      %v3725 = vpack.c.b16 %v3693, %v3693
      %v3726 = vpack.c.b16 %v3694, %v3694
      %v3727 = vpack.c.b16 %v3695, %v3695
      %v3728 = vpack.c.b16 %v3696, %v3696
      %v3729 = vpack.c.b16 %v3697, %v3697
      %v3730 = vpack.c.b16 %v3698, %v3698
      %v3731 = vpack.c.b16 %v3699, %v3699
      %v3732 = vpack.c.b16 %v3700, %v3700
      %v3733 = vpack.c.b16 %v3701, %v3701
      %v3734 = vpack.c.b16 %v3702, %v3702
      %v3735 = vpack.c.b16 %v3703, %v3703
      %v3736 = vpack.c.b16 %v3704, %v3704
      %v3737 = vpack.c.b16 %v3705, %v3705
      %vm3770 = vcmask 519168
      %3771 = vst.msk [vmem:[%s219] sm:$0xf] %vm3770, %v3706
      %3772 = vst.msk [vmem:[%s219 + $0x4] sm:$0xf] %vm3770, %v3707
      %3773 = vst.msk [vmem:[%s219 + $0x8] sm:$0xf] %vm3770, %v3708
      %3774 = vst.msk [vmem:[%s219 + $0xc] sm:$0xf] %vm3770, %v3709
      %3775 = vst.msk [vmem:[%s219 + $0x10] sm:$0xf] %vm3770, %v3710
      %3776 = vst.msk [vmem:[%s219 + $0x14] sm:$0xf] %vm3770, %v3711
      %3777 = vst.msk [vmem:[%s219 + $0x18] sm:$0xf] %vm3770, %v3712
      %3778 = vst.msk [vmem:[%s219 + $0x1c] sm:$0xf] %vm3770, %v3713
      %3779 = vst.msk [vmem:[%s219 + $0x20] sm:$0xf] %vm3770, %v3714
      %3780 = vst.msk [vmem:[%s219 + $0x24] sm:$0xf] %vm3770, %v3715
      %3781 = vst.msk [vmem:[%s219 + $0x28] sm:$0xf] %vm3770, %v3716
      %3782 = vst.msk [vmem:[%s219 + $0x2c] sm:$0xf] %vm3770, %v3717
      %3783 = vst.msk [vmem:[%s219 + $0x30] sm:$0xf] %vm3770, %v3718
      %3784 = vst.msk [vmem:[%s219 + $0x34] sm:$0xf] %vm3770, %v3719
      %3785 = vst.msk [vmem:[%s219 + $0x38] sm:$0xf] %vm3770, %v3720
      %3786 = vst.msk [vmem:[%s219 + $0x3c] sm:$0xf] %vm3770, %v3721
      %3787 = vst.msk [vmem:[%s219 + $0x40] sm:$0xf] %vm3770, %v3722
      %3788 = vst.msk [vmem:[%s219 + $0x44] sm:$0xf] %vm3770, %v3723
      %3789 = vst.msk [vmem:[%s219 + $0x48] sm:$0xf] %vm3770, %v3724
      %3790 = vst.msk [vmem:[%s219 + $0x4c] sm:$0xf] %vm3770, %v3725
      %3791 = vst.msk [vmem:[%s219 + $0x50] sm:$0xf] %vm3770, %v3726
      %3792 = vst.msk [vmem:[%s219 + $0x54] sm:$0xf] %vm3770, %v3727
      %3793 = vst.msk [vmem:[%s219 + $0x58] sm:$0xf] %vm3770, %v3728
      %3794 = vst.msk [vmem:[%s219 + $0x5c] sm:$0xf] %vm3770, %v3729
      %3795 = vst.msk [vmem:[%s219 + $0x60] sm:$0xf] %vm3770, %v3730
      %3796 = vst.msk [vmem:[%s219 + $0x64] sm:$0xf] %vm3770, %v3731
      %3797 = vst.msk [vmem:[%s219 + $0x68] sm:$0xf] %vm3770, %v3732
      %3798 = vst.msk [vmem:[%s219 + $0x6c] sm:$0xf] %vm3770, %v3733
      %3799 = vst.msk [vmem:[%s219 + $0x70] sm:$0xf] %vm3770, %v3734
      %3800 = vst.msk [vmem:[%s219 + $0x74] sm:$0xf] %vm3770, %v3735
      %3801 = vst.msk [vmem:[%s219 + $0x78] sm:$0xf] %vm3770, %v3736
      %3802 = vst.msk [vmem:[%s219 + $0x7c] sm:$0xf] %vm3770, %v3737
      %s3803 = smul.u32 32, %s20
      %p3804 = scmp.lt.s32.totalorder %s19, 1
      %s3805 = scalar_select %p3804, %s19, 1
      %p3806 = scmp.lt.s32.totalorder %s3803, 127
      %s3807 = scalar_select %p3806, %s3803, 127
      %s3808 = smul.addr %s3805, 128
      %s3809 = sadd.s32 %s3807, %s3808
      %s3810 = smul.addr %s3809, 4
      %s3811 = scalar_lea.vmem %s4, %s3810
      // Predicated region
      $region37: #{_lambda_.4} parent=35 // pred_check
        %p3812 = pneg %p136
      $region38: #{_lambda_.4} parent=35 // pred_check_branch
        %3814 = sbr.rel (%p3812) target = $region40
      $region39: #{_lambda_.4} parent=35 // pred_region
        %s3815 = smul.u32 32, %s20
      $region40: #{_lambda_.4} parent=35 // pred_fallthru
        _
    $region36: #{_lambda_.4} parent=5 // pred_fallthru
      _
    %p3816 = scmp.le.s32.totalorder 2, %s10
    // Predicated region
    $region41: #{_lambda_.4} parent=5 // pred_check
      %p3817 = pneg %p3816
    $region42: #{_lambda_.4} parent=5 // pred_check_branch
      %3819 = sbr.rel (%p3817) target = $region44
    $region43: #{_lambda_.4} parent=5 // pred_region
      %s3820 = ssub.s32 %s10, 2
      // Predicated region
      $region45: #{_lambda_.4} parent=43 // pred_check
        %p3821 = pneg %p142
      $region46: #{_lambda_.4} parent=43 // pred_check_branch
        %3823 = sbr.rel (%p3821) target = $region48
      $region47: #{_lambda_.4} parent=43 // pred_region
        %s3824 = smul.u32 32, %s22
        %p3825 = scmp.lt.s32.totalorder %s21, 1
        %s3826 = scalar_select %p3825, %s21, 1
        %p3827 = scmp.lt.s32.totalorder %s3824, 127
        %s3828 = scalar_select %p3827, %s3824, 127
        %s3829 = smul.addr %s3826, 128
        %s3830 = sadd.s32 %s3828, %s3829
        %s3831 = smul.addr %s3830, 4
        %s3832 = scalar_lea.vmem %s4, %s3831
      $region48: #{_lambda_.4} parent=43 // pred_fallthru
        _
    $region44: #{_lambda_.4} parent=5 // pred_fallthru
      _
  $region6: #{_lambda_.4} parent=0 // loop_footer
    %s14 = sadd.s32 1, %s10
  $region7: #{_lambda_.4} parent=0 // loop_footer_branch
    %9 = sbr.rel target = $region3
  $region8: #{_lambda_.4} parent=0 // loop_exit
    _

// kernel: _lambda_.5
$region0: #{_lambda_.5}
  #allocation0 [shape = 'u32[]', space=smem, size = 0x4, offset = 0x4, fixed_abs, tag = 'smem constant byte address 0x4 - core index']
  #allocation1 [shape = 'u32[144,128]{1,0:T(1,128)}', space=vmem, size = 0x12000, scoped, tag = 'internal scratch']
  %s0 = inlined_call_operand.vmem [shape: bf16[2,34,34,64], index: 0, kind: input, shape index: {}]
  %s1 = inlined_call_operand.vmem [shape: bf16[576,64], index: 1, kind: input, shape index: {}]
  %s2 = inlined_call_operand.vmem [shape: f32[1,64], index: 2, kind: input, shape index: {}]
  %s3 = inlined_call_operand.vmem [shape: f32[1,64], index: 3, kind: input, shape index: {}]
  %s4 = inlined_call_operand.vmem [shape: bf16[2,1024,64], index: 4, kind: input, shape index: {}]
  %s5 = inlined_call_operand.hbm [shape: f32[2,1024,64], index: 5, kind: output, shape index: {}]
  %s6 = sld [smem:[#allocation0]]
  $region53: #{_lambda_.5} parent=0
    _
  %s8 = ssub.s32 1, %s6
  %s9 = scalar_select 0, %s8, %s6
  $region1: #{_lambda_.5} parent=0
    #allocation2 [shape = 'u8[262144]{0}', space=vmem, size = 0x40000, scoped, tag = 'output window, operand 0']
    #allocation3 [shape = 's32[2]{0}', space=sflag, size = 0x8, scoped, tag = 'scoped memory for _lambda_.5']
    %10 = vsyncpa [#allocation3], 0
    %s11 = scalar_lea.sflag [#allocation3], 1
    %12 = vsyncpa %s11, 0
    loop: start=0, step=1, limit=10
    $region2: #{_lambda_.5} parent=1 // loop_pre_header
      _
    $region3: #{_lambda_.5} parent=1 // loop_header
      %s14 = sphi 0, %s18
      %p15 = scmp.ge.s32.totalorder %s14, 10
      %s21 = sphi 0, %s33
      %s22 = sphi 0, %s29
      %s23 = sphi 0, %s21
      %s24 = sphi 0, %s22
      %s25 = sphi 0, %s23
      %s26 = sphi 0, %s24
      %s36 = sphi 0, %s38
      %s39 = sphi 0, %s36
      %s40 = sphi 0, %s39
      %s56 = sphi 0, %s40
      %s60 = sphi 0, %s60
      %s62 = sphi 0, %s60
      %s63 = sphi 0, %s62
      %s77 = sphi 0, %s63
      %s81 = sphi 0, %s81
      %s83 = sphi 0, %s81
      %s84 = sphi 0, %s83
      %s98 = sphi 0, %s84
      %s102 = sphi 0, %s102
      %s104 = sphi 0, %s102
      %s105 = sphi 0, %s104
      %s119 = sphi 0, %s105
      %s127 = sphi 0, %s129
      %s130 = sphi 0, %s127
      %s131 = sphi 0, %s130
      %s147 = sphi 0, %s131
      %s155 = sphi 0, %s157
      %s158 = sphi 0, %s155
      %s159 = sphi 0, %s158
      %s175 = sphi 0, %s159
    $region4: #{_lambda_.5} parent=1 // loop_header_branch
      %17 = sbr.rel (%p15) target = $region8
    $region5: #{_lambda_.5} parent=1 // loop_body
      %s19 = ssub.s32 %s14, 1
      %s20 = ssub.s32 %s14, 2
      %s27 = sadd.s32 1, %s22
      %p28 = scmp.ge.s32.totalorder %s27, 4
      %s29 = scalar_select %p28, 0, %s27
      %s30 = sadd.s32 1, %s21
      %s31 = scalar_select %p28, %s30, %s21
      %p32 = scmp.ge.s32.totalorder %s31, 2
      %s33 = scalar_select %p32, 0, %s31
      %s34 = ssub.s32 %s21, %s33
      %p35 = scmp.eq.s32.totalorder %s34, 0
      %s37 = sadd.s32 %s36, 1
      %s38 = scalar_select %p35, %s36, %s37
      %p41 = pneg %p35
      %p42 = scmp.eq.s32.totalorder %s14, 7
      %p43 = por %p41, %p42
      %p44 = scmp.ne.s32.totalorder %s36, %s39
      %p45 = scmp.eq.s32.totalorder %s14, 0
      %p46 = por %p44, %p45
      %p47 = scmp.ne.s32.totalorder %s36, %s39
      %p48 = scmp.eq.s32.totalorder %s19, 7
      %p49 = por %p47, %p48
      %p50 = scmp.ne.s32.totalorder %s39, %s40
      %p51 = scmp.eq.s32.totalorder %s19, 0
      %p52 = por %p50, %p51
      %p53 = scmp.ne.s32.totalorder %s39, %s40
      %p54 = scmp.eq.s32.totalorder %s20, 7
      %p55 = por %p53, %p54
      %p57 = scmp.ne.s32.totalorder %s40, %s56
      %p58 = scmp.eq.s32.totalorder %s20, 0
      %p59 = por %p57, %p58
      %s61 = sadd.s32 %s60, 1
      %p64 = scmp.eq.s32.totalorder %s14, 7
      %p65 = scmp.ne.s32.totalorder %s60, %s62
      %p66 = scmp.eq.s32.totalorder %s14, 0
      %p67 = por %p65, %p66
      %p68 = scmp.ne.s32.totalorder %s60, %s62
      %p69 = scmp.eq.s32.totalorder %s19, 7
      %p70 = por %p68, %p69
      %p71 = scmp.ne.s32.totalorder %s62, %s63
      %p72 = scmp.eq.s32.totalorder %s19, 0
      %p73 = por %p71, %p72
      %p74 = scmp.ne.s32.totalorder %s62, %s63
      %p75 = scmp.eq.s32.totalorder %s20, 7
      %p76 = por %p74, %p75
      %p78 = scmp.ne.s32.totalorder %s63, %s77
      %p79 = scmp.eq.s32.totalorder %s20, 0
      %p80 = por %p78, %p79
      %s82 = sadd.s32 %s81, 1
      %p85 = scmp.eq.s32.totalorder %s14, 7
      %p86 = scmp.ne.s32.totalorder %s81, %s83
      %p87 = scmp.eq.s32.totalorder %s14, 0
      %p88 = por %p86, %p87
      %p89 = scmp.ne.s32.totalorder %s81, %s83
      %p90 = scmp.eq.s32.totalorder %s19, 7
      %p91 = por %p89, %p90
      %p92 = scmp.ne.s32.totalorder %s83, %s84
      %p93 = scmp.eq.s32.totalorder %s19, 0
      %p94 = por %p92, %p93
      %p95 = scmp.ne.s32.totalorder %s83, %s84
      %p96 = scmp.eq.s32.totalorder %s20, 7
      %p97 = por %p95, %p96
      %p99 = scmp.ne.s32.totalorder %s84, %s98
      %p100 = scmp.eq.s32.totalorder %s20, 0
      %p101 = por %p99, %p100
      %s103 = sadd.s32 %s102, 1
      %p106 = scmp.eq.s32.totalorder %s14, 7
      %p107 = scmp.ne.s32.totalorder %s102, %s104
      %p108 = scmp.eq.s32.totalorder %s14, 0
      %p109 = por %p107, %p108
      %p110 = scmp.ne.s32.totalorder %s102, %s104
      %p111 = scmp.eq.s32.totalorder %s19, 7
      %p112 = por %p110, %p111
      %p113 = scmp.ne.s32.totalorder %s104, %s105
      %p114 = scmp.eq.s32.totalorder %s19, 0
      %p115 = por %p113, %p114
      %p116 = scmp.ne.s32.totalorder %s104, %s105
      %p117 = scmp.eq.s32.totalorder %s20, 7
      %p118 = por %p116, %p117
      %p120 = scmp.ne.s32.totalorder %s105, %s119
      %p121 = scmp.eq.s32.totalorder %s20, 0
      %p122 = por %p120, %p121
      %s123 = ssub.s32 %s21, %s33
      %s124 = ssub.s32 %s22, %s29
      %s125 = sor.u32 %s123, %s124
      %p126 = scmp.eq.s32.totalorder %s125, 0
      %s128 = sadd.s32 %s127, 1
      %s129 = scalar_select %p126, %s127, %s128
      %p132 = pneg %p126
      %p133 = scmp.eq.s32.totalorder %s14, 7
      %p134 = por %p132, %p133
      %p135 = scmp.ne.s32.totalorder %s127, %s130
      %p136 = scmp.eq.s32.totalorder %s14, 0
      %p137 = por %p135, %p136
      %p138 = scmp.ne.s32.totalorder %s127, %s130
      %p139 = scmp.eq.s32.totalorder %s19, 7
      %p140 = por %p138, %p139
      %p141 = scmp.ne.s32.totalorder %s130, %s131
      %p142 = scmp.eq.s32.totalorder %s19, 0
      %p143 = por %p141, %p142
      %p144 = scmp.ne.s32.totalorder %s130, %s131
      %p145 = scmp.eq.s32.totalorder %s20, 7
      %p146 = por %p144, %p145
      %p148 = scmp.ne.s32.totalorder %s131, %s147
      %p149 = scmp.eq.s32.totalorder %s20, 0
      %p150 = por %p148, %p149
      %s151 = ssub.s32 %s21, %s33
      %s152 = ssub.s32 %s22, %s29
      %s153 = sor.u32 %s151, %s152
      %p154 = scmp.eq.s32.totalorder %s153, 0
      %s156 = sadd.s32 %s155, 1
      %s157 = scalar_select %p154, %s155, %s156
      %p160 = pneg %p154
      %p161 = scmp.eq.s32.totalorder %s14, 7
      %p162 = por %p160, %p161
      %p163 = scmp.ne.s32.totalorder %s155, %s158
      %p164 = scmp.eq.s32.totalorder %s14, 0
      %p165 = por %p163, %p164
      %p166 = scmp.ne.s32.totalorder %s155, %s158
      %p167 = scmp.eq.s32.totalorder %s19, 7
      %p168 = por %p166, %p167
      %p169 = scmp.ne.s32.totalorder %s158, %s159
      %p170 = scmp.eq.s32.totalorder %s19, 0
      %p171 = por %p169, %p170
      %p172 = scmp.ne.s32.totalorder %s158, %s159
      %p173 = scmp.eq.s32.totalorder %s20, 7
      %p174 = por %p172, %p173
      %p176 = scmp.ne.s32.totalorder %s159, %s175
      %p177 = scmp.eq.s32.totalorder %s20, 0
      %p178 = por %p176, %p177
      %p179 = scmp.le.s32.totalorder 1, %s14
      %p180 = scmp.lt.s32.totalorder %s14, 9
      %p181 = pnand %p179, %p180
      %p182 = pneg %p181
      // Predicated region
      $region9: #{_lambda_.5} parent=5 // pred_check
        _
      $region10: #{_lambda_.5} parent=5 // pred_check_branch
        %184 = sbr.rel (%p181) target = $region12
      $region11: #{_lambda_.5} parent=5 // pred_region
        %s185 = ssub.s32 %s14, 1
        // Predicated region
        $region13: #{_lambda_.5} parent=11 // pred_check
          %p186 = pneg %p73
        $region14: #{_lambda_.5} parent=11 // pred_check_branch
          %188 = sbr.rel (%p186) target = $region16
        $region15: #{_lambda_.5} parent=11 // pred_region
          _
        $region16: #{_lambda_.5} parent=11 // pred_fallthru
          _
        // Predicated region
        $region17: #{_lambda_.5} parent=11 // pred_check
          %p189 = pneg %p94
        $region18: #{_lambda_.5} parent=11 // pred_check_branch
          %191 = sbr.rel (%p189) target = $region20
        $region19: #{_lambda_.5} parent=11 // pred_region
          _
        $region20: #{_lambda_.5} parent=11 // pred_fallthru
          _
        // Predicated region
        $region21: #{_lambda_.5} parent=11 // pred_check
          %p192 = pneg %p115
        $region22: #{_lambda_.5} parent=11 // pred_check_branch
          %194 = sbr.rel (%p192) target = $region24
        $region23: #{_lambda_.5} parent=11 // pred_region
          _
        $region24: #{_lambda_.5} parent=11 // pred_fallthru
          _
      $region12: #{_lambda_.5} parent=5 // pred_fallthru
        _
      %p195 = scmp.lt.s32.totalorder %s14, 8
      // Predicated region
      $region25: #{_lambda_.5} parent=5 // pred_check
        %p196 = pneg %p195
      $region26: #{_lambda_.5} parent=5 // pred_check_branch
        %198 = sbr.rel (%p196) target = $region28
      $region27: #{_lambda_.5} parent=5 // pred_region
        // Predicated region
        $region29: #{_lambda_.5} parent=27 // pred_check
          %p199 = pneg %p46
        $region30: #{_lambda_.5} parent=27 // pred_check_branch
          %201 = sbr.rel (%p199) target = $region32
        $region31: #{_lambda_.5} parent=27 // pred_region
          %p202 = scmp.lt.s32.totalorder %s21, 1
          %s203 = scalar_select %p202, %s21, 1
          %s204 = smul.addr %s203, 170
          %s205 = smul.addr %s204, 4
          %s206 = scalar_lea.vmem %s0, %s205
        $region32: #{_lambda_.5} parent=27 // pred_fallthru
          _
        // Predicated region
        $region33: #{_lambda_.5} parent=27 // pred_check
          %p207 = pneg %p137
        $region34: #{_lambda_.5} parent=27 // pred_check_branch
          %209 = sbr.rel (%p207) target = $region36
        $region35: #{_lambda_.5} parent=27 // pred_region
          %s210 = smul.u32 32, %s22
          %p211 = scmp.lt.s32.totalorder %s21, 1
          %s212 = scalar_select %p211, %s21, 1
          %p213 = scmp.lt.s32.totalorder %s210, 127
          %s214 = scalar_select %p213, %s210, 127
          %s215 = smul.addr %s212, 128
          %s216 = sadd.s32 %s214, %s215
          %s217 = smul.addr %s216, 4
          %s218 = scalar_lea.vmem %s4, %s217
          %s219 = smul.u32 32, %s22
        $region36: #{_lambda_.5} parent=27 // pred_fallthru
          _
      $region28: #{_lambda_.5} parent=5 // pred_fallthru
        _
      %p220 = scmp.le.s32.totalorder 1, %s14
      %p221 = scmp.lt.s32.totalorder %s14, 9
      %p222 = pnand %p220, %p221
      %p223 = pneg %p222
      // Predicated region
      $region37: #{_lambda_.5} parent=5 // pred_check
        _
      $region38: #{_lambda_.5} parent=5 // pred_check_branch
        %225 = sbr.rel (%p222) target = $region40
      $region39: #{_lambda_.5} parent=5 // pred_region
        %s226 = ssub.s32 %s14, 1
        %p227 = scmp.lt.s32.totalorder %s23, 1
        %s228 = scalar_select %p227, %s23, 1
        %s229 = smul.addr %s228, 170
        %s230 = smul.addr %s229, 4
        %s231 = scalar_lea.vmem %s0, %s230
        %p232 = pneg %p52
        %p233 = pneg %p49
        %p234 = pneg %p73
        %p235 = pneg %p70
        %p236 = pneg %p94
        %p237 = pneg %p91
        %p238 = pneg %p115
        %p239 = pneg %p112
        %s240 = smul.u32 32, %s24
        %p241 = scmp.lt.s32.totalorder %s23, 1
        %s242 = scalar_select %p241, %s23, 1
        %p243 = scmp.lt.s32.totalorder %s240, 127
        %s244 = scalar_select %p243, %s240, 127
        %s245 = smul.addr %s242, 128
        %s246 = sadd.s32 %s244, %s245
        %s247 = smul.addr %s246, 4
        %s248 = scalar_lea.vmem %s4, %s247
        %p249 = pneg %p143
        %p250 = pneg %p140
        %p251 = pneg %p171
        %p252 = pneg %p168
        %s253 = sand.u32 %s158, 1
        %s254 = scalar_lea.sflag [#allocation3], %s253
        %s255 = sand.u32 %s158, 1
        %s256 = smul.addr %s255, 256
        %s257 = scalar_lea.vmem [#allocation2], %s256
        %p258 = scmp.lt.s32.totalorder %s23, 1
        %s259 = scalar_select %p258, %s23, 1
        %s260 = smul.addr %s259, 170
        %s261 = smul.addr %s260, 4
        %s262 = scalar_lea.vmem %s0, %s261
        %s263 = smul.u32 32, %s24
        %p264 = scmp.lt.s32.totalorder %s23, 1
        %s265 = scalar_select %p264, %s23, 1
        %p266 = scmp.lt.s32.totalorder %s263, 127
        %s267 = scalar_select %p266, %s263, 127
        %s268 = smul.addr %s265, 128
        %s269 = sadd.s32 %s267, %s268
        %s270 = smul.addr %s269, 4
        %s271 = scalar_lea.vmem %s4, %s270
        %s272 = smul.u32 32, %s24
        %s273 = smul.u32 32, %s24
        %s275 = smul.u32 %s24, 8
        %s276 = smul.u32 %s275, 5
        %s277 = smul.addr %s276, 4
        %s278 = scalar_lea.vmem %s262, %s277
        %v279 = vld [vmem:[%s278] sm:$0xf]
        %v280 = vld [vmem:[%s278 + $0x4] sm:$0xf]
        %v281 = vld [vmem:[%s278 + $0x8] sm:$0xf]
        %v282 = vld [vmem:[%s278 + $0xc] sm:$0xf]
        %v283 = vld [vmem:[%s278 + $0x14] sm:$0xf]
        %v284 = vld [vmem:[%s278 + $0x18] sm:$0xf]
        %v285 = vld [vmem:[%s278 + $0x1c] sm:$0xf]
        %v286 = vld [vmem:[%s278 + $0x20] sm:$0xf]
        %v287 = vld [vmem:[%s278 + $0x28] sm:$0xf]
        %v288 = vld [vmem:[%s278 + $0x2c] sm:$0xf]
        %v289 = vld [vmem:[%s278 + $0x30] sm:$0xf]
        %v290 = vld [vmem:[%s278 + $0x34] sm:$0xf]
        %v291 = vld [vmem:[%s278 + $0x3c] sm:$0xf]
        %v292 = vld [vmem:[%s278 + $0x40] sm:$0xf]
        %v293 = vld [vmem:[%s278 + $0x44] sm:$0xf]
        %v294 = vld [vmem:[%s278 + $0x48] sm:$0xf]
        %v295 = vld [vmem:[%s278 + $0x50] sm:$0xf]
        %v296 = vld [vmem:[%s278 + $0x54] sm:$0xf]
        %v297 = vld [vmem:[%s278 + $0x58] sm:$0xf]
        %v298 = vld [vmem:[%s278 + $0x5c] sm:$0xf]
        %v299 = vld [vmem:[%s278 + $0x64] sm:$0xf]
        %v300 = vld [vmem:[%s278 + $0x68] sm:$0xf]
        %v301 = vld [vmem:[%s278 + $0x6c] sm:$0xf]
        %v302 = vld [vmem:[%s278 + $0x70] sm:$0xf]
        %v303 = vld [vmem:[%s278 + $0x78] sm:$0xf]
        %v304 = vld [vmem:[%s278 + $0x7c] sm:$0xf]
        %v305 = vld [vmem:[%s278 + $0x80] sm:$0xf]
        %v306 = vld [vmem:[%s278 + $0x84] sm:$0xf]
        %v307 = vld [vmem:[%s278 + $0x8c] sm:$0xf]
        %v308 = vld [vmem:[%s278 + $0x90] sm:$0xf]
        %v309 = vld [vmem:[%s278 + $0x94] sm:$0xf]
        %v310 = vld [vmem:[%s278 + $0x98] sm:$0xf]
        %v311 = vld [vmem:[%s278 + $0x10] sm:$0x1]
        %v312 = vld [vmem:[%s278 + $0x24] sm:$0x1]
        %v313 = vld [vmem:[%s278 + $0x38] sm:$0x1]
        %v314 = vld [vmem:[%s278 + $0x4c] sm:$0x1]
        %v315 = vld [vmem:[%s278 + $0x60] sm:$0x1]
        %v316 = vld [vmem:[%s278 + $0x74] sm:$0x1]
        %v317 = vld [vmem:[%s278 + $0x88] sm:$0x1]
        %v318 = vld [vmem:[%s278 + $0x9c] sm:$0x1]
        %vm319 = vsmask.f32 3328
        %vm320 = vsmask.f32 7440
        %vm321 = vmor %vm319, %vm320
        %v323 = vshrl.u32 %v279, 16
        %v325 = vrot.slane %v323, 4
        %v326 = vshll.u32 %v279, 16
        %v328 = vrot.slane %v326, 5
        %v329 = vor.u32 %v325, %v328
        %v330 = vrot.slane %v329, 4
        %v332 = vshll.u32 %v280, 16
        %v334 = vrot.slane %v332, 5
        %v335 = vsel %vm321, %v330, %v334
        %v336 = vshrl.u32 %v280, 16
        %v338 = vrot.slane %v336, 4
        %v339 = vor.u32 %v338, %v334
        %v340 = vrot.slane %v339, 4
        %v342 = vshll.u32 %v281, 16
        %v344 = vrot.slane %v342, 5
        %v345 = vsel %vm321, %v340, %v344
        %v346 = vshrl.u32 %v281, 16
        %v348 = vrot.slane %v346, 4
        %v349 = vor.u32 %v348, %v344
        %v350 = vrot.slane %v349, 4
        %v352 = vshll.u32 %v282, 16
        %v354 = vrot.slane %v352, 5
        %v355 = vsel %vm321, %v350, %v354
        %v356 = vshrl.u32 %v282, 16
        %v358 = vrot.slane %v356, 4
        %v359 = vor.u32 %v358, %v354
        %v360 = vrot.slane %v359, 4
        %v362 = vshll.u32 %v311, 16
        %v364 = vrot.slane %v362, 5
        %v365 = vsel %vm321, %v360, %v364
        %v367 = vshrl.u32 %v283, 16
        %v369 = vrot.slane %v367, 4
        %v370 = vshll.u32 %v283, 16
        %v372 = vrot.slane %v370, 5
        %v373 = vor.u32 %v369, %v372
        %v374 = vrot.slane %v373, 4
        %v376 = vshll.u32 %v284, 16
        %v378 = vrot.slane %v376, 5
        %v379 = vsel %vm321, %v374, %v378
        %v380 = vshrl.u32 %v284, 16
        %v382 = vrot.slane %v380, 4
        %v383 = vor.u32 %v382, %v378
        %v384 = vrot.slane %v383, 4
        %v386 = vshll.u32 %v285, 16
        %v388 = vrot.slane %v386, 5
        %v389 = vsel %vm321, %v384, %v388
        %v390 = vshrl.u32 %v285, 16
        %v392 = vrot.slane %v390, 4
        %v393 = vor.u32 %v392, %v388
        %v394 = vrot.slane %v393, 4
        %v396 = vshll.u32 %v286, 16
        %v398 = vrot.slane %v396, 5
        %v399 = vsel %vm321, %v394, %v398
        %v400 = vshrl.u32 %v286, 16
        %v402 = vrot.slane %v400, 4
        %v403 = vor.u32 %v402, %v398
        %v404 = vrot.slane %v403, 4
        %v406 = vshll.u32 %v312, 16
        %v408 = vrot.slane %v406, 5
        %v409 = vsel %vm321, %v404, %v408
        %v411 = vshrl.u32 %v287, 16
        %v413 = vrot.slane %v411, 4
        %v414 = vshll.u32 %v287, 16
        %v416 = vrot.slane %v414, 5
        %v417 = vor.u32 %v413, %v416
        %v418 = vrot.slane %v417, 4
        %v420 = vshll.u32 %v288, 16
        %v422 = vrot.slane %v420, 5
        %v423 = vsel %vm321, %v418, %v422
        %v424 = vshrl.u32 %v288, 16
        %v426 = vrot.slane %v424, 4
        %v427 = vor.u32 %v426, %v422
        %v428 = vrot.slane %v427, 4
        %v430 = vshll.u32 %v289, 16
        %v432 = vrot.slane %v430, 5
        %v433 = vsel %vm321, %v428, %v432
        %v434 = vshrl.u32 %v289, 16
        %v436 = vrot.slane %v434, 4
        %v437 = vor.u32 %v436, %v432
        %v438 = vrot.slane %v437, 4
        %v440 = vshll.u32 %v290, 16
        %v442 = vrot.slane %v440, 5
        %v443 = vsel %vm321, %v438, %v442
        %v444 = vshrl.u32 %v290, 16
        %v446 = vrot.slane %v444, 4
        %v447 = vor.u32 %v446, %v442
        %v448 = vrot.slane %v447, 4
        %v450 = vshll.u32 %v313, 16
        %v452 = vrot.slane %v450, 5
        %v453 = vsel %vm321, %v448, %v452
        %v455 = vshrl.u32 %v291, 16
        %v457 = vrot.slane %v455, 4
        %v458 = vshll.u32 %v291, 16
        %v460 = vrot.slane %v458, 5
        %v461 = vor.u32 %v457, %v460
        %v462 = vrot.slane %v461, 4
        %v464 = vshll.u32 %v292, 16
        %v466 = vrot.slane %v464, 5
        %v467 = vsel %vm321, %v462, %v466
        %v468 = vshrl.u32 %v292, 16
        %v470 = vrot.slane %v468, 4
        %v471 = vor.u32 %v470, %v466
        %v472 = vrot.slane %v471, 4
        %v474 = vshll.u32 %v293, 16
        %v476 = vrot.slane %v474, 5
        %v477 = vsel %vm321, %v472, %v476
        %v478 = vshrl.u32 %v293, 16
        %v480 = vrot.slane %v478, 4
        %v481 = vor.u32 %v480, %v476
        %v482 = vrot.slane %v481, 4
        %v484 = vshll.u32 %v294, 16
        %v486 = vrot.slane %v484, 5
        %v487 = vsel %vm321, %v482, %v486
        %v488 = vshrl.u32 %v294, 16
        %v490 = vrot.slane %v488, 4
        %v491 = vor.u32 %v490, %v486
        %v492 = vrot.slane %v491, 4
        %v494 = vshll.u32 %v314, 16
        %v496 = vrot.slane %v494, 5
        %v497 = vsel %vm321, %v492, %v496
        %v499 = vshrl.u32 %v295, 16
        %v501 = vrot.slane %v499, 4
        %v502 = vshll.u32 %v295, 16
        %v504 = vrot.slane %v502, 5
        %v505 = vor.u32 %v501, %v504
        %v506 = vrot.slane %v505, 4
        %v508 = vshll.u32 %v296, 16
        %v510 = vrot.slane %v508, 5
        %v511 = vsel %vm321, %v506, %v510
        %v512 = vshrl.u32 %v296, 16
        %v514 = vrot.slane %v512, 4
        %v515 = vor.u32 %v514, %v510
        %v516 = vrot.slane %v515, 4
        %v518 = vshll.u32 %v297, 16
        %v520 = vrot.slane %v518, 5
        %v521 = vsel %vm321, %v516, %v520
        %v522 = vshrl.u32 %v297, 16
        %v524 = vrot.slane %v522, 4
        %v525 = vor.u32 %v524, %v520
        %v526 = vrot.slane %v525, 4
        %v528 = vshll.u32 %v298, 16
        %v530 = vrot.slane %v528, 5
        %v531 = vsel %vm321, %v526, %v530
        %v532 = vshrl.u32 %v298, 16
        %v534 = vrot.slane %v532, 4
        %v535 = vor.u32 %v534, %v530
        %v536 = vrot.slane %v535, 4
        %v538 = vshll.u32 %v315, 16
        %v540 = vrot.slane %v538, 5
        %v541 = vsel %vm321, %v536, %v540
        %v543 = vshrl.u32 %v299, 16
        %v545 = vrot.slane %v543, 4
        %v546 = vshll.u32 %v299, 16
        %v548 = vrot.slane %v546, 5
        %v549 = vor.u32 %v545, %v548
        %v550 = vrot.slane %v549, 4
        %v552 = vshll.u32 %v300, 16
        %v554 = vrot.slane %v552, 5
        %v555 = vsel %vm321, %v550, %v554
        %v556 = vshrl.u32 %v300, 16
        %v558 = vrot.slane %v556, 4
        %v559 = vor.u32 %v558, %v554
        %v560 = vrot.slane %v559, 4
        %v562 = vshll.u32 %v301, 16
        %v564 = vrot.slane %v562, 5
        %v565 = vsel %vm321, %v560, %v564
        %v566 = vshrl.u32 %v301, 16
        %v568 = vrot.slane %v566, 4
        %v569 = vor.u32 %v568, %v564
        %v570 = vrot.slane %v569, 4
        %v572 = vshll.u32 %v302, 16
        %v574 = vrot.slane %v572, 5
        %v575 = vsel %vm321, %v570, %v574
        %v576 = vshrl.u32 %v302, 16
        %v578 = vrot.slane %v576, 4
        %v579 = vor.u32 %v578, %v574
        %v580 = vrot.slane %v579, 4
        %v582 = vshll.u32 %v316, 16
        %v584 = vrot.slane %v582, 5
        %v585 = vsel %vm321, %v580, %v584
        %v587 = vshrl.u32 %v303, 16
        %v589 = vrot.slane %v587, 4
        %v590 = vshll.u32 %v303, 16
        %v592 = vrot.slane %v590, 5
        %v593 = vor.u32 %v589, %v592
        %v594 = vrot.slane %v593, 4
        %v596 = vshll.u32 %v304, 16
        %v598 = vrot.slane %v596, 5
        %v599 = vsel %vm321, %v594, %v598
        %v600 = vshrl.u32 %v304, 16
        %v602 = vrot.slane %v600, 4
        %v603 = vor.u32 %v602, %v598
        %v604 = vrot.slane %v603, 4
        %v606 = vshll.u32 %v305, 16
        %v608 = vrot.slane %v606, 5
        %v609 = vsel %vm321, %v604, %v608
        %v610 = vshrl.u32 %v305, 16
        %v612 = vrot.slane %v610, 4
        %v613 = vor.u32 %v612, %v608
        %v614 = vrot.slane %v613, 4
        %v616 = vshll.u32 %v306, 16
        %v618 = vrot.slane %v616, 5
        %v619 = vsel %vm321, %v614, %v618
        %v620 = vshrl.u32 %v306, 16
        %v622 = vrot.slane %v620, 4
        %v623 = vor.u32 %v622, %v618
        %v624 = vrot.slane %v623, 4
        %v626 = vshll.u32 %v317, 16
        %v628 = vrot.slane %v626, 5
        %v629 = vsel %vm321, %v624, %v628
        %v631 = vshrl.u32 %v307, 16
        %v633 = vrot.slane %v631, 4
        %v634 = vshll.u32 %v307, 16
        %v636 = vrot.slane %v634, 5
        %v637 = vor.u32 %v633, %v636
        %v638 = vrot.slane %v637, 4
        %v640 = vshll.u32 %v308, 16
        %v642 = vrot.slane %v640, 5
        %v643 = vsel %vm321, %v638, %v642
        %v644 = vshrl.u32 %v308, 16
        %v646 = vrot.slane %v644, 4
        %v647 = vor.u32 %v646, %v642
        %v648 = vrot.slane %v647, 4
        %v650 = vshll.u32 %v309, 16
        %v652 = vrot.slane %v650, 5
        %v653 = vsel %vm321, %v648, %v652
        %v654 = vshrl.u32 %v309, 16
        %v656 = vrot.slane %v654, 4
        %v657 = vor.u32 %v656, %v652
        %v658 = vrot.slane %v657, 4
        %v660 = vshll.u32 %v310, 16
        %v662 = vrot.slane %v660, 5
        %v663 = vsel %vm321, %v658, %v662
        %v664 = vshrl.u32 %v310, 16
        %v666 = vrot.slane %v664, 4
        %v667 = vor.u32 %v666, %v662
        %v668 = vrot.slane %v667, 4
        %v670 = vshll.u32 %v318, 16
        %v672 = vrot.slane %v670, 5
        %v673 = vsel %vm321, %v668, %v672
        %v674 = vld [vmem:[%s278] sm:$0xe]
        %v675 = vld [vmem:[%s278 + $0x14] sm:$0xe]
        %v676 = vld [vmem:[%s278 + $0x28] sm:$0xe]
        %v677 = vld [vmem:[%s278 + $0x3c] sm:$0xe]
        %v678 = vld [vmem:[%s278 + $0x50] sm:$0xe]
        %v679 = vld [vmem:[%s278 + $0x64] sm:$0xe]
        %v680 = vld [vmem:[%s278 + $0x78] sm:$0xe]
        %v681 = vld [vmem:[%s278 + $0x8c] sm:$0xe]
        %vm722 = vcmask 1042432
        %vm723 = vcmask 1046532
        %vm724 = vmor %vm722, %vm723
        %v725 = vrot.slane %v674, 5
        %v726 = vrot.slane %v725, 4
        %v727 = vrot.slane %v280, 5
        %v728 = vsel %vm724, %v726, %v727
        %v729 = vrot.slane %v727, 4
        %v730 = vrot.slane %v281, 5
        %v731 = vsel %vm724, %v729, %v730
        %v732 = vrot.slane %v730, 4
        %v733 = vrot.slane %v282, 5
        %v734 = vsel %vm724, %v732, %v733
        %v735 = vrot.slane %v733, 4
        %v736 = vrot.slane %v311, 5
        %v737 = vsel %vm724, %v735, %v736
        %v738 = vrot.slane %v675, 5
        %v739 = vrot.slane %v738, 4
        %v740 = vrot.slane %v284, 5
        %v741 = vsel %vm724, %v739, %v740
        %v742 = vrot.slane %v740, 4
        %v743 = vrot.slane %v285, 5
        %v744 = vsel %vm724, %v742, %v743
        %v745 = vrot.slane %v743, 4
        %v746 = vrot.slane %v286, 5
        %v747 = vsel %vm724, %v745, %v746
        %v748 = vrot.slane %v746, 4
        %v749 = vrot.slane %v312, 5
        %v750 = vsel %vm724, %v748, %v749
        %v751 = vrot.slane %v676, 5
        %v752 = vrot.slane %v751, 4
        %v753 = vrot.slane %v288, 5
        %v754 = vsel %vm724, %v752, %v753
        %v755 = vrot.slane %v753, 4
        %v756 = vrot.slane %v289, 5
        %v757 = vsel %vm724, %v755, %v756
        %v758 = vrot.slane %v756, 4
        %v759 = vrot.slane %v290, 5
        %v760 = vsel %vm724, %v758, %v759
        %v761 = vrot.slane %v759, 4
        %v762 = vrot.slane %v313, 5
        %v763 = vsel %vm724, %v761, %v762
        %v764 = vrot.slane %v677, 5
        %v765 = vrot.slane %v764, 4
        %v766 = vrot.slane %v292, 5
        %v767 = vsel %vm724, %v765, %v766
        %v768 = vrot.slane %v766, 4
        %v769 = vrot.slane %v293, 5
        %v770 = vsel %vm724, %v768, %v769
        %v771 = vrot.slane %v769, 4
        %v772 = vrot.slane %v294, 5
        %v773 = vsel %vm724, %v771, %v772
        %v774 = vrot.slane %v772, 4
        %v775 = vrot.slane %v314, 5
        %v776 = vsel %vm724, %v774, %v775
        %v777 = vrot.slane %v678, 5
        %v778 = vrot.slane %v777, 4
        %v779 = vrot.slane %v296, 5
        %v780 = vsel %vm724, %v778, %v779
        %v781 = vrot.slane %v779, 4
        %v782 = vrot.slane %v297, 5
        %v783 = vsel %vm724, %v781, %v782
        %v784 = vrot.slane %v782, 4
        %v785 = vrot.slane %v298, 5
        %v786 = vsel %vm724, %v784, %v785
        %v787 = vrot.slane %v785, 4
        %v788 = vrot.slane %v315, 5
        %v789 = vsel %vm724, %v787, %v788
        %v790 = vrot.slane %v679, 5
        %v791 = vrot.slane %v790, 4
        %v792 = vrot.slane %v300, 5
        %v793 = vsel %vm724, %v791, %v792
        %v794 = vrot.slane %v792, 4
        %v795 = vrot.slane %v301, 5
        %v796 = vsel %vm724, %v794, %v795
        %v797 = vrot.slane %v795, 4
        %v798 = vrot.slane %v302, 5
        %v799 = vsel %vm724, %v797, %v798
        %v800 = vrot.slane %v798, 4
        %v801 = vrot.slane %v316, 5
        %v802 = vsel %vm724, %v800, %v801
        %v803 = vrot.slane %v680, 5
        %v804 = vrot.slane %v803, 4
        %v805 = vrot.slane %v304, 5
        %v806 = vsel %vm724, %v804, %v805
        %v807 = vrot.slane %v805, 4
        %v808 = vrot.slane %v305, 5
        %v809 = vsel %vm724, %v807, %v808
        %v810 = vrot.slane %v808, 4
        %v811 = vrot.slane %v306, 5
        %v812 = vsel %vm724, %v810, %v811
        %v813 = vrot.slane %v811, 4
        %v814 = vrot.slane %v317, 5
        %v815 = vsel %vm724, %v813, %v814
        %v816 = vrot.slane %v681, 5
        %v817 = vrot.slane %v816, 4
        %v818 = vrot.slane %v308, 5
        %v819 = vsel %vm724, %v817, %v818
        %v820 = vrot.slane %v818, 4
        %v821 = vrot.slane %v309, 5
        %v822 = vsel %vm724, %v820, %v821
        %v823 = vrot.slane %v821, 4
        %v824 = vrot.slane %v310, 5
        %v825 = vsel %vm724, %v823, %v824
        %v826 = vrot.slane %v824, 4
        %v827 = vrot.slane %v318, 5
        %v828 = vsel %vm724, %v826, %v827
        %s829 = sadd.s32 %s275, 1
        %s830 = smul.u32 %s829, 5
        %s831 = smul.addr %s830, 4
        %s832 = scalar_lea.vmem %s262, %s831
        %v833 = vld [vmem:[%s832] sm:$0xf]
        %v834 = vld [vmem:[%s832 + $0x4] sm:$0xf]
        %v835 = vld [vmem:[%s832 + $0x8] sm:$0xf]
        %v836 = vld [vmem:[%s832 + $0xc] sm:$0xf]
        %v837 = vld [vmem:[%s832 + $0x14] sm:$0xf]
        %v838 = vld [vmem:[%s832 + $0x18] sm:$0xf]
        %v839 = vld [vmem:[%s832 + $0x1c] sm:$0xf]
        %v840 = vld [vmem:[%s832 + $0x20] sm:$0xf]
        %v841 = vld [vmem:[%s832 + $0x28] sm:$0xf]
        %v842 = vld [vmem:[%s832 + $0x2c] sm:$0xf]
        %v843 = vld [vmem:[%s832 + $0x30] sm:$0xf]
        %v844 = vld [vmem:[%s832 + $0x34] sm:$0xf]
        %v845 = vld [vmem:[%s832 + $0x3c] sm:$0xf]
        %v846 = vld [vmem:[%s832 + $0x40] sm:$0xf]
        %v847 = vld [vmem:[%s832 + $0x44] sm:$0xf]
        %v848 = vld [vmem:[%s832 + $0x48] sm:$0xf]
        %v849 = vld [vmem:[%s832 + $0x50] sm:$0xf]
        %v850 = vld [vmem:[%s832 + $0x54] sm:$0xf]
        %v851 = vld [vmem:[%s832 + $0x58] sm:$0xf]
        %v852 = vld [vmem:[%s832 + $0x5c] sm:$0xf]
        %v853 = vld [vmem:[%s832 + $0x64] sm:$0xf]
        %v854 = vld [vmem:[%s832 + $0x68] sm:$0xf]
        %v855 = vld [vmem:[%s832 + $0x6c] sm:$0xf]
        %v856 = vld [vmem:[%s832 + $0x70] sm:$0xf]
        %v857 = vld [vmem:[%s832 + $0x78] sm:$0xf]
        %v858 = vld [vmem:[%s832 + $0x7c] sm:$0xf]
        %v859 = vld [vmem:[%s832 + $0x80] sm:$0xf]
        %v860 = vld [vmem:[%s832 + $0x84] sm:$0xf]
        %v861 = vld [vmem:[%s832 + $0x8c] sm:$0xf]
        %v862 = vld [vmem:[%s832 + $0x90] sm:$0xf]
        %v863 = vld [vmem:[%s832 + $0x94] sm:$0xf]
        %v864 = vld [vmem:[%s832 + $0x98] sm:$0xf]
        %v865 = vld [vmem:[%s832 + $0x10] sm:$0x1]
        %v866 = vld [vmem:[%s832 + $0x24] sm:$0x1]
        %v867 = vld [vmem:[%s832 + $0x38] sm:$0x1]
        %v868 = vld [vmem:[%s832 + $0x4c] sm:$0x1]
        %v869 = vld [vmem:[%s832 + $0x60] sm:$0x1]
        %v870 = vld [vmem:[%s832 + $0x74] sm:$0x1]
        %v871 = vld [vmem:[%s832 + $0x88] sm:$0x1]
        %v872 = vld [vmem:[%s832 + $0x9c] sm:$0x1]
        %v874 = vshrl.u32 %v833, 16
        %v876 = vrot.slane %v874, 4
        %v877 = vshll.u32 %v833, 16
        %v879 = vrot.slane %v877, 5
        %v880 = vor.u32 %v876, %v879
        %v881 = vrot.slane %v880, 4
        %v883 = vshll.u32 %v834, 16
        %v885 = vrot.slane %v883, 5
        %v886 = vsel %vm321, %v881, %v885
        %v887 = vshrl.u32 %v834, 16
        %v889 = vrot.slane %v887, 4
        %v890 = vor.u32 %v889, %v885
        %v891 = vrot.slane %v890, 4
        %v893 = vshll.u32 %v835, 16
        %v895 = vrot.slane %v893, 5
        %v896 = vsel %vm321, %v891, %v895
        %v897 = vshrl.u32 %v835, 16
        %v899 = vrot.slane %v897, 4
        %v900 = vor.u32 %v899, %v895
        %v901 = vrot.slane %v900, 4
        %v903 = vshll.u32 %v836, 16
        %v905 = vrot.slane %v903, 5
        %v906 = vsel %vm321, %v901, %v905
        %v907 = vshrl.u32 %v836, 16
        %v909 = vrot.slane %v907, 4
        %v910 = vor.u32 %v909, %v905
        %v911 = vrot.slane %v910, 4
        %v913 = vshll.u32 %v865, 16
        %v915 = vrot.slane %v913, 5
        %v916 = vsel %vm321, %v911, %v915
        %v918 = vshrl.u32 %v837, 16
        %v920 = vrot.slane %v918, 4
        %v921 = vshll.u32 %v837, 16
        %v923 = vrot.slane %v921, 5
        %v924 = vor.u32 %v920, %v923
        %v925 = vrot.slane %v924, 4
        %v927 = vshll.u32 %v838, 16
        %v929 = vrot.slane %v927, 5
        %v930 = vsel %vm321, %v925, %v929
        %v931 = vshrl.u32 %v838, 16
        %v933 = vrot.slane %v931, 4
        %v934 = vor.u32 %v933, %v929
        %v935 = vrot.slane %v934, 4
        %v937 = vshll.u32 %v839, 16
        %v939 = vrot.slane %v937, 5
        %v940 = vsel %vm321, %v935, %v939
        %v941 = vshrl.u32 %v839, 16
        %v943 = vrot.slane %v941, 4
        %v944 = vor.u32 %v943, %v939
        %v945 = vrot.slane %v944, 4
        %v947 = vshll.u32 %v840, 16
        %v949 = vrot.slane %v947, 5
        %v950 = vsel %vm321, %v945, %v949
        %v951 = vshrl.u32 %v840, 16
        %v953 = vrot.slane %v951, 4
        %v954 = vor.u32 %v953, %v949
        %v955 = vrot.slane %v954, 4
        %v957 = vshll.u32 %v866, 16
        %v959 = vrot.slane %v957, 5
        %v960 = vsel %vm321, %v955, %v959
        %v962 = vshrl.u32 %v841, 16
        %v964 = vrot.slane %v962, 4
        %v965 = vshll.u32 %v841, 16
        %v967 = vrot.slane %v965, 5
        %v968 = vor.u32 %v964, %v967
        %v969 = vrot.slane %v968, 4
        %v971 = vshll.u32 %v842, 16
        %v973 = vrot.slane %v971, 5
        %v974 = vsel %vm321, %v969, %v973
        %v975 = vshrl.u32 %v842, 16
        %v977 = vrot.slane %v975, 4
        %v978 = vor.u32 %v977, %v973
        %v979 = vrot.slane %v978, 4
        %v981 = vshll.u32 %v843, 16
        %v983 = vrot.slane %v981, 5
        %v984 = vsel %vm321, %v979, %v983
        %v985 = vshrl.u32 %v843, 16
        %v987 = vrot.slane %v985, 4
        %v988 = vor.u32 %v987, %v983
        %v989 = vrot.slane %v988, 4
        %v991 = vshll.u32 %v844, 16
        %v993 = vrot.slane %v991, 5
        %v994 = vsel %vm321, %v989, %v993
        %v995 = vshrl.u32 %v844, 16
        %v997 = vrot.slane %v995, 4
        %v998 = vor.u32 %v997, %v993
        %v999 = vrot.slane %v998, 4
        %v1001 = vshll.u32 %v867, 16
        %v1003 = vrot.slane %v1001, 5
        %v1004 = vsel %vm321, %v999, %v1003
        %v1006 = vshrl.u32 %v845, 16
        %v1008 = vrot.slane %v1006, 4
        %v1009 = vshll.u32 %v845, 16
        %v1011 = vrot.slane %v1009, 5
        %v1012 = vor.u32 %v1008, %v1011
        %v1013 = vrot.slane %v1012, 4
        %v1015 = vshll.u32 %v846, 16
        %v1017 = vrot.slane %v1015, 5
        %v1018 = vsel %vm321, %v1013, %v1017
        %v1019 = vshrl.u32 %v846, 16
        %v1021 = vrot.slane %v1019, 4
        %v1022 = vor.u32 %v1021, %v1017
        %v1023 = vrot.slane %v1022, 4
        %v1025 = vshll.u32 %v847, 16
        %v1027 = vrot.slane %v1025, 5
        %v1028 = vsel %vm321, %v1023, %v1027
        %v1029 = vshrl.u32 %v847, 16
        %v1031 = vrot.slane %v1029, 4
        %v1032 = vor.u32 %v1031, %v1027
        %v1033 = vrot.slane %v1032, 4
        %v1035 = vshll.u32 %v848, 16
        %v1037 = vrot.slane %v1035, 5
        %v1038 = vsel %vm321, %v1033, %v1037
        %v1039 = vshrl.u32 %v848, 16
        %v1041 = vrot.slane %v1039, 4
        %v1042 = vor.u32 %v1041, %v1037
        %v1043 = vrot.slane %v1042, 4
        %v1045 = vshll.u32 %v868, 16
        %v1047 = vrot.slane %v1045, 5
        %v1048 = vsel %vm321, %v1043, %v1047
        %v1050 = vshrl.u32 %v849, 16
        %v1052 = vrot.slane %v1050, 4
        %v1053 = vshll.u32 %v849, 16
        %v1055 = vrot.slane %v1053, 5
        %v1056 = vor.u32 %v1052, %v1055
        %v1057 = vrot.slane %v1056, 4
        %v1059 = vshll.u32 %v850, 16
        %v1061 = vrot.slane %v1059, 5
        %v1062 = vsel %vm321, %v1057, %v1061
        %v1063 = vshrl.u32 %v850, 16
        %v1065 = vrot.slane %v1063, 4
        %v1066 = vor.u32 %v1065, %v1061
        %v1067 = vrot.slane %v1066, 4
        %v1069 = vshll.u32 %v851, 16
        %v1071 = vrot.slane %v1069, 5
        %v1072 = vsel %vm321, %v1067, %v1071
        %v1073 = vshrl.u32 %v851, 16
        %v1075 = vrot.slane %v1073, 4
        %v1076 = vor.u32 %v1075, %v1071
        %v1077 = vrot.slane %v1076, 4
        %v1079 = vshll.u32 %v852, 16
        %v1081 = vrot.slane %v1079, 5
        %v1082 = vsel %vm321, %v1077, %v1081
        %v1083 = vshrl.u32 %v852, 16
        %v1085 = vrot.slane %v1083, 4
        %v1086 = vor.u32 %v1085, %v1081
        %v1087 = vrot.slane %v1086, 4
        %v1089 = vshll.u32 %v869, 16
        %v1091 = vrot.slane %v1089, 5
        %v1092 = vsel %vm321, %v1087, %v1091
        %v1094 = vshrl.u32 %v853, 16
        %v1096 = vrot.slane %v1094, 4
        %v1097 = vshll.u32 %v853, 16
        %v1099 = vrot.slane %v1097, 5
        %v1100 = vor.u32 %v1096, %v1099
        %v1101 = vrot.slane %v1100, 4
        %v1103 = vshll.u32 %v854, 16
        %v1105 = vrot.slane %v1103, 5
        %v1106 = vsel %vm321, %v1101, %v1105
        %v1107 = vshrl.u32 %v854, 16
        %v1109 = vrot.slane %v1107, 4
        %v1110 = vor.u32 %v1109, %v1105
        %v1111 = vrot.slane %v1110, 4
        %v1113 = vshll.u32 %v855, 16
        %v1115 = vrot.slane %v1113, 5
        %v1116 = vsel %vm321, %v1111, %v1115
        %v1117 = vshrl.u32 %v855, 16
        %v1119 = vrot.slane %v1117, 4
        %v1120 = vor.u32 %v1119, %v1115
        %v1121 = vrot.slane %v1120, 4
        %v1123 = vshll.u32 %v856, 16
        %v1125 = vrot.slane %v1123, 5
        %v1126 = vsel %vm321, %v1121, %v1125
        %v1127 = vshrl.u32 %v856, 16
        %v1129 = vrot.slane %v1127, 4
        %v1130 = vor.u32 %v1129, %v1125
        %v1131 = vrot.slane %v1130, 4
        %v1133 = vshll.u32 %v870, 16
        %v1135 = vrot.slane %v1133, 5
        %v1136 = vsel %vm321, %v1131, %v1135
        %v1138 = vshrl.u32 %v857, 16
        %v1140 = vrot.slane %v1138, 4
        %v1141 = vshll.u32 %v857, 16
        %v1143 = vrot.slane %v1141, 5
        %v1144 = vor.u32 %v1140, %v1143
        %v1145 = vrot.slane %v1144, 4
        %v1147 = vshll.u32 %v858, 16
        %v1149 = vrot.slane %v1147, 5
        %v1150 = vsel %vm321, %v1145, %v1149
        %v1151 = vshrl.u32 %v858, 16
        %v1153 = vrot.slane %v1151, 4
        %v1154 = vor.u32 %v1153, %v1149
        %v1155 = vrot.slane %v1154, 4
        %v1157 = vshll.u32 %v859, 16
        %v1159 = vrot.slane %v1157, 5
        %v1160 = vsel %vm321, %v1155, %v1159
        %v1161 = vshrl.u32 %v859, 16
        %v1163 = vrot.slane %v1161, 4
        %v1164 = vor.u32 %v1163, %v1159
        %v1165 = vrot.slane %v1164, 4
        %v1167 = vshll.u32 %v860, 16
        %v1169 = vrot.slane %v1167, 5
        %v1170 = vsel %vm321, %v1165, %v1169
        %v1171 = vshrl.u32 %v860, 16
        %v1173 = vrot.slane %v1171, 4
        %v1174 = vor.u32 %v1173, %v1169
        %v1175 = vrot.slane %v1174, 4
        %v1177 = vshll.u32 %v871, 16
        %v1179 = vrot.slane %v1177, 5
        %v1180 = vsel %vm321, %v1175, %v1179
        %v1182 = vshrl.u32 %v861, 16
        %v1184 = vrot.slane %v1182, 4
        %v1185 = vshll.u32 %v861, 16
        %v1187 = vrot.slane %v1185, 5
        %v1188 = vor.u32 %v1184, %v1187
        %v1189 = vrot.slane %v1188, 4
        %v1191 = vshll.u32 %v862, 16
        %v1193 = vrot.slane %v1191, 5
        %v1194 = vsel %vm321, %v1189, %v1193
        %v1195 = vshrl.u32 %v862, 16
        %v1197 = vrot.slane %v1195, 4
        %v1198 = vor.u32 %v1197, %v1193
        %v1199 = vrot.slane %v1198, 4
        %v1201 = vshll.u32 %v863, 16
        %v1203 = vrot.slane %v1201, 5
        %v1204 = vsel %vm321, %v1199, %v1203
        %v1205 = vshrl.u32 %v863, 16
        %v1207 = vrot.slane %v1205, 4
        %v1208 = vor.u32 %v1207, %v1203
        %v1209 = vrot.slane %v1208, 4
        %v1211 = vshll.u32 %v864, 16
        %v1213 = vrot.slane %v1211, 5
        %v1214 = vsel %vm321, %v1209, %v1213
        %v1215 = vshrl.u32 %v864, 16
        %v1217 = vrot.slane %v1215, 4
        %v1218 = vor.u32 %v1217, %v1213
        %v1219 = vrot.slane %v1218, 4
        %v1221 = vshll.u32 %v872, 16
        %v1223 = vrot.slane %v1221, 5
        %v1224 = vsel %vm321, %v1219, %v1223
        %v1225 = vld [vmem:[%s832] sm:$0xe]
        %v1226 = vld [vmem:[%s832 + $0x14] sm:$0xe]
        %v1227 = vld [vmem:[%s832 + $0x28] sm:$0xe]
        %v1228 = vld [vmem:[%s832 + $0x3c] sm:$0xe]
        %v1229 = vld [vmem:[%s832 + $0x50] sm:$0xe]
        %v1230 = vld [vmem:[%s832 + $0x64] sm:$0xe]
        %v1231 = vld [vmem:[%s832 + $0x78] sm:$0xe]
        %v1232 = vld [vmem:[%s832 + $0x8c] sm:$0xe]
        %v1273 = vrot.slane %v1225, 5
        %v1274 = vrot.slane %v1273, 4
        %v1275 = vrot.slane %v834, 5
        %v1276 = vsel %vm724, %v1274, %v1275
        %v1277 = vrot.slane %v1275, 4
        %v1278 = vrot.slane %v835, 5
        %v1279 = vsel %vm724, %v1277, %v1278
        %v1280 = vrot.slane %v1278, 4
        %v1281 = vrot.slane %v836, 5
        %v1282 = vsel %vm724, %v1280, %v1281
        %v1283 = vrot.slane %v1281, 4
        %v1284 = vrot.slane %v865, 5
        %v1285 = vsel %vm724, %v1283, %v1284
        %v1286 = vrot.slane %v1226, 5
        %v1287 = vrot.slane %v1286, 4
        %v1288 = vrot.slane %v838, 5
        %v1289 = vsel %vm724, %v1287, %v1288
        %v1290 = vrot.slane %v1288, 4
        %v1291 = vrot.slane %v839, 5
        %v1292 = vsel %vm724, %v1290, %v1291
        %v1293 = vrot.slane %v1291, 4
        %v1294 = vrot.slane %v840, 5
        %v1295 = vsel %vm724, %v1293, %v1294
        %v1296 = vrot.slane %v1294, 4
        %v1297 = vrot.slane %v866, 5
        %v1298 = vsel %vm724, %v1296, %v1297
        %v1299 = vrot.slane %v1227, 5
        %v1300 = vrot.slane %v1299, 4
        %v1301 = vrot.slane %v842, 5
        %v1302 = vsel %vm724, %v1300, %v1301
        %v1303 = vrot.slane %v1301, 4
        %v1304 = vrot.slane %v843, 5
        %v1305 = vsel %vm724, %v1303, %v1304
        %v1306 = vrot.slane %v1304, 4
        %v1307 = vrot.slane %v844, 5
        %v1308 = vsel %vm724, %v1306, %v1307
        %v1309 = vrot.slane %v1307, 4
        %v1310 = vrot.slane %v867, 5
        %v1311 = vsel %vm724, %v1309, %v1310
        %v1312 = vrot.slane %v1228, 5
        %v1313 = vrot.slane %v1312, 4
        %v1314 = vrot.slane %v846, 5
        %v1315 = vsel %vm724, %v1313, %v1314
        %v1316 = vrot.slane %v1314, 4
        %v1317 = vrot.slane %v847, 5
        %v1318 = vsel %vm724, %v1316, %v1317
        %v1319 = vrot.slane %v1317, 4
        %v1320 = vrot.slane %v848, 5
        %v1321 = vsel %vm724, %v1319, %v1320
        %v1322 = vrot.slane %v1320, 4
        %v1323 = vrot.slane %v868, 5
        %v1324 = vsel %vm724, %v1322, %v1323
        %v1325 = vrot.slane %v1229, 5
        %v1326 = vrot.slane %v1325, 4
        %v1327 = vrot.slane %v850, 5
        %v1328 = vsel %vm724, %v1326, %v1327
        %v1329 = vrot.slane %v1327, 4
        %v1330 = vrot.slane %v851, 5
        %v1331 = vsel %vm724, %v1329, %v1330
        %v1332 = vrot.slane %v1330, 4
        %v1333 = vrot.slane %v852, 5
        %v1334 = vsel %vm724, %v1332, %v1333
        %v1335 = vrot.slane %v1333, 4
        %v1336 = vrot.slane %v869, 5
        %v1337 = vsel %vm724, %v1335, %v1336
        %v1338 = vrot.slane %v1230, 5
        %v1339 = vrot.slane %v1338, 4
        %v1340 = vrot.slane %v854, 5
        %v1341 = vsel %vm724, %v1339, %v1340
        %v1342 = vrot.slane %v1340, 4
        %v1343 = vrot.slane %v855, 5
        %v1344 = vsel %vm724, %v1342, %v1343
        %v1345 = vrot.slane %v1343, 4
        %v1346 = vrot.slane %v856, 5
        %v1347 = vsel %vm724, %v1345, %v1346
        %v1348 = vrot.slane %v1346, 4
        %v1349 = vrot.slane %v870, 5
        %v1350 = vsel %vm724, %v1348, %v1349
        %v1351 = vrot.slane %v1231, 5
        %v1352 = vrot.slane %v1351, 4
        %v1353 = vrot.slane %v858, 5
        %v1354 = vsel %vm724, %v1352, %v1353
        %v1355 = vrot.slane %v1353, 4
        %v1356 = vrot.slane %v859, 5
        %v1357 = vsel %vm724, %v1355, %v1356
        %v1358 = vrot.slane %v1356, 4
        %v1359 = vrot.slane %v860, 5
        %v1360 = vsel %vm724, %v1358, %v1359
        %v1361 = vrot.slane %v1359, 4
        %v1362 = vrot.slane %v871, 5
        %v1363 = vsel %vm724, %v1361, %v1362
        %v1364 = vrot.slane %v1232, 5
        %v1365 = vrot.slane %v1364, 4
        %v1366 = vrot.slane %v862, 5
        %v1367 = vsel %vm724, %v1365, %v1366
        %v1368 = vrot.slane %v1366, 4
        %v1369 = vrot.slane %v863, 5
        %v1370 = vsel %vm724, %v1368, %v1369
        %v1371 = vrot.slane %v1369, 4
        %v1372 = vrot.slane %v864, 5
        %v1373 = vsel %vm724, %v1371, %v1372
        %v1374 = vrot.slane %v1372, 4
        %v1375 = vrot.slane %v872, 5
        %v1376 = vsel %vm724, %v1374, %v1375
        %s1377 = sadd.s32 %s275, 2
        %s1378 = smul.u32 %s1377, 5
        %s1379 = smul.addr %s1378, 4
        %s1380 = scalar_lea.vmem %s262, %s1379
        %v1381 = vld [vmem:[%s1380] sm:$0xf]
        %v1382 = vld [vmem:[%s1380 + $0x4] sm:$0xf]
        %v1383 = vld [vmem:[%s1380 + $0x8] sm:$0xf]
        %v1384 = vld [vmem:[%s1380 + $0xc] sm:$0xf]
        %v1385 = vld [vmem:[%s1380 + $0x14] sm:$0xf]
        %v1386 = vld [vmem:[%s1380 + $0x18] sm:$0xf]
        %v1387 = vld [vmem:[%s1380 + $0x1c] sm:$0xf]
        %v1388 = vld [vmem:[%s1380 + $0x20] sm:$0xf]
        %v1389 = vld [vmem:[%s1380 + $0x28] sm:$0xf]
        %v1390 = vld [vmem:[%s1380 + $0x2c] sm:$0xf]
        %v1391 = vld [vmem:[%s1380 + $0x30] sm:$0xf]
        %v1392 = vld [vmem:[%s1380 + $0x34] sm:$0xf]
        %v1393 = vld [vmem:[%s1380 + $0x3c] sm:$0xf]
        %v1394 = vld [vmem:[%s1380 + $0x40] sm:$0xf]
        %v1395 = vld [vmem:[%s1380 + $0x44] sm:$0xf]
        %v1396 = vld [vmem:[%s1380 + $0x48] sm:$0xf]
        %v1397 = vld [vmem:[%s1380 + $0x50] sm:$0xf]
        %v1398 = vld [vmem:[%s1380 + $0x54] sm:$0xf]
        %v1399 = vld [vmem:[%s1380 + $0x58] sm:$0xf]
        %v1400 = vld [vmem:[%s1380 + $0x5c] sm:$0xf]
        %v1401 = vld [vmem:[%s1380 + $0x64] sm:$0xf]
        %v1402 = vld [vmem:[%s1380 + $0x68] sm:$0xf]
        %v1403 = vld [vmem:[%s1380 + $0x6c] sm:$0xf]
        %v1404 = vld [vmem:[%s1380 + $0x70] sm:$0xf]
        %v1405 = vld [vmem:[%s1380 + $0x78] sm:$0xf]
        %v1406 = vld [vmem:[%s1380 + $0x7c] sm:$0xf]
        %v1407 = vld [vmem:[%s1380 + $0x80] sm:$0xf]
        %v1408 = vld [vmem:[%s1380 + $0x84] sm:$0xf]
        %v1409 = vld [vmem:[%s1380 + $0x8c] sm:$0xf]
        %v1410 = vld [vmem:[%s1380 + $0x90] sm:$0xf]
        %v1411 = vld [vmem:[%s1380 + $0x94] sm:$0xf]
        %v1412 = vld [vmem:[%s1380 + $0x98] sm:$0xf]
        %v1413 = vld [vmem:[%s1380 + $0x10] sm:$0x1]
        %v1414 = vld [vmem:[%s1380 + $0x24] sm:$0x1]
        %v1415 = vld [vmem:[%s1380 + $0x38] sm:$0x1]
        %v1416 = vld [vmem:[%s1380 + $0x4c] sm:$0x1]
        %v1417 = vld [vmem:[%s1380 + $0x60] sm:$0x1]
        %v1418 = vld [vmem:[%s1380 + $0x74] sm:$0x1]
        %v1419 = vld [vmem:[%s1380 + $0x88] sm:$0x1]
        %v1420 = vld [vmem:[%s1380 + $0x9c] sm:$0x1]
        %v1422 = vshrl.u32 %v1381, 16
        %v1424 = vrot.slane %v1422, 4
        %v1425 = vshll.u32 %v1381, 16
        %v1427 = vrot.slane %v1425, 5
        %v1428 = vor.u32 %v1424, %v1427
        %v1429 = vrot.slane %v1428, 4
        %v1431 = vshll.u32 %v1382, 16
        %v1433 = vrot.slane %v1431, 5
        %v1434 = vsel %vm321, %v1429, %v1433
        %v1435 = vshrl.u32 %v1382, 16
        %v1437 = vrot.slane %v1435, 4
        %v1438 = vor.u32 %v1437, %v1433
        %v1439 = vrot.slane %v1438, 4
        %v1441 = vshll.u32 %v1383, 16
        %v1443 = vrot.slane %v1441, 5
        %v1444 = vsel %vm321, %v1439, %v1443
        %v1445 = vshrl.u32 %v1383, 16
        %v1447 = vrot.slane %v1445, 4
        %v1448 = vor.u32 %v1447, %v1443
        %v1449 = vrot.slane %v1448, 4
        %v1451 = vshll.u32 %v1384, 16
        %v1453 = vrot.slane %v1451, 5
        %v1454 = vsel %vm321, %v1449, %v1453
        %v1455 = vshrl.u32 %v1384, 16
        %v1457 = vrot.slane %v1455, 4
        %v1458 = vor.u32 %v1457, %v1453
        %v1459 = vrot.slane %v1458, 4
        %v1461 = vshll.u32 %v1413, 16
        %v1463 = vrot.slane %v1461, 5
        %v1464 = vsel %vm321, %v1459, %v1463
        %v1466 = vshrl.u32 %v1385, 16
        %v1468 = vrot.slane %v1466, 4
        %v1469 = vshll.u32 %v1385, 16
        %v1471 = vrot.slane %v1469, 5
        %v1472 = vor.u32 %v1468, %v1471
        %v1473 = vrot.slane %v1472, 4
        %v1475 = vshll.u32 %v1386, 16
        %v1477 = vrot.slane %v1475, 5
        %v1478 = vsel %vm321, %v1473, %v1477
        %v1479 = vshrl.u32 %v1386, 16
        %v1481 = vrot.slane %v1479, 4
        %v1482 = vor.u32 %v1481, %v1477
        %v1483 = vrot.slane %v1482, 4
        %v1485 = vshll.u32 %v1387, 16
        %v1487 = vrot.slane %v1485, 5
        %v1488 = vsel %vm321, %v1483, %v1487
        %v1489 = vshrl.u32 %v1387, 16
        %v1491 = vrot.slane %v1489, 4
        %v1492 = vor.u32 %v1491, %v1487
        %v1493 = vrot.slane %v1492, 4
        %v1495 = vshll.u32 %v1388, 16
        %v1497 = vrot.slane %v1495, 5
        %v1498 = vsel %vm321, %v1493, %v1497
        %v1499 = vshrl.u32 %v1388, 16
        %v1501 = vrot.slane %v1499, 4
        %v1502 = vor.u32 %v1501, %v1497
        %v1503 = vrot.slane %v1502, 4
        %v1505 = vshll.u32 %v1414, 16
        %v1507 = vrot.slane %v1505, 5
        %v1508 = vsel %vm321, %v1503, %v1507
        %v1510 = vshrl.u32 %v1389, 16
        %v1512 = vrot.slane %v1510, 4
        %v1513 = vshll.u32 %v1389, 16
        %v1515 = vrot.slane %v1513, 5
        %v1516 = vor.u32 %v1512, %v1515
        %v1517 = vrot.slane %v1516, 4
        %v1519 = vshll.u32 %v1390, 16
        %v1521 = vrot.slane %v1519, 5
        %v1522 = vsel %vm321, %v1517, %v1521
        %v1523 = vshrl.u32 %v1390, 16
        %v1525 = vrot.slane %v1523, 4
        %v1526 = vor.u32 %v1525, %v1521
        %v1527 = vrot.slane %v1526, 4
        %v1529 = vshll.u32 %v1391, 16
        %v1531 = vrot.slane %v1529, 5
        %v1532 = vsel %vm321, %v1527, %v1531
        %v1533 = vshrl.u32 %v1391, 16
        %v1535 = vrot.slane %v1533, 4
        %v1536 = vor.u32 %v1535, %v1531
        %v1537 = vrot.slane %v1536, 4
        %v1539 = vshll.u32 %v1392, 16
        %v1541 = vrot.slane %v1539, 5
        %v1542 = vsel %vm321, %v1537, %v1541
        %v1543 = vshrl.u32 %v1392, 16
        %v1545 = vrot.slane %v1543, 4
        %v1546 = vor.u32 %v1545, %v1541
        %v1547 = vrot.slane %v1546, 4
        %v1549 = vshll.u32 %v1415, 16
        %v1551 = vrot.slane %v1549, 5
        %v1552 = vsel %vm321, %v1547, %v1551
        %v1554 = vshrl.u32 %v1393, 16
        %v1556 = vrot.slane %v1554, 4
        %v1557 = vshll.u32 %v1393, 16
        %v1559 = vrot.slane %v1557, 5
        %v1560 = vor.u32 %v1556, %v1559
        %v1561 = vrot.slane %v1560, 4
        %v1563 = vshll.u32 %v1394, 16
        %v1565 = vrot.slane %v1563, 5
        %v1566 = vsel %vm321, %v1561, %v1565
        %v1567 = vshrl.u32 %v1394, 16
        %v1569 = vrot.slane %v1567, 4
        %v1570 = vor.u32 %v1569, %v1565
        %v1571 = vrot.slane %v1570, 4
        %v1573 = vshll.u32 %v1395, 16
        %v1575 = vrot.slane %v1573, 5
        %v1576 = vsel %vm321, %v1571, %v1575
        %v1577 = vshrl.u32 %v1395, 16
        %v1579 = vrot.slane %v1577, 4
        %v1580 = vor.u32 %v1579, %v1575
        %v1581 = vrot.slane %v1580, 4
        %v1583 = vshll.u32 %v1396, 16
        %v1585 = vrot.slane %v1583, 5
        %v1586 = vsel %vm321, %v1581, %v1585
        %v1587 = vshrl.u32 %v1396, 16
        %v1589 = vrot.slane %v1587, 4
        %v1590 = vor.u32 %v1589, %v1585
        %v1591 = vrot.slane %v1590, 4
        %v1593 = vshll.u32 %v1416, 16
        %v1595 = vrot.slane %v1593, 5
        %v1596 = vsel %vm321, %v1591, %v1595
        %v1598 = vshrl.u32 %v1397, 16
        %v1600 = vrot.slane %v1598, 4
        %v1601 = vshll.u32 %v1397, 16
        %v1603 = vrot.slane %v1601, 5
        %v1604 = vor.u32 %v1600, %v1603
        %v1605 = vrot.slane %v1604, 4
        %v1607 = vshll.u32 %v1398, 16
        %v1609 = vrot.slane %v1607, 5
        %v1610 = vsel %vm321, %v1605, %v1609
        %v1611 = vshrl.u32 %v1398, 16
        %v1613 = vrot.slane %v1611, 4
        %v1614 = vor.u32 %v1613, %v1609
        %v1615 = vrot.slane %v1614, 4
        %v1617 = vshll.u32 %v1399, 16
        %v1619 = vrot.slane %v1617, 5
        %v1620 = vsel %vm321, %v1615, %v1619
        %v1621 = vshrl.u32 %v1399, 16
        %v1623 = vrot.slane %v1621, 4
        %v1624 = vor.u32 %v1623, %v1619
        %v1625 = vrot.slane %v1624, 4
        %v1627 = vshll.u32 %v1400, 16
        %v1629 = vrot.slane %v1627, 5
        %v1630 = vsel %vm321, %v1625, %v1629
        %v1631 = vshrl.u32 %v1400, 16
        %v1633 = vrot.slane %v1631, 4
        %v1634 = vor.u32 %v1633, %v1629
        %v1635 = vrot.slane %v1634, 4
        %v1637 = vshll.u32 %v1417, 16
        %v1639 = vrot.slane %v1637, 5
        %v1640 = vsel %vm321, %v1635, %v1639
        %v1642 = vshrl.u32 %v1401, 16
        %v1644 = vrot.slane %v1642, 4
        %v1645 = vshll.u32 %v1401, 16
        %v1647 = vrot.slane %v1645, 5
        %v1648 = vor.u32 %v1644, %v1647
        %v1649 = vrot.slane %v1648, 4
        %v1651 = vshll.u32 %v1402, 16
        %v1653 = vrot.slane %v1651, 5
        %v1654 = vsel %vm321, %v1649, %v1653
        %v1655 = vshrl.u32 %v1402, 16
        %v1657 = vrot.slane %v1655, 4
        %v1658 = vor.u32 %v1657, %v1653
        %v1659 = vrot.slane %v1658, 4
        %v1661 = vshll.u32 %v1403, 16
        %v1663 = vrot.slane %v1661, 5
        %v1664 = vsel %vm321, %v1659, %v1663
        %v1665 = vshrl.u32 %v1403, 16
        %v1667 = vrot.slane %v1665, 4
        %v1668 = vor.u32 %v1667, %v1663
        %v1669 = vrot.slane %v1668, 4
        %v1671 = vshll.u32 %v1404, 16
        %v1673 = vrot.slane %v1671, 5
        %v1674 = vsel %vm321, %v1669, %v1673
        %v1675 = vshrl.u32 %v1404, 16
        %v1677 = vrot.slane %v1675, 4
        %v1678 = vor.u32 %v1677, %v1673
        %v1679 = vrot.slane %v1678, 4
        %v1681 = vshll.u32 %v1418, 16
        %v1683 = vrot.slane %v1681, 5
        %v1684 = vsel %vm321, %v1679, %v1683
        %v1686 = vshrl.u32 %v1405, 16
        %v1688 = vrot.slane %v1686, 4
        %v1689 = vshll.u32 %v1405, 16
        %v1691 = vrot.slane %v1689, 5
        %v1692 = vor.u32 %v1688, %v1691
        %v1693 = vrot.slane %v1692, 4
        %v1695 = vshll.u32 %v1406, 16
        %v1697 = vrot.slane %v1695, 5
        %v1698 = vsel %vm321, %v1693, %v1697
        %v1699 = vshrl.u32 %v1406, 16
        %v1701 = vrot.slane %v1699, 4
        %v1702 = vor.u32 %v1701, %v1697
        %v1703 = vrot.slane %v1702, 4
        %v1705 = vshll.u32 %v1407, 16
        %v1707 = vrot.slane %v1705, 5
        %v1708 = vsel %vm321, %v1703, %v1707
        %v1709 = vshrl.u32 %v1407, 16
        %v1711 = vrot.slane %v1709, 4
        %v1712 = vor.u32 %v1711, %v1707
        %v1713 = vrot.slane %v1712, 4
        %v1715 = vshll.u32 %v1408, 16
        %v1717 = vrot.slane %v1715, 5
        %v1718 = vsel %vm321, %v1713, %v1717
        %v1719 = vshrl.u32 %v1408, 16
        %v1721 = vrot.slane %v1719, 4
        %v1722 = vor.u32 %v1721, %v1717
        %v1723 = vrot.slane %v1722, 4
        %v1725 = vshll.u32 %v1419, 16
        %v1727 = vrot.slane %v1725, 5
        %v1728 = vsel %vm321, %v1723, %v1727
        %v1730 = vshrl.u32 %v1409, 16
        %v1732 = vrot.slane %v1730, 4
        %v1733 = vshll.u32 %v1409, 16
        %v1735 = vrot.slane %v1733, 5
        %v1736 = vor.u32 %v1732, %v1735
        %v1737 = vrot.slane %v1736, 4
        %v1739 = vshll.u32 %v1410, 16
        %v1741 = vrot.slane %v1739, 5
        %v1742 = vsel %vm321, %v1737, %v1741
        %v1743 = vshrl.u32 %v1410, 16
        %v1745 = vrot.slane %v1743, 4
        %v1746 = vor.u32 %v1745, %v1741
        %v1747 = vrot.slane %v1746, 4
        %v1749 = vshll.u32 %v1411, 16
        %v1751 = vrot.slane %v1749, 5
        %v1752 = vsel %vm321, %v1747, %v1751
        %v1753 = vshrl.u32 %v1411, 16
        %v1755 = vrot.slane %v1753, 4
        %v1756 = vor.u32 %v1755, %v1751
        %v1757 = vrot.slane %v1756, 4
        %v1759 = vshll.u32 %v1412, 16
        %v1761 = vrot.slane %v1759, 5
        %v1762 = vsel %vm321, %v1757, %v1761
        %v1763 = vshrl.u32 %v1412, 16
        %v1765 = vrot.slane %v1763, 4
        %v1766 = vor.u32 %v1765, %v1761
        %v1767 = vrot.slane %v1766, 4
        %v1769 = vshll.u32 %v1420, 16
        %v1771 = vrot.slane %v1769, 5
        %v1772 = vsel %vm321, %v1767, %v1771
        %v1773 = vld [vmem:[%s1380] sm:$0xe]
        %v1774 = vld [vmem:[%s1380 + $0x14] sm:$0xe]
        %v1775 = vld [vmem:[%s1380 + $0x28] sm:$0xe]
        %v1776 = vld [vmem:[%s1380 + $0x3c] sm:$0xe]
        %v1777 = vld [vmem:[%s1380 + $0x50] sm:$0xe]
        %v1778 = vld [vmem:[%s1380 + $0x64] sm:$0xe]
        %v1779 = vld [vmem:[%s1380 + $0x78] sm:$0xe]
        %v1780 = vld [vmem:[%s1380 + $0x8c] sm:$0xe]
        %v1821 = vrot.slane %v1773, 5
        %v1822 = vrot.slane %v1821, 4
        %v1823 = vrot.slane %v1382, 5
        %v1824 = vsel %vm724, %v1822, %v1823
        %v1825 = vrot.slane %v1823, 4
        %v1826 = vrot.slane %v1383, 5
        %v1827 = vsel %vm724, %v1825, %v1826
        %v1828 = vrot.slane %v1826, 4
        %v1829 = vrot.slane %v1384, 5
        %v1830 = vsel %vm724, %v1828, %v1829
        %v1831 = vrot.slane %v1829, 4
        %v1832 = vrot.slane %v1413, 5
        %v1833 = vsel %vm724, %v1831, %v1832
        %v1834 = vrot.slane %v1774, 5
        %v1835 = vrot.slane %v1834, 4
        %v1836 = vrot.slane %v1386, 5
        %v1837 = vsel %vm724, %v1835, %v1836
        %v1838 = vrot.slane %v1836, 4
        %v1839 = vrot.slane %v1387, 5
        %v1840 = vsel %vm724, %v1838, %v1839
        %v1841 = vrot.slane %v1839, 4
        %v1842 = vrot.slane %v1388, 5
        %v1843 = vsel %vm724, %v1841, %v1842
        %v1844 = vrot.slane %v1842, 4
        %v1845 = vrot.slane %v1414, 5
        %v1846 = vsel %vm724, %v1844, %v1845
        %v1847 = vrot.slane %v1775, 5
        %v1848 = vrot.slane %v1847, 4
        %v1849 = vrot.slane %v1390, 5
        %v1850 = vsel %vm724, %v1848, %v1849
        %v1851 = vrot.slane %v1849, 4
        %v1852 = vrot.slane %v1391, 5
        %v1853 = vsel %vm724, %v1851, %v1852
        %v1854 = vrot.slane %v1852, 4
        %v1855 = vrot.slane %v1392, 5
        %v1856 = vsel %vm724, %v1854, %v1855
        %v1857 = vrot.slane %v1855, 4
        %v1858 = vrot.slane %v1415, 5
        %v1859 = vsel %vm724, %v1857, %v1858
        %v1860 = vrot.slane %v1776, 5
        %v1861 = vrot.slane %v1860, 4
        %v1862 = vrot.slane %v1394, 5
        %v1863 = vsel %vm724, %v1861, %v1862
        %v1864 = vrot.slane %v1862, 4
        %v1865 = vrot.slane %v1395, 5
        %v1866 = vsel %vm724, %v1864, %v1865
        %v1867 = vrot.slane %v1865, 4
        %v1868 = vrot.slane %v1396, 5
        %v1869 = vsel %vm724, %v1867, %v1868
        %v1870 = vrot.slane %v1868, 4
        %v1871 = vrot.slane %v1416, 5
        %v1872 = vsel %vm724, %v1870, %v1871
        %v1873 = vrot.slane %v1777, 5
        %v1874 = vrot.slane %v1873, 4
        %v1875 = vrot.slane %v1398, 5
        %v1876 = vsel %vm724, %v1874, %v1875
        %v1877 = vrot.slane %v1875, 4
        %v1878 = vrot.slane %v1399, 5
        %v1879 = vsel %vm724, %v1877, %v1878
        %v1880 = vrot.slane %v1878, 4
        %v1881 = vrot.slane %v1400, 5
        %v1882 = vsel %vm724, %v1880, %v1881
        %v1883 = vrot.slane %v1881, 4
        %v1884 = vrot.slane %v1417, 5
        %v1885 = vsel %vm724, %v1883, %v1884
        %v1886 = vrot.slane %v1778, 5
        %v1887 = vrot.slane %v1886, 4
        %v1888 = vrot.slane %v1402, 5
        %v1889 = vsel %vm724, %v1887, %v1888
        %v1890 = vrot.slane %v1888, 4
        %v1891 = vrot.slane %v1403, 5
        %v1892 = vsel %vm724, %v1890, %v1891
        %v1893 = vrot.slane %v1891, 4
        %v1894 = vrot.slane %v1404, 5
        %v1895 = vsel %vm724, %v1893, %v1894
        %v1896 = vrot.slane %v1894, 4
        %v1897 = vrot.slane %v1418, 5
        %v1898 = vsel %vm724, %v1896, %v1897
        %v1899 = vrot.slane %v1779, 5
        %v1900 = vrot.slane %v1899, 4
        %v1901 = vrot.slane %v1406, 5
        %v1902 = vsel %vm724, %v1900, %v1901
        %v1903 = vrot.slane %v1901, 4
        %v1904 = vrot.slane %v1407, 5
        %v1905 = vsel %vm724, %v1903, %v1904
        %v1906 = vrot.slane %v1904, 4
        %v1907 = vrot.slane %v1408, 5
        %v1908 = vsel %vm724, %v1906, %v1907
        %v1909 = vrot.slane %v1907, 4
        %v1910 = vrot.slane %v1419, 5
        %v1911 = vsel %vm724, %v1909, %v1910
        %v1912 = vrot.slane %v1780, 5
        %v1913 = vrot.slane %v1912, 4
        %v1914 = vrot.slane %v1410, 5
        %v1915 = vsel %vm724, %v1913, %v1914
        %v1916 = vrot.slane %v1914, 4
        %v1917 = vrot.slane %v1411, 5
        %v1918 = vsel %vm724, %v1916, %v1917
        %v1919 = vrot.slane %v1917, 4
        %v1920 = vrot.slane %v1412, 5
        %v1921 = vsel %vm724, %v1919, %v1920
        %v1922 = vrot.slane %v1920, 4
        %v1923 = vrot.slane %v1420, 5
        %v1924 = vsel %vm724, %v1922, %v1923
        %v1933 = vunpack.c.l.b16 %v279
        %v1934 = vunpack.c.l.b16 %v280
        %v1935 = vunpack.c.l.b16 %v281
        %v1936 = vunpack.c.l.b16 %v282
        %v1937 = vunpack.c.l.b16 %v283
        %v1938 = vunpack.c.l.b16 %v284
        %v1939 = vunpack.c.l.b16 %v285
        %v1940 = vunpack.c.l.b16 %v286
        %v1941 = vunpack.c.l.b16 %v287
        %v1942 = vunpack.c.l.b16 %v288
        %v1943 = vunpack.c.l.b16 %v289
        %v1944 = vunpack.c.l.b16 %v290
        %v1945 = vunpack.c.l.b16 %v291
        %v1946 = vunpack.c.l.b16 %v292
        %v1947 = vunpack.c.l.b16 %v293
        %v1948 = vunpack.c.l.b16 %v294
        %v1949 = vunpack.c.l.b16 %v295
        %v1950 = vunpack.c.l.b16 %v296
        %v1951 = vunpack.c.l.b16 %v297
        %v1952 = vunpack.c.l.b16 %v298
        %v1953 = vunpack.c.l.b16 %v299
        %v1954 = vunpack.c.l.b16 %v300
        %v1955 = vunpack.c.l.b16 %v301
        %v1956 = vunpack.c.l.b16 %v302
        %v1957 = vunpack.c.l.b16 %v303
        %v1958 = vunpack.c.l.b16 %v304
        %v1959 = vunpack.c.l.b16 %v305
        %v1960 = vunpack.c.l.b16 %v306
        %v1961 = vunpack.c.l.b16 %v307
        %v1962 = vunpack.c.l.b16 %v308
        %v1963 = vunpack.c.l.b16 %v309
        %v1964 = vunpack.c.l.b16 %v310
        %v1965 = vpack.c.b16 %v1934, %v1933
        %v1966 = vpack.c.b16 %v1936, %v1935
        %v1967 = vpack.c.b16 %v1938, %v1937
        %v1968 = vpack.c.b16 %v1940, %v1939
        %v1969 = vpack.c.b16 %v1942, %v1941
        %v1970 = vpack.c.b16 %v1944, %v1943
        %v1971 = vpack.c.b16 %v1946, %v1945
        %v1972 = vpack.c.b16 %v1948, %v1947
        %v1973 = vpack.c.b16 %v1950, %v1949
        %v1974 = vpack.c.b16 %v1952, %v1951
        %v1975 = vpack.c.b16 %v1954, %v1953
        %v1976 = vpack.c.b16 %v1956, %v1955
        %v1977 = vpack.c.b16 %v1958, %v1957
        %v1978 = vpack.c.b16 %v1960, %v1959
        %v1979 = vpack.c.b16 %v1962, %v1961
        %v1980 = vpack.c.b16 %v1964, %v1963
        %v1981 = vunpack.c.l.b16 %v335
        %v1982 = vunpack.c.l.b16 %v345
        %v1983 = vunpack.c.l.b16 %v355
        %v1984 = vunpack.c.l.b16 %v365
        %v1985 = vunpack.c.l.b16 %v379
        %v1986 = vunpack.c.l.b16 %v389
        %v1987 = vunpack.c.l.b16 %v399
        %v1988 = vunpack.c.l.b16 %v409
        %v1989 = vunpack.c.l.b16 %v423
        %v1990 = vunpack.c.l.b16 %v433
        %v1991 = vunpack.c.l.b16 %v443
        %v1992 = vunpack.c.l.b16 %v453
        %v1993 = vunpack.c.l.b16 %v467
        %v1994 = vunpack.c.l.b16 %v477
        %v1995 = vunpack.c.l.b16 %v487
        %v1996 = vunpack.c.l.b16 %v497
        %v1997 = vunpack.c.l.b16 %v511
        %v1998 = vunpack.c.l.b16 %v521
        %v1999 = vunpack.c.l.b16 %v531
        %v2000 = vunpack.c.l.b16 %v541
        %v2001 = vunpack.c.l.b16 %v555
        %v2002 = vunpack.c.l.b16 %v565
        %v2003 = vunpack.c.l.b16 %v575
        %v2004 = vunpack.c.l.b16 %v585
        %v2005 = vunpack.c.l.b16 %v599
        %v2006 = vunpack.c.l.b16 %v609
        %v2007 = vunpack.c.l.b16 %v619
        %v2008 = vunpack.c.l.b16 %v629
        %v2009 = vunpack.c.l.b16 %v643
        %v2010 = vunpack.c.l.b16 %v653
        %v2011 = vunpack.c.l.b16 %v663
        %v2012 = vunpack.c.l.b16 %v673
        %v2013 = vpack.c.b16 %v1982, %v1981
        %v2014 = vpack.c.b16 %v1984, %v1983
        %v2015 = vpack.c.b16 %v1986, %v1985
        %v2016 = vpack.c.b16 %v1988, %v1987
        %v2017 = vpack.c.b16 %v1990, %v1989
        %v2018 = vpack.c.b16 %v1992, %v1991
        %v2019 = vpack.c.b16 %v1994, %v1993
        %v2020 = vpack.c.b16 %v1996, %v1995
        %v2021 = vpack.c.b16 %v1998, %v1997
        %v2022 = vpack.c.b16 %v2000, %v1999
        %v2023 = vpack.c.b16 %v2002, %v2001
        %v2024 = vpack.c.b16 %v2004, %v2003
        %v2025 = vpack.c.b16 %v2006, %v2005
        %v2026 = vpack.c.b16 %v2008, %v2007
        %v2027 = vpack.c.b16 %v2010, %v2009
        %v2028 = vpack.c.b16 %v2012, %v2011
        %2029 = vrot.lane.b32.xlu0 %v2013, 64
        %v2030 = vpop.permute.xlu0 %2029
        %2031 = vrot.lane.b32.xlu0 %v2014, 64
        %v2032 = vpop.permute.xlu0 %2031
        %2033 = vrot.lane.b32.xlu0 %v2015, 64
        %v2034 = vpop.permute.xlu0 %2033
        %2035 = vrot.lane.b32.xlu0 %v2016, 64
        %v2036 = vpop.permute.xlu0 %2035
        %2037 = vrot.lane.b32.xlu0 %v2017, 64
        %v2038 = vpop.permute.xlu0 %2037
        %2039 = vrot.lane.b32.xlu0 %v2018, 64
        %v2040 = vpop.permute.xlu0 %2039
        %2041 = vrot.lane.b32.xlu0 %v2019, 64
        %v2042 = vpop.permute.xlu0 %2041
        %2043 = vrot.lane.b32.xlu0 %v2020, 64
        %v2044 = vpop.permute.xlu0 %2043
        %2045 = vrot.lane.b32.xlu0 %v2021, 64
        %v2046 = vpop.permute.xlu0 %2045
        %2047 = vrot.lane.b32.xlu0 %v2022, 64
        %v2048 = vpop.permute.xlu0 %2047
        %2049 = vrot.lane.b32.xlu0 %v2023, 64
        %v2050 = vpop.permute.xlu0 %2049
        %2051 = vrot.lane.b32.xlu0 %v2024, 64
        %v2052 = vpop.permute.xlu0 %2051
        %2053 = vrot.lane.b32.xlu0 %v2025, 64
        %v2054 = vpop.permute.xlu0 %2053
        %2055 = vrot.lane.b32.xlu0 %v2026, 64
        %v2056 = vpop.permute.xlu0 %2055
        %2057 = vrot.lane.b32.xlu0 %v2027, 64
        %v2058 = vpop.permute.xlu0 %2057
        %2059 = vrot.lane.b32.xlu0 %v2028, 64
        %v2060 = vpop.permute.xlu0 %2059
        %v2061 = vunpack.c.l.b16 %v728
        %v2062 = vunpack.c.l.b16 %v731
        %v2063 = vunpack.c.l.b16 %v734
        %v2064 = vunpack.c.l.b16 %v737
        %v2065 = vunpack.c.l.b16 %v741
        %v2066 = vunpack.c.l.b16 %v744
        %v2067 = vunpack.c.l.b16 %v747
        %v2068 = vunpack.c.l.b16 %v750
        %v2069 = vunpack.c.l.b16 %v754
        %v2070 = vunpack.c.l.b16 %v757
        %v2071 = vunpack.c.l.b16 %v760
        %v2072 = vunpack.c.l.b16 %v763
        %v2073 = vunpack.c.l.b16 %v767
        %v2074 = vunpack.c.l.b16 %v770
        %v2075 = vunpack.c.l.b16 %v773
        %v2076 = vunpack.c.l.b16 %v776
        %v2077 = vunpack.c.l.b16 %v780
        %v2078 = vunpack.c.l.b16 %v783
        %v2079 = vunpack.c.l.b16 %v786
        %v2080 = vunpack.c.l.b16 %v789
        %v2081 = vunpack.c.l.b16 %v793
        %v2082 = vunpack.c.l.b16 %v796
        %v2083 = vunpack.c.l.b16 %v799
        %v2084 = vunpack.c.l.b16 %v802
        %v2085 = vunpack.c.l.b16 %v806
        %v2086 = vunpack.c.l.b16 %v809
        %v2087 = vunpack.c.l.b16 %v812
        %v2088 = vunpack.c.l.b16 %v815
        %v2089 = vunpack.c.l.b16 %v819
        %v2090 = vunpack.c.l.b16 %v822
        %v2091 = vunpack.c.l.b16 %v825
        %v2092 = vunpack.c.l.b16 %v828
        %v2093 = vpack.c.b16 %v2062, %v2061
        %v2094 = vpack.c.b16 %v2064, %v2063
        %v2095 = vpack.c.b16 %v2066, %v2065
        %v2096 = vpack.c.b16 %v2068, %v2067
        %v2097 = vpack.c.b16 %v2070, %v2069
        %v2098 = vpack.c.b16 %v2072, %v2071
        %v2099 = vpack.c.b16 %v2074, %v2073
        %v2100 = vpack.c.b16 %v2076, %v2075
        %v2101 = vpack.c.b16 %v2078, %v2077
        %v2102 = vpack.c.b16 %v2080, %v2079
        %v2103 = vpack.c.b16 %v2082, %v2081
        %v2104 = vpack.c.b16 %v2084, %v2083
        %v2105 = vpack.c.b16 %v2086, %v2085
        %v2106 = vpack.c.b16 %v2088, %v2087
        %v2107 = vpack.c.b16 %v2090, %v2089
        %v2108 = vpack.c.b16 %v2092, %v2091
        %v2117 = vunpack.c.l.b16 %v833
        %v2118 = vunpack.c.l.b16 %v834
        %v2119 = vunpack.c.l.b16 %v835
        %v2120 = vunpack.c.l.b16 %v836
        %v2121 = vunpack.c.l.b16 %v837
        %v2122 = vunpack.c.l.b16 %v838
        %v2123 = vunpack.c.l.b16 %v839
        %v2124 = vunpack.c.l.b16 %v840
        %v2125 = vunpack.c.l.b16 %v841
        %v2126 = vunpack.c.l.b16 %v842
        %v2127 = vunpack.c.l.b16 %v843
        %v2128 = vunpack.c.l.b16 %v844
        %v2129 = vunpack.c.l.b16 %v845
        %v2130 = vunpack.c.l.b16 %v846
        %v2131 = vunpack.c.l.b16 %v847
        %v2132 = vunpack.c.l.b16 %v848
        %v2133 = vunpack.c.l.b16 %v849
        %v2134 = vunpack.c.l.b16 %v850
        %v2135 = vunpack.c.l.b16 %v851
        %v2136 = vunpack.c.l.b16 %v852
        %v2137 = vunpack.c.l.b16 %v853
        %v2138 = vunpack.c.l.b16 %v854
        %v2139 = vunpack.c.l.b16 %v855
        %v2140 = vunpack.c.l.b16 %v856
        %v2141 = vunpack.c.l.b16 %v857
        %v2142 = vunpack.c.l.b16 %v858
        %v2143 = vunpack.c.l.b16 %v859
        %v2144 = vunpack.c.l.b16 %v860
        %v2145 = vunpack.c.l.b16 %v861
        %v2146 = vunpack.c.l.b16 %v862
        %v2147 = vunpack.c.l.b16 %v863
        %v2148 = vunpack.c.l.b16 %v864
        %v2149 = vpack.c.b16 %v2118, %v2117
        %v2150 = vpack.c.b16 %v2120, %v2119
        %v2151 = vpack.c.b16 %v2122, %v2121
        %v2152 = vpack.c.b16 %v2124, %v2123
        %v2153 = vpack.c.b16 %v2126, %v2125
        %v2154 = vpack.c.b16 %v2128, %v2127
        %v2155 = vpack.c.b16 %v2130, %v2129
        %v2156 = vpack.c.b16 %v2132, %v2131
        %v2157 = vpack.c.b16 %v2134, %v2133
        %v2158 = vpack.c.b16 %v2136, %v2135
        %v2159 = vpack.c.b16 %v2138, %v2137
        %v2160 = vpack.c.b16 %v2140, %v2139
        %v2161 = vpack.c.b16 %v2142, %v2141
        %v2162 = vpack.c.b16 %v2144, %v2143
        %v2163 = vpack.c.b16 %v2146, %v2145
        %v2164 = vpack.c.b16 %v2148, %v2147
        %2165 = vrot.lane.b32.xlu0 %v2149, 64
        %v2166 = vpop.permute.xlu0 %2165
        %2167 = vrot.lane.b32.xlu0 %v2150, 64
        %v2168 = vpop.permute.xlu0 %2167
        %2169 = vrot.lane.b32.xlu0 %v2151, 64
        %v2170 = vpop.permute.xlu0 %2169
        %2171 = vrot.lane.b32.xlu0 %v2152, 64
        %v2172 = vpop.permute.xlu0 %2171
        %2173 = vrot.lane.b32.xlu0 %v2153, 64
        %v2174 = vpop.permute.xlu0 %2173
        %2175 = vrot.lane.b32.xlu0 %v2154, 64
        %v2176 = vpop.permute.xlu0 %2175
        %2177 = vrot.lane.b32.xlu0 %v2155, 64
        %v2178 = vpop.permute.xlu0 %2177
        %2179 = vrot.lane.b32.xlu0 %v2156, 64
        %v2180 = vpop.permute.xlu0 %2179
        %2181 = vrot.lane.b32.xlu0 %v2157, 64
        %v2182 = vpop.permute.xlu0 %2181
        %2183 = vrot.lane.b32.xlu0 %v2158, 64
        %v2184 = vpop.permute.xlu0 %2183
        %2185 = vrot.lane.b32.xlu0 %v2159, 64
        %v2186 = vpop.permute.xlu0 %2185
        %2187 = vrot.lane.b32.xlu0 %v2160, 64
        %v2188 = vpop.permute.xlu0 %2187
        %2189 = vrot.lane.b32.xlu0 %v2161, 64
        %v2190 = vpop.permute.xlu0 %2189
        %2191 = vrot.lane.b32.xlu0 %v2162, 64
        %v2192 = vpop.permute.xlu0 %2191
        %2193 = vrot.lane.b32.xlu0 %v2163, 64
        %v2194 = vpop.permute.xlu0 %2193
        %2195 = vrot.lane.b32.xlu0 %v2164, 64
        %v2196 = vpop.permute.xlu0 %2195
        %v2197 = vunpack.c.l.b16 %v886
        %v2198 = vunpack.c.l.b16 %v896
        %v2199 = vunpack.c.l.b16 %v906
        %v2200 = vunpack.c.l.b16 %v916
        %v2201 = vunpack.c.l.b16 %v930
        %v2202 = vunpack.c.l.b16 %v940
        %v2203 = vunpack.c.l.b16 %v950
        %v2204 = vunpack.c.l.b16 %v960
        %v2205 = vunpack.c.l.b16 %v974
        %v2206 = vunpack.c.l.b16 %v984
        %v2207 = vunpack.c.l.b16 %v994
        %v2208 = vunpack.c.l.b16 %v1004
        %v2209 = vunpack.c.l.b16 %v1018
        %v2210 = vunpack.c.l.b16 %v1028
        %v2211 = vunpack.c.l.b16 %v1038
        %v2212 = vunpack.c.l.b16 %v1048
        %v2213 = vunpack.c.l.b16 %v1062
        %v2214 = vunpack.c.l.b16 %v1072
        %v2215 = vunpack.c.l.b16 %v1082
        %v2216 = vunpack.c.l.b16 %v1092
        %v2217 = vunpack.c.l.b16 %v1106
        %v2218 = vunpack.c.l.b16 %v1116
        %v2219 = vunpack.c.l.b16 %v1126
        %v2220 = vunpack.c.l.b16 %v1136
        %v2221 = vunpack.c.l.b16 %v1150
        %v2222 = vunpack.c.l.b16 %v1160
        %v2223 = vunpack.c.l.b16 %v1170
        %v2224 = vunpack.c.l.b16 %v1180
        %v2225 = vunpack.c.l.b16 %v1194
        %v2226 = vunpack.c.l.b16 %v1204
        %v2227 = vunpack.c.l.b16 %v1214
        %v2228 = vunpack.c.l.b16 %v1224
        %v2229 = vpack.c.b16 %v2198, %v2197
        %v2230 = vpack.c.b16 %v2200, %v2199
        %v2231 = vpack.c.b16 %v2202, %v2201
        %v2232 = vpack.c.b16 %v2204, %v2203
        %v2233 = vpack.c.b16 %v2206, %v2205
        %v2234 = vpack.c.b16 %v2208, %v2207
        %v2235 = vpack.c.b16 %v2210, %v2209
        %v2236 = vpack.c.b16 %v2212, %v2211
        %v2237 = vpack.c.b16 %v2214, %v2213
        %v2238 = vpack.c.b16 %v2216, %v2215
        %v2239 = vpack.c.b16 %v2218, %v2217
        %v2240 = vpack.c.b16 %v2220, %v2219
        %v2241 = vpack.c.b16 %v2222, %v2221
        %v2242 = vpack.c.b16 %v2224, %v2223
        %v2243 = vpack.c.b16 %v2226, %v2225
        %v2244 = vpack.c.b16 %v2228, %v2227
        %v2245 = vunpack.c.l.b16 %v1276
        %v2246 = vunpack.c.l.b16 %v1279
        %v2247 = vunpack.c.l.b16 %v1282
        %v2248 = vunpack.c.l.b16 %v1285
        %v2249 = vunpack.c.l.b16 %v1289
        %v2250 = vunpack.c.l.b16 %v1292
        %v2251 = vunpack.c.l.b16 %v1295
        %v2252 = vunpack.c.l.b16 %v1298
        %v2253 = vunpack.c.l.b16 %v1302
        %v2254 = vunpack.c.l.b16 %v1305
        %v2255 = vunpack.c.l.b16 %v1308
        %v2256 = vunpack.c.l.b16 %v1311
        %v2257 = vunpack.c.l.b16 %v1315
        %v2258 = vunpack.c.l.b16 %v1318
        %v2259 = vunpack.c.l.b16 %v1321
        %v2260 = vunpack.c.l.b16 %v1324
        %v2261 = vunpack.c.l.b16 %v1328
        %v2262 = vunpack.c.l.b16 %v1331
        %v2263 = vunpack.c.l.b16 %v1334
        %v2264 = vunpack.c.l.b16 %v1337
        %v2265 = vunpack.c.l.b16 %v1341
        %v2266 = vunpack.c.l.b16 %v1344
        %v2267 = vunpack.c.l.b16 %v1347
        %v2268 = vunpack.c.l.b16 %v1350
        %v2269 = vunpack.c.l.b16 %v1354
        %v2270 = vunpack.c.l.b16 %v1357
        %v2271 = vunpack.c.l.b16 %v1360
        %v2272 = vunpack.c.l.b16 %v1363
        %v2273 = vunpack.c.l.b16 %v1367
        %v2274 = vunpack.c.l.b16 %v1370
        %v2275 = vunpack.c.l.b16 %v1373
        %v2276 = vunpack.c.l.b16 %v1376
        %v2277 = vpack.c.b16 %v2246, %v2245
        %v2278 = vpack.c.b16 %v2248, %v2247
        %v2279 = vpack.c.b16 %v2250, %v2249
        %v2280 = vpack.c.b16 %v2252, %v2251
        %v2281 = vpack.c.b16 %v2254, %v2253
        %v2282 = vpack.c.b16 %v2256, %v2255
        %v2283 = vpack.c.b16 %v2258, %v2257
        %v2284 = vpack.c.b16 %v2260, %v2259
        %v2285 = vpack.c.b16 %v2262, %v2261
        %v2286 = vpack.c.b16 %v2264, %v2263
        %v2287 = vpack.c.b16 %v2266, %v2265
        %v2288 = vpack.c.b16 %v2268, %v2267
        %v2289 = vpack.c.b16 %v2270, %v2269
        %v2290 = vpack.c.b16 %v2272, %v2271
        %v2291 = vpack.c.b16 %v2274, %v2273
        %v2292 = vpack.c.b16 %v2276, %v2275
        %2293 = vrot.lane.b32.xlu0 %v2277, 64
        %v2294 = vpop.permute.xlu0 %2293
        %2295 = vrot.lane.b32.xlu0 %v2278, 64
        %v2296 = vpop.permute.xlu0 %2295
        %2297 = vrot.lane.b32.xlu0 %v2279, 64
        %v2298 = vpop.permute.xlu0 %2297
        %2299 = vrot.lane.b32.xlu0 %v2280, 64
        %v2300 = vpop.permute.xlu0 %2299
        %2301 = vrot.lane.b32.xlu0 %v2281, 64
        %v2302 = vpop.permute.xlu0 %2301
        %2303 = vrot.lane.b32.xlu0 %v2282, 64
        %v2304 = vpop.permute.xlu0 %2303
        %2305 = vrot.lane.b32.xlu0 %v2283, 64
        %v2306 = vpop.permute.xlu0 %2305
        %2307 = vrot.lane.b32.xlu0 %v2284, 64
        %v2308 = vpop.permute.xlu0 %2307
        %2309 = vrot.lane.b32.xlu0 %v2285, 64
        %v2310 = vpop.permute.xlu0 %2309
        %2311 = vrot.lane.b32.xlu0 %v2286, 64
        %v2312 = vpop.permute.xlu0 %2311
        %2313 = vrot.lane.b32.xlu0 %v2287, 64
        %v2314 = vpop.permute.xlu0 %2313
        %2315 = vrot.lane.b32.xlu0 %v2288, 64
        %v2316 = vpop.permute.xlu0 %2315
        %2317 = vrot.lane.b32.xlu0 %v2289, 64
        %v2318 = vpop.permute.xlu0 %2317
        %2319 = vrot.lane.b32.xlu0 %v2290, 64
        %v2320 = vpop.permute.xlu0 %2319
        %2321 = vrot.lane.b32.xlu0 %v2291, 64
        %v2322 = vpop.permute.xlu0 %2321
        %2323 = vrot.lane.b32.xlu0 %v2292, 64
        %v2324 = vpop.permute.xlu0 %2323
        %v2333 = vunpack.c.l.b16 %v1381
        %v2334 = vunpack.c.l.b16 %v1382
        %v2335 = vunpack.c.l.b16 %v1383
        %v2336 = vunpack.c.l.b16 %v1384
        %v2337 = vunpack.c.l.b16 %v1385
        %v2338 = vunpack.c.l.b16 %v1386
        %v2339 = vunpack.c.l.b16 %v1387
        %v2340 = vunpack.c.l.b16 %v1388
        %v2341 = vunpack.c.l.b16 %v1389
        %v2342 = vunpack.c.l.b16 %v1390
        %v2343 = vunpack.c.l.b16 %v1391
        %v2344 = vunpack.c.l.b16 %v1392
        %v2345 = vunpack.c.l.b16 %v1393
        %v2346 = vunpack.c.l.b16 %v1394
        %v2347 = vunpack.c.l.b16 %v1395
        %v2348 = vunpack.c.l.b16 %v1396
        %v2349 = vunpack.c.l.b16 %v1397
        %v2350 = vunpack.c.l.b16 %v1398
        %v2351 = vunpack.c.l.b16 %v1399
        %v2352 = vunpack.c.l.b16 %v1400
        %v2353 = vunpack.c.l.b16 %v1401
        %v2354 = vunpack.c.l.b16 %v1402
        %v2355 = vunpack.c.l.b16 %v1403
        %v2356 = vunpack.c.l.b16 %v1404
        %v2357 = vunpack.c.l.b16 %v1405
        %v2358 = vunpack.c.l.b16 %v1406
        %v2359 = vunpack.c.l.b16 %v1407
        %v2360 = vunpack.c.l.b16 %v1408
        %v2361 = vunpack.c.l.b16 %v1409
        %v2362 = vunpack.c.l.b16 %v1410
        %v2363 = vunpack.c.l.b16 %v1411
        %v2364 = vunpack.c.l.b16 %v1412
        %v2365 = vpack.c.b16 %v2334, %v2333
        %v2366 = vpack.c.b16 %v2336, %v2335
        %v2367 = vpack.c.b16 %v2338, %v2337
        %v2368 = vpack.c.b16 %v2340, %v2339
        %v2369 = vpack.c.b16 %v2342, %v2341
        %v2370 = vpack.c.b16 %v2344, %v2343
        %v2371 = vpack.c.b16 %v2346, %v2345
        %v2372 = vpack.c.b16 %v2348, %v2347
        %v2373 = vpack.c.b16 %v2350, %v2349
        %v2374 = vpack.c.b16 %v2352, %v2351
        %v2375 = vpack.c.b16 %v2354, %v2353
        %v2376 = vpack.c.b16 %v2356, %v2355
        %v2377 = vpack.c.b16 %v2358, %v2357
        %v2378 = vpack.c.b16 %v2360, %v2359
        %v2379 = vpack.c.b16 %v2362, %v2361
        %v2380 = vpack.c.b16 %v2364, %v2363
        %v2381 = vunpack.c.l.b16 %v1434
        %v2382 = vunpack.c.l.b16 %v1444
        %v2383 = vunpack.c.l.b16 %v1454
        %v2384 = vunpack.c.l.b16 %v1464
        %v2385 = vunpack.c.l.b16 %v1478
        %v2386 = vunpack.c.l.b16 %v1488
        %v2387 = vunpack.c.l.b16 %v1498
        %v2388 = vunpack.c.l.b16 %v1508
        %v2389 = vunpack.c.l.b16 %v1522
        %v2390 = vunpack.c.l.b16 %v1532
        %v2391 = vunpack.c.l.b16 %v1542
        %v2392 = vunpack.c.l.b16 %v1552
        %v2393 = vunpack.c.l.b16 %v1566
        %v2394 = vunpack.c.l.b16 %v1576
        %v2395 = vunpack.c.l.b16 %v1586
        %v2396 = vunpack.c.l.b16 %v1596
        %v2397 = vunpack.c.l.b16 %v1610
        %v2398 = vunpack.c.l.b16 %v1620
        %v2399 = vunpack.c.l.b16 %v1630
        %v2400 = vunpack.c.l.b16 %v1640
        %v2401 = vunpack.c.l.b16 %v1654
        %v2402 = vunpack.c.l.b16 %v1664
        %v2403 = vunpack.c.l.b16 %v1674
        %v2404 = vunpack.c.l.b16 %v1684
        %v2405 = vunpack.c.l.b16 %v1698
        %v2406 = vunpack.c.l.b16 %v1708
        %v2407 = vunpack.c.l.b16 %v1718
        %v2408 = vunpack.c.l.b16 %v1728
        %v2409 = vunpack.c.l.b16 %v1742
        %v2410 = vunpack.c.l.b16 %v1752
        %v2411 = vunpack.c.l.b16 %v1762
        %v2412 = vunpack.c.l.b16 %v1772
        %v2413 = vpack.c.b16 %v2382, %v2381
        %v2414 = vpack.c.b16 %v2384, %v2383
        %v2415 = vpack.c.b16 %v2386, %v2385
        %v2416 = vpack.c.b16 %v2388, %v2387
        %v2417 = vpack.c.b16 %v2390, %v2389
        %v2418 = vpack.c.b16 %v2392, %v2391
        %v2419 = vpack.c.b16 %v2394, %v2393
        %v2420 = vpack.c.b16 %v2396, %v2395
        %v2421 = vpack.c.b16 %v2398, %v2397
        %v2422 = vpack.c.b16 %v2400, %v2399
        %v2423 = vpack.c.b16 %v2402, %v2401
        %v2424 = vpack.c.b16 %v2404, %v2403
        %v2425 = vpack.c.b16 %v2406, %v2405
        %v2426 = vpack.c.b16 %v2408, %v2407
        %v2427 = vpack.c.b16 %v2410, %v2409
        %v2428 = vpack.c.b16 %v2412, %v2411
        %2429 = vrot.lane.b32.xlu0 %v2413, 64
        %v2430 = vpop.permute.xlu0 %2429
        %2431 = vrot.lane.b32.xlu0 %v2414, 64
        %v2432 = vpop.permute.xlu0 %2431
        %2433 = vrot.lane.b32.xlu0 %v2415, 64
        %v2434 = vpop.permute.xlu0 %2433
        %2435 = vrot.lane.b32.xlu0 %v2416, 64
        %v2436 = vpop.permute.xlu0 %2435
        %2437 = vrot.lane.b32.xlu0 %v2417, 64
        %v2438 = vpop.permute.xlu0 %2437
        %2439 = vrot.lane.b32.xlu0 %v2418, 64
        %v2440 = vpop.permute.xlu0 %2439
        %2441 = vrot.lane.b32.xlu0 %v2419, 64
        %v2442 = vpop.permute.xlu0 %2441
        %2443 = vrot.lane.b32.xlu0 %v2420, 64
        %v2444 = vpop.permute.xlu0 %2443
        %2445 = vrot.lane.b32.xlu0 %v2421, 64
        %v2446 = vpop.permute.xlu0 %2445
        %2447 = vrot.lane.b32.xlu0 %v2422, 64
        %v2448 = vpop.permute.xlu0 %2447
        %2449 = vrot.lane.b32.xlu0 %v2423, 64
        %v2450 = vpop.permute.xlu0 %2449
        %2451 = vrot.lane.b32.xlu0 %v2424, 64
        %v2452 = vpop.permute.xlu0 %2451
        %2453 = vrot.lane.b32.xlu0 %v2425, 64
        %v2454 = vpop.permute.xlu0 %2453
        %2455 = vrot.lane.b32.xlu0 %v2426, 64
        %v2456 = vpop.permute.xlu0 %2455
        %2457 = vrot.lane.b32.xlu0 %v2427, 64
        %v2458 = vpop.permute.xlu0 %2457
        %2459 = vrot.lane.b32.xlu0 %v2428, 64
        %v2460 = vpop.permute.xlu0 %2459
        %v2461 = vunpack.c.l.b16 %v1824
        %v2462 = vunpack.c.l.b16 %v1827
        %v2463 = vunpack.c.l.b16 %v1830
        %v2464 = vunpack.c.l.b16 %v1833
        %v2465 = vunpack.c.l.b16 %v1837
        %v2466 = vunpack.c.l.b16 %v1840
        %v2467 = vunpack.c.l.b16 %v1843
        %v2468 = vunpack.c.l.b16 %v1846
        %v2469 = vunpack.c.l.b16 %v1850
        %v2470 = vunpack.c.l.b16 %v1853
        %v2471 = vunpack.c.l.b16 %v1856
        %v2472 = vunpack.c.l.b16 %v1859
        %v2473 = vunpack.c.l.b16 %v1863
        %v2474 = vunpack.c.l.b16 %v1866
        %v2475 = vunpack.c.l.b16 %v1869
        %v2476 = vunpack.c.l.b16 %v1872
        %v2477 = vunpack.c.l.b16 %v1876
        %v2478 = vunpack.c.l.b16 %v1879
        %v2479 = vunpack.c.l.b16 %v1882
        %v2480 = vunpack.c.l.b16 %v1885
        %v2481 = vunpack.c.l.b16 %v1889
        %v2482 = vunpack.c.l.b16 %v1892
        %v2483 = vunpack.c.l.b16 %v1895
        %v2484 = vunpack.c.l.b16 %v1898
        %v2485 = vunpack.c.l.b16 %v1902
        %v2486 = vunpack.c.l.b16 %v1905
        %v2487 = vunpack.c.l.b16 %v1908
        %v2488 = vunpack.c.l.b16 %v1911
        %v2489 = vunpack.c.l.b16 %v1915
        %v2490 = vunpack.c.l.b16 %v1918
        %v2491 = vunpack.c.l.b16 %v1921
        %v2492 = vunpack.c.l.b16 %v1924
        %v2493 = vpack.c.b16 %v2462, %v2461
        %v2494 = vpack.c.b16 %v2464, %v2463
        %v2495 = vpack.c.b16 %v2466, %v2465
        %v2496 = vpack.c.b16 %v2468, %v2467
        %v2497 = vpack.c.b16 %v2470, %v2469
        %v2498 = vpack.c.b16 %v2472, %v2471
        %v2499 = vpack.c.b16 %v2474, %v2473
        %v2500 = vpack.c.b16 %v2476, %v2475
        %v2501 = vpack.c.b16 %v2478, %v2477
        %v2502 = vpack.c.b16 %v2480, %v2479
        %v2503 = vpack.c.b16 %v2482, %v2481
        %v2504 = vpack.c.b16 %v2484, %v2483
        %v2505 = vpack.c.b16 %v2486, %v2485
        %v2506 = vpack.c.b16 %v2488, %v2487
        %v2507 = vpack.c.b16 %v2490, %v2489
        %v2508 = vpack.c.b16 %v2492, %v2491
        %vm2509 = vcmask 523264
        %v2512 = vsel %vm2509, %v1965, %v2030
        %v2516 = vsel %vm2509, %v1966, %v2032
        %v2520 = vsel %vm2509, %v1967, %v2034
        %v2524 = vsel %vm2509, %v1968, %v2036
        %v2528 = vsel %vm2509, %v1969, %v2038
        %v2532 = vsel %vm2509, %v1970, %v2040
        %v2536 = vsel %vm2509, %v1971, %v2042
        %v2540 = vsel %vm2509, %v1972, %v2044
        %v2544 = vsel %vm2509, %v1973, %v2046
        %v2548 = vsel %vm2509, %v1974, %v2048
        %v2552 = vsel %vm2509, %v1975, %v2050
        %v2556 = vsel %vm2509, %v1976, %v2052
        %v2560 = vsel %vm2509, %v1977, %v2054
        %v2564 = vsel %vm2509, %v1978, %v2056
        %v2568 = vsel %vm2509, %v1979, %v2058
        %v2572 = vsel %vm2509, %v1980, %v2060
        %v2576 = vsel %vm2509, %v2093, %v2166
        %v2580 = vsel %vm2509, %v2094, %v2168
        %v2584 = vsel %vm2509, %v2095, %v2170
        %v2588 = vsel %vm2509, %v2096, %v2172
        %v2592 = vsel %vm2509, %v2097, %v2174
        %v2596 = vsel %vm2509, %v2098, %v2176
        %v2600 = vsel %vm2509, %v2099, %v2178
        %v2604 = vsel %vm2509, %v2100, %v2180
        %v2608 = vsel %vm2509, %v2101, %v2182
        %v2612 = vsel %vm2509, %v2102, %v2184
        %v2616 = vsel %vm2509, %v2103, %v2186
        %v2620 = vsel %vm2509, %v2104, %v2188
        %v2624 = vsel %vm2509, %v2105, %v2190
        %v2628 = vsel %vm2509, %v2106, %v2192
        %v2632 = vsel %vm2509, %v2107, %v2194
        %v2636 = vsel %vm2509, %v2108, %v2196
        %v2640 = vsel %vm2509, %v2229, %v2294
        %v2644 = vsel %vm2509, %v2230, %v2296
        %v2648 = vsel %vm2509, %v2231, %v2298
        %v2652 = vsel %vm2509, %v2232, %v2300
        %v2656 = vsel %vm2509, %v2233, %v2302
        %v2660 = vsel %vm2509, %v2234, %v2304
        %v2664 = vsel %vm2509, %v2235, %v2306
        %v2668 = vsel %vm2509, %v2236, %v2308
        %v2672 = vsel %vm2509, %v2237, %v2310
        %v2676 = vsel %vm2509, %v2238, %v2312
        %v2680 = vsel %vm2509, %v2239, %v2314
        %v2684 = vsel %vm2509, %v2240, %v2316
        %v2688 = vsel %vm2509, %v2241, %v2318
        %v2692 = vsel %vm2509, %v2242, %v2320
        %v2696 = vsel %vm2509, %v2243, %v2322
        %v2700 = vsel %vm2509, %v2244, %v2324
        %v2704 = vsel %vm2509, %v2365, %v2430
        %v2708 = vsel %vm2509, %v2366, %v2432
        %v2712 = vsel %vm2509, %v2367, %v2434
        %v2716 = vsel %vm2509, %v2368, %v2436
        %v2720 = vsel %vm2509, %v2369, %v2438
        %v2724 = vsel %vm2509, %v2370, %v2440
        %v2728 = vsel %vm2509, %v2371, %v2442
        %v2732 = vsel %vm2509, %v2372, %v2444
        %v2736 = vsel %vm2509, %v2373, %v2446
        %v2740 = vsel %vm2509, %v2374, %v2448
        %v2744 = vsel %vm2509, %v2375, %v2450
        %v2748 = vsel %vm2509, %v2376, %v2452
        %v2752 = vsel %vm2509, %v2377, %v2454
        %v2756 = vsel %vm2509, %v2378, %v2456
        %v2760 = vsel %vm2509, %v2379, %v2458
        %v2764 = vsel %vm2509, %v2380, %v2460
        %v2766 = vld [vmem:[%s1] sm:$0xf]
        %v2767 = vld [vmem:[%s1 + $0x4] sm:$0xf]
        %v2768 = vld [vmem:[%s1 + $0x8] sm:$0xf]
        %v2769 = vld [vmem:[%s1 + $0xc] sm:$0xf]
        %v2770 = vld [vmem:[%s1 + $0x10] sm:$0xf]
        %v2771 = vld [vmem:[%s1 + $0x14] sm:$0xf]
        %v2772 = vld [vmem:[%s1 + $0x18] sm:$0xf]
        %v2773 = vld [vmem:[%s1 + $0x1c] sm:$0xf]
        %v2774 = vld [vmem:[%s1 + $0x20] sm:$0xf]
        %v2775 = vld [vmem:[%s1 + $0x24] sm:$0xf]
        %v2776 = vld [vmem:[%s1 + $0x28] sm:$0xf]
        %v2777 = vld [vmem:[%s1 + $0x2c] sm:$0xf]
        %v2778 = vld [vmem:[%s1 + $0x30] sm:$0xf]
        %v2779 = vld [vmem:[%s1 + $0x34] sm:$0xf]
        %v2780 = vld [vmem:[%s1 + $0x38] sm:$0xf]
        %v2781 = vld [vmem:[%s1 + $0x3c] sm:$0xf]
        %v2782 = vld [vmem:[%s1 + $0x40] sm:$0xf]
        %v2783 = vld [vmem:[%s1 + $0x44] sm:$0xf]
        %v2784 = vld [vmem:[%s1 + $0x48] sm:$0xf]
        %v2785 = vld [vmem:[%s1 + $0x4c] sm:$0xf]
        %v2786 = vld [vmem:[%s1 + $0x50] sm:$0xf]
        %v2787 = vld [vmem:[%s1 + $0x54] sm:$0xf]
        %v2788 = vld [vmem:[%s1 + $0x58] sm:$0xf]
        %v2789 = vld [vmem:[%s1 + $0x5c] sm:$0xf]
        %v2790 = vld [vmem:[%s1 + $0x60] sm:$0xf]
        %v2791 = vld [vmem:[%s1 + $0x64] sm:$0xf]
        %v2792 = vld [vmem:[%s1 + $0x68] sm:$0xf]
        %v2793 = vld [vmem:[%s1 + $0x6c] sm:$0xf]
        %v2794 = vld [vmem:[%s1 + $0x70] sm:$0xf]
        %v2795 = vld [vmem:[%s1 + $0x74] sm:$0xf]
        %v2796 = vld [vmem:[%s1 + $0x78] sm:$0xf]
        %v2797 = vld [vmem:[%s1 + $0x7c] sm:$0xf]
        %v2798 = vld [vmem:[%s1 + $0x80] sm:$0xf]
        %v2799 = vld [vmem:[%s1 + $0x84] sm:$0xf]
        %v2800 = vld [vmem:[%s1 + $0x88] sm:$0xf]
        %v2801 = vld [vmem:[%s1 + $0x8c] sm:$0xf]
        %v2802 = vld [vmem:[%s1 + $0x90] sm:$0xf]
        %v2803 = vld [vmem:[%s1 + $0x94] sm:$0xf]
        %v2804 = vld [vmem:[%s1 + $0x98] sm:$0xf]
        %v2805 = vld [vmem:[%s1 + $0x9c] sm:$0xf]
        %v2806 = vld [vmem:[%s1 + $0xa0] sm:$0xf]
        %v2807 = vld [vmem:[%s1 + $0xa4] sm:$0xf]
        %v2808 = vld [vmem:[%s1 + $0xa8] sm:$0xf]
        %v2809 = vld [vmem:[%s1 + $0xac] sm:$0xf]
        %v2810 = vld [vmem:[%s1 + $0xb0] sm:$0xf]
        %v2811 = vld [vmem:[%s1 + $0xb4] sm:$0xf]
        %v2812 = vld [vmem:[%s1 + $0xb8] sm:$0xf]
        %v2813 = vld [vmem:[%s1 + $0xbc] sm:$0xf]
        %v2814 = vld [vmem:[%s1 + $0xc0] sm:$0xf]
        %v2815 = vld [vmem:[%s1 + $0xc4] sm:$0xf]
        %v2816 = vld [vmem:[%s1 + $0xc8] sm:$0xf]
        %v2817 = vld [vmem:[%s1 + $0xcc] sm:$0xf]
        %v2818 = vld [vmem:[%s1 + $0xd0] sm:$0xf]
        %v2819 = vld [vmem:[%s1 + $0xd4] sm:$0xf]
        %v2820 = vld [vmem:[%s1 + $0xd8] sm:$0xf]
        %v2821 = vld [vmem:[%s1 + $0xdc] sm:$0xf]
        %v2822 = vld [vmem:[%s1 + $0xe0] sm:$0xf]
        %v2823 = vld [vmem:[%s1 + $0xe4] sm:$0xf]
        %v2824 = vld [vmem:[%s1 + $0xe8] sm:$0xf]
        %v2825 = vld [vmem:[%s1 + $0xec] sm:$0xf]
        %v2826 = vld [vmem:[%s1 + $0xf0] sm:$0xf]
        %v2827 = vld [vmem:[%s1 + $0xf4] sm:$0xf]
        %v2828 = vld [vmem:[%s1 + $0xf8] sm:$0xf]
        %v2829 = vld [vmem:[%s1 + $0xfc] sm:$0xf]
        %v2830 = vld [vmem:[%s1 + $0x100] sm:$0xf]
        %v2831 = vld [vmem:[%s1 + $0x104] sm:$0xf]
        %v2832 = vld [vmem:[%s1 + $0x108] sm:$0xf]
        %v2833 = vld [vmem:[%s1 + $0x10c] sm:$0xf]
        %v2834 = vld [vmem:[%s1 + $0x110] sm:$0xf]
        %v2835 = vld [vmem:[%s1 + $0x114] sm:$0xf]
        %v2836 = vld [vmem:[%s1 + $0x118] sm:$0xf]
        %v2837 = vld [vmem:[%s1 + $0x11c] sm:$0xf]
        %v2910 = vunpack.c.l.b16 %v2766
        %v2911 = vunpack.c.l.b16 %v2767
        %v2912 = vunpack.c.l.b16 %v2768
        %v2913 = vunpack.c.l.b16 %v2769
        %v2914 = vunpack.c.l.b16 %v2770
        %v2915 = vunpack.c.l.b16 %v2771
        %v2916 = vunpack.c.l.b16 %v2772
        %v2917 = vunpack.c.l.b16 %v2773
        %v2918 = vunpack.c.l.b16 %v2774
        %v2919 = vunpack.c.l.b16 %v2775
        %v2920 = vunpack.c.l.b16 %v2776
        %v2921 = vunpack.c.l.b16 %v2777
        %v2922 = vunpack.c.l.b16 %v2778
        %v2923 = vunpack.c.l.b16 %v2779
        %v2924 = vunpack.c.l.b16 %v2780
        %v2925 = vunpack.c.l.b16 %v2781
        %v2926 = vunpack.c.l.b16 %v2782
        %v2927 = vunpack.c.l.b16 %v2783
        %v2928 = vunpack.c.l.b16 %v2784
        %v2929 = vunpack.c.l.b16 %v2785
        %v2930 = vunpack.c.l.b16 %v2786
        %v2931 = vunpack.c.l.b16 %v2787
        %v2932 = vunpack.c.l.b16 %v2788
        %v2933 = vunpack.c.l.b16 %v2789
        %v2934 = vunpack.c.l.b16 %v2790
        %v2935 = vunpack.c.l.b16 %v2791
        %v2936 = vunpack.c.l.b16 %v2792
        %v2937 = vunpack.c.l.b16 %v2793
        %v2938 = vunpack.c.l.b16 %v2794
        %v2939 = vunpack.c.l.b16 %v2795
        %v2940 = vunpack.c.l.b16 %v2796
        %v2941 = vunpack.c.l.b16 %v2797
        %v2942 = vunpack.c.l.b16 %v2798
        %v2943 = vunpack.c.l.b16 %v2799
        %v2944 = vunpack.c.l.b16 %v2800
        %v2945 = vunpack.c.l.b16 %v2801
        %v2946 = vunpack.c.l.b16 %v2802
        %v2947 = vunpack.c.l.b16 %v2803
        %v2948 = vunpack.c.l.b16 %v2804
        %v2949 = vunpack.c.l.b16 %v2805
        %v2950 = vunpack.c.l.b16 %v2806
        %v2951 = vunpack.c.l.b16 %v2807
        %v2952 = vunpack.c.l.b16 %v2808
        %v2953 = vunpack.c.l.b16 %v2809
        %v2954 = vunpack.c.l.b16 %v2810
        %v2955 = vunpack.c.l.b16 %v2811
        %v2956 = vunpack.c.l.b16 %v2812
        %v2957 = vunpack.c.l.b16 %v2813
        %v2958 = vunpack.c.l.b16 %v2814
        %v2959 = vunpack.c.l.b16 %v2815
        %v2960 = vunpack.c.l.b16 %v2816
        %v2961 = vunpack.c.l.b16 %v2817
        %v2962 = vunpack.c.l.b16 %v2818
        %v2963 = vunpack.c.l.b16 %v2819
        %v2964 = vunpack.c.l.b16 %v2820
        %v2965 = vunpack.c.l.b16 %v2821
        %v2966 = vunpack.c.l.b16 %v2822
        %v2967 = vunpack.c.l.b16 %v2823
        %v2968 = vunpack.c.l.b16 %v2824
        %v2969 = vunpack.c.l.b16 %v2825
        %v2970 = vunpack.c.l.b16 %v2826
        %v2971 = vunpack.c.l.b16 %v2827
        %v2972 = vunpack.c.l.b16 %v2828
        %v2973 = vunpack.c.l.b16 %v2829
        %v2974 = vunpack.c.l.b16 %v2830
        %v2975 = vunpack.c.l.b16 %v2831
        %v2976 = vunpack.c.l.b16 %v2832
        %v2977 = vunpack.c.l.b16 %v2833
        %v2978 = vunpack.c.l.b16 %v2834
        %v2979 = vunpack.c.l.b16 %v2835
        %v2980 = vunpack.c.l.b16 %v2836
        %v2981 = vunpack.c.l.b16 %v2837
        %v2982 = vpack.c.b16 %v2911, %v2910
        %v2983 = vpack.c.b16 %v2913, %v2912
        %v2984 = vpack.c.b16 %v2915, %v2914
        %v2985 = vpack.c.b16 %v2917, %v2916
        %v2986 = vpack.c.b16 %v2919, %v2918
        %v2987 = vpack.c.b16 %v2921, %v2920
        %v2988 = vpack.c.b16 %v2923, %v2922
        %v2989 = vpack.c.b16 %v2925, %v2924
        %v2990 = vpack.c.b16 %v2927, %v2926
        %v2991 = vpack.c.b16 %v2929, %v2928
        %v2992 = vpack.c.b16 %v2931, %v2930
        %v2993 = vpack.c.b16 %v2933, %v2932
        %v2994 = vpack.c.b16 %v2935, %v2934
        %v2995 = vpack.c.b16 %v2937, %v2936
        %v2996 = vpack.c.b16 %v2939, %v2938
        %v2997 = vpack.c.b16 %v2941, %v2940
        %v2998 = vpack.c.b16 %v2943, %v2942
        %v2999 = vpack.c.b16 %v2945, %v2944
        %v3000 = vpack.c.b16 %v2947, %v2946
        %v3001 = vpack.c.b16 %v2949, %v2948
        %v3002 = vpack.c.b16 %v2951, %v2950
        %v3003 = vpack.c.b16 %v2953, %v2952
        %v3004 = vpack.c.b16 %v2955, %v2954
        %v3005 = vpack.c.b16 %v2957, %v2956
        %v3006 = vpack.c.b16 %v2959, %v2958
        %v3007 = vpack.c.b16 %v2961, %v2960
        %v3008 = vpack.c.b16 %v2963, %v2962
        %v3009 = vpack.c.b16 %v2965, %v2964
        %v3010 = vpack.c.b16 %v2967, %v2966
        %v3011 = vpack.c.b16 %v2969, %v2968
        %v3012 = vpack.c.b16 %v2971, %v2970
        %v3013 = vpack.c.b16 %v2973, %v2972
        %v3014 = vpack.c.b16 %v2975, %v2974
        %v3015 = vpack.c.b16 %v2977, %v2976
        %v3016 = vpack.c.b16 %v2979, %v2978
        %v3017 = vpack.c.b16 %v2981, %v2980
        %v3055 = vsel %vm2509, %v2493, 0
        %v3058 = vsel %vm2509, %v2494, 0
        %v3061 = vsel %vm2509, %v2495, 0
        %v3064 = vsel %vm2509, %v2496, 0
        %v3067 = vsel %vm2509, %v2497, 0
        %v3070 = vsel %vm2509, %v2498, 0
        %v3073 = vsel %vm2509, %v2499, 0
        %v3076 = vsel %vm2509, %v2500, 0
        %v3079 = vsel %vm2509, %v2501, 0
        %v3082 = vsel %vm2509, %v2502, 0
        %v3085 = vsel %vm2509, %v2503, 0
        %v3088 = vsel %vm2509, %v2504, 0
        %v3091 = vsel %vm2509, %v2505, 0
        %v3094 = vsel %vm2509, %v2506, 0
        %v3097 = vsel %vm2509, %v2507, 0
        %v3100 = vsel %vm2509, %v2508, 0
        %3102 = vmatprep.subr.bf16.mxu0 0
        %3103 = vmatpush1.bf16.msra.mxu0 %v2989
        %3104 = vmatprep.subr.bf16.mxu0 0
        %3105 = vmatpush1.bf16.msra.mxu0 %v2988
        %3106 = vmatprep.subr.bf16.mxu0 0
        %3107 = vmatpush1.bf16.msra.mxu0 %v2987
        %3108 = vmatprep.subr.bf16.mxu0 0
        %3109 = vmatpush1.bf16.msra.mxu0 %v2986
        %3110 = vmatprep.subr.bf16.mxu0 0
        %3111 = vmatpush1.bf16.msra.mxu0 %v2985
        %3112 = vmatprep.subr.bf16.mxu0 0
        %3113 = vmatpush1.bf16.msra.mxu0 %v2984
        %3114 = vmatprep.subr.bf16.mxu0 0
        %3115 = vmatpush1.bf16.msra.mxu0 %v2983
        %3116 = vmatprep.subr.bf16.mxu0 0
        %3117 = vmatpush1.bf16.msra.mxu0 %v2982
        %3118 = vmatprep.subr.bf16.mxu0 0
        %3119 = vmatpush2.bf16.msra.mxu0 %v2997
        %3120 = vmatprep.subr.bf16.mxu0 0
        %3121 = vmatpush2.bf16.msra.mxu0 %v2996
        %3122 = vmatprep.subr.bf16.mxu0 0
        %3123 = vmatpush2.bf16.msra.mxu0 %v2995
        %3124 = vmatprep.subr.bf16.mxu0 0
        %3125 = vmatpush2.bf16.msra.mxu0 %v2994
        %3126 = vmatprep.subr.bf16.mxu0 0
        %3127 = vmatpush2.bf16.msra.mxu0 %v2993
        %3128 = vmatprep.subr.bf16.mxu0 0
        %3129 = vmatpush2.bf16.msra.mxu0 %v2992
        %3130 = vmatprep.subr.bf16.mxu0 0
        %3131 = vmatpush2.bf16.msra.mxu0 %v2991
        %3132 = vmatprep.subr.bf16.mxu0 0
        %3133 = vmatpush2.bf16.msra.mxu0 %v2990
        %3134 = vmatprep.mubr.bf16.mxu0 %v2576
        %3135 = vmatmul.mubr.bf16.gmra.mxu0 %v2512
        %v3136 = vpop.f32.mrf.mxu0
        %v3137 = vadd.f32 0.0, %v3136
        %v3138 = vpop.f32.mrf.mxu0
        %v3139 = vpop.f32.mrf.mxu0
        %v3140 = vadd.f32 0.0, %v3139
        %v3141 = vpop.f32.mrf.mxu0
        %3142 = vmatprep.mubr.bf16.mxu0 %v2580
        %3143 = vmatmul.mubr.bf16.gmra.mxu0 %v2516
        %v3144 = vpop.f32.mrf.mxu0
        %v3145 = vadd.f32 0.0, %v3144
        %v3146 = vpop.f32.mrf.mxu0
        %v3147 = vpop.f32.mrf.mxu0
        %v3148 = vadd.f32 0.0, %v3147
        %v3149 = vpop.f32.mrf.mxu0
        %3150 = vmatprep.mubr.bf16.mxu0 %v2584
        %3151 = vmatmul.mubr.bf16.gmra.mxu0 %v2520
        %v3152 = vpop.f32.mrf.mxu0
        %v3153 = vadd.f32 0.0, %v3152
        %v3154 = vpop.f32.mrf.mxu0
        %v3155 = vpop.f32.mrf.mxu0
        %v3156 = vadd.f32 0.0, %v3155
        %v3157 = vpop.f32.mrf.mxu0
        %3158 = vmatprep.mubr.bf16.mxu0 %v2588
        %3159 = vmatmul.mubr.bf16.gmra.mxu0 %v2524
        %v3160 = vpop.f32.mrf.mxu0
        %v3161 = vadd.f32 0.0, %v3160
        %v3162 = vpop.f32.mrf.mxu0
        %v3163 = vpop.f32.mrf.mxu0
        %v3164 = vadd.f32 0.0, %v3163
        %v3165 = vpop.f32.mrf.mxu0
        %3166 = vmatprep.mubr.bf16.mxu0 %v2592
        %3167 = vmatmul.mubr.bf16.gmra.mxu0 %v2528
        %v3168 = vpop.f32.mrf.mxu0
        %v3169 = vadd.f32 0.0, %v3168
        %v3170 = vpop.f32.mrf.mxu0
        %v3171 = vpop.f32.mrf.mxu0
        %v3172 = vadd.f32 0.0, %v3171
        %v3173 = vpop.f32.mrf.mxu0
        %3174 = vmatprep.mubr.bf16.mxu0 %v2596
        %3175 = vmatmul.mubr.bf16.gmra.mxu0 %v2532
        %v3176 = vpop.f32.mrf.mxu0
        %v3177 = vadd.f32 0.0, %v3176
        %v3178 = vpop.f32.mrf.mxu0
        %v3179 = vpop.f32.mrf.mxu0
        %v3180 = vadd.f32 0.0, %v3179
        %v3181 = vpop.f32.mrf.mxu0
        %3182 = vmatprep.mubr.bf16.mxu0 %v2600
        %3183 = vmatmul.mubr.bf16.gmra.mxu0 %v2536
        %v3184 = vpop.f32.mrf.mxu0
        %v3185 = vadd.f32 0.0, %v3184
        %v3186 = vpop.f32.mrf.mxu0
        %v3187 = vpop.f32.mrf.mxu0
        %v3188 = vadd.f32 0.0, %v3187
        %v3189 = vpop.f32.mrf.mxu0
        %3190 = vmatprep.mubr.bf16.mxu0 %v2604
        %3191 = vmatmul.mubr.bf16.gmra.mxu0 %v2540
        %v3192 = vpop.f32.mrf.mxu0
        %v3193 = vadd.f32 0.0, %v3192
        %v3194 = vpop.f32.mrf.mxu0
        %v3195 = vpop.f32.mrf.mxu0
        %v3196 = vadd.f32 0.0, %v3195
        %v3197 = vpop.f32.mrf.mxu0
        %3198 = vmatprep.mubr.bf16.mxu0 %v2608
        %3199 = vmatmul.mubr.bf16.gmra.mxu0 %v2544
        %v3200 = vpop.f32.mrf.mxu0
        %v3201 = vadd.f32 0.0, %v3200
        %v3202 = vpop.f32.mrf.mxu0
        %v3203 = vpop.f32.mrf.mxu0
        %v3204 = vadd.f32 0.0, %v3203
        %v3205 = vpop.f32.mrf.mxu0
        %3206 = vmatprep.mubr.bf16.mxu0 %v2612
        %3207 = vmatmul.mubr.bf16.gmra.mxu0 %v2548
        %v3208 = vpop.f32.mrf.mxu0
        %v3209 = vadd.f32 0.0, %v3208
        %v3210 = vpop.f32.mrf.mxu0
        %v3211 = vpop.f32.mrf.mxu0
        %v3212 = vadd.f32 0.0, %v3211
        %v3213 = vpop.f32.mrf.mxu0
        %3214 = vmatprep.mubr.bf16.mxu0 %v2616
        %3215 = vmatmul.mubr.bf16.gmra.mxu0 %v2552
        %v3216 = vpop.f32.mrf.mxu0
        %v3217 = vadd.f32 0.0, %v3216
        %v3218 = vpop.f32.mrf.mxu0
        %v3219 = vpop.f32.mrf.mxu0
        %v3220 = vadd.f32 0.0, %v3219
        %v3221 = vpop.f32.mrf.mxu0
        %3222 = vmatprep.mubr.bf16.mxu0 %v2620
        %3223 = vmatmul.mubr.bf16.gmra.mxu0 %v2556
        %v3224 = vpop.f32.mrf.mxu0
        %v3225 = vadd.f32 0.0, %v3224
        %v3226 = vpop.f32.mrf.mxu0
        %v3227 = vpop.f32.mrf.mxu0
        %v3228 = vadd.f32 0.0, %v3227
        %v3229 = vpop.f32.mrf.mxu0
        %3230 = vmatprep.mubr.bf16.mxu0 %v2624
        %3231 = vmatmul.mubr.bf16.gmra.mxu0 %v2560
        %v3232 = vpop.f32.mrf.mxu0
        %v3233 = vadd.f32 0.0, %v3232
        %v3234 = vpop.f32.mrf.mxu0
        %v3235 = vpop.f32.mrf.mxu0
        %v3236 = vadd.f32 0.0, %v3235
        %v3237 = vpop.f32.mrf.mxu0
        %3238 = vmatprep.mubr.bf16.mxu0 %v2628
        %3239 = vmatmul.mubr.bf16.gmra.mxu0 %v2564
        %v3240 = vpop.f32.mrf.mxu0
        %v3241 = vadd.f32 0.0, %v3240
        %v3242 = vpop.f32.mrf.mxu0
        %v3243 = vpop.f32.mrf.mxu0
        %v3244 = vadd.f32 0.0, %v3243
        %v3245 = vpop.f32.mrf.mxu0
        %3246 = vmatprep.mubr.bf16.mxu0 %v2632
        %3247 = vmatmul.mubr.bf16.gmra.mxu0 %v2568
        %v3248 = vpop.f32.mrf.mxu0
        %v3249 = vadd.f32 0.0, %v3248
        %v3250 = vpop.f32.mrf.mxu0
        %v3251 = vpop.f32.mrf.mxu0
        %v3252 = vadd.f32 0.0, %v3251
        %v3253 = vpop.f32.mrf.mxu0
        %3254 = vmatprep.mubr.bf16.mxu0 %v2636
        %3255 = vmatmul.mubr.bf16.gmra.mxu0 %v2572
        %v3256 = vpop.f32.mrf.mxu0
        %v3257 = vadd.f32 0.0, %v3256
        %v3258 = vpop.f32.mrf.mxu0
        %v3259 = vpop.f32.mrf.mxu0
        %v3260 = vadd.f32 0.0, %v3259
        %v3261 = vpop.f32.mrf.mxu0
        %3262 = vdwg.mxu0
        %3263 = vmatprep.subr.bf16.mxu0 0
        %3264 = vmatpush1.bf16.msra.mxu0 %v3005
        %3265 = vmatprep.subr.bf16.mxu0 0
        %3266 = vmatpush1.bf16.msra.mxu0 %v3004
        %3267 = vmatprep.subr.bf16.mxu0 0
        %3268 = vmatpush1.bf16.msra.mxu0 %v3003
        %3269 = vmatprep.subr.bf16.mxu0 0
        %3270 = vmatpush1.bf16.msra.mxu0 %v3002
        %3271 = vmatprep.subr.bf16.mxu0 0
        %3272 = vmatpush1.bf16.msra.mxu0 %v3001
        %3273 = vmatprep.subr.bf16.mxu0 0
        %3274 = vmatpush1.bf16.msra.mxu0 %v3000
        %3275 = vmatprep.subr.bf16.mxu0 0
        %3276 = vmatpush1.bf16.msra.mxu0 %v2999
        %3277 = vmatprep.subr.bf16.mxu0 0
        %3278 = vmatpush1.bf16.msra.mxu0 %v2998
        %3279 = vmatprep.subr.bf16.mxu0 0
        %3280 = vmatpush2.bf16.msra.mxu0 %v3013
        %3281 = vmatprep.subr.bf16.mxu0 0
        %3282 = vmatpush2.bf16.msra.mxu0 %v3012
        %3283 = vmatprep.subr.bf16.mxu0 0
        %3284 = vmatpush2.bf16.msra.mxu0 %v3011
        %3285 = vmatprep.subr.bf16.mxu0 0
        %3286 = vmatpush2.bf16.msra.mxu0 %v3010
        %3287 = vmatprep.subr.bf16.mxu0 0
        %3288 = vmatpush2.bf16.msra.mxu0 %v3009
        %3289 = vmatprep.subr.bf16.mxu0 0
        %3290 = vmatpush2.bf16.msra.mxu0 %v3008
        %3291 = vmatprep.subr.bf16.mxu0 0
        %3292 = vmatpush2.bf16.msra.mxu0 %v3007
        %3293 = vmatprep.subr.bf16.mxu0 0
        %3294 = vmatpush2.bf16.msra.mxu0 %v3006
        %3295 = vmatprep.mubr.bf16.mxu0 %v2704
        %3296 = vmatmul.mubr.bf16.gmra.mxu0 %v2640
        %v3297 = vpop.f32.mrf.mxu0
        %v3298 = vadd.f32 %v3137, %v3297
        %v3299 = vpop.f32.mrf.mxu0
        %v3300 = vpop.f32.mrf.mxu0
        %v3301 = vadd.f32 %v3140, %v3300
        %v3302 = vpop.f32.mrf.mxu0
        %3303 = vmatprep.mubr.bf16.mxu0 %v2708
        %3304 = vmatmul.mubr.bf16.gmra.mxu0 %v2644
        %v3305 = vpop.f32.mrf.mxu0
        %v3306 = vadd.f32 %v3145, %v3305
        %v3307 = vpop.f32.mrf.mxu0
        %v3308 = vpop.f32.mrf.mxu0
        %v3309 = vadd.f32 %v3148, %v3308
        %v3310 = vpop.f32.mrf.mxu0
        %3311 = vmatprep.mubr.bf16.mxu0 %v2712
        %3312 = vmatmul.mubr.bf16.gmra.mxu0 %v2648
        %v3313 = vpop.f32.mrf.mxu0
        %v3314 = vadd.f32 %v3153, %v3313
        %v3315 = vpop.f32.mrf.mxu0
        %v3316 = vpop.f32.mrf.mxu0
        %v3317 = vadd.f32 %v3156, %v3316
        %v3318 = vpop.f32.mrf.mxu0
        %3319 = vmatprep.mubr.bf16.mxu0 %v2716
        %3320 = vmatmul.mubr.bf16.gmra.mxu0 %v2652
        %v3321 = vpop.f32.mrf.mxu0
        %v3322 = vadd.f32 %v3161, %v3321
        %v3323 = vpop.f32.mrf.mxu0
        %v3324 = vpop.f32.mrf.mxu0
        %v3325 = vadd.f32 %v3164, %v3324
        %v3326 = vpop.f32.mrf.mxu0
        %3327 = vmatprep.mubr.bf16.mxu0 %v2720
        %3328 = vmatmul.mubr.bf16.gmra.mxu0 %v2656
        %v3329 = vpop.f32.mrf.mxu0
        %v3330 = vadd.f32 %v3169, %v3329
        %v3331 = vpop.f32.mrf.mxu0
        %v3332 = vpop.f32.mrf.mxu0
        %v3333 = vadd.f32 %v3172, %v3332
        %v3334 = vpop.f32.mrf.mxu0
        %3335 = vmatprep.mubr.bf16.mxu0 %v2724
        %3336 = vmatmul.mubr.bf16.gmra.mxu0 %v2660
        %v3337 = vpop.f32.mrf.mxu0
        %v3338 = vadd.f32 %v3177, %v3337
        %v3339 = vpop.f32.mrf.mxu0
        %v3340 = vpop.f32.mrf.mxu0
        %v3341 = vadd.f32 %v3180, %v3340
        %v3342 = vpop.f32.mrf.mxu0
        %3343 = vmatprep.mubr.bf16.mxu0 %v2728
        %3344 = vmatmul.mubr.bf16.gmra.mxu0 %v2664
        %v3345 = vpop.f32.mrf.mxu0
        %v3346 = vadd.f32 %v3185, %v3345
        %v3347 = vpop.f32.mrf.mxu0
        %v3348 = vpop.f32.mrf.mxu0
        %v3349 = vadd.f32 %v3188, %v3348
        %v3350 = vpop.f32.mrf.mxu0
        %3351 = vmatprep.mubr.bf16.mxu0 %v2732
        %3352 = vmatmul.mubr.bf16.gmra.mxu0 %v2668
        %v3353 = vpop.f32.mrf.mxu0
        %v3354 = vadd.f32 %v3193, %v3353
        %v3355 = vpop.f32.mrf.mxu0
        %v3356 = vpop.f32.mrf.mxu0
        %v3357 = vadd.f32 %v3196, %v3356
        %v3358 = vpop.f32.mrf.mxu0
        %3359 = vmatprep.mubr.bf16.mxu0 %v2736
        %3360 = vmatmul.mubr.bf16.gmra.mxu0 %v2672
        %v3361 = vpop.f32.mrf.mxu0
        %v3362 = vadd.f32 %v3201, %v3361
        %v3363 = vpop.f32.mrf.mxu0
        %v3364 = vpop.f32.mrf.mxu0
        %v3365 = vadd.f32 %v3204, %v3364
        %v3366 = vpop.f32.mrf.mxu0
        %3367 = vmatprep.mubr.bf16.mxu0 %v2740
        %3368 = vmatmul.mubr.bf16.gmra.mxu0 %v2676
        %v3369 = vpop.f32.mrf.mxu0
        %v3370 = vadd.f32 %v3209, %v3369
        %v3371 = vpop.f32.mrf.mxu0
        %v3372 = vpop.f32.mrf.mxu0
        %v3373 = vadd.f32 %v3212, %v3372
        %v3374 = vpop.f32.mrf.mxu0
        %3375 = vmatprep.mubr.bf16.mxu0 %v2744
        %3376 = vmatmul.mubr.bf16.gmra.mxu0 %v2680
        %v3377 = vpop.f32.mrf.mxu0
        %v3378 = vadd.f32 %v3217, %v3377
        %v3379 = vpop.f32.mrf.mxu0
        %v3380 = vpop.f32.mrf.mxu0
        %v3381 = vadd.f32 %v3220, %v3380
        %v3382 = vpop.f32.mrf.mxu0
        %3383 = vmatprep.mubr.bf16.mxu0 %v2748
        %3384 = vmatmul.mubr.bf16.gmra.mxu0 %v2684
        %v3385 = vpop.f32.mrf.mxu0
        %v3386 = vadd.f32 %v3225, %v3385
        %v3387 = vpop.f32.mrf.mxu0
        %v3388 = vpop.f32.mrf.mxu0
        %v3389 = vadd.f32 %v3228, %v3388
        %v3390 = vpop.f32.mrf.mxu0
        %3391 = vmatprep.mubr.bf16.mxu0 %v2752
        %3392 = vmatmul.mubr.bf16.gmra.mxu0 %v2688
        %v3393 = vpop.f32.mrf.mxu0
        %v3394 = vadd.f32 %v3233, %v3393
        %v3395 = vpop.f32.mrf.mxu0
        %v3396 = vpop.f32.mrf.mxu0
        %v3397 = vadd.f32 %v3236, %v3396
        %v3398 = vpop.f32.mrf.mxu0
        %3399 = vmatprep.mubr.bf16.mxu0 %v2756
        %3400 = vmatmul.mubr.bf16.gmra.mxu0 %v2692
        %v3401 = vpop.f32.mrf.mxu0
        %v3402 = vadd.f32 %v3241, %v3401
        %v3403 = vpop.f32.mrf.mxu0
        %v3404 = vpop.f32.mrf.mxu0
        %v3405 = vadd.f32 %v3244, %v3404
        %v3406 = vpop.f32.mrf.mxu0
        %3407 = vmatprep.mubr.bf16.mxu0 %v2760
        %3408 = vmatmul.mubr.bf16.gmra.mxu0 %v2696
        %v3409 = vpop.f32.mrf.mxu0
        %v3410 = vadd.f32 %v3249, %v3409
        %v3411 = vpop.f32.mrf.mxu0
        %v3412 = vpop.f32.mrf.mxu0
        %v3413 = vadd.f32 %v3252, %v3412
        %v3414 = vpop.f32.mrf.mxu0
        %3415 = vmatprep.mubr.bf16.mxu0 %v2764
        %3416 = vmatmul.mubr.bf16.gmra.mxu0 %v2700
        %v3417 = vpop.f32.mrf.mxu0
        %v3418 = vadd.f32 %v3257, %v3417
        %v3419 = vpop.f32.mrf.mxu0
        %v3420 = vpop.f32.mrf.mxu0
        %v3421 = vadd.f32 %v3260, %v3420
        %v3422 = vpop.f32.mrf.mxu0
        %3423 = vdwg.mxu0
        %3424 = vmatprep.subr.bf16.mxu0 0
        %3425 = vmatpush1.bf16.msra.mxu0 0
        %3426 = vmatprep.subr.bf16.mxu0 0
        %3427 = vmatpush1.bf16.msra.mxu0 0
        %3428 = vmatprep.subr.bf16.mxu0 0
        %3429 = vmatpush1.bf16.msra.mxu0 0
        %3430 = vmatprep.subr.bf16.mxu0 0
        %3431 = vmatpush1.bf16.msra.mxu0 0
        %3432 = vmatprep.subr.bf16.mxu0 0
        %3433 = vmatpush1.bf16.msra.mxu0 %v3017
        %3434 = vmatprep.subr.bf16.mxu0 0
        %3435 = vmatpush1.bf16.msra.mxu0 %v3016
        %3436 = vmatprep.subr.bf16.mxu0 0
        %3437 = vmatpush1.bf16.msra.mxu0 %v3015
        %3438 = vmatprep.subr.bf16.mxu0 0
        %3439 = vmatpush1.bf16.msra.mxu0 %v3014
        %3440 = vmatprep.subr.bf16.mxu0 0
        %3441 = vmatpush2.bf16.msra.mxu0 0
        %3442 = vmatprep.subr.bf16.mxu0 0
        %3443 = vmatpush2.bf16.msra.mxu0 0
        %3444 = vmatprep.subr.bf16.mxu0 0
        %3445 = vmatpush2.bf16.msra.mxu0 0
        %3446 = vmatprep.subr.bf16.mxu0 0
        %3447 = vmatpush2.bf16.msra.mxu0 0
        %3448 = vmatprep.subr.bf16.mxu0 0
        %3449 = vmatpush2.bf16.msra.mxu0 0
        %3450 = vmatprep.subr.bf16.mxu0 0
        %3451 = vmatpush2.bf16.msra.mxu0 0
        %3452 = vmatprep.subr.bf16.mxu0 0
        %3453 = vmatpush2.bf16.msra.mxu0 0
        %3454 = vmatprep.subr.bf16.mxu0 0
        %3455 = vmatpush2.bf16.msra.mxu0 0
        %3456 = vmatprep.mubr.bf16.mxu0 0
        %3457 = vmatmul.mubr.bf16.gmra.mxu0 %v3055
        %v3458 = vpop.f32.mrf.mxu0
        %v3459 = vadd.f32 %v3298, %v3458
        %v3460 = vpop.f32.mrf.mxu0
        %v3461 = vpop.f32.mrf.mxu0
        %v3462 = vadd.f32 %v3301, %v3461
        %v3463 = vpop.f32.mrf.mxu0
        %3464 = vmatprep.mubr.bf16.mxu0 0
        %3465 = vmatmul.mubr.bf16.gmra.mxu0 %v3058
        %v3466 = vpop.f32.mrf.mxu0
        %v3467 = vadd.f32 %v3306, %v3466
        %v3468 = vpop.f32.mrf.mxu0
        %v3469 = vpop.f32.mrf.mxu0
        %v3470 = vadd.f32 %v3309, %v3469
        %v3471 = vpop.f32.mrf.mxu0
        %3472 = vmatprep.mubr.bf16.mxu0 0
        %3473 = vmatmul.mubr.bf16.gmra.mxu0 %v3061
        %v3474 = vpop.f32.mrf.mxu0
        %v3475 = vadd.f32 %v3314, %v3474
        %v3476 = vpop.f32.mrf.mxu0
        %v3477 = vpop.f32.mrf.mxu0
        %v3478 = vadd.f32 %v3317, %v3477
        %v3479 = vpop.f32.mrf.mxu0
        %3480 = vmatprep.mubr.bf16.mxu0 0
        %3481 = vmatmul.mubr.bf16.gmra.mxu0 %v3064
        %v3482 = vpop.f32.mrf.mxu0
        %v3483 = vadd.f32 %v3322, %v3482
        %v3484 = vpop.f32.mrf.mxu0
        %v3485 = vpop.f32.mrf.mxu0
        %v3486 = vadd.f32 %v3325, %v3485
        %v3487 = vpop.f32.mrf.mxu0
        %3488 = vmatprep.mubr.bf16.mxu0 0
        %3489 = vmatmul.mubr.bf16.gmra.mxu0 %v3067
        %v3490 = vpop.f32.mrf.mxu0
        %v3491 = vadd.f32 %v3330, %v3490
        %v3492 = vpop.f32.mrf.mxu0
        %v3493 = vpop.f32.mrf.mxu0
        %v3494 = vadd.f32 %v3333, %v3493
        %v3495 = vpop.f32.mrf.mxu0
        %3496 = vmatprep.mubr.bf16.mxu0 0
        %3497 = vmatmul.mubr.bf16.gmra.mxu0 %v3070
        %v3498 = vpop.f32.mrf.mxu0
        %v3499 = vadd.f32 %v3338, %v3498
        %v3500 = vpop.f32.mrf.mxu0
        %v3501 = vpop.f32.mrf.mxu0
        %v3502 = vadd.f32 %v3341, %v3501
        %v3503 = vpop.f32.mrf.mxu0
        %3504 = vmatprep.mubr.bf16.mxu0 0
        %3505 = vmatmul.mubr.bf16.gmra.mxu0 %v3073
        %v3506 = vpop.f32.mrf.mxu0
        %v3507 = vadd.f32 %v3346, %v3506
        %v3508 = vpop.f32.mrf.mxu0
        %v3509 = vpop.f32.mrf.mxu0
        %v3510 = vadd.f32 %v3349, %v3509
        %v3511 = vpop.f32.mrf.mxu0
        %3512 = vmatprep.mubr.bf16.mxu0 0
        %3513 = vmatmul.mubr.bf16.gmra.mxu0 %v3076
        %v3514 = vpop.f32.mrf.mxu0
        %v3515 = vadd.f32 %v3354, %v3514
        %v3516 = vpop.f32.mrf.mxu0
        %v3517 = vpop.f32.mrf.mxu0
        %v3518 = vadd.f32 %v3357, %v3517
        %v3519 = vpop.f32.mrf.mxu0
        %3520 = vmatprep.mubr.bf16.mxu0 0
        %3521 = vmatmul.mubr.bf16.gmra.mxu0 %v3079
        %v3522 = vpop.f32.mrf.mxu0
        %v3523 = vadd.f32 %v3362, %v3522
        %v3524 = vpop.f32.mrf.mxu0
        %v3525 = vpop.f32.mrf.mxu0
        %v3526 = vadd.f32 %v3365, %v3525
        %v3527 = vpop.f32.mrf.mxu0
        %3528 = vmatprep.mubr.bf16.mxu0 0
        %3529 = vmatmul.mubr.bf16.gmra.mxu0 %v3082
        %v3530 = vpop.f32.mrf.mxu0
        %v3531 = vadd.f32 %v3370, %v3530
        %v3532 = vpop.f32.mrf.mxu0
        %v3533 = vpop.f32.mrf.mxu0
        %v3534 = vadd.f32 %v3373, %v3533
        %v3535 = vpop.f32.mrf.mxu0
        %3536 = vmatprep.mubr.bf16.mxu0 0
        %3537 = vmatmul.mubr.bf16.gmra.mxu0 %v3085
        %v3538 = vpop.f32.mrf.mxu0
        %v3539 = vadd.f32 %v3378, %v3538
        %v3540 = vpop.f32.mrf.mxu0
        %v3541 = vpop.f32.mrf.mxu0
        %v3542 = vadd.f32 %v3381, %v3541
        %v3543 = vpop.f32.mrf.mxu0
        %3544 = vmatprep.mubr.bf16.mxu0 0
        %3545 = vmatmul.mubr.bf16.gmra.mxu0 %v3088
        %v3546 = vpop.f32.mrf.mxu0
        %v3547 = vadd.f32 %v3386, %v3546
        %v3548 = vpop.f32.mrf.mxu0
        %v3549 = vpop.f32.mrf.mxu0
        %v3550 = vadd.f32 %v3389, %v3549
        %v3551 = vpop.f32.mrf.mxu0
        %3552 = vmatprep.mubr.bf16.mxu0 0
        %3553 = vmatmul.mubr.bf16.gmra.mxu0 %v3091
        %v3554 = vpop.f32.mrf.mxu0
        %v3555 = vadd.f32 %v3394, %v3554
        %v3556 = vpop.f32.mrf.mxu0
        %v3557 = vpop.f32.mrf.mxu0
        %v3558 = vadd.f32 %v3397, %v3557
        %v3559 = vpop.f32.mrf.mxu0
        %3560 = vmatprep.mubr.bf16.mxu0 0
        %3561 = vmatmul.mubr.bf16.gmra.mxu0 %v3094
        %v3562 = vpop.f32.mrf.mxu0
        %v3563 = vadd.f32 %v3402, %v3562
        %v3564 = vpop.f32.mrf.mxu0
        %v3565 = vpop.f32.mrf.mxu0
        %v3566 = vadd.f32 %v3405, %v3565
        %v3567 = vpop.f32.mrf.mxu0
        %3568 = vmatprep.mubr.bf16.mxu0 0
        %3569 = vmatmul.mubr.bf16.gmra.mxu0 %v3097
        %v3570 = vpop.f32.mrf.mxu0
        %v3571 = vadd.f32 %v3410, %v3570
        %v3572 = vpop.f32.mrf.mxu0
        %v3573 = vpop.f32.mrf.mxu0
        %v3574 = vadd.f32 %v3413, %v3573
        %v3575 = vpop.f32.mrf.mxu0
        %3576 = vmatprep.mubr.bf16.mxu0 0
        %3577 = vmatmul.mubr.bf16.gmra.mxu0 %v3100
        %v3578 = vpop.f32.mrf.mxu0
        %v3579 = vadd.f32 %v3418, %v3578
        %v3580 = vpop.f32.mrf.mxu0
        %v3581 = vpop.f32.mrf.mxu0
        %v3582 = vadd.f32 %v3421, %v3581
        %v3583 = vpop.f32.mrf.mxu0
        %3584 = vdwg.mxu0
        %v3585 = vld [vmem:[%s2] sm:$0x1]
        %v3587 = vlaneseq
        %v3588 = vshrl.u32 %v3587, 7
        %v3589 = vsub.s32 0, %v3588
        %v3590 = vrot.slane %v3585, %v3589
        %v3592 = vmul.f32 %v3459, %v3590
        %v3593 = vmul.f32 %v3462, %v3590
        %v3594 = vmul.f32 %v3467, %v3590
        %v3595 = vmul.f32 %v3470, %v3590
        %v3596 = vmul.f32 %v3475, %v3590
        %v3597 = vmul.f32 %v3478, %v3590
        %v3598 = vmul.f32 %v3483, %v3590
        %v3599 = vmul.f32 %v3486, %v3590
        %v3600 = vmul.f32 %v3491, %v3590
        %v3601 = vmul.f32 %v3494, %v3590
        %v3602 = vmul.f32 %v3499, %v3590
        %v3603 = vmul.f32 %v3502, %v3590
        %v3604 = vmul.f32 %v3507, %v3590
        %v3605 = vmul.f32 %v3510, %v3590
        %v3606 = vmul.f32 %v3515, %v3590
        %v3607 = vmul.f32 %v3518, %v3590
        %v3608 = vmul.f32 %v3523, %v3590
        %v3609 = vmul.f32 %v3526, %v3590
        %v3610 = vmul.f32 %v3531, %v3590
        %v3611 = vmul.f32 %v3534, %v3590
        %v3612 = vmul.f32 %v3539, %v3590
        %v3613 = vmul.f32 %v3542, %v3590
        %v3614 = vmul.f32 %v3547, %v3590
        %v3615 = vmul.f32 %v3550, %v3590
        %v3616 = vmul.f32 %v3555, %v3590
        %v3617 = vmul.f32 %v3558, %v3590
        %v3618 = vmul.f32 %v3563, %v3590
        %v3619 = vmul.f32 %v3566, %v3590
        %v3620 = vmul.f32 %v3571, %v3590
        %v3621 = vmul.f32 %v3574, %v3590
        %v3622 = vmul.f32 %v3579, %v3590
        %v3623 = vmul.f32 %v3582, %v3590
        %v3624 = vld [vmem:[%s3] sm:$0x1]
        %v3626 = vlaneseq
        %v3627 = vshrl.u32 %v3626, 7
        %v3628 = vsub.s32 0, %v3627
        %v3629 = vrot.slane %v3624, %v3628
        %v3631 = vadd.f32 %v3592, %v3629
        %v3632 = vadd.f32 %v3593, %v3629
        %v3633 = vadd.f32 %v3594, %v3629
        %v3634 = vadd.f32 %v3595, %v3629
        %v3635 = vadd.f32 %v3596, %v3629
        %v3636 = vadd.f32 %v3597, %v3629
        %v3637 = vadd.f32 %v3598, %v3629
        %v3638 = vadd.f32 %v3599, %v3629
        %v3639 = vadd.f32 %v3600, %v3629
        %v3640 = vadd.f32 %v3601, %v3629
        %v3641 = vadd.f32 %v3602, %v3629
        %v3642 = vadd.f32 %v3603, %v3629
        %v3643 = vadd.f32 %v3604, %v3629
        %v3644 = vadd.f32 %v3605, %v3629
        %v3645 = vadd.f32 %v3606, %v3629
        %v3646 = vadd.f32 %v3607, %v3629
        %v3647 = vadd.f32 %v3608, %v3629
        %v3648 = vadd.f32 %v3609, %v3629
        %v3649 = vadd.f32 %v3610, %v3629
        %v3650 = vadd.f32 %v3611, %v3629
        %v3651 = vadd.f32 %v3612, %v3629
        %v3652 = vadd.f32 %v3613, %v3629
        %v3653 = vadd.f32 %v3614, %v3629
        %v3654 = vadd.f32 %v3615, %v3629
        %v3655 = vadd.f32 %v3616, %v3629
        %v3656 = vadd.f32 %v3617, %v3629
        %v3657 = vadd.f32 %v3618, %v3629
        %v3658 = vadd.f32 %v3619, %v3629
        %v3659 = vadd.f32 %v3620, %v3629
        %v3660 = vadd.f32 %v3621, %v3629
        %v3661 = vadd.f32 %v3622, %v3629
        %v3662 = vadd.f32 %v3623, %v3629
        %v3663 = vld [vmem:[%s271] sm:$0xf]
        %v3664 = vld [vmem:[%s271 + $0x4] sm:$0xf]
        %v3665 = vld [vmem:[%s271 + $0x8] sm:$0xf]
        %v3666 = vld [vmem:[%s271 + $0xc] sm:$0xf]
        %v3667 = vld [vmem:[%s271 + $0x10] sm:$0xf]
        %v3668 = vld [vmem:[%s271 + $0x14] sm:$0xf]
        %v3669 = vld [vmem:[%s271 + $0x18] sm:$0xf]
        %v3670 = vld [vmem:[%s271 + $0x1c] sm:$0xf]
        %v3671 = vld [vmem:[%s271 + $0x20] sm:$0xf]
        %v3672 = vld [vmem:[%s271 + $0x24] sm:$0xf]
        %v3673 = vld [vmem:[%s271 + $0x28] sm:$0xf]
        %v3674 = vld [vmem:[%s271 + $0x2c] sm:$0xf]
        %v3675 = vld [vmem:[%s271 + $0x30] sm:$0xf]
        %v3676 = vld [vmem:[%s271 + $0x34] sm:$0xf]
        %v3677 = vld [vmem:[%s271 + $0x38] sm:$0xf]
        %v3678 = vld [vmem:[%s271 + $0x3c] sm:$0xf]
        %v3679 = vld [vmem:[%s271 + $0x40] sm:$0xf]
        %v3680 = vld [vmem:[%s271 + $0x44] sm:$0xf]
        %v3681 = vld [vmem:[%s271 + $0x48] sm:$0xf]
        %v3682 = vld [vmem:[%s271 + $0x4c] sm:$0xf]
        %v3683 = vld [vmem:[%s271 + $0x50] sm:$0xf]
        %v3684 = vld [vmem:[%s271 + $0x54] sm:$0xf]
        %v3685 = vld [vmem:[%s271 + $0x58] sm:$0xf]
        %v3686 = vld [vmem:[%s271 + $0x5c] sm:$0xf]
        %v3687 = vld [vmem:[%s271 + $0x60] sm:$0xf]
        %v3688 = vld [vmem:[%s271 + $0x64] sm:$0xf]
        %v3689 = vld [vmem:[%s271 + $0x68] sm:$0xf]
        %v3690 = vld [vmem:[%s271 + $0x6c] sm:$0xf]
        %v3691 = vld [vmem:[%s271 + $0x70] sm:$0xf]
        %v3692 = vld [vmem:[%s271 + $0x74] sm:$0xf]
        %v3693 = vld [vmem:[%s271 + $0x78] sm:$0xf]
        %v3694 = vld [vmem:[%s271 + $0x7c] sm:$0xf]
        %v3695 = vunpack.c.l.bf16 %v3663
        %v3696 = vunpack.c.l.bf16 %v3664
        %v3697 = vunpack.c.l.bf16 %v3665
        %v3698 = vunpack.c.l.bf16 %v3666
        %v3699 = vunpack.c.l.bf16 %v3667
        %v3700 = vunpack.c.l.bf16 %v3668
        %v3701 = vunpack.c.l.bf16 %v3669
        %v3702 = vunpack.c.l.bf16 %v3670
        %v3703 = vunpack.c.l.bf16 %v3671
        %v3704 = vunpack.c.l.bf16 %v3672
        %v3705 = vunpack.c.l.bf16 %v3673
        %v3706 = vunpack.c.l.bf16 %v3674
        %v3707 = vunpack.c.l.bf16 %v3675
        %v3708 = vunpack.c.l.bf16 %v3676
        %v3709 = vunpack.c.l.bf16 %v3677
        %v3710 = vunpack.c.l.bf16 %v3678
        %v3711 = vunpack.c.l.bf16 %v3679
        %v3712 = vunpack.c.l.bf16 %v3680
        %v3713 = vunpack.c.l.bf16 %v3681
        %v3714 = vunpack.c.l.bf16 %v3682
        %v3715 = vunpack.c.l.bf16 %v3683
        %v3716 = vunpack.c.l.bf16 %v3684
        %v3717 = vunpack.c.l.bf16 %v3685
        %v3718 = vunpack.c.l.bf16 %v3686
        %v3719 = vunpack.c.l.bf16 %v3687
        %v3720 = vunpack.c.l.bf16 %v3688
        %v3721 = vunpack.c.l.bf16 %v3689
        %v3722 = vunpack.c.l.bf16 %v3690
        %v3723 = vunpack.c.l.bf16 %v3691
        %v3724 = vunpack.c.l.bf16 %v3692
        %v3725 = vunpack.c.l.bf16 %v3693
        %v3726 = vunpack.c.l.bf16 %v3694
        %v3727 = vadd.f32 %v3631, %v3695
        %v3728 = vadd.f32 %v3632, %v3696
        %v3729 = vadd.f32 %v3633, %v3697
        %v3730 = vadd.f32 %v3634, %v3698
        %v3731 = vadd.f32 %v3635, %v3699
        %v3732 = vadd.f32 %v3636, %v3700
        %v3733 = vadd.f32 %v3637, %v3701
        %v3734 = vadd.f32 %v3638, %v3702
        %v3735 = vadd.f32 %v3639, %v3703
        %v3736 = vadd.f32 %v3640, %v3704
        %v3737 = vadd.f32 %v3641, %v3705
        %v3738 = vadd.f32 %v3642, %v3706
        %v3739 = vadd.f32 %v3643, %v3707
        %v3740 = vadd.f32 %v3644, %v3708
        %v3741 = vadd.f32 %v3645, %v3709
        %v3742 = vadd.f32 %v3646, %v3710
        %v3743 = vadd.f32 %v3647, %v3711
        %v3744 = vadd.f32 %v3648, %v3712
        %v3745 = vadd.f32 %v3649, %v3713
        %v3746 = vadd.f32 %v3650, %v3714
        %v3747 = vadd.f32 %v3651, %v3715
        %v3748 = vadd.f32 %v3652, %v3716
        %v3749 = vadd.f32 %v3653, %v3717
        %v3750 = vadd.f32 %v3654, %v3718
        %v3751 = vadd.f32 %v3655, %v3719
        %v3752 = vadd.f32 %v3656, %v3720
        %v3753 = vadd.f32 %v3657, %v3721
        %v3754 = vadd.f32 %v3658, %v3722
        %v3755 = vadd.f32 %v3659, %v3723
        %v3756 = vadd.f32 %v3660, %v3724
        %v3757 = vadd.f32 %v3661, %v3725
        %v3758 = vadd.f32 %v3662, %v3726
        %v3759 = vmax.f32 %v3727, 0.0
        %v3760 = vmax.f32 %v3728, 0.0
        %v3761 = vmax.f32 %v3729, 0.0
        %v3762 = vmax.f32 %v3730, 0.0
        %v3763 = vmax.f32 %v3731, 0.0
        %v3764 = vmax.f32 %v3732, 0.0
        %v3765 = vmax.f32 %v3733, 0.0
        %v3766 = vmax.f32 %v3734, 0.0
        %v3767 = vmax.f32 %v3735, 0.0
        %v3768 = vmax.f32 %v3736, 0.0
        %v3769 = vmax.f32 %v3737, 0.0
        %v3770 = vmax.f32 %v3738, 0.0
        %v3771 = vmax.f32 %v3739, 0.0
        %v3772 = vmax.f32 %v3740, 0.0
        %v3773 = vmax.f32 %v3741, 0.0
        %v3774 = vmax.f32 %v3742, 0.0
        %v3775 = vmax.f32 %v3743, 0.0
        %v3776 = vmax.f32 %v3744, 0.0
        %v3777 = vmax.f32 %v3745, 0.0
        %v3778 = vmax.f32 %v3746, 0.0
        %v3779 = vmax.f32 %v3747, 0.0
        %v3780 = vmax.f32 %v3748, 0.0
        %v3781 = vmax.f32 %v3749, 0.0
        %v3782 = vmax.f32 %v3750, 0.0
        %v3783 = vmax.f32 %v3751, 0.0
        %v3784 = vmax.f32 %v3752, 0.0
        %v3785 = vmax.f32 %v3753, 0.0
        %v3786 = vmax.f32 %v3754, 0.0
        %v3787 = vmax.f32 %v3755, 0.0
        %v3788 = vmax.f32 %v3756, 0.0
        %v3789 = vmax.f32 %v3757, 0.0
        %v3790 = vmax.f32 %v3758, 0.0
        %3791 = vst.msk [vmem:[%s257] sm:$0xff] %vm2509, %v3759
        %3792 = vst.msk [vmem:[%s257 + $0x8] sm:$0xff] %vm2509, %v3760
        %3793 = vst.msk [vmem:[%s257 + $0x10] sm:$0xff] %vm2509, %v3761
        %3794 = vst.msk [vmem:[%s257 + $0x18] sm:$0xff] %vm2509, %v3762
        %3795 = vst.msk [vmem:[%s257 + $0x20] sm:$0xff] %vm2509, %v3763
        %3796 = vst.msk [vmem:[%s257 + $0x28] sm:$0xff] %vm2509, %v3764
        %3797 = vst.msk [vmem:[%s257 + $0x30] sm:$0xff] %vm2509, %v3765
        %3798 = vst.msk [vmem:[%s257 + $0x38] sm:$0xff] %vm2509, %v3766
        %3799 = vst.msk [vmem:[%s257 + $0x40] sm:$0xff] %vm2509, %v3767
        %3800 = vst.msk [vmem:[%s257 + $0x48] sm:$0xff] %vm2509, %v3768
        %3801 = vst.msk [vmem:[%s257 + $0x50] sm:$0xff] %vm2509, %v3769
        %3802 = vst.msk [vmem:[%s257 + $0x58] sm:$0xff] %vm2509, %v3770
        %3803 = vst.msk [vmem:[%s257 + $0x60] sm:$0xff] %vm2509, %v3771
        %3804 = vst.msk [vmem:[%s257 + $0x68] sm:$0xff] %vm2509, %v3772
        %3805 = vst.msk [vmem:[%s257 + $0x70] sm:$0xff] %vm2509, %v3773
        %3806 = vst.msk [vmem:[%s257 + $0x78] sm:$0xff] %vm2509, %v3774
        %3807 = vst.msk [vmem:[%s257 + $0x80] sm:$0xff] %vm2509, %v3775
        %3808 = vst.msk [vmem:[%s257 + $0x88] sm:$0xff] %vm2509, %v3776
        %3809 = vst.msk [vmem:[%s257 + $0x90] sm:$0xff] %vm2509, %v3777
        %3810 = vst.msk [vmem:[%s257 + $0x98] sm:$0xff] %vm2509, %v3778
        %3811 = vst.msk [vmem:[%s257 + $0xa0] sm:$0xff] %vm2509, %v3779
        %3812 = vst.msk [vmem:[%s257 + $0xa8] sm:$0xff] %vm2509, %v3780
        %3813 = vst.msk [vmem:[%s257 + $0xb0] sm:$0xff] %vm2509, %v3781
        %3814 = vst.msk [vmem:[%s257 + $0xb8] sm:$0xff] %vm2509, %v3782
        %3815 = vst.msk [vmem:[%s257 + $0xc0] sm:$0xff] %vm2509, %v3783
        %3816 = vst.msk [vmem:[%s257 + $0xc8] sm:$0xff] %vm2509, %v3784
        %3817 = vst.msk [vmem:[%s257 + $0xd0] sm:$0xff] %vm2509, %v3785
        %3818 = vst.msk [vmem:[%s257 + $0xd8] sm:$0xff] %vm2509, %v3786
        %3819 = vst.msk [vmem:[%s257 + $0xe0] sm:$0xff] %vm2509, %v3787
        %3820 = vst.msk [vmem:[%s257 + $0xe8] sm:$0xff] %vm2509, %v3788
        %3821 = vst.msk [vmem:[%s257 + $0xf0] sm:$0xff] %vm2509, %v3789
        %3822 = vst.msk [vmem:[%s257 + $0xf8] sm:$0xff] %vm2509, %v3790
        %s3823 = sand.u32 %s158, 1
        %s3824 = scalar_lea.sflag [#allocation3], %s3823
        %s3825 = sand.u32 %s158, 1
        %s3826 = smul.addr %s3825, 256
        %s3827 = scalar_lea.vmem [#allocation2], %s3826
        // Predicated region
        $region41: #{_lambda_.5} parent=39 // pred_check
          %p3828 = pneg %p168
        $region42: #{_lambda_.5} parent=39 // pred_check_branch
          %3830 = sbr.rel (%p3828) target = $region44
        $region43: #{_lambda_.5} parent=39 // pred_region
          %s3831 = smul.u32 32, %s24
          %s3833 = ssub.s32 4096, 4096
          %3834 = vsyncadd %s3824, %s3833
          %s3835 = smul.addr %s23, 128
          %s3836 = sadd.s32 %s3831, %s3835
          %s3837 = smul.addr %s3836, 128
          %s3838 = scalar_lea.hbm %s5, %s3837
          %s3839 = sshll.u32 %s3827, 4
          %s3840 = int_to_ptr.vmem [resolvable:$true] %s3839
          %3845 = dma.vmem_to_hbm [thread:$0]  %s3840, 4096, %s3838, %s3824, 128, 128, 8
        $region44: #{_lambda_.5} parent=39 // pred_fallthru
          _
      $region40: #{_lambda_.5} parent=5 // pred_fallthru
        _
      %p3846 = scmp.le.s32.totalorder 2, %s14
      // Predicated region
      $region45: #{_lambda_.5} parent=5 // pred_check
        %p3847 = pneg %p3846
      $region46: #{_lambda_.5} parent=5 // pred_check_branch
        %3849 = sbr.rel (%p3847) target = $region48
      $region47: #{_lambda_.5} parent=5 // pred_region
        %s3850 = ssub.s32 %s14, 2
        // Predicated region
        $region49: #{_lambda_.5} parent=47 // pred_check
          %p3851 = pneg %p174
        $region50: #{_lambda_.5} parent=47 // pred_check_branch
          %3853 = sbr.rel (%p3851) target = $region52
        $region51: #{_lambda_.5} parent=47 // pred_region
          %s3854 = sand.u32 %s159, 1
          %s3855 = scalar_lea.sflag [#allocation3], %s3854
          %s3856 = sand.u32 %s159, 1
          %s3857 = smul.addr %s3856, 256
          %s3858 = scalar_lea.vmem [#allocation2], %s3857
          %3859 = dma.done %s3855, 4096
        $region52: #{_lambda_.5} parent=47 // pred_fallthru
          _
      $region48: #{_lambda_.5} parent=5 // pred_fallthru
        _
    $region6: #{_lambda_.5} parent=1 // loop_footer
      %s18 = sadd.s32 1, %s14
    $region7: #{_lambda_.5} parent=1 // loop_footer_branch
      %13 = sbr.rel target = $region3
    $region8: #{_lambda_.5} parent=1 // loop_exit
      _
    %3860 = vsyncpa [#allocation3], 1
    %s3861 = scalar_lea.sflag [#allocation3], 1
    %3862 = vsyncpa %s3861, 1

</llo_original>
